<compile_context>
chip_gen: v6e
topology: v6e:2x2x1
jax: 0.10.0
libtpu: 0.0.40
codegen_flags: <defaults>
</compile_context>

<pallas_src>
import functools

import jax
import jax.numpy as jnp
import numpy as np
from jax.experimental import pallas as pl
from jax.experimental.pallas import tpu as pltpu

LANE = 128  # lane-dense width of the stored output slab / padded heads


# ------------------------------------------------------------------ kernel ---

def _fused_kernel(x_ref, wgat_ref, ea_ref, masks_ref, vecs_ref,
                  wsq_ref, wlane_ref, vlane_ref, g_ref, o_ref,
                  *, n_convs, fh, max_len):
    f32, bf16 = jnp.float32, jnp.bfloat16
    nc = n_convs
    ASRC, BGAT, BLIN = 0, 2 * nc, 4 * nc          # rows in the packed vector slab
    B1 = BLIN + (nc - 1)
    B2 = B1 + 1

    def vec(r):                                   # (1, Fh) row of the packed vector slab
        return vecs_ref[r:r + 1, :]

    def gat(x_in, layer, mask):
        """Dense single-head GATConv (+bias, ReLU); att_dst folded into W host-side."""
        h_aug = jnp.dot(x_in.astype(bf16), wgat_ref[layer],
                        preferred_element_type=f32)                  # (N, Fh+pad)
        h = h_aug[:, :fh]                                            # (N, Fh)  f32
        s_dst = h_aug[:, fh:fh + 1]                                  # (N, 1) — folded col
        s_src = jax.lax.dot_general(vec(ASRC + layer), h, (((1,), (1,)), ((), ())),
                                    preferred_element_type=f32)      # (1, N)
        e = s_dst + s_src + ea_ref[layer]                            # -1e30 mask pre-folded
        e = jnp.where(e > 0, e, 0.2 * e)                             # leaky_relu(0.2)
        m = jnp.max(e, axis=-1, keepdims=True)
        p = jnp.exp(e - m) * mask                                    # zero fully-masked rows
        denom = jnp.sum(p, axis=-1, keepdims=True)
        attn = p / jnp.where(denom > 0, denom, 1.0)                  # exact divide
        out = jnp.dot(attn.astype(bf16), h.astype(bf16),
                      preferred_element_type=f32) + vec(BGAT + layer)
        return jnp.maximum(out, 0.0)

    mask_up = masks_ref[0]
    mask_dn = masks_ref[1]

    # ---------------- TransposeTREE (GNN), all node state stays in VMEM ----------------
    x = x_ref[...]                                                   # (N, Fh) f32
    for l in range(nc):                                              # toup GATs + relu
        x = gat(x, l, mask_up)
    x_to_up = x

    # matches the reference indexing: todown[0] is reused at loop i == 0 and
    # todown[n_convs-1] is never applied (faithful to the PyTorch source).
    x = gat(x_to_up, nc + 0, mask_dn) + x_to_up
    for i in range(nc - 1):
        x = jnp.maximum(jnp.dot(x.astype(bf16), wsq_ref[i],
                                preferred_element_type=f32) + vec(BLIN + i), 0.0)
        x = gat(x, nc + i, mask_dn) + x_to_up
    final_emb = x                                                    # (N, Fh)
    femb_bf = final_emb.astype(bf16)

    # node-level prediction head (lin[-1]), output lane-padded to 128
    pred_nodes = (jnp.dot(femb_bf, wlane_ref[0],
                          preferred_element_type=f32) + vlane_ref[0:1, :])   # (N, LANE)

    # per-graph zero-pad re-layout: block-diagonal 0/1 gather matmul (exact zeros on pads)
    G = g_ref[...]                                                   # (R, N) bf16
    emb_rows = jnp.dot(G, femb_bf, preferred_element_type=f32)                   # (R, Fh)
    pred_rows = jnp.dot(G, pred_nodes.astype(bf16), preferred_element_type=f32)  # (R, LANE)

    # ---------------- transfer MLP head (on zero-padded embeddings, like the reference) --
    h1 = jnp.maximum(jnp.dot(emb_rows.astype(bf16), wsq_ref[nc - 1],
                             preferred_element_type=f32) + vec(B1), 0.0)
    h2 = jnp.maximum(jnp.dot(h1.astype(bf16), wsq_ref[nc],
                             preferred_element_type=f32) + vec(B2), 0.0)
    t = (jnp.dot(h2.astype(bf16), wlane_ref[1],
                 preferred_element_type=f32) + vlane_ref[1:2, :])            # (R, LANE)

    # ---- subtract-first-row epilogue for BOTH heads; one lane-dense (2R,128) store ----
    both = jnp.concatenate([t, pred_rows], axis=0)                   # (2R, LANE)
    lane = both.shape[-1]
    b3d = both.reshape(both.shape[0] // max_len, max_len, lane)      # L == sublane tile
    o_ref[...] = (b3d - b3d[:, 0:1, :]).reshape(both.shape[0], lane)


# ------------------------------------------------------------ pallas wrapper --

def make_fused_forward(A, *, n_graphs, node_pad, inst_per_block, n_blocks):
    nc, L, Fh = A["n_convs"], A["max_len"], A["conv_hi_dim"]
    N = inst_per_block * node_pad             # padded nodes per grid step  (128)
    R = inst_per_block * n_graphs * L         # padded output rows per grid step (128)
    Faug = Fh + 8
    n_gat = 2 * nc

    kernel = functools.partial(_fused_kernel, n_convs=nc, fh=Fh, max_len=L)

    # advisory cost estimate for the XLA scheduler
    flops_blk = (n_gat * (2 * N * Fh * Faug + 2 * Fh * N + 2 * N * N * Fh)
                 + (nc - 1) * 2 * N * Fh * Fh
                 + 2 * N * Fh * LANE
                 + 2 * R * N * Fh + 2 * R * N * LANE
                 + 2 * (2 * R * Fh * Fh) + 2 * R * Fh * LANE)
    cost = pl.CostEstimate(
        flops=int(n_blocks * flops_blk),
        transcendentals=int(n_blocks * n_gat * N * N),
        bytes_accessed=int(n_blocks * (N * Fh * 4 + 2 * R * LANE * 4)
                           + (n_gat + 2) * N * N * 4))

    @jax.jit
    def fwd(x_blocks, wgat, ea, masks, vecs, wsq, wlane, vlane, G):
        out = pl.pallas_call(
            kernel,
            grid=(n_blocks,),
            out_shape=jax.ShapeDtypeStruct((n_blocks, 2 * R, LANE), jnp.float32),
            in_specs=[
                pl.BlockSpec((None, N, Fh), lambda i: (i, 0, 0)),   # per-block node feats
                pl.BlockSpec(wgat.shape, lambda i: (0, 0, 0)),      # shared — stays resident
                pl.BlockSpec(ea.shape, lambda i: (0, 0, 0)),
                pl.BlockSpec(masks.shape, lambda i: (0, 0, 0)),
                pl.BlockSpec(vecs.shape, lambda i: (0, 0)),
                pl.BlockSpec(wsq.shape, lambda i: (0, 0, 0)),
                pl.BlockSpec(wlane.shape, lambda i: (0, 0, 0)),
                pl.BlockSpec(vlane.shape, lambda i: (0, 0)),
                pl.BlockSpec(G.shape, lambda i: (0, 0)),
            ],
            out_specs=pl.BlockSpec((None, 2 * R, LANE), lambda i: (i, 0, 0)),
            compiler_params=pltpu.CompilerParams(
                dimension_semantics=("parallel",),
                vmem_limit_bytes=32 * 1024 * 1024),
            cost_estimate=cost,
        )(x_blocks, wgat, ea, masks, vecs, wsq, wlane, vlane, G)

        n_inst = n_blocks * inst_per_block
        transfer = out[:, :R, 0].reshape(n_inst, n_graphs, L)
        pred = out[:, R:, 0].reshape(n_inst, n_graphs, L)
        return transfer, pred

    return fwd


# ------------------------------------------------------------------ JAX glue --

def dense_edge_alpha(data, vedge, down, with_self_loops):
    """Scatter per-edge attention scalars (edge_attr @ W_edge @ att_edge) to [Np, Np]."""
    Np = data["Np"]
    per_edge = data["edge_attr"] @ vedge                                 # (E,)
    if down:   # reversed edges: target = src_up, source = dst_up
        mat = jnp.zeros((Np, Np), jnp.float32).at[data["src"], data["dst"]].set(per_edge)
    else:      # target = dst_up, source = src_up
        mat = jnp.zeros((Np, Np), jnp.float32).at[data["dst"], data["src"]].set(per_edge)
    if with_self_loops:   # PyG add_self_loops(fill_value='mean')
        loop_alpha = data["loop_attr"] @ vedge
        mat = mat.at[data["idx"], data["idx"]].set(loop_alpha)
    return mat


def build_data(key, A):
    sizes = [7, 5]                       # nodes per graph in one batch
    N_total = sum(sizes)
    Np = ((N_total + 7) // 8) * 8        # sublane-pad node count
    offsets = np.cumsum([0] + sizes)
    src, dst = [], []
    for g, n in enumerate(sizes):        # chain trees: edge (child k+1) -> (parent k)
        o = int(offsets[g])
        for k in range(n - 1):
            src.append(o + k + 1)
            dst.append(o + k)
    src = jnp.asarray(src, jnp.int32)
    dst = jnp.asarray(dst, jnp.int32)
    E = int(src.shape[0])

    edge_attr = jax.random.normal(key, (E, A["edge_dim"]), jnp.float32)

    idx = jnp.arange(N_total, dtype=jnp.int32)
    mask_up = (jnp.zeros((Np, Np), jnp.float32)
               .at[dst, src].set(1.0)
               .at[idx, idx].set(1.0))                                   # add_self_loops=True
    mask_down = jnp.zeros((Np, Np), jnp.float32).at[src, dst].set(1.0)   # add_self_loops=False

    # self-loop edge attr = per-target mean of incoming edge attrs (fill_value='mean')
    sums = jnp.zeros((N_total, A["edge_dim"]), jnp.float32).at[dst].add(edge_attr)
    counts = jnp.zeros((N_total,), jnp.float32).at[dst].add(1.0)
    loop_attr = sums / jnp.maximum(counts, 1.0)[:, None]

    return dict(sizes=sizes, N_total=N_total, Np=Np, src=src, dst=dst, idx=idx,
                edge_attr=edge_attr, loop_attr=loop_attr,
                mask_up=mask_up, mask_down=mask_down)


def init_params(key, A):
    def dense(k, shape, scale=0.3):
        return scale * jax.random.normal(k, shape, dtype=jnp.float32)

    keys = iter(jax.random.split(key, 64))
    Fh, ed = A["conv_hi_dim"], A["edge_dim"]
    params = {"toup": [], "todown": [], "lin": [], "transfer": {}}

    def gat_params(fi):
        W = dense(next(keys), (fi, Fh))
        if fi < Fh:                                   # pad input dim so layers stack
            W = jnp.concatenate([W, jnp.zeros((Fh - fi, Fh), jnp.float32)], axis=0)
        W_edge = dense(next(keys), (ed, Fh))
        att_edge = dense(next(keys), (1, Fh))
        return dict(W=W,
                    att_src=dense(next(keys), (1, Fh)),
                    att_dst=dense(next(keys), (1, Fh)),
                    bias=dense(next(keys), (1, Fh), 0.1),
                    vedge=(W_edge @ att_edge.reshape(Fh, 1)).reshape(ed))

    for l in range(A["n_convs"]):
        params["toup"].append(gat_params(A["conv_in_dim"] if l == 0 else Fh))
    for _ in range(A["n_convs"]):
        params["todown"].append(gat_params(Fh))

    for _ in range(A["n_convs"] - 1):
        params["lin"].append(dict(W=dense(next(keys), (Fh, Fh)),
                                  b=dense(next(keys), (1, Fh), 0.1)))
    Wlast = dense(next(keys), (Fh, A["conv_out_dim"]))
    blast = dense(next(keys), (1, A["conv_out_dim"]), 0.1)
    pad = LANE - A["conv_out_dim"]
    params["lin"].append(dict(
        W=jnp.concatenate([Wlast, jnp.zeros((Fh, pad), jnp.float32)], axis=1),
        b=jnp.concatenate([blast, jnp.zeros((1, pad), jnp.float32)], axis=1)))

    ti, th, to = A["transfer_mlp_in_dim"], A["transfer_mlp_hi_dim"], A["transfer_mlp_out_dim"]
    W3 = dense(next(keys), (th, to))
    b3 = dense(next(keys), (1, to), 0.1)
    padt = LANE - to
    params["transfer"] = dict(
        W1=dense(next(keys), (ti, th)), b1=dense(next(keys), (1, th), 0.1),
        W2=dense(next(keys), (th, th)), b2=dense(next(keys), (1, th), 0.1),
        W3=jnp.concatenate([W3, jnp.zeros((th, padt), jnp.float32)], axis=1),
        b3=jnp.concatenate([b3, jnp.zeros((1, padt), jnp.float32)], axis=1))
    return params


def build_fused_inputs(params, data, A, inst_per_block):
    """One-time setup: pack everything into 8 shared slabs (block-diagonal over instances)."""
    Np, Fh, nc = data["Np"], A["conv_hi_dim"], A["n_convs"]
    B, L = len(data["sizes"]), A["max_len"]
    Faug = Fh + 8
    eye = np.eye(inst_per_block, dtype=np.float32)

    mask_up1 = np.asarray(data["mask_up"], np.float32)
    mask_dn1 = np.asarray(data["mask_down"], np.float32)
    mask_up = np.kron(eye, mask_up1)
    mask_dn = np.kron(eye, mask_dn1)
    masks = jnp.asarray(np.stack([mask_up, mask_dn]), jnp.float32)       # (2, N, N)

    # per-layer dense edge-alpha (params-only, hoisted), block-diag tiled, -inf mask folded
    ea_layers = []
    for p in params["toup"]:
        ea1 = np.asarray(dense_edge_alpha(data, p["vedge"], down=False,
                                          with_self_loops=True), np.float32)
        ea_layers.append(np.kron(eye, ea1) + (mask_up - 1.0) * 1e30)
    for p in params["todown"]:
        ea1 = np.asarray(dense_edge_alpha(data, p["vedge"], down=True,
                                          with_self_loops=False), np.float32)
        ea_layers.append(np.kron(eye, ea1) + (mask_dn - 1.0) * 1e30)
    ea = jnp.asarray(np.stack(ea_layers), jnp.float32)                   # (2nc, N, N)

    # GAT weights with att_dst folded in as an extra column (lane-padded), bf16 for the MXU
    def waug(p):
        col = p["W"] @ p["att_dst"].reshape(Fh, 1)
        padc = jnp.zeros((Fh, Faug - Fh - 1), jnp.float32)
        return jnp.concatenate([p["W"], col, padc], axis=1)
    gat_layers = params["toup"] + params["todown"]
    wgat = jnp.stack([waug(p) for p in gat_layers]).astype(jnp.bfloat16)  # (2nc, Fh, Faug)

    # every (1,Fh) vector in ONE slab: att_src x6, gat bias x6, lin bias x2, MLP b1, b2
    t = params["transfer"]
    vecs = jnp.stack([p["att_src"].reshape(Fh) for p in gat_layers]
                     + [p["bias"].reshape(Fh) for p in gat_layers]
                     + [lw["b"].reshape(Fh) for lw in params["lin"][:-1]]
                     + [t["b1"].reshape(Fh), t["b2"].reshape(Fh)]).astype(jnp.float32)

    wsq = jnp.stack([lw["W"] for lw in params["lin"][:-1]]
                    + [t["W1"], t["W2"]]).astype(jnp.bfloat16)            # (nc+1, Fh, Fh)
    wlane = jnp.stack([params["lin"][-1]["W"], t["W3"]]).astype(jnp.bfloat16)  # (2, Fh, LANE)
    vlane = jnp.concatenate([params["lin"][-1]["b"], t["b3"]], axis=0)    # (2, LANE) f32

    # per-graph zero-pad gather matrix, block-diagonal over instances
    G1 = np.zeros((B * L, Np), np.float32)
    off = 0
    for bi, n in enumerate(data["sizes"]):
        for pp in range(n):
            G1[bi * L + pp, off + pp] = 1.0
        off += n
    G = jnp.asarray(np.kron(eye, G1)).astype(jnp.bfloat16)                # (R, N)

    return (wgat, ea, masks, vecs, wsq, wlane, vlane, G)


if __name__ == "__main__":
    A = dict(n_convs=3, conv_in_dim=1, conv_hi_dim=32, conv_out_dim=1,
             edge_dim=4, max_len=8,
             transfer_mlp_in_dim=32, transfer_mlp_hi_dim=32, transfer_mlp_out_dim=1,
             transfer_n_mlps=3)
    INST_PER_BLOCK = 8          # independent graph-batches packed block-diagonally -> M = 128
    N_BLOCKS = 2                # grid axis ("parallel"): one block per TensorCore on v7x
    N_INSTANCES = INST_PER_BLOCK * N_BLOCKS

    key = jax.random.PRNGKey(0)
    kd, kp, kx = jax.random.split(key, 3)
    data = build_data(kd, A)
    params = init_params(kp, A)

    B, L, Fh, Np = len(data["sizes"]), A["max_len"], A["conv_hi_dim"], data["Np"]

    # per-instance node features (data.c), column 0 of the feature-padded x
    flat_c = jax.random.normal(kx, (N_INSTANCES, data["N_total"]), jnp.float32)
    x_all = (jnp.zeros((N_INSTANCES, Np, Fh), jnp.float32)
             .at[:, :data["N_total"], 0].set(flat_c))
    x_blocks = x_all.reshape(N_BLOCKS, INST_PER_BLOCK * Np, Fh)

    shared = build_fused_inputs(params, data, A, INST_PER_BLOCK)
    fwd = make_fused_forward(A, n_graphs=B, node_pad=Np,
                             inst_per_block=INST_PER_BLOCK, n_blocks=N_BLOCKS)

    transfer_out, gnn_pred = fwd(x_blocks, *shared)
    jax.block_until_ready((transfer_out, gnn_pred))
    assert transfer_out.shape == (N_INSTANCES, B, L), transfer_out.shape
    assert gnn_pred.shape == (N_INSTANCES, B, L), gnn_pred.shape
    print("KERNEL_OK")
</pallas_src>

<mosaic_0001>
module attributes {stable_mosaic.version = 11 : i64} {
  func.func @_fused_kernel(%arg0: i32, %arg1: memref<1x128x32xf32, #tpu.memory_space<vmem>>, %arg2: memref<6x32x40xbf16, #tpu.memory_space<vmem>>, %arg3: memref<6x128x128xf32, #tpu.memory_space<vmem>>, %arg4: memref<2x128x128xf32, #tpu.memory_space<vmem>>, %arg5: memref<16x32xf32, #tpu.memory_space<vmem>>, %arg6: memref<4x32x32xbf16, #tpu.memory_space<vmem>>, %arg7: memref<2x32x128xbf16, #tpu.memory_space<vmem>>, %arg8: memref<2x128xf32, #tpu.memory_space<vmem>>, %arg9: memref<128x128xbf16, #tpu.memory_space<vmem>>, %arg10: memref<1x256x128xf32, #tpu.memory_space<vmem>>) attributes {dimension_semantics = [#tpu.dimension_semantics<parallel>], iteration_bounds = array<i64: 2>, scalar_prefetch = 0 : i64, scratch_operands = 0 : i64, tpu.core_type = #tpu.core_type<tc>, window_params = [{transform_indices = @transform_0, window_bounds = array<i64: 1, 128, 32>}, {pipeline_mode = #tpu.pipeline_mode<synchronous>, transform_indices = @transform_1, window_bounds = array<i64: 6, 32, 40>}, {pipeline_mode = #tpu.pipeline_mode<synchronous>, transform_indices = @transform_2, window_bounds = array<i64: 6, 128, 128>}, {pipeline_mode = #tpu.pipeline_mode<synchronous>, transform_indices = @transform_3, window_bounds = array<i64: 2, 128, 128>}, {pipeline_mode = #tpu.pipeline_mode<synchronous>, transform_indices = @transform_4, window_bounds = array<i64: 16, 32>}, {pipeline_mode = #tpu.pipeline_mode<synchronous>, transform_indices = @transform_5, window_bounds = array<i64: 4, 32, 32>}, {pipeline_mode = #tpu.pipeline_mode<synchronous>, transform_indices = @transform_6, window_bounds = array<i64: 2, 32, 128>}, {pipeline_mode = #tpu.pipeline_mode<synchronous>, transform_indices = @transform_7, window_bounds = array<i64: 2, 128>}, {pipeline_mode = #tpu.pipeline_mode<synchronous>, transform_indices = @transform_8, window_bounds = array<i64: 128, 128>}, {transform_indices = @transform_9, window_bounds = array<i64: 1, 256, 128>}]} {
    %c0 = arith.constant 0 : index
    %c0_0 = arith.constant 0 : index
    %c0_1 = arith.constant 0 : index
    %0 = vector.load %arg4[%c0, %c0_0, %c0_1] : memref<2x128x128xf32, #tpu.memory_space<vmem>>, vector<1x128x128xf32>
    %1 = vector.shape_cast %0 : vector<1x128x128xf32> to vector<128x128xf32>
    %c1 = arith.constant 1 : index
    %c0_2 = arith.constant 0 : index
    %c0_3 = arith.constant 0 : index
    %2 = vector.load %arg4[%c1, %c0_2, %c0_3] : memref<2x128x128xf32, #tpu.memory_space<vmem>>, vector<1x128x128xf32>
    %3 = vector.shape_cast %2 : vector<1x128x128xf32> to vector<128x128xf32>
    %c0_4 = arith.constant 0 : index
    %c0_5 = arith.constant 0 : index
    %c0_6 = arith.constant 0 : index
    %4 = vector.load %arg1[%c0_4, %c0_5, %c0_6] : memref<1x128x32xf32, #tpu.memory_space<vmem>>, vector<1x128x32xf32>
    %5 = vector.shape_cast %4 : vector<1x128x32xf32> to vector<128x32xf32>
    %6 = arith.truncf %5 : vector<128x32xf32> to vector<128x32xbf16>
    %c0_7 = arith.constant 0 : index
    %c0_8 = arith.constant 0 : index
    %c0_9 = arith.constant 0 : index
    %7 = vector.load %arg2[%c0_7, %c0_8, %c0_9] : memref<6x32x40xbf16, #tpu.memory_space<vmem>>, vector<1x32x40xbf16>
    %8 = vector.shape_cast %7 : vector<1x32x40xbf16> to vector<32x40xbf16>
    %cst = arith.constant dense<0.000000e+00> : vector<128x40xf32>
    %9 = tpu.matmul %6, %8, %cst {dimension_numbers = #tpu.dot_dimension_numbers<[1], [0], [0], [1], [0, 0, 1, 1], [], []>} : vector<128x32xbf16>, vector<32x40xbf16>, vector<128x40xf32> -> vector<128x40xf32>
    %10 = vector.extract_strided_slice %9 {offsets = [0, 0], sizes = [128, 32], strides = [1, 1]} : vector<128x40xf32> to vector<128x32xf32>
    %11 = vector.extract_strided_slice %9 {offsets = [0, 32], sizes = [128, 1], strides = [1, 1]} : vector<128x40xf32> to vector<128x1xf32>
    %c0_10 = arith.constant 0 : index
    %c0_11 = arith.constant 0 : index
    %12 = vector.load %arg5[%c0_10, %c0_11] : memref<16x32xf32, #tpu.memory_space<vmem>>, vector<1x32xf32>
    %cst_12 = arith.constant dense<0.000000e+00> : vector<1x128xf32>
    %13 = tpu.matmul %12, %10, %cst_12 {dimension_numbers = #tpu.dot_dimension_numbers<[1], [1], [0], [0], [0, 0, 1, 0], [], []>} : vector<1x32xf32>, vector<128x32xf32>, vector<1x128xf32> -> vector<1x128xf32>
    %14 = vector.broadcast %11 : vector<128x1xf32> to vector<128x128xf32>
    %15 = vector.broadcast %13 : vector<1x128xf32> to vector<128x128xf32>
    %16 = arith.addf %14, %15 : vector<128x128xf32>
    %c0_13 = arith.constant 0 : index
    %c0_14 = arith.constant 0 : index
    %c0_15 = arith.constant 0 : index
    %17 = vector.load %arg3[%c0_13, %c0_14, %c0_15] : memref<6x128x128xf32, #tpu.memory_space<vmem>>, vector<1x128x128xf32>
    %18 = vector.shape_cast %17 : vector<1x128x128xf32> to vector<128x128xf32>
    %19 = arith.addf %16, %18 : vector<128x128xf32>
    %cst_16 = arith.constant 0.000000e+00 : f32
    %20 = vector.broadcast %cst_16 : f32 to vector<128x128xf32>
    %21 = arith.cmpf ogt, %19, %20 : vector<128x128xf32>
    %cst_17 = arith.constant 2.000000e-01 : f32
    %22 = vector.broadcast %cst_17 : f32 to vector<128x128xf32>
    %23 = arith.mulf %22, %19 : vector<128x128xf32>
    %24 = arith.select %21, %19, %23 : vector<128x128xi1>, vector<128x128xf32>
    %cst_18 = arith.constant dense<0xFF800000> : vector<128xf32>
    %25 = vector.multi_reduction <maximumf>, %24, %cst_18 [1] : vector<128x128xf32> to vector<128xf32>
    %26 = vector.shape_cast %25 : vector<128xf32> to vector<128x1xf32>
    %27 = vector.broadcast %26 : vector<128x1xf32> to vector<128x128xf32>
    %28 = arith.subf %24, %27 : vector<128x128xf32>
    %29 = math.exp %28 : vector<128x128xf32>
    %30 = arith.mulf %29, %1 : vector<128x128xf32>
    %cst_19 = arith.constant dense<0.000000e+00> : vector<128xf32>
    %31 = vector.multi_reduction <add>, %30, %cst_19 [1] : vector<128x128xf32> to vector<128xf32>
    %32 = vector.shape_cast %31 : vector<128xf32> to vector<128x1xf32>
    %cst_20 = arith.constant 0.000000e+00 : f32
    %33 = vector.broadcast %cst_20 : f32 to vector<128x1xf32>
    %34 = arith.cmpf ogt, %32, %33 : vector<128x1xf32>
    %cst_21 = arith.constant 1.000000e+00 : f32
    %35 = vector.broadcast %cst_21 : f32 to vector<128x1xf32>
    %36 = arith.select %34, %32, %35 : vector<128x1xi1>, vector<128x1xf32>
    %37 = vector.broadcast %36 : vector<128x1xf32> to vector<128x128xf32>
    %38 = arith.divf %30, %37 : vector<128x128xf32>
    %39 = arith.truncf %38 : vector<128x128xf32> to vector<128x128xbf16>
    %40 = arith.truncf %10 : vector<128x32xf32> to vector<128x32xbf16>
    %cst_22 = arith.constant dense<0.000000e+00> : vector<128x32xf32>
    %41 = tpu.matmul %39, %40, %cst_22 {dimension_numbers = #tpu.dot_dimension_numbers<[1], [0], [0], [1], [0, 0, 1, 1], [], []>} : vector<128x128xbf16>, vector<128x32xbf16>, vector<128x32xf32> -> vector<128x32xf32>
    %c6 = arith.constant 6 : index
    %c0_23 = arith.constant 0 : index
    %42 = vector.load %arg5[%c6, %c0_23] : memref<16x32xf32, #tpu.memory_space<vmem>>, vector<1x32xf32>
    %43 = vector.broadcast %42 : vector<1x32xf32> to vector<128x32xf32>
    %44 = arith.addf %41, %43 : vector<128x32xf32>
    %cst_24 = arith.constant 0.000000e+00 : f32
    %45 = vector.broadcast %cst_24 : f32 to vector<128x32xf32>
    %46 = arith.maximumf %44, %45 : vector<128x32xf32>
    %47 = arith.truncf %46 : vector<128x32xf32> to vector<128x32xbf16>
    %c1_25 = arith.constant 1 : index
    %c0_26 = arith.constant 0 : index
    %c0_27 = arith.constant 0 : index
    %48 = vector.load %arg2[%c1_25, %c0_26, %c0_27] : memref<6x32x40xbf16, #tpu.memory_space<vmem>>, vector<1x32x40xbf16>
    %49 = vector.shape_cast %48 : vector<1x32x40xbf16> to vector<32x40xbf16>
    %cst_28 = arith.constant dense<0.000000e+00> : vector<128x40xf32>
    %50 = tpu.matmul %47, %49, %cst_28 {dimension_numbers = #tpu.dot_dimension_numbers<[1], [0], [0], [1], [0, 0, 1, 1], [], []>} : vector<128x32xbf16>, vector<32x40xbf16>, vector<128x40xf32> -> vector<128x40xf32>
    %51 = vector.extract_strided_slice %50 {offsets = [0, 0], sizes = [128, 32], strides = [1, 1]} : vector<128x40xf32> to vector<128x32xf32>
    %52 = vector.extract_strided_slice %50 {offsets = [0, 32], sizes = [128, 1], strides = [1, 1]} : vector<128x40xf32> to vector<128x1xf32>
    %c1_29 = arith.constant 1 : index
    %c0_30 = arith.constant 0 : index
    %53 = vector.load %arg5[%c1_29, %c0_30] : memref<16x32xf32, #tpu.memory_space<vmem>>, vector<1x32xf32>
    %cst_31 = arith.constant dense<0.000000e+00> : vector<1x128xf32>
    %54 = tpu.matmul %53, %51, %cst_31 {dimension_numbers = #tpu.dot_dimension_numbers<[1], [1], [0], [0], [0, 0, 1, 0], [], []>} : vector<1x32xf32>, vector<128x32xf32>, vector<1x128xf32> -> vector<1x128xf32>
    %55 = vector.broadcast %52 : vector<128x1xf32> to vector<128x128xf32>
    %56 = vector.broadcast %54 : vector<1x128xf32> to vector<128x128xf32>
    %57 = arith.addf %55, %56 : vector<128x128xf32>
    %c1_32 = arith.constant 1 : index
    %c0_33 = arith.constant 0 : index
    %c0_34 = arith.constant 0 : index
    %58 = vector.load %arg3[%c1_32, %c0_33, %c0_34] : memref<6x128x128xf32, #tpu.memory_space<vmem>>, vector<1x128x128xf32>
    %59 = vector.shape_cast %58 : vector<1x128x128xf32> to vector<128x128xf32>
    %60 = arith.addf %57, %59 : vector<128x128xf32>
    %cst_35 = arith.constant 0.000000e+00 : f32
    %61 = vector.broadcast %cst_35 : f32 to vector<128x128xf32>
    %62 = arith.cmpf ogt, %60, %61 : vector<128x128xf32>
    %cst_36 = arith.constant 2.000000e-01 : f32
    %63 = vector.broadcast %cst_36 : f32 to vector<128x128xf32>
    %64 = arith.mulf %63, %60 : vector<128x128xf32>
    %65 = arith.select %62, %60, %64 : vector<128x128xi1>, vector<128x128xf32>
    %cst_37 = arith.constant dense<0xFF800000> : vector<128xf32>
    %66 = vector.multi_reduction <maximumf>, %65, %cst_37 [1] : vector<128x128xf32> to vector<128xf32>
    %67 = vector.shape_cast %66 : vector<128xf32> to vector<128x1xf32>
    %68 = vector.broadcast %67 : vector<128x1xf32> to vector<128x128xf32>
    %69 = arith.subf %65, %68 : vector<128x128xf32>
    %70 = math.exp %69 : vector<128x128xf32>
    %71 = arith.mulf %70, %1 : vector<128x128xf32>
    %cst_38 = arith.constant dense<0.000000e+00> : vector<128xf32>
    %72 = vector.multi_reduction <add>, %71, %cst_38 [1] : vector<128x128xf32> to vector<128xf32>
    %73 = vector.shape_cast %72 : vector<128xf32> to vector<128x1xf32>
    %cst_39 = arith.constant 0.000000e+00 : f32
    %74 = vector.broadcast %cst_39 : f32 to vector<128x1xf32>
    %75 = arith.cmpf ogt, %73, %74 : vector<128x1xf32>
    %cst_40 = arith.constant 1.000000e+00 : f32
    %76 = vector.broadcast %cst_40 : f32 to vector<128x1xf32>
    %77 = arith.select %75, %73, %76 : vector<128x1xi1>, vector<128x1xf32>
    %78 = vector.broadcast %77 : vector<128x1xf32> to vector<128x128xf32>
    %79 = arith.divf %71, %78 : vector<128x128xf32>
    %80 = arith.truncf %79 : vector<128x128xf32> to vector<128x128xbf16>
    %81 = arith.truncf %51 : vector<128x32xf32> to vector<128x32xbf16>
    %cst_41 = arith.constant dense<0.000000e+00> : vector<128x32xf32>
    %82 = tpu.matmul %80, %81, %cst_41 {dimension_numbers = #tpu.dot_dimension_numbers<[1], [0], [0], [1], [0, 0, 1, 1], [], []>} : vector<128x128xbf16>, vector<128x32xbf16>, vector<128x32xf32> -> vector<128x32xf32>
    %c7 = arith.constant 7 : index
    %c0_42 = arith.constant 0 : index
    %83 = vector.load %arg5[%c7, %c0_42] : memref<16x32xf32, #tpu.memory_space<vmem>>, vector<1x32xf32>
    %84 = vector.broadcast %83 : vector<1x32xf32> to vector<128x32xf32>
    %85 = arith.addf %82, %84 : vector<128x32xf32>
    %cst_43 = arith.constant 0.000000e+00 : f32
    %86 = vector.broadcast %cst_43 : f32 to vector<128x32xf32>
    %87 = arith.maximumf %85, %86 : vector<128x32xf32>
    %88 = arith.truncf %87 : vector<128x32xf32> to vector<128x32xbf16>
    %c2 = arith.constant 2 : index
    %c0_44 = arith.constant 0 : index
    %c0_45 = arith.constant 0 : index
    %89 = vector.load %arg2[%c2, %c0_44, %c0_45] : memref<6x32x40xbf16, #tpu.memory_space<vmem>>, vector<1x32x40xbf16>
    %90 = vector.shape_cast %89 : vector<1x32x40xbf16> to vector<32x40xbf16>
    %cst_46 = arith.constant dense<0.000000e+00> : vector<128x40xf32>
    %91 = tpu.matmul %88, %90, %cst_46 {dimension_numbers = #tpu.dot_dimension_numbers<[1], [0], [0], [1], [0, 0, 1, 1], [], []>} : vector<128x32xbf16>, vector<32x40xbf16>, vector<128x40xf32> -> vector<128x40xf32>
    %92 = vector.extract_strided_slice %91 {offsets = [0, 0], sizes = [128, 32], strides = [1, 1]} : vector<128x40xf32> to vector<128x32xf32>
    %93 = vector.extract_strided_slice %91 {offsets = [0, 32], sizes = [128, 1], strides = [1, 1]} : vector<128x40xf32> to vector<128x1xf32>
    %c2_47 = arith.constant 2 : index
    %c0_48 = arith.constant 0 : index
    %94 = vector.load %arg5[%c2_47, %c0_48] : memref<16x32xf32, #tpu.memory_space<vmem>>, vector<1x32xf32>
    %cst_49 = arith.constant dense<0.000000e+00> : vector<1x128xf32>
    %95 = tpu.matmul %94, %92, %cst_49 {dimension_numbers = #tpu.dot_dimension_numbers<[1], [1], [0], [0], [0, 0, 1, 0], [], []>} : vector<1x32xf32>, vector<128x32xf32>, vector<1x128xf32> -> vector<1x128xf32>
    %96 = vector.broadcast %93 : vector<128x1xf32> to vector<128x128xf32>
    %97 = vector.broadcast %95 : vector<1x128xf32> to vector<128x128xf32>
    %98 = arith.addf %96, %97 : vector<128x128xf32>
    %c2_50 = arith.constant 2 : index
    %c0_51 = arith.constant 0 : index
    %c0_52 = arith.constant 0 : index
    %99 = vector.load %arg3[%c2_50, %c0_51, %c0_52] : memref<6x128x128xf32, #tpu.memory_space<vmem>>, vector<1x128x128xf32>
    %100 = vector.shape_cast %99 : vector<1x128x128xf32> to vector<128x128xf32>
    %101 = arith.addf %98, %100 : vector<128x128xf32>
    %cst_53 = arith.constant 0.000000e+00 : f32
    %102 = vector.broadcast %cst_53 : f32 to vector<128x128xf32>
    %103 = arith.cmpf ogt, %101, %102 : vector<128x128xf32>
    %cst_54 = arith.constant 2.000000e-01 : f32
    %104 = vector.broadcast %cst_54 : f32 to vector<128x128xf32>
    %105 = arith.mulf %104, %101 : vector<128x128xf32>
    %106 = arith.select %103, %101, %105 : vector<128x128xi1>, vector<128x128xf32>
    %cst_55 = arith.constant dense<0xFF800000> : vector<128xf32>
    %107 = vector.multi_reduction <maximumf>, %106, %cst_55 [1] : vector<128x128xf32> to vector<128xf32>
    %108 = vector.shape_cast %107 : vector<128xf32> to vector<128x1xf32>
    %109 = vector.broadcast %108 : vector<128x1xf32> to vector<128x128xf32>
    %110 = arith.subf %106, %109 : vector<128x128xf32>
    %111 = math.exp %110 : vector<128x128xf32>
    %112 = arith.mulf %111, %1 : vector<128x128xf32>
    %cst_56 = arith.constant dense<0.000000e+00> : vector<128xf32>
    %113 = vector.multi_reduction <add>, %112, %cst_56 [1] : vector<128x128xf32> to vector<128xf32>
    %114 = vector.shape_cast %113 : vector<128xf32> to vector<128x1xf32>
    %cst_57 = arith.constant 0.000000e+00 : f32
    %115 = vector.broadcast %cst_57 : f32 to vector<128x1xf32>
    %116 = arith.cmpf ogt, %114, %115 : vector<128x1xf32>
    %cst_58 = arith.constant 1.000000e+00 : f32
    %117 = vector.broadcast %cst_58 : f32 to vector<128x1xf32>
    %118 = arith.select %116, %114, %117 : vector<128x1xi1>, vector<128x1xf32>
    %119 = vector.broadcast %118 : vector<128x1xf32> to vector<128x128xf32>
    %120 = arith.divf %112, %119 : vector<128x128xf32>
    %121 = arith.truncf %120 : vector<128x128xf32> to vector<128x128xbf16>
    %122 = arith.truncf %92 : vector<128x32xf32> to vector<128x32xbf16>
    %cst_59 = arith.constant dense<0.000000e+00> : vector<128x32xf32>
    %123 = tpu.matmul %121, %122, %cst_59 {dimension_numbers = #tpu.dot_dimension_numbers<[1], [0], [0], [1], [0, 0, 1, 1], [], []>} : vector<128x128xbf16>, vector<128x32xbf16>, vector<128x32xf32> -> vector<128x32xf32>
    %c8 = arith.constant 8 : index
    %c0_60 = arith.constant 0 : index
    %124 = vector.load %arg5[%c8, %c0_60] : memref<16x32xf32, #tpu.memory_space<vmem>>, vector<1x32xf32>
    %125 = vector.broadcast %124 : vector<1x32xf32> to vector<128x32xf32>
    %126 = arith.addf %123, %125 : vector<128x32xf32>
    %cst_61 = arith.constant 0.000000e+00 : f32
    %127 = vector.broadcast %cst_61 : f32 to vector<128x32xf32>
    %128 = arith.maximumf %126, %127 : vector<128x32xf32>
    %129 = arith.truncf %128 : vector<128x32xf32> to vector<128x32xbf16>
    %c3 = arith.constant 3 : index
    %c0_62 = arith.constant 0 : index
    %c0_63 = arith.constant 0 : index
    %130 = vector.load %arg2[%c3, %c0_62, %c0_63] : memref<6x32x40xbf16, #tpu.memory_space<vmem>>, vector<1x32x40xbf16>
    %131 = vector.shape_cast %130 : vector<1x32x40xbf16> to vector<32x40xbf16>
    %cst_64 = arith.constant dense<0.000000e+00> : vector<128x40xf32>
    %132 = tpu.matmul %129, %131, %cst_64 {dimension_numbers = #tpu.dot_dimension_numbers<[1], [0], [0], [1], [0, 0, 1, 1], [], []>} : vector<128x32xbf16>, vector<32x40xbf16>, vector<128x40xf32> -> vector<128x40xf32>
    %133 = vector.extract_strided_slice %132 {offsets = [0, 0], sizes = [128, 32], strides = [1, 1]} : vector<128x40xf32> to vector<128x32xf32>
    %134 = vector.extract_strided_slice %132 {offsets = [0, 32], sizes = [128, 1], strides = [1, 1]} : vector<128x40xf32> to vector<128x1xf32>
    %c3_65 = arith.constant 3 : index
    %c0_66 = arith.constant 0 : index
    %135 = vector.load %arg5[%c3_65, %c0_66] : memref<16x32xf32, #tpu.memory_space<vmem>>, vector<1x32xf32>
    %cst_67 = arith.constant dense<0.000000e+00> : vector<1x128xf32>
    %136 = tpu.matmul %135, %133, %cst_67 {dimension_numbers = #tpu.dot_dimension_numbers<[1], [1], [0], [0], [0, 0, 1, 0], [], []>} : vector<1x32xf32>, vector<128x32xf32>, vector<1x128xf32> -> vector<1x128xf32>
    %137 = vector.broadcast %134 : vector<128x1xf32> to vector<128x128xf32>
    %138 = vector.broadcast %136 : vector<1x128xf32> to vector<128x128xf32>
    %139 = arith.addf %137, %138 : vector<128x128xf32>
    %c3_68 = arith.constant 3 : index
    %c0_69 = arith.constant 0 : index
    %c0_70 = arith.constant 0 : index
    %140 = vector.load %arg3[%c3_68, %c0_69, %c0_70] : memref<6x128x128xf32, #tpu.memory_space<vmem>>, vector<1x128x128xf32>
    %141 = vector.shape_cast %140 : vector<1x128x128xf32> to vector<128x128xf32>
    %142 = arith.addf %139, %141 : vector<128x128xf32>
    %cst_71 = arith.constant 0.000000e+00 : f32
    %143 = vector.broadcast %cst_71 : f32 to vector<128x128xf32>
    %144 = arith.cmpf ogt, %142, %143 : vector<128x128xf32>
    %cst_72 = arith.constant 2.000000e-01 : f32
    %145 = vector.broadcast %cst_72 : f32 to vector<128x128xf32>
    %146 = arith.mulf %145, %142 : vector<128x128xf32>
    %147 = arith.select %144, %142, %146 : vector<128x128xi1>, vector<128x128xf32>
    %cst_73 = arith.constant dense<0xFF800000> : vector<128xf32>
    %148 = vector.multi_reduction <maximumf>, %147, %cst_73 [1] : vector<128x128xf32> to vector<128xf32>
    %149 = vector.shape_cast %148 : vector<128xf32> to vector<128x1xf32>
    %150 = vector.broadcast %149 : vector<128x1xf32> to vector<128x128xf32>
    %151 = arith.subf %147, %150 : vector<128x128xf32>
    %152 = math.exp %151 : vector<128x128xf32>
    %153 = arith.mulf %152, %3 : vector<128x128xf32>
    %cst_74 = arith.constant dense<0.000000e+00> : vector<128xf32>
    %154 = vector.multi_reduction <add>, %153, %cst_74 [1] : vector<128x128xf32> to vector<128xf32>
    %155 = vector.shape_cast %154 : vector<128xf32> to vector<128x1xf32>
    %cst_75 = arith.constant 0.000000e+00 : f32
    %156 = vector.broadcast %cst_75 : f32 to vector<128x1xf32>
    %157 = arith.cmpf ogt, %155, %156 : vector<128x1xf32>
    %cst_76 = arith.constant 1.000000e+00 : f32
    %158 = vector.broadcast %cst_76 : f32 to vector<128x1xf32>
    %159 = arith.select %157, %155, %158 : vector<128x1xi1>, vector<128x1xf32>
    %160 = vector.broadcast %159 : vector<128x1xf32> to vector<128x128xf32>
    %161 = arith.divf %153, %160 : vector<128x128xf32>
    %162 = arith.truncf %161 : vector<128x128xf32> to vector<128x128xbf16>
    %163 = arith.truncf %133 : vector<128x32xf32> to vector<128x32xbf16>
    %cst_77 = arith.constant dense<0.000000e+00> : vector<128x32xf32>
    %164 = tpu.matmul %162, %163, %cst_77 {dimension_numbers = #tpu.dot_dimension_numbers<[1], [0], [0], [1], [0, 0, 1, 1], [], []>} : vector<128x128xbf16>, vector<128x32xbf16>, vector<128x32xf32> -> vector<128x32xf32>
    %c9 = arith.constant 9 : index
    %c0_78 = arith.constant 0 : index
    %165 = vector.load %arg5[%c9, %c0_78] : memref<16x32xf32, #tpu.memory_space<vmem>>, vector<1x32xf32>
    %166 = vector.broadcast %165 : vector<1x32xf32> to vector<128x32xf32>
    %167 = arith.addf %164, %166 : vector<128x32xf32>
    %cst_79 = arith.constant 0.000000e+00 : f32
    %168 = vector.broadcast %cst_79 : f32 to vector<128x32xf32>
    %169 = arith.maximumf %167, %168 : vector<128x32xf32>
    %170 = arith.addf %169, %128 : vector<128x32xf32>
    %171 = arith.truncf %170 : vector<128x32xf32> to vector<128x32xbf16>
    %c0_80 = arith.constant 0 : index
    %c0_81 = arith.constant 0 : index
    %c0_82 = arith.constant 0 : index
    %172 = vector.load %arg6[%c0_80, %c0_81, %c0_82] : memref<4x32x32xbf16, #tpu.memory_space<vmem>>, vector<1x32x32xbf16>
    %173 = vector.shape_cast %172 : vector<1x32x32xbf16> to vector<32x32xbf16>
    %cst_83 = arith.constant dense<0.000000e+00> : vector<128x32xf32>
    %174 = tpu.matmul %171, %173, %cst_83 {dimension_numbers = #tpu.dot_dimension_numbers<[1], [0], [0], [1], [0, 0, 1, 1], [], []>} : vector<128x32xbf16>, vector<32x32xbf16>, vector<128x32xf32> -> vector<128x32xf32>
    %c12 = arith.constant 12 : index
    %c0_84 = arith.constant 0 : index
    %175 = vector.load %arg5[%c12, %c0_84] : memref<16x32xf32, #tpu.memory_space<vmem>>, vector<1x32xf32>
    %176 = vector.broadcast %175 : vector<1x32xf32> to vector<128x32xf32>
    %177 = arith.addf %174, %176 : vector<128x32xf32>
    %cst_85 = arith.constant 0.000000e+00 : f32
    %178 = vector.broadcast %cst_85 : f32 to vector<128x32xf32>
    %179 = arith.maximumf %177, %178 : vector<128x32xf32>
    %180 = arith.truncf %179 : vector<128x32xf32> to vector<128x32xbf16>
    %c3_86 = arith.constant 3 : index
    %c0_87 = arith.constant 0 : index
    %c0_88 = arith.constant 0 : index
    %181 = vector.load %arg2[%c3_86, %c0_87, %c0_88] : memref<6x32x40xbf16, #tpu.memory_space<vmem>>, vector<1x32x40xbf16>
    %182 = vector.shape_cast %181 : vector<1x32x40xbf16> to vector<32x40xbf16>
    %cst_89 = arith.constant dense<0.000000e+00> : vector<128x40xf32>
    %183 = tpu.matmul %180, %182, %cst_89 {dimension_numbers = #tpu.dot_dimension_numbers<[1], [0], [0], [1], [0, 0, 1, 1], [], []>} : vector<128x32xbf16>, vector<32x40xbf16>, vector<128x40xf32> -> vector<128x40xf32>
    %184 = vector.extract_strided_slice %183 {offsets = [0, 0], sizes = [128, 32], strides = [1, 1]} : vector<128x40xf32> to vector<128x32xf32>
    %185 = vector.extract_strided_slice %183 {offsets = [0, 32], sizes = [128, 1], strides = [1, 1]} : vector<128x40xf32> to vector<128x1xf32>
    %c3_90 = arith.constant 3 : index
    %c0_91 = arith.constant 0 : index
    %186 = vector.load %arg5[%c3_90, %c0_91] : memref<16x32xf32, #tpu.memory_space<vmem>>, vector<1x32xf32>
    %cst_92 = arith.constant dense<0.000000e+00> : vector<1x128xf32>
    %187 = tpu.matmul %186, %184, %cst_92 {dimension_numbers = #tpu.dot_dimension_numbers<[1], [1], [0], [0], [0, 0, 1, 0], [], []>} : vector<1x32xf32>, vector<128x32xf32>, vector<1x128xf32> -> vector<1x128xf32>
    %188 = vector.broadcast %185 : vector<128x1xf32> to vector<128x128xf32>
    %189 = vector.broadcast %187 : vector<1x128xf32> to vector<128x128xf32>
    %190 = arith.addf %188, %189 : vector<128x128xf32>
    %c3_93 = arith.constant 3 : index
    %c0_94 = arith.constant 0 : index
    %c0_95 = arith.constant 0 : index
    %191 = vector.load %arg3[%c3_93, %c0_94, %c0_95] : memref<6x128x128xf32, #tpu.memory_space<vmem>>, vector<1x128x128xf32>
    %192 = vector.shape_cast %191 : vector<1x128x128xf32> to vector<128x128xf32>
    %193 = arith.addf %190, %192 : vector<128x128xf32>
    %cst_96 = arith.constant 0.000000e+00 : f32
    %194 = vector.broadcast %cst_96 : f32 to vector<128x128xf32>
    %195 = arith.cmpf ogt, %193, %194 : vector<128x128xf32>
    %cst_97 = arith.constant 2.000000e-01 : f32
    %196 = vector.broadcast %cst_97 : f32 to vector<128x128xf32>
    %197 = arith.mulf %196, %193 : vector<128x128xf32>
    %198 = arith.select %195, %193, %197 : vector<128x128xi1>, vector<128x128xf32>
    %cst_98 = arith.constant dense<0xFF800000> : vector<128xf32>
    %199 = vector.multi_reduction <maximumf>, %198, %cst_98 [1] : vector<128x128xf32> to vector<128xf32>
    %200 = vector.shape_cast %199 : vector<128xf32> to vector<128x1xf32>
    %201 = vector.broadcast %200 : vector<128x1xf32> to vector<128x128xf32>
    %202 = arith.subf %198, %201 : vector<128x128xf32>
    %203 = math.exp %202 : vector<128x128xf32>
    %204 = arith.mulf %203, %3 : vector<128x128xf32>
    %cst_99 = arith.constant dense<0.000000e+00> : vector<128xf32>
    %205 = vector.multi_reduction <add>, %204, %cst_99 [1] : vector<128x128xf32> to vector<128xf32>
    %206 = vector.shape_cast %205 : vector<128xf32> to vector<128x1xf32>
    %cst_100 = arith.constant 0.000000e+00 : f32
    %207 = vector.broadcast %cst_100 : f32 to vector<128x1xf32>
    %208 = arith.cmpf ogt, %206, %207 : vector<128x1xf32>
    %cst_101 = arith.constant 1.000000e+00 : f32
    %209 = vector.broadcast %cst_101 : f32 to vector<128x1xf32>
    %210 = arith.select %208, %206, %209 : vector<128x1xi1>, vector<128x1xf32>
    %211 = vector.broadcast %210 : vector<128x1xf32> to vector<128x128xf32>
    %212 = arith.divf %204, %211 : vector<128x128xf32>
    %213 = arith.truncf %212 : vector<128x128xf32> to vector<128x128xbf16>
    %214 = arith.truncf %184 : vector<128x32xf32> to vector<128x32xbf16>
    %cst_102 = arith.constant dense<0.000000e+00> : vector<128x32xf32>
    %215 = tpu.matmul %213, %214, %cst_102 {dimension_numbers = #tpu.dot_dimension_numbers<[1], [0], [0], [1], [0, 0, 1, 1], [], []>} : vector<128x128xbf16>, vector<128x32xbf16>, vector<128x32xf32> -> vector<128x32xf32>
    %c9_103 = arith.constant 9 : index
    %c0_104 = arith.constant 0 : index
    %216 = vector.load %arg5[%c9_103, %c0_104] : memref<16x32xf32, #tpu.memory_space<vmem>>, vector<1x32xf32>
    %217 = vector.broadcast %216 : vector<1x32xf32> to vector<128x32xf32>
    %218 = arith.addf %215, %217 : vector<128x32xf32>
    %cst_105 = arith.constant 0.000000e+00 : f32
    %219 = vector.broadcast %cst_105 : f32 to vector<128x32xf32>
    %220 = arith.maximumf %218, %219 : vector<128x32xf32>
    %221 = arith.addf %220, %128 : vector<128x32xf32>
    %222 = arith.truncf %221 : vector<128x32xf32> to vector<128x32xbf16>
    %c1_106 = arith.constant 1 : index
    %c0_107 = arith.constant 0 : index
    %c0_108 = arith.constant 0 : index
    %223 = vector.load %arg6[%c1_106, %c0_107, %c0_108] : memref<4x32x32xbf16, #tpu.memory_space<vmem>>, vector<1x32x32xbf16>
    %224 = vector.shape_cast %223 : vector<1x32x32xbf16> to vector<32x32xbf16>
    %cst_109 = arith.constant dense<0.000000e+00> : vector<128x32xf32>
    %225 = tpu.matmul %222, %224, %cst_109 {dimension_numbers = #tpu.dot_dimension_numbers<[1], [0], [0], [1], [0, 0, 1, 1], [], []>} : vector<128x32xbf16>, vector<32x32xbf16>, vector<128x32xf32> -> vector<128x32xf32>
    %c13 = arith.constant 13 : index
    %c0_110 = arith.constant 0 : index
    %226 = vector.load %arg5[%c13, %c0_110] : memref<16x32xf32, #tpu.memory_space<vmem>>, vector<1x32xf32>
    %227 = vector.broadcast %226 : vector<1x32xf32> to vector<128x32xf32>
    %228 = arith.addf %225, %227 : vector<128x32xf32>
    %cst_111 = arith.constant 0.000000e+00 : f32
    %229 = vector.broadcast %cst_111 : f32 to vector<128x32xf32>
    %230 = arith.maximumf %228, %229 : vector<128x32xf32>
    %231 = arith.truncf %230 : vector<128x32xf32> to vector<128x32xbf16>
    %c4 = arith.constant 4 : index
    %c0_112 = arith.constant 0 : index
    %c0_113 = arith.constant 0 : index
    %232 = vector.load %arg2[%c4, %c0_112, %c0_113] : memref<6x32x40xbf16, #tpu.memory_space<vmem>>, vector<1x32x40xbf16>
    %233 = vector.shape_cast %232 : vector<1x32x40xbf16> to vector<32x40xbf16>
    %cst_114 = arith.constant dense<0.000000e+00> : vector<128x40xf32>
    %234 = tpu.matmul %231, %233, %cst_114 {dimension_numbers = #tpu.dot_dimension_numbers<[1], [0], [0], [1], [0, 0, 1, 1], [], []>} : vector<128x32xbf16>, vector<32x40xbf16>, vector<128x40xf32> -> vector<128x40xf32>
    %235 = vector.extract_strided_slice %234 {offsets = [0, 0], sizes = [128, 32], strides = [1, 1]} : vector<128x40xf32> to vector<128x32xf32>
    %236 = vector.extract_strided_slice %234 {offsets = [0, 32], sizes = [128, 1], strides = [1, 1]} : vector<128x40xf32> to vector<128x1xf32>
    %c4_115 = arith.constant 4 : index
    %c0_116 = arith.constant 0 : index
    %237 = vector.load %arg5[%c4_115, %c0_116] : memref<16x32xf32, #tpu.memory_space<vmem>>, vector<1x32xf32>
    %cst_117 = arith.constant dense<0.000000e+00> : vector<1x128xf32>
    %238 = tpu.matmul %237, %235, %cst_117 {dimension_numbers = #tpu.dot_dimension_numbers<[1], [1], [0], [0], [0, 0, 1, 0], [], []>} : vector<1x32xf32>, vector<128x32xf32>, vector<1x128xf32> -> vector<1x128xf32>
    %239 = vector.broadcast %236 : vector<128x1xf32> to vector<128x128xf32>
    %240 = vector.broadcast %238 : vector<1x128xf32> to vector<128x128xf32>
    %241 = arith.addf %239, %240 : vector<128x128xf32>
    %c4_118 = arith.constant 4 : index
    %c0_119 = arith.constant 0 : index
    %c0_120 = arith.constant 0 : index
    %242 = vector.load %arg3[%c4_118, %c0_119, %c0_120] : memref<6x128x128xf32, #tpu.memory_space<vmem>>, vector<1x128x128xf32>
    %243 = vector.shape_cast %242 : vector<1x128x128xf32> to vector<128x128xf32>
    %244 = arith.addf %241, %243 : vector<128x128xf32>
    %cst_121 = arith.constant 0.000000e+00 : f32
    %245 = vector.broadcast %cst_121 : f32 to vector<128x128xf32>
    %246 = arith.cmpf ogt, %244, %245 : vector<128x128xf32>
    %cst_122 = arith.constant 2.000000e-01 : f32
    %247 = vector.broadcast %cst_122 : f32 to vector<128x128xf32>
    %248 = arith.mulf %247, %244 : vector<128x128xf32>
    %249 = arith.select %246, %244, %248 : vector<128x128xi1>, vector<128x128xf32>
    %cst_123 = arith.constant dense<0xFF800000> : vector<128xf32>
    %250 = vector.multi_reduction <maximumf>, %249, %cst_123 [1] : vector<128x128xf32> to vector<128xf32>
    %251 = vector.shape_cast %250 : vector<128xf32> to vector<128x1xf32>
    %252 = vector.broadcast %251 : vector<128x1xf32> to vector<128x128xf32>
    %253 = arith.subf %249, %252 : vector<128x128xf32>
    %254 = math.exp %253 : vector<128x128xf32>
    %255 = arith.mulf %254, %3 : vector<128x128xf32>
    %cst_124 = arith.constant dense<0.000000e+00> : vector<128xf32>
    %256 = vector.multi_reduction <add>, %255, %cst_124 [1] : vector<128x128xf32> to vector<128xf32>
    %257 = vector.shape_cast %256 : vector<128xf32> to vector<128x1xf32>
    %cst_125 = arith.constant 0.000000e+00 : f32
    %258 = vector.broadcast %cst_125 : f32 to vector<128x1xf32>
    %259 = arith.cmpf ogt, %257, %258 : vector<128x1xf32>
    %cst_126 = arith.constant 1.000000e+00 : f32
    %260 = vector.broadcast %cst_126 : f32 to vector<128x1xf32>
    %261 = arith.select %259, %257, %260 : vector<128x1xi1>, vector<128x1xf32>
    %262 = vector.broadcast %261 : vector<128x1xf32> to vector<128x128xf32>
    %263 = arith.divf %255, %262 : vector<128x128xf32>
    %264 = arith.truncf %263 : vector<128x128xf32> to vector<128x128xbf16>
    %265 = arith.truncf %235 : vector<128x32xf32> to vector<128x32xbf16>
    %cst_127 = arith.constant dense<0.000000e+00> : vector<128x32xf32>
    %266 = tpu.matmul %264, %265, %cst_127 {dimension_numbers = #tpu.dot_dimension_numbers<[1], [0], [0], [1], [0, 0, 1, 1], [], []>} : vector<128x128xbf16>, vector<128x32xbf16>, vector<128x32xf32> -> vector<128x32xf32>
    %c10 = arith.constant 10 : index
    %c0_128 = arith.constant 0 : index
    %267 = vector.load %arg5[%c10, %c0_128] : memref<16x32xf32, #tpu.memory_space<vmem>>, vector<1x32xf32>
    %268 = vector.broadcast %267 : vector<1x32xf32> to vector<128x32xf32>
    %269 = arith.addf %266, %268 : vector<128x32xf32>
    %cst_129 = arith.constant 0.000000e+00 : f32
    %270 = vector.broadcast %cst_129 : f32 to vector<128x32xf32>
    %271 = arith.maximumf %269, %270 : vector<128x32xf32>
    %272 = arith.addf %271, %128 : vector<128x32xf32>
    %273 = arith.truncf %272 : vector<128x32xf32> to vector<128x32xbf16>
    %c0_130 = arith.constant 0 : index
    %c0_131 = arith.constant 0 : index
    %c0_132 = arith.constant 0 : index
    %274 = vector.load %arg7[%c0_130, %c0_131, %c0_132] : memref<2x32x128xbf16, #tpu.memory_space<vmem>>, vector<1x32x128xbf16>
    %275 = vector.shape_cast %274 : vector<1x32x128xbf16> to vector<32x128xbf16>
    %cst_133 = arith.constant dense<0.000000e+00> : vector<128x128xf32>
    %276 = tpu.matmul %273, %275, %cst_133 {dimension_numbers = #tpu.dot_dimension_numbers<[1], [0], [0], [1], [0, 0, 1, 1], [], []>} : vector<128x32xbf16>, vector<32x128xbf16>, vector<128x128xf32> -> vector<128x128xf32>
    %c0_134 = arith.constant 0 : index
    %c0_135 = arith.constant 0 : index
    %277 = vector.load %arg8[%c0_134, %c0_135] : memref<2x128xf32, #tpu.memory_space<vmem>>, vector<1x128xf32>
    %278 = vector.broadcast %277 : vector<1x128xf32> to vector<128x128xf32>
    %279 = arith.addf %276, %278 : vector<128x128xf32>
    %c0_136 = arith.constant 0 : index
    %c0_137 = arith.constant 0 : index
    %280 = vector.load %arg9[%c0_136, %c0_137] : memref<128x128xbf16, #tpu.memory_space<vmem>>, vector<128x128xbf16>
    %cst_138 = arith.constant dense<0.000000e+00> : vector<128x32xf32>
    %281 = tpu.matmul %280, %273, %cst_138 {dimension_numbers = #tpu.dot_dimension_numbers<[1], [0], [0], [1], [0, 0, 1, 1], [], []>} : vector<128x128xbf16>, vector<128x32xbf16>, vector<128x32xf32> -> vector<128x32xf32>
    %282 = arith.truncf %279 : vector<128x128xf32> to vector<128x128xbf16>
    %cst_139 = arith.constant dense<0.000000e+00> : vector<128x128xf32>
    %283 = tpu.matmul %280, %282, %cst_139 {dimension_numbers = #tpu.dot_dimension_numbers<[1], [0], [0], [1], [0, 0, 1, 1], [], []>} : vector<128x128xbf16>, vector<128x128xbf16>, vector<128x128xf32> -> vector<128x128xf32>
    %284 = arith.truncf %281 : vector<128x32xf32> to vector<128x32xbf16>
    %c2_140 = arith.constant 2 : index
    %c0_141 = arith.constant 0 : index
    %c0_142 = arith.constant 0 : index
    %285 = vector.load %arg6[%c2_140, %c0_141, %c0_142] : memref<4x32x32xbf16, #tpu.memory_space<vmem>>, vector<1x32x32xbf16>
    %286 = vector.shape_cast %285 : vector<1x32x32xbf16> to vector<32x32xbf16>
    %cst_143 = arith.constant dense<0.000000e+00> : vector<128x32xf32>
    %287 = tpu.matmul %284, %286, %cst_143 {dimension_numbers = #tpu.dot_dimension_numbers<[1], [0], [0], [1], [0, 0, 1, 1], [], []>} : vector<128x32xbf16>, vector<32x32xbf16>, vector<128x32xf32> -> vector<128x32xf32>
    %c14 = arith.constant 14 : index
    %c0_144 = arith.constant 0 : index
    %288 = vector.load %arg5[%c14, %c0_144] : memref<16x32xf32, #tpu.memory_space<vmem>>, vector<1x32xf32>
    %289 = vector.broadcast %288 : vector<1x32xf32> to vector<128x32xf32>
    %290 = arith.addf %287, %289 : vector<128x32xf32>
    %cst_145 = arith.constant 0.000000e+00 : f32
    %291 = vector.broadcast %cst_145 : f32 to vector<128x32xf32>
    %292 = arith.maximumf %290, %291 : vector<128x32xf32>
    %293 = arith.truncf %292 : vector<128x32xf32> to vector<128x32xbf16>
    %c3_146 = arith.constant 3 : index
    %c0_147 = arith.constant 0 : index
    %c0_148 = arith.constant 0 : index
    %294 = vector.load %arg6[%c3_146, %c0_147, %c0_148] : memref<4x32x32xbf16, #tpu.memory_space<vmem>>, vector<1x32x32xbf16>
    %295 = vector.shape_cast %294 : vector<1x32x32xbf16> to vector<32x32xbf16>
    %cst_149 = arith.constant dense<0.000000e+00> : vector<128x32xf32>
    %296 = tpu.matmul %293, %295, %cst_149 {dimension_numbers = #tpu.dot_dimension_numbers<[1], [0], [0], [1], [0, 0, 1, 1], [], []>} : vector<128x32xbf16>, vector<32x32xbf16>, vector<128x32xf32> -> vector<128x32xf32>
    %c15 = arith.constant 15 : index
    %c0_150 = arith.constant 0 : index
    %297 = vector.load %arg5[%c15, %c0_150] : memref<16x32xf32, #tpu.memory_space<vmem>>, vector<1x32xf32>
    %298 = vector.broadcast %297 : vector<1x32xf32> to vector<128x32xf32>
    %299 = arith.addf %296, %298 : vector<128x32xf32>
    %cst_151 = arith.constant 0.000000e+00 : f32
    %300 = vector.broadcast %cst_151 : f32 to vector<128x32xf32>
    %301 = arith.maximumf %299, %300 : vector<128x32xf32>
    %302 = arith.truncf %301 : vector<128x32xf32> to vector<128x32xbf16>
    %c1_152 = arith.constant 1 : index
    %c0_153 = arith.constant 0 : index
    %c0_154 = arith.constant 0 : index
    %303 = vector.load %arg7[%c1_152, %c0_153, %c0_154] : memref<2x32x128xbf16, #tpu.memory_space<vmem>>, vector<1x32x128xbf16>
    %304 = vector.shape_cast %303 : vector<1x32x128xbf16> to vector<32x128xbf16>
    %cst_155 = arith.constant dense<0.000000e+00> : vector<128x128xf32>
    %305 = tpu.matmul %302, %304, %cst_155 {dimension_numbers = #tpu.dot_dimension_numbers<[1], [0], [0], [1], [0, 0, 1, 1], [], []>} : vector<128x32xbf16>, vector<32x128xbf16>, vector<128x128xf32> -> vector<128x128xf32>
    %c1_156 = arith.constant 1 : index
    %c0_157 = arith.constant 0 : index
    %306 = vector.load %arg8[%c1_156, %c0_157] : memref<2x128xf32, #tpu.memory_space<vmem>>, vector<1x128xf32>
    %307 = vector.broadcast %306 : vector<1x128xf32> to vector<128x128xf32>
    %308 = arith.addf %305, %307 : vector<128x128xf32>
    %309 = tpu.concatenate %308, %283 in 0 : vector<128x128xf32>, vector<128x128xf32> -> vector<256x128xf32>
    %310 = vector.shape_cast %309 : vector<256x128xf32> to vector<32x8x128xf32>
    %311 = vector.extract_strided_slice %310 {offsets = [0, 0, 0], sizes = [32, 1, 128], strides = [1, 1, 1]} : vector<32x8x128xf32> to vector<32x1x128xf32>
    %312 = vector.broadcast %311 : vector<32x1x128xf32> to vector<32x8x128xf32>
    %313 = arith.subf %310, %312 : vector<32x8x128xf32>
    %314 = vector.shape_cast %313 : vector<32x8x128xf32> to vector<256x128xf32>
    %c0_158 = arith.constant 0 : index
    %c0_159 = arith.constant 0 : index
    %c0_160 = arith.constant 0 : index
    %315 = vector.load %arg10[%c0_158, %c0_159, %c0_160] : memref<1x256x128xf32, #tpu.memory_space<vmem>>, vector<1x256x128xf32>
    %316 = vector.shape_cast %315 : vector<1x256x128xf32> to vector<256x128xf32>
    %317 = vector.shape_cast %314 : vector<256x128xf32> to vector<1x256x128xf32>
    tpu.vector_store %arg10[%c0_158, %c0_159, %c0_160], %317 {strides = array<i32>} : memref<1x256x128xf32, #tpu.memory_space<vmem>>, vector<1x256x128xf32>,
    return
  }
  func.func @transform_0(%arg0: i32) -> (i32, i32, i32) {
    %c0_i32 = arith.constant 0 : i32
    %c0_i32_0 = arith.constant 0 : i32
    %c0_i32_1 = arith.constant 0 : i32
    return %arg0, %c0_i32, %c0_i32_0 : i32, i32, i32
  }
  func.func @transform_1(%arg0: i32) -> (i32, i32, i32) {
    %c0_i32 = arith.constant 0 : i32
    %c0_i32_0 = arith.constant 0 : i32
    %c0_i32_1 = arith.constant 0 : i32
    %c0_i32_2 = arith.constant 0 : i32
    return %c0_i32, %c0_i32_0, %c0_i32_1 : i32, i32, i32
  }
  func.func @transform_2(%arg0: i32) -> (i32, i32, i32) {
    %c0_i32 = arith.constant 0 : i32
    %c0_i32_0 = arith.constant 0 : i32
    %c0_i32_1 = arith.constant 0 : i32
    %c0_i32_2 = arith.constant 0 : i32
    return %c0_i32, %c0_i32_0, %c0_i32_1 : i32, i32, i32
  }
  func.func @transform_3(%arg0: i32) -> (i32, i32, i32) {
    %c0_i32 = arith.constant 0 : i32
    %c0_i32_0 = arith.constant 0 : i32
    %c0_i32_1 = arith.constant 0 : i32
    %c0_i32_2 = arith.constant 0 : i32
    return %c0_i32, %c0_i32_0, %c0_i32_1 : i32, i32, i32
  }
  func.func @transform_4(%arg0: i32) -> (i32, i32) {
    %c0_i32 = arith.constant 0 : i32
    %c0_i32_0 = arith.constant 0 : i32
    %c0_i32_1 = arith.constant 0 : i32
    return %c0_i32, %c0_i32_0 : i32, i32
  }
  func.func @transform_5(%arg0: i32) -> (i32, i32, i32) {
    %c0_i32 = arith.constant 0 : i32
    %c0_i32_0 = arith.constant 0 : i32
    %c0_i32_1 = arith.constant 0 : i32
    %c0_i32_2 = arith.constant 0 : i32
    return %c0_i32, %c0_i32_0, %c0_i32_1 : i32, i32, i32
  }
  func.func @transform_6(%arg0: i32) -> (i32, i32, i32) {
    %c0_i32 = arith.constant 0 : i32
    %c0_i32_0 = arith.constant 0 : i32
    %c0_i32_1 = arith.constant 0 : i32
    %c0_i32_2 = arith.constant 0 : i32
    return %c0_i32, %c0_i32_0, %c0_i32_1 : i32, i32, i32
  }
  func.func @transform_7(%arg0: i32) -> (i32, i32) {
    %c0_i32 = arith.constant 0 : i32
    %c0_i32_0 = arith.constant 0 : i32
    %c0_i32_1 = arith.constant 0 : i32
    return %c0_i32, %c0_i32_0 : i32, i32
  }
  func.func @transform_8(%arg0: i32) -> (i32, i32) {
    %c0_i32 = arith.constant 0 : i32
    %c0_i32_0 = arith.constant 0 : i32
    %c0_i32_1 = arith.constant 0 : i32
    return %c0_i32, %c0_i32_0 : i32, i32
  }
  func.func @transform_9(%arg0: i32) -> (i32, i32, i32) {
    %c0_i32 = arith.constant 0 : i32
    %c0_i32_0 = arith.constant 0 : i32
    %c0_i32_1 = arith.constant 0 : i32
    return %arg0, %c0_i32, %c0_i32_0 : i32, i32, i32
  }
}

</mosaic_0001>

<llo_original>
// kernel: squeeze.3
$region0: #{squeeze.3}
  %s0 = inlined_call_operand.vmem [shape: f32[2,128], index: 0, kind: input, shape index: {}]
  %s1 = inlined_call_operand.vmem [shape: f32[16,2,8], index: 1, kind: output, shape index: {}]
  $region1: #{squeeze.3} parent=0
    #allocation0 [shape = 'u8[65536]{0}', space=vmem, size = 0x10000, scoped, tag = 'scoped mem for output reshape']
    #allocation1 [shape = 'u8[4096]{0}', space=vmem, size = 0x1000, scoped, tag = 'scoped mem for input reshape']
    %s3 = sshll.u32 1, 2
    %s4 = ssub.s32 %s3, 1
    %v5 = vld [vmem:[%s0] sm:%s4]
    %6 = vst [vmem:[#allocation1] sm:%s4] %v5
    %v7 = vld [vmem:[#allocation1] sm:$0x3]
    %vm8 = vcmask 64512
    %9 = vst.msk [vmem:[#allocation0] sm:$0x1] %vm8, %v7
    %s10 = scalar_lea.vmem [#allocation0], 63
    %11 = vst.msk [vmem:[%s10] sm:$0x2] %vm8, %v7
    %v12 = vld [vmem:[#allocation1] sm:$0x3]
    %13 = vrot.lane.b32.xlu0 %v12, 120
    %v14 = vpop.permute.xlu0 %13
    %vm15 = vcmask 64512
    %s16 = scalar_lea.vmem [#allocation0], 1
    %17 = vst.msk [vmem:[%s16] sm:$0x1] %vm15, %v14
    %s18 = scalar_lea.vmem [#allocation0], 64
    %19 = vst.msk [vmem:[%s18] sm:$0x2] %vm15, %v14
    %v20 = vld [vmem:[#allocation1] sm:$0x3]
    %21 = vrot.lane.b32.xlu0 %v20, 112
    %v22 = vpop.permute.xlu0 %21
    %vm23 = vcmask 64512
    %s24 = scalar_lea.vmem [#allocation0], 8
    %25 = vst.msk [vmem:[%s24] sm:$0x1] %vm23, %v22
    %s26 = scalar_lea.vmem [#allocation0], 71
    %27 = vst.msk [vmem:[%s26] sm:$0x2] %vm23, %v22
    %v28 = vld [vmem:[#allocation1] sm:$0x3]
    %29 = vrot.lane.b32.xlu0 %v28, 104
    %v30 = vpop.permute.xlu0 %29
    %vm31 = vcmask 64512
    %s32 = scalar_lea.vmem [#allocation0], 9
    %33 = vst.msk [vmem:[%s32] sm:$0x1] %vm31, %v30
    %s34 = scalar_lea.vmem [#allocation0], 72
    %35 = vst.msk [vmem:[%s34] sm:$0x2] %vm31, %v30
    %v36 = vld [vmem:[#allocation1] sm:$0x3]
    %37 = vrot.lane.b32.xlu0 %v36, 96
    %v38 = vpop.permute.xlu0 %37
    %vm39 = vcmask 64512
    %s40 = scalar_lea.vmem [#allocation0], 16
    %41 = vst.msk [vmem:[%s40] sm:$0x1] %vm39, %v38
    %s42 = scalar_lea.vmem [#allocation0], 79
    %43 = vst.msk [vmem:[%s42] sm:$0x2] %vm39, %v38
    %v44 = vld [vmem:[#allocation1] sm:$0x3]
    %45 = vrot.lane.b32.xlu0 %v44, 88
    %v46 = vpop.permute.xlu0 %45
    %vm47 = vcmask 64512
    %s48 = scalar_lea.vmem [#allocation0], 17
    %49 = vst.msk [vmem:[%s48] sm:$0x1] %vm47, %v46
    %s50 = scalar_lea.vmem [#allocation0], 80
    %51 = vst.msk [vmem:[%s50] sm:$0x2] %vm47, %v46
    %v52 = vld [vmem:[#allocation1] sm:$0x3]
    %53 = vrot.lane.b32.xlu0 %v52, 80
    %v54 = vpop.permute.xlu0 %53
    %vm55 = vcmask 64512
    %s56 = scalar_lea.vmem [#allocation0], 24
    %57 = vst.msk [vmem:[%s56] sm:$0x1] %vm55, %v54
    %s58 = scalar_lea.vmem [#allocation0], 87
    %59 = vst.msk [vmem:[%s58] sm:$0x2] %vm55, %v54
    %v60 = vld [vmem:[#allocation1] sm:$0x3]
    %61 = vrot.lane.b32.xlu0 %v60, 72
    %v62 = vpop.permute.xlu0 %61
    %vm63 = vcmask 64512
    %s64 = scalar_lea.vmem [#allocation0], 25
    %65 = vst.msk [vmem:[%s64] sm:$0x1] %vm63, %v62
    %s66 = scalar_lea.vmem [#allocation0], 88
    %67 = vst.msk [vmem:[%s66] sm:$0x2] %vm63, %v62
    %v68 = vld [vmem:[#allocation1] sm:$0x3]
    %69 = vrot.lane.b32.xlu0 %v68, 64
    %v70 = vpop.permute.xlu0 %69
    %vm71 = vcmask 64512
    %s72 = scalar_lea.vmem [#allocation0], 32
    %73 = vst.msk [vmem:[%s72] sm:$0x1] %vm71, %v70
    %s74 = scalar_lea.vmem [#allocation0], 95
    %75 = vst.msk [vmem:[%s74] sm:$0x2] %vm71, %v70
    %v76 = vld [vmem:[#allocation1] sm:$0x3]
    %77 = vrot.lane.b32.xlu0 %v76, 56
    %v78 = vpop.permute.xlu0 %77
    %vm79 = vcmask 64512
    %s80 = scalar_lea.vmem [#allocation0], 33
    %81 = vst.msk [vmem:[%s80] sm:$0x1] %vm79, %v78
    %s82 = scalar_lea.vmem [#allocation0], 96
    %83 = vst.msk [vmem:[%s82] sm:$0x2] %vm79, %v78
    %v84 = vld [vmem:[#allocation1] sm:$0x3]
    %85 = vrot.lane.b32.xlu0 %v84, 48
    %v86 = vpop.permute.xlu0 %85
    %vm87 = vcmask 64512
    %s88 = scalar_lea.vmem [#allocation0], 40
    %89 = vst.msk [vmem:[%s88] sm:$0x1] %vm87, %v86
    %s90 = scalar_lea.vmem [#allocation0], 103
    %91 = vst.msk [vmem:[%s90] sm:$0x2] %vm87, %v86
    %v92 = vld [vmem:[#allocation1] sm:$0x3]
    %93 = vrot.lane.b32.xlu0 %v92, 40
    %v94 = vpop.permute.xlu0 %93
    %vm95 = vcmask 64512
    %s96 = scalar_lea.vmem [#allocation0], 41
    %97 = vst.msk [vmem:[%s96] sm:$0x1] %vm95, %v94
    %s98 = scalar_lea.vmem [#allocation0], 104
    %99 = vst.msk [vmem:[%s98] sm:$0x2] %vm95, %v94
    %v100 = vld [vmem:[#allocation1] sm:$0x3]
    %101 = vrot.lane.b32.xlu0 %v100, 32
    %v102 = vpop.permute.xlu0 %101
    %vm103 = vcmask 64512
    %s104 = scalar_lea.vmem [#allocation0], 48
    %105 = vst.msk [vmem:[%s104] sm:$0x1] %vm103, %v102
    %s106 = scalar_lea.vmem [#allocation0], 111
    %107 = vst.msk [vmem:[%s106] sm:$0x2] %vm103, %v102
    %v108 = vld [vmem:[#allocation1] sm:$0x3]
    %109 = vrot.lane.b32.xlu0 %v108, 24
    %v110 = vpop.permute.xlu0 %109
    %vm111 = vcmask 64512
    %s112 = scalar_lea.vmem [#allocation0], 49
    %113 = vst.msk [vmem:[%s112] sm:$0x1] %vm111, %v110
    %s114 = scalar_lea.vmem [#allocation0], 112
    %115 = vst.msk [vmem:[%s114] sm:$0x2] %vm111, %v110
    %v116 = vld [vmem:[#allocation1] sm:$0x3]
    %117 = vrot.lane.b32.xlu0 %v116, 16
    %v118 = vpop.permute.xlu0 %117
    %vm119 = vcmask 64512
    %s120 = scalar_lea.vmem [#allocation0], 56
    %121 = vst.msk [vmem:[%s120] sm:$0x1] %vm119, %v118
    %s122 = scalar_lea.vmem [#allocation0], 119
    %123 = vst.msk [vmem:[%s122] sm:$0x2] %vm119, %v118
    %v124 = vld [vmem:[#allocation1] sm:$0x3]
    %125 = vrot.lane.b32.xlu0 %v124, 8
    %v126 = vpop.permute.xlu0 %125
    %vm127 = vcmask 64512
    %s128 = scalar_lea.vmem [#allocation0], 57
    %129 = vst.msk [vmem:[%s128] sm:$0x1] %vm127, %v126
    %s130 = scalar_lea.vmem [#allocation0], 120
    %131 = vst.msk [vmem:[%s130] sm:$0x2] %vm127, %v126
    %s133 = sshll.u32 1, 2
    %s134 = ssub.s32 %s133, 1
    %v136 = vld [vmem:[#allocation0] sm:%s134]
    %s137 = sshll.u32 1, 2
    %s138 = ssub.s32 %s137, 1
    %139 = vst [vmem:[%s1] sm:%s138] %v136
    %s140 = scalar_lea.vmem [#allocation0], 8
    %v141 = vld [vmem:[%s140] sm:%s134]
    %s142 = sshll.u32 1, 2
    %s143 = ssub.s32 %s142, 1
    %s144 = scalar_lea.vmem %s1, 2
    %145 = vst [vmem:[%s144] sm:%s143] %v141
    %s146 = scalar_lea.vmem [#allocation0], 16
    %v147 = vld [vmem:[%s146] sm:%s134]
    %s148 = sshll.u32 1, 2
    %s149 = ssub.s32 %s148, 1
    %s150 = smul.addr 2, 2
    %s151 = scalar_lea.vmem %s1, %s150
    %152 = vst [vmem:[%s151] sm:%s149] %v147
    %s153 = scalar_lea.vmem [#allocation0], 24
    %v154 = vld [vmem:[%s153] sm:%s134]
    %s155 = sshll.u32 1, 2
    %s156 = ssub.s32 %s155, 1
    %s157 = smul.addr 2, 3
    %s158 = scalar_lea.vmem %s1, %s157
    %159 = vst [vmem:[%s158] sm:%s156] %v154
    %s160 = scalar_lea.vmem [#allocation0], 32
    %v161 = vld [vmem:[%s160] sm:%s134]
    %s162 = sshll.u32 1, 2
    %s163 = ssub.s32 %s162, 1
    %s164 = smul.addr 2, 4
    %s165 = scalar_lea.vmem %s1, %s164
    %166 = vst [vmem:[%s165] sm:%s163] %v161
    %s167 = scalar_lea.vmem [#allocation0], 40
    %v168 = vld [vmem:[%s167] sm:%s134]
    %s169 = sshll.u32 1, 2
    %s170 = ssub.s32 %s169, 1
    %s171 = smul.addr 2, 5
    %s172 = scalar_lea.vmem %s1, %s171
    %173 = vst [vmem:[%s172] sm:%s170] %v168
    %s174 = scalar_lea.vmem [#allocation0], 48
    %v175 = vld [vmem:[%s174] sm:%s134]
    %s176 = sshll.u32 1, 2
    %s177 = ssub.s32 %s176, 1
    %s178 = smul.addr 2, 6
    %s179 = scalar_lea.vmem %s1, %s178
    %180 = vst [vmem:[%s179] sm:%s177] %v175
    %s181 = scalar_lea.vmem [#allocation0], 56
    %v182 = vld [vmem:[%s181] sm:%s134]
    %s183 = sshll.u32 1, 2
    %s184 = ssub.s32 %s183, 1
    %s185 = smul.addr 2, 7
    %s186 = scalar_lea.vmem %s1, %s185
    %187 = vst [vmem:[%s186] sm:%s184] %v182
    %s188 = scalar_lea.vmem [#allocation0], 64
    %v189 = vld [vmem:[%s188] sm:%s134]
    %s190 = sshll.u32 1, 2
    %s191 = ssub.s32 %s190, 1
    %s192 = smul.addr 2, 8
    %s193 = scalar_lea.vmem %s1, %s192
    %194 = vst [vmem:[%s193] sm:%s191] %v189
    %s195 = scalar_lea.vmem [#allocation0], 72
    %v196 = vld [vmem:[%s195] sm:%s134]
    %s197 = sshll.u32 1, 2
    %s198 = ssub.s32 %s197, 1
    %s199 = smul.addr 2, 9
    %s200 = scalar_lea.vmem %s1, %s199
    %201 = vst [vmem:[%s200] sm:%s198] %v196
    %s202 = scalar_lea.vmem [#allocation0], 80
    %v203 = vld [vmem:[%s202] sm:%s134]
    %s204 = sshll.u32 1, 2
    %s205 = ssub.s32 %s204, 1
    %s206 = smul.addr 2, 10
    %s207 = scalar_lea.vmem %s1, %s206
    %208 = vst [vmem:[%s207] sm:%s205] %v203
    %s209 = scalar_lea.vmem [#allocation0], 88
    %v210 = vld [vmem:[%s209] sm:%s134]
    %s211 = sshll.u32 1, 2
    %s212 = ssub.s32 %s211, 1
    %s213 = smul.addr 2, 11
    %s214 = scalar_lea.vmem %s1, %s213
    %215 = vst [vmem:[%s214] sm:%s212] %v210
    %s216 = scalar_lea.vmem [#allocation0], 96
    %v217 = vld [vmem:[%s216] sm:%s134]
    %s218 = sshll.u32 1, 2
    %s219 = ssub.s32 %s218, 1
    %s220 = smul.addr 2, 12
    %s221 = scalar_lea.vmem %s1, %s220
    %222 = vst [vmem:[%s221] sm:%s219] %v217
    %s223 = scalar_lea.vmem [#allocation0], 104
    %v224 = vld [vmem:[%s223] sm:%s134]
    %s225 = sshll.u32 1, 2
    %s226 = ssub.s32 %s225, 1
    %s227 = smul.addr 2, 13
    %s228 = scalar_lea.vmem %s1, %s227
    %229 = vst [vmem:[%s228] sm:%s226] %v224
    %s230 = scalar_lea.vmem [#allocation0], 112
    %v231 = vld [vmem:[%s230] sm:%s134]
    %s232 = sshll.u32 1, 2
    %s233 = ssub.s32 %s232, 1
    %s234 = smul.addr 2, 14
    %s235 = scalar_lea.vmem %s1, %s234
    %236 = vst [vmem:[%s235] sm:%s233] %v231
    %s237 = scalar_lea.vmem [#allocation0], 120
    %v238 = vld [vmem:[%s237] sm:%s134]
    %s239 = sshll.u32 1, 2
    %s240 = ssub.s32 %s239, 1
    %s241 = smul.addr 2, 15
    %s242 = scalar_lea.vmem %s1, %s241
    %243 = vst [vmem:[%s242] sm:%s240] %v238

// kernel: fwd.1
$region0: #{fwd.1}
  #allocation0 [shape = 'u32[]', space=smem, size = 0x4, offset = 0x4, fixed_abs, tag = 'smem constant byte address 0x4 - core index']
  #allocation1 [shape = 'u32[144,128]{1,0:T(1,128)}', space=vmem, size = 0x12000, scoped, tag = 'internal scratch']
  %s0 = inlined_call_operand.vmem [shape: f32[2,128,32], index: 0, kind: input, shape index: {}]
  %s1 = inlined_call_operand.hbm [shape: bf16[6,32,40], index: 1, kind: input, shape index: {}]
  %s2 = inlined_call_operand.hbm [shape: f32[6,128,128], index: 2, kind: input, shape index: {}]
  %s3 = inlined_call_operand.vmem [shape: f32[2,128,128], index: 3, kind: input, shape index: {}]
  %s4 = inlined_call_operand.hbm [shape: f32[16,32], index: 4, kind: input, shape index: {}]
  %s5 = inlined_call_operand.vmem [shape: bf16[4,32,32], index: 5, kind: input, shape index: {}]
  %s6 = inlined_call_operand.hbm [shape: bf16[2,32,128], index: 6, kind: input, shape index: {}]
  %s7 = inlined_call_operand.vmem [shape: f32[2,128], index: 7, kind: input, shape index: {}]
  %s8 = inlined_call_operand.hbm [shape: bf16[128,128], index: 8, kind: input, shape index: {}]
  %s9 = inlined_call_operand.vmem [shape: f32[2,256,128], index: 9, kind: output, shape index: {}]
  %s10 = sld [smem:[#allocation0]]
  $region89: #{fwd.1} parent=0
    _
  %s12 = ssub.s32 1, %s10
  %s13 = scalar_select 0, %s12, %s10
  $region1: #{fwd.1} parent=0
    #allocation2 [shape = 'u8[49152]{0}', space=vmem, size = 0xc000, scoped, tag = 'input window, operand 1, single buffered']
    #allocation3 [shape = 's32[2]{0}', space=sflag, size = 0x8, scoped, tag = 'scoped memory for fwd.1']
    #allocation4 [shape = 'u8[393216]{0}', space=vmem, size = 0x60000, scoped, tag = 'input window, operand 2, single buffered']
    #allocation5 [shape = 's32[1]{0}', space=sflag, size = 0x4, scoped, tag = 'scoped memory for fwd.1']
    #allocation6 [shape = 'u8[8192]{0}', space=vmem, size = 0x2000, scoped, tag = 'input window, operand 4, single buffered']
    #allocation7 [shape = 'u8[16384]{0}', space=vmem, size = 0x4000, scoped, tag = 'input window, operand 6, single buffered']
    #allocation8 [shape = 's32[1]{0}', space=sflag, size = 0x4, scoped, tag = 'scoped memory for fwd.1']
    #allocation9 [shape = 'u8[32768]{0}', space=vmem, size = 0x8000, scoped, tag = 'input window, operand 8, single buffered']
    %14 = vsyncpa [#allocation3], 0
    %15 = vsyncpa [#allocation5], 0
    %16 = vsyncpa [#allocation8], 0
    loop: start=0, step=1, limit=4
    $region2: #{fwd.1} parent=1 // loop_pre_header
      _
    $region3: #{fwd.1} parent=1 // loop_header
      %s18 = sphi 0, %s22
      %p19 = scmp.ge.s32.totalorder %s18, 4
      %s28 = sphi 0, %s30
      %s31 = sphi 0, %s28
      %s32 = sphi 0, %s31
      %s48 = sphi 0, %s32
      %s52 = sphi 0, %s52
      %s54 = sphi 0, %s52
      %s55 = sphi 0, %s54
      %s69 = sphi 0, %s55
      %s73 = sphi 0, %s73
      %s75 = sphi 0, %s73
      %s76 = sphi 0, %s75
      %s90 = sphi 0, %s76
      %s94 = sphi 0, %s94
      %s96 = sphi 0, %s94
      %s97 = sphi 0, %s96
      %s111 = sphi 0, %s97
      %s115 = sphi 0, %s115
      %s117 = sphi 0, %s115
      %s118 = sphi 0, %s117
      %s132 = sphi 0, %s118
      %s136 = sphi 0, %s136
      %s138 = sphi 0, %s136
      %s139 = sphi 0, %s138
      %s153 = sphi 0, %s139
      %s157 = sphi 0, %s157
      %s159 = sphi 0, %s157
      %s160 = sphi 0, %s159
      %s174 = sphi 0, %s160
      %s178 = sphi 0, %s178
      %s180 = sphi 0, %s178
      %s181 = sphi 0, %s180
      %s195 = sphi 0, %s181
      %s199 = sphi 0, %s199
      %s201 = sphi 0, %s199
      %s202 = sphi 0, %s201
      %s216 = sphi 0, %s202
      %s222 = sphi 0, %s224
      %s225 = sphi 0, %s222
      %s226 = sphi 0, %s225
      %s242 = sphi 0, %s226
    $region4: #{fwd.1} parent=1 // loop_header_branch
      %21 = sbr.rel (%p19) target = $region8
    $region5: #{fwd.1} parent=1 // loop_body
      %s23 = ssub.s32 %s18, 1
      %s24 = ssub.s32 %s18, 2
      %s25 = sadd.s32 %s18, 1
      %s26 = ssub.s32 %s18, %s25
      %p27 = scmp.eq.s32.totalorder %s26, 0
      %s29 = sadd.s32 %s28, 1
      %s30 = scalar_select %p27, %s28, %s29
      %p33 = pneg %p27
      %p34 = scmp.eq.s32.totalorder %s18, 1
      %p35 = por %p33, %p34
      %p36 = scmp.ne.s32.totalorder %s28, %s31
      %p37 = scmp.eq.s32.totalorder %s18, 0
      %p38 = por %p36, %p37
      %p39 = scmp.ne.s32.totalorder %s28, %s31
      %p40 = scmp.eq.s32.totalorder %s23, 1
      %p41 = por %p39, %p40
      %p42 = scmp.ne.s32.totalorder %s31, %s32
      %p43 = scmp.eq.s32.totalorder %s23, 0
      %p44 = por %p42, %p43
      %p45 = scmp.ne.s32.totalorder %s31, %s32
      %p46 = scmp.eq.s32.totalorder %s24, 1
      %p47 = por %p45, %p46
      %p49 = scmp.ne.s32.totalorder %s32, %s48
      %p50 = scmp.eq.s32.totalorder %s24, 0
      %p51 = por %p49, %p50
      %s53 = sadd.s32 %s52, 1
      %p56 = scmp.eq.s32.totalorder %s18, 1
      %p57 = scmp.ne.s32.totalorder %s52, %s54
      %p58 = scmp.eq.s32.totalorder %s18, 0
      %p59 = por %p57, %p58
      %p60 = scmp.ne.s32.totalorder %s52, %s54
      %p61 = scmp.eq.s32.totalorder %s23, 1
      %p62 = por %p60, %p61
      %p63 = scmp.ne.s32.totalorder %s54, %s55
      %p64 = scmp.eq.s32.totalorder %s23, 0
      %p65 = por %p63, %p64
      %p66 = scmp.ne.s32.totalorder %s54, %s55
      %p67 = scmp.eq.s32.totalorder %s24, 1
      %p68 = por %p66, %p67
      %p70 = scmp.ne.s32.totalorder %s55, %s69
      %p71 = scmp.eq.s32.totalorder %s24, 0
      %p72 = por %p70, %p71
      %s74 = sadd.s32 %s73, 1
      %p77 = scmp.eq.s32.totalorder %s18, 1
      %p78 = scmp.ne.s32.totalorder %s73, %s75
      %p79 = scmp.eq.s32.totalorder %s18, 0
      %p80 = por %p78, %p79
      %p81 = scmp.ne.s32.totalorder %s73, %s75
      %p82 = scmp.eq.s32.totalorder %s23, 1
      %p83 = por %p81, %p82
      %p84 = scmp.ne.s32.totalorder %s75, %s76
      %p85 = scmp.eq.s32.totalorder %s23, 0
      %p86 = por %p84, %p85
      %p87 = scmp.ne.s32.totalorder %s75, %s76
      %p88 = scmp.eq.s32.totalorder %s24, 1
      %p89 = por %p87, %p88
      %p91 = scmp.ne.s32.totalorder %s76, %s90
      %p92 = scmp.eq.s32.totalorder %s24, 0
      %p93 = por %p91, %p92
      %s95 = sadd.s32 %s94, 1
      %p98 = scmp.eq.s32.totalorder %s18, 1
      %p99 = scmp.ne.s32.totalorder %s94, %s96
      %p100 = scmp.eq.s32.totalorder %s18, 0
      %p101 = por %p99, %p100
      %p102 = scmp.ne.s32.totalorder %s94, %s96
      %p103 = scmp.eq.s32.totalorder %s23, 1
      %p104 = por %p102, %p103
      %p105 = scmp.ne.s32.totalorder %s96, %s97
      %p106 = scmp.eq.s32.totalorder %s23, 0
      %p107 = por %p105, %p106
      %p108 = scmp.ne.s32.totalorder %s96, %s97
      %p109 = scmp.eq.s32.totalorder %s24, 1
      %p110 = por %p108, %p109
      %p112 = scmp.ne.s32.totalorder %s97, %s111
      %p113 = scmp.eq.s32.totalorder %s24, 0
      %p114 = por %p112, %p113
      %s116 = sadd.s32 %s115, 1
      %p119 = scmp.eq.s32.totalorder %s18, 1
      %p120 = scmp.ne.s32.totalorder %s115, %s117
      %p121 = scmp.eq.s32.totalorder %s18, 0
      %p122 = por %p120, %p121
      %p123 = scmp.ne.s32.totalorder %s115, %s117
      %p124 = scmp.eq.s32.totalorder %s23, 1
      %p125 = por %p123, %p124
      %p126 = scmp.ne.s32.totalorder %s117, %s118
      %p127 = scmp.eq.s32.totalorder %s23, 0
      %p128 = por %p126, %p127
      %p129 = scmp.ne.s32.totalorder %s117, %s118
      %p130 = scmp.eq.s32.totalorder %s24, 1
      %p131 = por %p129, %p130
      %p133 = scmp.ne.s32.totalorder %s118, %s132
      %p134 = scmp.eq.s32.totalorder %s24, 0
      %p135 = por %p133, %p134
      %s137 = sadd.s32 %s136, 1
      %p140 = scmp.eq.s32.totalorder %s18, 1
      %p141 = scmp.ne.s32.totalorder %s136, %s138
      %p142 = scmp.eq.s32.totalorder %s18, 0
      %p143 = por %p141, %p142
      %p144 = scmp.ne.s32.totalorder %s136, %s138
      %p145 = scmp.eq.s32.totalorder %s23, 1
      %p146 = por %p144, %p145
      %p147 = scmp.ne.s32.totalorder %s138, %s139
      %p148 = scmp.eq.s32.totalorder %s23, 0
      %p149 = por %p147, %p148
      %p150 = scmp.ne.s32.totalorder %s138, %s139
      %p151 = scmp.eq.s32.totalorder %s24, 1
      %p152 = por %p150, %p151
      %p154 = scmp.ne.s32.totalorder %s139, %s153
      %p155 = scmp.eq.s32.totalorder %s24, 0
      %p156 = por %p154, %p155
      %s158 = sadd.s32 %s157, 1
      %p161 = scmp.eq.s32.totalorder %s18, 1
      %p162 = scmp.ne.s32.totalorder %s157, %s159
      %p163 = scmp.eq.s32.totalorder %s18, 0
      %p164 = por %p162, %p163
      %p165 = scmp.ne.s32.totalorder %s157, %s159
      %p166 = scmp.eq.s32.totalorder %s23, 1
      %p167 = por %p165, %p166
      %p168 = scmp.ne.s32.totalorder %s159, %s160
      %p169 = scmp.eq.s32.totalorder %s23, 0
      %p170 = por %p168, %p169
      %p171 = scmp.ne.s32.totalorder %s159, %s160
      %p172 = scmp.eq.s32.totalorder %s24, 1
      %p173 = por %p171, %p172
      %p175 = scmp.ne.s32.totalorder %s160, %s174
      %p176 = scmp.eq.s32.totalorder %s24, 0
      %p177 = por %p175, %p176
      %s179 = sadd.s32 %s178, 1
      %p182 = scmp.eq.s32.totalorder %s18, 1
      %p183 = scmp.ne.s32.totalorder %s178, %s180
      %p184 = scmp.eq.s32.totalorder %s18, 0
      %p185 = por %p183, %p184
      %p186 = scmp.ne.s32.totalorder %s178, %s180
      %p187 = scmp.eq.s32.totalorder %s23, 1
      %p188 = por %p186, %p187
      %p189 = scmp.ne.s32.totalorder %s180, %s181
      %p190 = scmp.eq.s32.totalorder %s23, 0
      %p191 = por %p189, %p190
      %p192 = scmp.ne.s32.totalorder %s180, %s181
      %p193 = scmp.eq.s32.totalorder %s24, 1
      %p194 = por %p192, %p193
      %p196 = scmp.ne.s32.totalorder %s181, %s195
      %p197 = scmp.eq.s32.totalorder %s24, 0
      %p198 = por %p196, %p197
      %s200 = sadd.s32 %s199, 1
      %p203 = scmp.eq.s32.totalorder %s18, 1
      %p204 = scmp.ne.s32.totalorder %s199, %s201
      %p205 = scmp.eq.s32.totalorder %s18, 0
      %p206 = por %p204, %p205
      %p207 = scmp.ne.s32.totalorder %s199, %s201
      %p208 = scmp.eq.s32.totalorder %s23, 1
      %p209 = por %p207, %p208
      %p210 = scmp.ne.s32.totalorder %s201, %s202
      %p211 = scmp.eq.s32.totalorder %s23, 0
      %p212 = por %p210, %p211
      %p213 = scmp.ne.s32.totalorder %s201, %s202
      %p214 = scmp.eq.s32.totalorder %s24, 1
      %p215 = por %p213, %p214
      %p217 = scmp.ne.s32.totalorder %s202, %s216
      %p218 = scmp.eq.s32.totalorder %s24, 0
      %p219 = por %p217, %p218
      %s220 = ssub.s32 %s18, %s25
      %p221 = scmp.eq.s32.totalorder %s220, 0
      %s223 = sadd.s32 %s222, 1
      %s224 = scalar_select %p221, %s222, %s223
      %p227 = pneg %p221
      %p228 = scmp.eq.s32.totalorder %s18, 1
      %p229 = por %p227, %p228
      %p230 = scmp.ne.s32.totalorder %s222, %s225
      %p231 = scmp.eq.s32.totalorder %s18, 0
      %p232 = por %p230, %p231
      %p233 = scmp.ne.s32.totalorder %s222, %s225
      %p234 = scmp.eq.s32.totalorder %s23, 1
      %p235 = por %p233, %p234
      %p236 = scmp.ne.s32.totalorder %s225, %s226
      %p237 = scmp.eq.s32.totalorder %s23, 0
      %p238 = por %p236, %p237
      %p239 = scmp.ne.s32.totalorder %s225, %s226
      %p240 = scmp.eq.s32.totalorder %s24, 1
      %p241 = por %p239, %p240
      %p243 = scmp.ne.s32.totalorder %s226, %s242
      %p244 = scmp.eq.s32.totalorder %s24, 0
      %p245 = por %p243, %p244
      %p246 = scmp.le.s32.totalorder 1, %s18
      %p247 = scmp.lt.s32.totalorder %s18, 3
      %p248 = pnand %p246, %p247
      %p249 = pneg %p248
      // Predicated region
      $region9: #{fwd.1} parent=5 // pred_check
        _
      $region10: #{fwd.1} parent=5 // pred_check_branch
        %251 = sbr.rel (%p248) target = $region12
      $region11: #{fwd.1} parent=5 // pred_region
        %s252 = ssub.s32 %s18, 1
        // Predicated region
        $region13: #{fwd.1} parent=11 // pred_check
          %p253 = pneg %p65
        $region14: #{fwd.1} parent=11 // pred_check_branch
          %255 = sbr.rel (%p253) target = $region16
        $region15: #{fwd.1} parent=11 // pred_region
          %s257 = ssub.s32 1536, 1536
          %258 = vsyncadd [#allocation3], %s257
          %s259 = sshll.u32 [#allocation2], 4
          %s260 = int_to_ptr.vmem [resolvable:$true] %s259
          %265 = dma.hbm_to_vmem [thread:$0]  %s1, 1536, %s260, [#allocation3], 64, 64, 4
        $region16: #{fwd.1} parent=11 // pred_fallthru
          _
        // Predicated region
        $region17: #{fwd.1} parent=11 // pred_check
          %p266 = pneg %p86
        $region18: #{fwd.1} parent=11 // pred_check_branch
          %268 = sbr.rel (%p266) target = $region20
        $region19: #{fwd.1} parent=11 // pred_region
          %s270 = ssub.s32 12288, 12288
          %271 = vsyncadd [#allocation5], %s270
          %s272 = sshll.u32 [#allocation4], 4
          %s273 = int_to_ptr.vmem [resolvable:$true] %s272
          %278 = dma.hbm_to_vmem [thread:$0]  %s2, 12288, %s273, [#allocation5], 128, 128, 8
        $region20: #{fwd.1} parent=11 // pred_fallthru
          _
        // Predicated region
        $region21: #{fwd.1} parent=11 // pred_check
          %p279 = pneg %p107
        $region22: #{fwd.1} parent=11 // pred_check_branch
          %281 = sbr.rel (%p279) target = $region24
        $region23: #{fwd.1} parent=11 // pred_region
          _
        $region24: #{fwd.1} parent=11 // pred_fallthru
          _
        // Predicated region
        $region25: #{fwd.1} parent=11 // pred_check
          %p282 = pneg %p128
        $region26: #{fwd.1} parent=11 // pred_check_branch
          %284 = sbr.rel (%p282) target = $region28
        $region27: #{fwd.1} parent=11 // pred_region
          %s286 = ssub.s32 256, 256
          %287 = vsyncadd [#allocation5], %s286
          %s288 = sshll.u32 [#allocation6], 4
          %s289 = int_to_ptr.vmem [resolvable:$true] %s288
          %294 = dma.hbm_to_vmem [thread:$0]  %s4, 256, %s289, [#allocation5], 128, 128, 8
        $region28: #{fwd.1} parent=11 // pred_fallthru
          _
        // Predicated region
        $region29: #{fwd.1} parent=11 // pred_check
          %p295 = pneg %p149
        $region30: #{fwd.1} parent=11 // pred_check_branch
          %297 = sbr.rel (%p295) target = $region32
        $region31: #{fwd.1} parent=11 // pred_region
          _
        $region32: #{fwd.1} parent=11 // pred_fallthru
          _
        // Predicated region
        $region33: #{fwd.1} parent=11 // pred_check
          %p298 = pneg %p170
        $region34: #{fwd.1} parent=11 // pred_check_branch
          %300 = sbr.rel (%p298) target = $region36
        $region35: #{fwd.1} parent=11 // pred_region
          %s302 = ssub.s32 512, 512
          %303 = vsyncadd [#allocation8], %s302
          %s304 = sshll.u32 [#allocation7], 4
          %s305 = int_to_ptr.vmem [resolvable:$true] %s304
          %310 = dma.hbm_to_vmem [thread:$0]  %s6, 512, %s305, [#allocation8], 64, 64, 4
        $region36: #{fwd.1} parent=11 // pred_fallthru
          _
        // Predicated region
        $region37: #{fwd.1} parent=11 // pred_check
          %p311 = pneg %p191
        $region38: #{fwd.1} parent=11 // pred_check_branch
          %313 = sbr.rel (%p311) target = $region40
        $region39: #{fwd.1} parent=11 // pred_region
          _
        $region40: #{fwd.1} parent=11 // pred_fallthru
          _
        // Predicated region
        $region41: #{fwd.1} parent=11 // pred_check
          %p314 = pneg %p212
        $region42: #{fwd.1} parent=11 // pred_check_branch
          %316 = sbr.rel (%p314) target = $region44
        $region43: #{fwd.1} parent=11 // pred_region
          %s318 = ssub.s32 1024, 1024
          %319 = vsyncadd [#allocation8], %s318
          %s320 = sshll.u32 [#allocation9], 4
          %s321 = int_to_ptr.vmem [resolvable:$true] %s320
          %326 = dma.hbm_to_vmem [thread:$0]  %s8, 1024, %s321, [#allocation8], 64, 64, 4
        $region44: #{fwd.1} parent=11 // pred_fallthru
          _
      $region12: #{fwd.1} parent=5 // pred_fallthru
        _
      %p327 = scmp.lt.s32.totalorder %s18, 2
      // Predicated region
      $region45: #{fwd.1} parent=5 // pred_check
        %p328 = pneg %p327
      $region46: #{fwd.1} parent=5 // pred_check_branch
        %330 = sbr.rel (%p328) target = $region48
      $region47: #{fwd.1} parent=5 // pred_region
        // Predicated region
        $region49: #{fwd.1} parent=47 // pred_check
          %p331 = pneg %p38
        $region50: #{fwd.1} parent=47 // pred_check_branch
          %333 = sbr.rel (%p331) target = $region52
        $region51: #{fwd.1} parent=47 // pred_region
          %p334 = scmp.lt.s32.totalorder %s18, 1
          %s335 = scalar_select %p334, %s18, 1
          %s336 = smul.addr %s335, 16
          %s337 = smul.addr %s336, 8
          %s338 = scalar_lea.vmem %s0, %s337
        $region52: #{fwd.1} parent=47 // pred_fallthru
          _
      $region48: #{fwd.1} parent=5 // pred_fallthru
        _
      %p339 = scmp.le.s32.totalorder 1, %s18
      %p340 = scmp.lt.s32.totalorder %s18, 3
      %p341 = pnand %p339, %p340
      %p342 = pneg %p341
      // Predicated region
      $region53: #{fwd.1} parent=5 // pred_check
        _
      $region54: #{fwd.1} parent=5 // pred_check_branch
        %344 = sbr.rel (%p341) target = $region56
      $region55: #{fwd.1} parent=5 // pred_region
        %s345 = ssub.s32 %s18, 1
        // Predicated region
        $region57: #{fwd.1} parent=55 // pred_check
          %p346 = pneg %p65
        $region58: #{fwd.1} parent=55 // pred_check_branch
          %348 = sbr.rel (%p346) target = $region60
        $region59: #{fwd.1} parent=55 // pred_region
          %349 = dma.done [#allocation3], 1536
        $region60: #{fwd.1} parent=55 // pred_fallthru
          _
        // Predicated region
        $region61: #{fwd.1} parent=55 // pred_check
          %p350 = pneg %p86
        $region62: #{fwd.1} parent=55 // pred_check_branch
          %352 = sbr.rel (%p350) target = $region64
        $region63: #{fwd.1} parent=55 // pred_region
          %353 = dma.done [#allocation5], 12288
        $region64: #{fwd.1} parent=55 // pred_fallthru
          _
        // Predicated region
        $region65: #{fwd.1} parent=55 // pred_check
          %p354 = pneg %p128
        $region66: #{fwd.1} parent=55 // pred_check_branch
          %356 = sbr.rel (%p354) target = $region68
        $region67: #{fwd.1} parent=55 // pred_region
          %357 = dma.done [#allocation5], 256
        $region68: #{fwd.1} parent=55 // pred_fallthru
          _
        // Predicated region
        $region69: #{fwd.1} parent=55 // pred_check
          %p358 = pneg %p170
        $region70: #{fwd.1} parent=55 // pred_check_branch
          %360 = sbr.rel (%p358) target = $region72
        $region71: #{fwd.1} parent=55 // pred_region
          %361 = dma.done [#allocation8], 512
        $region72: #{fwd.1} parent=55 // pred_fallthru
          _
        // Predicated region
        $region73: #{fwd.1} parent=55 // pred_check
          %p362 = pneg %p212
        $region74: #{fwd.1} parent=55 // pred_check_branch
          %364 = sbr.rel (%p362) target = $region76
        $region75: #{fwd.1} parent=55 // pred_region
          %365 = dma.done [#allocation8], 1024
        $region76: #{fwd.1} parent=55 // pred_fallthru
          _
        %p366 = scmp.lt.s32.totalorder %s23, 1
        %s367 = scalar_select %p366, %s23, 1
        %s368 = smul.addr %s367, 16
        %s369 = smul.addr %s368, 8
        %s370 = scalar_lea.vmem %s0, %s369
        %p371 = pneg %p44
        %p372 = pneg %p41
        %p373 = pneg %p65
        %p374 = pneg %p62
        %p375 = pneg %p86
        %p376 = pneg %p83
        %p377 = pneg %p107
        %p378 = pneg %p104
        %p379 = pneg %p128
        %p380 = pneg %p125
        %p381 = pneg %p149
        %p382 = pneg %p146
        %p383 = pneg %p170
        %p384 = pneg %p167
        %p385 = pneg %p191
        %p386 = pneg %p188
        %p387 = pneg %p212
        %p388 = pneg %p209
        %p389 = pneg %p238
        %p390 = pneg %p235
        %p391 = scmp.lt.s32.totalorder %s23, 1
        %s392 = scalar_select %p391, %s23, 1
        %s393 = smul.addr %s392, 32
        %s394 = smul.addr %s393, 8
        %s395 = scalar_lea.vmem %s9, %s394
        %p396 = scmp.lt.s32.totalorder %s23, 1
        %s397 = scalar_select %p396, %s23, 1
        %s398 = smul.addr %s397, 16
        %s399 = smul.addr %s398, 8
        %s400 = scalar_lea.vmem %s0, %s399
        %p401 = scmp.lt.s32.totalorder %s23, 1
        %s402 = scalar_select %p401, %s23, 1
        %s403 = smul.addr %s402, 32
        %s404 = smul.addr %s403, 8
        %s405 = scalar_lea.vmem %s9, %s404
        %v407 = vld [vmem:[%s3] sm:$0xff]
        %v408 = vld [vmem:[%s3 + $0x8] sm:$0xff]
        %v409 = vld [vmem:[%s3 + $0x10] sm:$0xff]
        %v410 = vld [vmem:[%s3 + $0x18] sm:$0xff]
        %v411 = vld [vmem:[%s3 + $0x20] sm:$0xff]
        %v412 = vld [vmem:[%s3 + $0x28] sm:$0xff]
        %v413 = vld [vmem:[%s3 + $0x30] sm:$0xff]
        %v414 = vld [vmem:[%s3 + $0x38] sm:$0xff]
        %v415 = vld [vmem:[%s3 + $0x40] sm:$0xff]
        %v416 = vld [vmem:[%s3 + $0x48] sm:$0xff]
        %v417 = vld [vmem:[%s3 + $0x50] sm:$0xff]
        %v418 = vld [vmem:[%s3 + $0x58] sm:$0xff]
        %v419 = vld [vmem:[%s3 + $0x60] sm:$0xff]
        %v420 = vld [vmem:[%s3 + $0x68] sm:$0xff]
        %v421 = vld [vmem:[%s3 + $0x70] sm:$0xff]
        %v422 = vld [vmem:[%s3 + $0x78] sm:$0xff]
        %s423 = scalar_lea.vmem %s3, 128
        %v424 = vld [vmem:[%s423] sm:$0xff]
        %v425 = vld [vmem:[%s423 + $0x8] sm:$0xff]
        %v426 = vld [vmem:[%s423 + $0x10] sm:$0xff]
        %v427 = vld [vmem:[%s423 + $0x18] sm:$0xff]
        %v428 = vld [vmem:[%s423 + $0x20] sm:$0xff]
        %v429 = vld [vmem:[%s423 + $0x28] sm:$0xff]
        %v430 = vld [vmem:[%s423 + $0x30] sm:$0xff]
        %v431 = vld [vmem:[%s423 + $0x38] sm:$0xff]
        %v432 = vld [vmem:[%s423 + $0x40] sm:$0xff]
        %v433 = vld [vmem:[%s423 + $0x48] sm:$0xff]
        %v434 = vld [vmem:[%s423 + $0x50] sm:$0xff]
        %v435 = vld [vmem:[%s423 + $0x58] sm:$0xff]
        %v436 = vld [vmem:[%s423 + $0x60] sm:$0xff]
        %v437 = vld [vmem:[%s423 + $0x68] sm:$0xff]
        %v438 = vld [vmem:[%s423 + $0x70] sm:$0xff]
        %v439 = vld [vmem:[%s423 + $0x78] sm:$0xff]
        %v440 = vld [vmem:[%s400] sm:$0xff]
        %v441 = vld [vmem:[%s400 + $0x8] sm:$0xff]
        %v442 = vld [vmem:[%s400 + $0x10] sm:$0xff]
        %v443 = vld [vmem:[%s400 + $0x18] sm:$0xff]
        %v444 = vld [vmem:[%s400 + $0x20] sm:$0xff]
        %v445 = vld [vmem:[%s400 + $0x28] sm:$0xff]
        %v446 = vld [vmem:[%s400 + $0x30] sm:$0xff]
        %v447 = vld [vmem:[%s400 + $0x38] sm:$0xff]
        %v448 = vld [vmem:[%s400 + $0x40] sm:$0xff]
        %v449 = vld [vmem:[%s400 + $0x48] sm:$0xff]
        %v450 = vld [vmem:[%s400 + $0x50] sm:$0xff]
        %v451 = vld [vmem:[%s400 + $0x58] sm:$0xff]
        %v452 = vld [vmem:[%s400 + $0x60] sm:$0xff]
        %v453 = vld [vmem:[%s400 + $0x68] sm:$0xff]
        %v454 = vld [vmem:[%s400 + $0x70] sm:$0xff]
        %v455 = vld [vmem:[%s400 + $0x78] sm:$0xff]
        %v456 = vpack.c.bf16 %v441, %v440
        %v457 = vpack.c.bf16 %v443, %v442
        %v458 = vpack.c.bf16 %v445, %v444
        %v459 = vpack.c.bf16 %v447, %v446
        %v460 = vpack.c.bf16 %v449, %v448
        %v461 = vpack.c.bf16 %v451, %v450
        %v462 = vpack.c.bf16 %v453, %v452
        %v463 = vpack.c.bf16 %v455, %v454
        %v464 = vld [vmem:[#allocation2] sm:$0xf]
        %v465 = vld [vmem:[#allocation2 + $0x4] sm:$0xf]
        %v466 = vld [vmem:[#allocation2 + $0x8] sm:$0xf]
        %v467 = vld [vmem:[#allocation2 + $0xc] sm:$0xf]
        %v472 = vunpack.c.l.b16 %v464
        %v473 = vunpack.c.l.b16 %v465
        %v474 = vunpack.c.l.b16 %v466
        %v475 = vunpack.c.l.b16 %v467
        %v476 = vpack.c.b16 %v473, %v472
        %v477 = vpack.c.b16 %v475, %v474
        %vm480 = vcmask 261120
        %v482 = vsel %vm480, %v456, 0
        %v485 = vsel %vm480, %v457, 0
        %v488 = vsel %vm480, %v458, 0
        %v491 = vsel %vm480, %v459, 0
        %v494 = vsel %vm480, %v460, 0
        %v497 = vsel %vm480, %v461, 0
        %v500 = vsel %vm480, %v462, 0
        %v503 = vsel %vm480, %v463, 0
        %505 = vmatprep.subr.bf16.mxu0 0
        %506 = vmatpush1.bf16.msra.mxu0 0
        %507 = vmatprep.subr.bf16.mxu0 0
        %508 = vmatpush1.bf16.msra.mxu0 0
        %509 = vmatprep.subr.bf16.mxu0 0
        %510 = vmatpush1.bf16.msra.mxu0 0
        %511 = vmatprep.subr.bf16.mxu0 0
        %512 = vmatpush1.bf16.msra.mxu0 0
        %513 = vmatprep.subr.bf16.mxu0 0
        %514 = vmatpush1.bf16.msra.mxu0 0
        %515 = vmatprep.subr.bf16.mxu0 0
        %516 = vmatpush1.bf16.msra.mxu0 0
        %517 = vmatprep.subr.bf16.mxu0 0
        %518 = vmatpush1.bf16.msra.mxu0 %v477
        %519 = vmatprep.subr.bf16.mxu0 0
        %520 = vmatpush1.bf16.msra.mxu0 %v476
        %521 = vmatprep.subr.bf16.mxu0 0
        %522 = vmatpush2.bf16.msra.mxu0 0
        %523 = vmatprep.subr.bf16.mxu0 0
        %524 = vmatpush2.bf16.msra.mxu0 0
        %525 = vmatprep.subr.bf16.mxu0 0
        %526 = vmatpush2.bf16.msra.mxu0 0
        %527 = vmatprep.subr.bf16.mxu0 0
        %528 = vmatpush2.bf16.msra.mxu0 0
        %529 = vmatprep.subr.bf16.mxu0 0
        %530 = vmatpush2.bf16.msra.mxu0 0
        %531 = vmatprep.subr.bf16.mxu0 0
        %532 = vmatpush2.bf16.msra.mxu0 0
        %533 = vmatprep.subr.bf16.mxu0 0
        %534 = vmatpush2.bf16.msra.mxu0 0
        %535 = vmatprep.subr.bf16.mxu0 0
        %536 = vmatpush2.bf16.msra.mxu0 0
        %537 = vmatprep.mubr.bf16.mxu0 0
        %538 = vmatmul.mubr.bf16.gmra.mxu0 %v482
        %v539 = vpop.f32.mrf.mxu0
        %v540 = vadd.f32 0.0, %v539
        %v541 = vpop.f32.mrf.mxu0
        %v542 = vpop.f32.mrf.mxu0
        %v543 = vadd.f32 0.0, %v542
        %v544 = vpop.f32.mrf.mxu0
        %545 = vmatprep.mubr.bf16.mxu0 0
        %546 = vmatmul.mubr.bf16.gmra.mxu0 %v485
        %v547 = vpop.f32.mrf.mxu0
        %v548 = vadd.f32 0.0, %v547
        %v549 = vpop.f32.mrf.mxu0
        %v550 = vpop.f32.mrf.mxu0
        %v551 = vadd.f32 0.0, %v550
        %v552 = vpop.f32.mrf.mxu0
        %553 = vmatprep.mubr.bf16.mxu0 0
        %554 = vmatmul.mubr.bf16.gmra.mxu0 %v488
        %v555 = vpop.f32.mrf.mxu0
        %v556 = vadd.f32 0.0, %v555
        %v557 = vpop.f32.mrf.mxu0
        %v558 = vpop.f32.mrf.mxu0
        %v559 = vadd.f32 0.0, %v558
        %v560 = vpop.f32.mrf.mxu0
        %561 = vmatprep.mubr.bf16.mxu0 0
        %562 = vmatmul.mubr.bf16.gmra.mxu0 %v491
        %v563 = vpop.f32.mrf.mxu0
        %v564 = vadd.f32 0.0, %v563
        %v565 = vpop.f32.mrf.mxu0
        %v566 = vpop.f32.mrf.mxu0
        %v567 = vadd.f32 0.0, %v566
        %v568 = vpop.f32.mrf.mxu0
        %569 = vmatprep.mubr.bf16.mxu0 0
        %570 = vmatmul.mubr.bf16.gmra.mxu0 %v494
        %v571 = vpop.f32.mrf.mxu0
        %v572 = vadd.f32 0.0, %v571
        %v573 = vpop.f32.mrf.mxu0
        %v574 = vpop.f32.mrf.mxu0
        %v575 = vadd.f32 0.0, %v574
        %v576 = vpop.f32.mrf.mxu0
        %577 = vmatprep.mubr.bf16.mxu0 0
        %578 = vmatmul.mubr.bf16.gmra.mxu0 %v497
        %v579 = vpop.f32.mrf.mxu0
        %v580 = vadd.f32 0.0, %v579
        %v581 = vpop.f32.mrf.mxu0
        %v582 = vpop.f32.mrf.mxu0
        %v583 = vadd.f32 0.0, %v582
        %v584 = vpop.f32.mrf.mxu0
        %585 = vmatprep.mubr.bf16.mxu0 0
        %586 = vmatmul.mubr.bf16.gmra.mxu0 %v500
        %v587 = vpop.f32.mrf.mxu0
        %v588 = vadd.f32 0.0, %v587
        %v589 = vpop.f32.mrf.mxu0
        %v590 = vpop.f32.mrf.mxu0
        %v591 = vadd.f32 0.0, %v590
        %v592 = vpop.f32.mrf.mxu0
        %593 = vmatprep.mubr.bf16.mxu0 0
        %594 = vmatmul.mubr.bf16.gmra.mxu0 %v503
        %v595 = vpop.f32.mrf.mxu0
        %v596 = vadd.f32 0.0, %v595
        %v597 = vpop.f32.mrf.mxu0
        %v598 = vpop.f32.mrf.mxu0
        %v599 = vadd.f32 0.0, %v598
        %v600 = vpop.f32.mrf.mxu0
        %601 = vdwg.mxu0
        %v602 = vld [vmem:[#allocation6] sm:$0x1]
        %v604 = vsel %vm480, %v602, 0
        %v607 = vsel %vm480, %v540, 0
        %v610 = vsel %vm480, %v543, 0
        %v613 = vsel %vm480, %v548, 0
        %v616 = vsel %vm480, %v551, 0
        %v619 = vsel %vm480, %v556, 0
        %v622 = vsel %vm480, %v559, 0
        %v625 = vsel %vm480, %v564, 0
        %v628 = vsel %vm480, %v567, 0
        %v631 = vsel %vm480, %v572, 0
        %v634 = vsel %vm480, %v575, 0
        %v637 = vsel %vm480, %v580, 0
        %v640 = vsel %vm480, %v583, 0
        %v643 = vsel %vm480, %v588, 0
        %v646 = vsel %vm480, %v591, 0
        %v649 = vsel %vm480, %v596, 0
        %v652 = vsel %vm480, %v599, 0
        %654 = vmatprep.subr.mxu0 0.0
        %655 = vmatpush1.xpose.msra.mxu0 %v652
        %656 = vmatprep.subr.mxu0 0.0
        %657 = vmatpush1.xpose.msra.mxu0 %v649
        %658 = vmatprep.subr.mxu0 0.0
        %659 = vmatpush1.xpose.msra.mxu0 %v646
        %660 = vmatprep.subr.mxu0 0.0
        %661 = vmatpush1.xpose.msra.mxu0 %v643
        %662 = vmatprep.subr.mxu0 0.0
        %663 = vmatpush1.xpose.msra.mxu0 %v640
        %664 = vmatprep.subr.mxu0 0.0
        %665 = vmatpush1.xpose.msra.mxu0 %v637
        %666 = vmatprep.subr.mxu0 0.0
        %667 = vmatpush1.xpose.msra.mxu0 %v634
        %668 = vmatprep.subr.mxu0 0.0
        %669 = vmatpush1.xpose.msra.mxu0 %v631
        %670 = vmatprep.subr.mxu0 0.0
        %671 = vmatpush1.xpose.msra.mxu0 %v628
        %672 = vmatprep.subr.mxu0 0.0
        %673 = vmatpush1.xpose.msra.mxu0 %v625
        %674 = vmatprep.subr.mxu0 0.0
        %675 = vmatpush1.xpose.msra.mxu0 %v622
        %676 = vmatprep.subr.mxu0 0.0
        %677 = vmatpush1.xpose.msra.mxu0 %v619
        %678 = vmatprep.subr.mxu0 0.0
        %679 = vmatpush1.xpose.msra.mxu0 %v616
        %680 = vmatprep.subr.mxu0 0.0
        %681 = vmatpush1.xpose.msra.mxu0 %v613
        %682 = vmatprep.subr.mxu0 0.0
        %683 = vmatpush1.xpose.msra.mxu0 %v610
        %684 = vmatprep.subr.mxu0 0.0
        %685 = vmatpush1.xpose.msra.mxu0 %v607
        %686 = vmatprep.subr.mxu0 0.0
        %687 = vmatpush2.xpose.msra.mxu0 0.0
        %688 = vmatprep.subr.mxu0 0.0
        %689 = vmatpush2.xpose.msra.mxu0 0.0
        %690 = vmatprep.subr.mxu0 0.0
        %691 = vmatpush2.xpose.msra.mxu0 0.0
        %692 = vmatprep.subr.mxu0 0.0
        %693 = vmatpush2.xpose.msra.mxu0 0.0
        %694 = vmatprep.subr.mxu0 0.0
        %695 = vmatpush2.xpose.msra.mxu0 0.0
        %696 = vmatprep.subr.mxu0 0.0
        %697 = vmatpush2.xpose.msra.mxu0 0.0
        %698 = vmatprep.subr.mxu0 0.0
        %699 = vmatpush2.xpose.msra.mxu0 0.0
        %700 = vmatprep.subr.mxu0 0.0
        %701 = vmatpush2.xpose.msra.mxu0 0.0
        %702 = vmatprep.subr.mxu0 0.0
        %703 = vmatpush2.xpose.msra.mxu0 0.0
        %704 = vmatprep.subr.mxu0 0.0
        %705 = vmatpush2.xpose.msra.mxu0 0.0
        %706 = vmatprep.subr.mxu0 0.0
        %707 = vmatpush2.xpose.msra.mxu0 0.0
        %708 = vmatprep.subr.mxu0 0.0
        %709 = vmatpush2.xpose.msra.mxu0 0.0
        %710 = vmatprep.subr.mxu0 0.0
        %711 = vmatpush2.xpose.msra.mxu0 0.0
        %712 = vmatprep.subr.mxu0 0.0
        %713 = vmatpush2.xpose.msra.mxu0 0.0
        %714 = vmatprep.subr.mxu0 0.0
        %715 = vmatpush2.xpose.msra.mxu0 0.0
        %716 = vmatprep.subr.mxu0 0.0
        %717 = vmatpush2.xpose.msra.mxu0 0.0
        %718 = vmatprep.mubr.f32.mxu0 0.0
        %719 = vmatmul.mubr.f32.gmra.mxu0 %v604
        %v720 = vpop.f32.mrf.mxu0
        %v721 = vadd.f32 0.0, %v720
        %v722 = vpop.f32.mrf.mxu0
        %723 = vdwg.mxu0
        %724 = vset.pattern.permute.xlu0 32
        %725 = vperm.xlu0 %724, %v540
        %v726 = vpop.permute.xlu0 %725
        %728 = vset.pattern.permute.xlu0 32
        %729 = vperm.xlu0 %728, %v543
        %v730 = vpop.permute.xlu0 %729
        %732 = vset.pattern.permute.xlu0 32
        %733 = vperm.xlu0 %732, %v548
        %v734 = vpop.permute.xlu0 %733
        %736 = vset.pattern.permute.xlu0 32
        %737 = vperm.xlu0 %736, %v551
        %v738 = vpop.permute.xlu0 %737
        %740 = vset.pattern.permute.xlu0 32
        %741 = vperm.xlu0 %740, %v556
        %v742 = vpop.permute.xlu0 %741
        %744 = vset.pattern.permute.xlu0 32
        %745 = vperm.xlu0 %744, %v559
        %v746 = vpop.permute.xlu0 %745
        %748 = vset.pattern.permute.xlu0 32
        %749 = vperm.xlu0 %748, %v564
        %v750 = vpop.permute.xlu0 %749
        %752 = vset.pattern.permute.xlu0 32
        %753 = vperm.xlu0 %752, %v567
        %v754 = vpop.permute.xlu0 %753
        %756 = vset.pattern.permute.xlu0 32
        %757 = vperm.xlu0 %756, %v572
        %v758 = vpop.permute.xlu0 %757
        %760 = vset.pattern.permute.xlu0 32
        %761 = vperm.xlu0 %760, %v575
        %v762 = vpop.permute.xlu0 %761
        %764 = vset.pattern.permute.xlu0 32
        %765 = vperm.xlu0 %764, %v580
        %v766 = vpop.permute.xlu0 %765
        %768 = vset.pattern.permute.xlu0 32
        %769 = vperm.xlu0 %768, %v583
        %v770 = vpop.permute.xlu0 %769
        %772 = vset.pattern.permute.xlu0 32
        %773 = vperm.xlu0 %772, %v588
        %v774 = vpop.permute.xlu0 %773
        %776 = vset.pattern.permute.xlu0 32
        %777 = vperm.xlu0 %776, %v591
        %v778 = vpop.permute.xlu0 %777
        %780 = vset.pattern.permute.xlu0 32
        %781 = vperm.xlu0 %780, %v596
        %v782 = vpop.permute.xlu0 %781
        %784 = vset.pattern.permute.xlu0 32
        %785 = vperm.xlu0 %784, %v599
        %v786 = vpop.permute.xlu0 %785
        %v788 = vlaneseq
        %v789 = vshrl.u32 %v788, 7
        %v790 = vsub.s32 0, %v789
        %v791 = vrot.slane %v721, %v790
        %v792 = vadd.f32 %v726, %v791
        %v793 = vadd.f32 %v730, %v791
        %v794 = vadd.f32 %v734, %v791
        %v795 = vadd.f32 %v738, %v791
        %v796 = vadd.f32 %v742, %v791
        %v797 = vadd.f32 %v746, %v791
        %v798 = vadd.f32 %v750, %v791
        %v799 = vadd.f32 %v754, %v791
        %v800 = vadd.f32 %v758, %v791
        %v801 = vadd.f32 %v762, %v791
        %v802 = vadd.f32 %v766, %v791
        %v803 = vadd.f32 %v770, %v791
        %v804 = vadd.f32 %v774, %v791
        %v805 = vadd.f32 %v778, %v791
        %v806 = vadd.f32 %v782, %v791
        %v807 = vadd.f32 %v786, %v791
        %v808 = vld [vmem:[#allocation4] sm:$0xff]
        %v809 = vld [vmem:[#allocation4 + $0x8] sm:$0xff]
        %v810 = vld [vmem:[#allocation4 + $0x10] sm:$0xff]
        %v811 = vld [vmem:[#allocation4 + $0x18] sm:$0xff]
        %v812 = vld [vmem:[#allocation4 + $0x20] sm:$0xff]
        %v813 = vld [vmem:[#allocation4 + $0x28] sm:$0xff]
        %v814 = vld [vmem:[#allocation4 + $0x30] sm:$0xff]
        %v815 = vld [vmem:[#allocation4 + $0x38] sm:$0xff]
        %v816 = vld [vmem:[#allocation4 + $0x40] sm:$0xff]
        %v817 = vld [vmem:[#allocation4 + $0x48] sm:$0xff]
        %v818 = vld [vmem:[#allocation4 + $0x50] sm:$0xff]
        %v819 = vld [vmem:[#allocation4 + $0x58] sm:$0xff]
        %v820 = vld [vmem:[#allocation4 + $0x60] sm:$0xff]
        %v821 = vld [vmem:[#allocation4 + $0x68] sm:$0xff]
        %v822 = vld [vmem:[#allocation4 + $0x70] sm:$0xff]
        %v823 = vld [vmem:[#allocation4 + $0x78] sm:$0xff]
        %v824 = vadd.f32 %v792, %v808
        %v825 = vadd.f32 %v793, %v809
        %v826 = vadd.f32 %v794, %v810
        %v827 = vadd.f32 %v795, %v811
        %v828 = vadd.f32 %v796, %v812
        %v829 = vadd.f32 %v797, %v813
        %v830 = vadd.f32 %v798, %v814
        %v831 = vadd.f32 %v799, %v815
        %v832 = vadd.f32 %v800, %v816
        %v833 = vadd.f32 %v801, %v817
        %v834 = vadd.f32 %v802, %v818
        %v835 = vadd.f32 %v803, %v819
        %v836 = vadd.f32 %v804, %v820
        %v837 = vadd.f32 %v805, %v821
        %v838 = vadd.f32 %v806, %v822
        %v839 = vadd.f32 %v807, %v823
        %vm840 = vcmp.gt.f32.partialorder %v824, 0.0
        %vm841 = vcmp.gt.f32.partialorder %v825, 0.0
        %vm842 = vcmp.gt.f32.partialorder %v826, 0.0
        %vm843 = vcmp.gt.f32.partialorder %v827, 0.0
        %vm844 = vcmp.gt.f32.partialorder %v828, 0.0
        %vm845 = vcmp.gt.f32.partialorder %v829, 0.0
        %vm846 = vcmp.gt.f32.partialorder %v830, 0.0
        %vm847 = vcmp.gt.f32.partialorder %v831, 0.0
        %vm848 = vcmp.gt.f32.partialorder %v832, 0.0
        %vm849 = vcmp.gt.f32.partialorder %v833, 0.0
        %vm850 = vcmp.gt.f32.partialorder %v834, 0.0
        %vm851 = vcmp.gt.f32.partialorder %v835, 0.0
        %vm852 = vcmp.gt.f32.partialorder %v836, 0.0
        %vm853 = vcmp.gt.f32.partialorder %v837, 0.0
        %vm854 = vcmp.gt.f32.partialorder %v838, 0.0
        %vm855 = vcmp.gt.f32.partialorder %v839, 0.0
        %v856 = vmul.f32 %v824, 0.2
        %v857 = vmul.f32 %v825, 0.2
        %v858 = vmul.f32 %v826, 0.2
        %v859 = vmul.f32 %v827, 0.2
        %v860 = vmul.f32 %v828, 0.2
        %v861 = vmul.f32 %v829, 0.2
        %v862 = vmul.f32 %v830, 0.2
        %v863 = vmul.f32 %v831, 0.2
        %v864 = vmul.f32 %v832, 0.2
        %v865 = vmul.f32 %v833, 0.2
        %v866 = vmul.f32 %v834, 0.2
        %v867 = vmul.f32 %v835, 0.2
        %v868 = vmul.f32 %v836, 0.2
        %v869 = vmul.f32 %v837, 0.2
        %v870 = vmul.f32 %v838, 0.2
        %v871 = vmul.f32 %v839, 0.2
        %v872 = vsel %vm840, %v824, %v856
        %v873 = vsel %vm841, %v825, %v857
        %v874 = vsel %vm842, %v826, %v858
        %v875 = vsel %vm843, %v827, %v859
        %v876 = vsel %vm844, %v828, %v860
        %v877 = vsel %vm845, %v829, %v861
        %v878 = vsel %vm846, %v830, %v862
        %v879 = vsel %vm847, %v831, %v863
        %v880 = vsel %vm848, %v832, %v864
        %v881 = vsel %vm849, %v833, %v865
        %v882 = vsel %vm850, %v834, %v866
        %v883 = vsel %vm851, %v835, %v867
        %v884 = vsel %vm852, %v836, %v868
        %v885 = vsel %vm853, %v837, %v869
        %v886 = vsel %vm854, %v838, %v870
        %v887 = vsel %vm855, %v839, %v871
        %888 = vmax.xlane.f32.xlu0 %v872
        %v889 = vpop.xlane.xlu0 %888
        %890 = vmax.xlane.f32.xlu0 %v873
        %v891 = vpop.xlane.xlu0 %890
        %892 = vmax.xlane.f32.xlu0 %v874
        %v893 = vpop.xlane.xlu0 %892
        %894 = vmax.xlane.f32.xlu0 %v875
        %v895 = vpop.xlane.xlu0 %894
        %896 = vmax.xlane.f32.xlu0 %v876
        %v897 = vpop.xlane.xlu0 %896
        %898 = vmax.xlane.f32.xlu0 %v877
        %v899 = vpop.xlane.xlu0 %898
        %900 = vmax.xlane.f32.xlu0 %v878
        %v901 = vpop.xlane.xlu0 %900
        %902 = vmax.xlane.f32.xlu0 %v879
        %v903 = vpop.xlane.xlu0 %902
        %904 = vmax.xlane.f32.xlu0 %v880
        %v905 = vpop.xlane.xlu0 %904
        %906 = vmax.xlane.f32.xlu0 %v881
        %v907 = vpop.xlane.xlu0 %906
        %908 = vmax.xlane.f32.xlu0 %v882
        %v909 = vpop.xlane.xlu0 %908
        %910 = vmax.xlane.f32.xlu0 %v883
        %v911 = vpop.xlane.xlu0 %910
        %912 = vmax.xlane.f32.xlu0 %v884
        %v913 = vpop.xlane.xlu0 %912
        %914 = vmax.xlane.f32.xlu0 %v885
        %v915 = vpop.xlane.xlu0 %914
        %916 = vmax.xlane.f32.xlu0 %v886
        %v917 = vpop.xlane.xlu0 %916
        %918 = vmax.xlane.f32.xlu0 %v887
        %v919 = vpop.xlane.xlu0 %918
        %v920 = vsub.f32 %v872, %v889
        %v921 = vsub.f32 %v873, %v891
        %v922 = vsub.f32 %v874, %v893
        %v923 = vsub.f32 %v875, %v895
        %v924 = vsub.f32 %v876, %v897
        %v925 = vsub.f32 %v877, %v899
        %v926 = vsub.f32 %v878, %v901
        %v927 = vsub.f32 %v879, %v903
        %v928 = vsub.f32 %v880, %v905
        %v929 = vsub.f32 %v881, %v907
        %v930 = vsub.f32 %v882, %v909
        %v931 = vsub.f32 %v883, %v911
        %v932 = vsub.f32 %v884, %v913
        %v933 = vsub.f32 %v885, %v915
        %v934 = vsub.f32 %v886, %v917
        %v935 = vsub.f32 %v887, %v919
        %v936 = vmul.f32 %v920, 1.442695
        %v937 = vpow.pop %v936
        %v938 = vmul.f32 %v921, 1.442695
        %v939 = vpow.pop %v938
        %v940 = vmul.f32 %v922, 1.442695
        %v941 = vpow.pop %v940
        %v942 = vmul.f32 %v923, 1.442695
        %v943 = vpow.pop %v942
        %v944 = vmul.f32 %v924, 1.442695
        %v945 = vpow.pop %v944
        %v946 = vmul.f32 %v925, 1.442695
        %v947 = vpow.pop %v946
        %v948 = vmul.f32 %v926, 1.442695
        %v949 = vpow.pop %v948
        %v950 = vmul.f32 %v927, 1.442695
        %v951 = vpow.pop %v950
        %v952 = vmul.f32 %v928, 1.442695
        %v953 = vpow.pop %v952
        %v954 = vmul.f32 %v929, 1.442695
        %v955 = vpow.pop %v954
        %v956 = vmul.f32 %v930, 1.442695
        %v957 = vpow.pop %v956
        %v958 = vmul.f32 %v931, 1.442695
        %v959 = vpow.pop %v958
        %v960 = vmul.f32 %v932, 1.442695
        %v961 = vpow.pop %v960
        %v962 = vmul.f32 %v933, 1.442695
        %v963 = vpow.pop %v962
        %v964 = vmul.f32 %v934, 1.442695
        %v965 = vpow.pop %v964
        %v966 = vmul.f32 %v935, 1.442695
        %v967 = vpow.pop %v966
        %v968 = vmul.f32 %v937, %v407
        %v969 = vmul.f32 %v939, %v408
        %v970 = vmul.f32 %v941, %v409
        %v971 = vmul.f32 %v943, %v410
        %v972 = vmul.f32 %v945, %v411
        %v973 = vmul.f32 %v947, %v412
        %v974 = vmul.f32 %v949, %v413
        %v975 = vmul.f32 %v951, %v414
        %v976 = vmul.f32 %v953, %v415
        %v977 = vmul.f32 %v955, %v416
        %v978 = vmul.f32 %v957, %v417
        %v979 = vmul.f32 %v959, %v418
        %v980 = vmul.f32 %v961, %v419
        %v981 = vmul.f32 %v963, %v420
        %v982 = vmul.f32 %v965, %v421
        %v983 = vmul.f32 %v967, %v422
        %984 = vadd.xlane.f32.xlu0 %v968
        %v985 = vpop.xlane.xlu0 %984
        %986 = vadd.xlane.f32.xlu0 %v969
        %v987 = vpop.xlane.xlu0 %986
        %988 = vadd.xlane.f32.xlu0 %v970
        %v989 = vpop.xlane.xlu0 %988
        %990 = vadd.xlane.f32.xlu0 %v971
        %v991 = vpop.xlane.xlu0 %990
        %992 = vadd.xlane.f32.xlu0 %v972
        %v993 = vpop.xlane.xlu0 %992
        %994 = vadd.xlane.f32.xlu0 %v973
        %v995 = vpop.xlane.xlu0 %994
        %996 = vadd.xlane.f32.xlu0 %v974
        %v997 = vpop.xlane.xlu0 %996
        %998 = vadd.xlane.f32.xlu0 %v975
        %v999 = vpop.xlane.xlu0 %998
        %1000 = vadd.xlane.f32.xlu0 %v976
        %v1001 = vpop.xlane.xlu0 %1000
        %1002 = vadd.xlane.f32.xlu0 %v977
        %v1003 = vpop.xlane.xlu0 %1002
        %1004 = vadd.xlane.f32.xlu0 %v978
        %v1005 = vpop.xlane.xlu0 %1004
        %1006 = vadd.xlane.f32.xlu0 %v979
        %v1007 = vpop.xlane.xlu0 %1006
        %1008 = vadd.xlane.f32.xlu0 %v980
        %v1009 = vpop.xlane.xlu0 %1008
        %1010 = vadd.xlane.f32.xlu0 %v981
        %v1011 = vpop.xlane.xlu0 %1010
        %1012 = vadd.xlane.f32.xlu0 %v982
        %v1013 = vpop.xlane.xlu0 %1012
        %1014 = vadd.xlane.f32.xlu0 %v983
        %v1015 = vpop.xlane.xlu0 %1014
        %vm1016 = vcmp.gt.f32.partialorder %v985, 0.0
        %vm1017 = vcmp.gt.f32.partialorder %v987, 0.0
        %vm1018 = vcmp.gt.f32.partialorder %v989, 0.0
        %vm1019 = vcmp.gt.f32.partialorder %v991, 0.0
        %vm1020 = vcmp.gt.f32.partialorder %v993, 0.0
        %vm1021 = vcmp.gt.f32.partialorder %v995, 0.0
        %vm1022 = vcmp.gt.f32.partialorder %v997, 0.0
        %vm1023 = vcmp.gt.f32.partialorder %v999, 0.0
        %vm1024 = vcmp.gt.f32.partialorder %v1001, 0.0
        %vm1025 = vcmp.gt.f32.partialorder %v1003, 0.0
        %vm1026 = vcmp.gt.f32.partialorder %v1005, 0.0
        %vm1027 = vcmp.gt.f32.partialorder %v1007, 0.0
        %vm1028 = vcmp.gt.f32.partialorder %v1009, 0.0
        %vm1029 = vcmp.gt.f32.partialorder %v1011, 0.0
        %vm1030 = vcmp.gt.f32.partialorder %v1013, 0.0
        %vm1031 = vcmp.gt.f32.partialorder %v1015, 0.0
        %v1032 = vsel %vm1016, %v985, 1.0
        %v1033 = vsel %vm1017, %v987, 1.0
        %v1034 = vsel %vm1018, %v989, 1.0
        %v1035 = vsel %vm1019, %v991, 1.0
        %v1036 = vsel %vm1020, %v993, 1.0
        %v1037 = vsel %vm1021, %v995, 1.0
        %v1038 = vsel %vm1022, %v997, 1.0
        %v1039 = vsel %vm1023, %v999, 1.0
        %v1040 = vsel %vm1024, %v1001, 1.0
        %v1041 = vsel %vm1025, %v1003, 1.0
        %v1042 = vsel %vm1026, %v1005, 1.0
        %v1043 = vsel %vm1027, %v1007, 1.0
        %v1044 = vsel %vm1028, %v1009, 1.0
        %v1045 = vsel %vm1029, %v1011, 1.0
        %v1046 = vsel %vm1030, %v1013, 1.0
        %v1047 = vsel %vm1031, %v1015, 1.0
        %v1048 = vrcp.pop %v1032
        %v1049 = vmul.f32 %v968, %v1048
        %v1050 = vrcp.pop %v1033
        %v1051 = vmul.f32 %v969, %v1050
        %v1052 = vrcp.pop %v1034
        %v1053 = vmul.f32 %v970, %v1052
        %v1054 = vrcp.pop %v1035
        %v1055 = vmul.f32 %v971, %v1054
        %v1056 = vrcp.pop %v1036
        %v1057 = vmul.f32 %v972, %v1056
        %v1058 = vrcp.pop %v1037
        %v1059 = vmul.f32 %v973, %v1058
        %v1060 = vrcp.pop %v1038
        %v1061 = vmul.f32 %v974, %v1060
        %v1062 = vrcp.pop %v1039
        %v1063 = vmul.f32 %v975, %v1062
        %v1064 = vrcp.pop %v1040
        %v1065 = vmul.f32 %v976, %v1064
        %v1066 = vrcp.pop %v1041
        %v1067 = vmul.f32 %v977, %v1066
        %v1068 = vrcp.pop %v1042
        %v1069 = vmul.f32 %v978, %v1068
        %v1070 = vrcp.pop %v1043
        %v1071 = vmul.f32 %v979, %v1070
        %v1072 = vrcp.pop %v1044
        %v1073 = vmul.f32 %v980, %v1072
        %v1074 = vrcp.pop %v1045
        %v1075 = vmul.f32 %v981, %v1074
        %v1076 = vrcp.pop %v1046
        %v1077 = vmul.f32 %v982, %v1076
        %v1078 = vrcp.pop %v1047
        %v1079 = vmul.f32 %v983, %v1078
        %v1080 = vpack.c.bf16 %v1051, %v1049
        %v1081 = vpack.c.bf16 %v1055, %v1053
        %v1082 = vpack.c.bf16 %v1059, %v1057
        %v1083 = vpack.c.bf16 %v1063, %v1061
        %v1084 = vpack.c.bf16 %v1067, %v1065
        %v1085 = vpack.c.bf16 %v1071, %v1069
        %v1086 = vpack.c.bf16 %v1075, %v1073
        %v1087 = vpack.c.bf16 %v1079, %v1077
        %v1088 = vpack.c.bf16 %v543, %v540
        %v1089 = vpack.c.bf16 %v551, %v548
        %v1090 = vpack.c.bf16 %v559, %v556
        %v1091 = vpack.c.bf16 %v567, %v564
        %v1092 = vpack.c.bf16 %v575, %v572
        %v1093 = vpack.c.bf16 %v583, %v580
        %v1094 = vpack.c.bf16 %v591, %v588
        %v1095 = vpack.c.bf16 %v599, %v596
        %v1096 = vld [vmem:[#allocation6 + $0x6] sm:$0x1]
        %v1097 = vlaneseq
        %v1098 = vshrl.u32 %v1097, 7
        %v1099 = vsub.s32 0, %v1098
        %v1100 = vrot.slane %v1096, %v1099
        %1101 = vmatprep.subr.bf16.mxu0 0
        %1102 = vmatpush1.bf16.msra.mxu0 %v1095
        %1103 = vmatprep.subr.bf16.mxu0 0
        %1104 = vmatpush1.bf16.msra.mxu0 %v1094
        %1105 = vmatprep.subr.bf16.mxu0 0
        %1106 = vmatpush1.bf16.msra.mxu0 %v1093
        %1107 = vmatprep.subr.bf16.mxu0 0
        %1108 = vmatpush1.bf16.msra.mxu0 %v1092
        %1109 = vmatprep.subr.bf16.mxu0 0
        %1110 = vmatpush1.bf16.msra.mxu0 %v1091
        %1111 = vmatprep.subr.bf16.mxu0 0
        %1112 = vmatpush1.bf16.msra.mxu0 %v1090
        %1113 = vmatprep.subr.bf16.mxu0 0
        %1114 = vmatpush1.bf16.msra.mxu0 %v1089
        %1115 = vmatprep.subr.bf16.mxu0 0
        %1116 = vmatpush1.bf16.msra.mxu0 %v1088
        %1117 = vmatprep.subr.bf16.mxu0 0
        %1118 = vmatpush2.bf16.msra.mxu0 0
        %1119 = vmatprep.subr.bf16.mxu0 0
        %1120 = vmatpush2.bf16.msra.mxu0 0
        %1121 = vmatprep.subr.bf16.mxu0 0
        %1122 = vmatpush2.bf16.msra.mxu0 0
        %1123 = vmatprep.subr.bf16.mxu0 0
        %1124 = vmatpush2.bf16.msra.mxu0 0
        %1125 = vmatprep.subr.bf16.mxu0 0
        %1126 = vmatpush2.bf16.msra.mxu0 0
        %1127 = vmatprep.subr.bf16.mxu0 0
        %1128 = vmatpush2.bf16.msra.mxu0 0
        %1129 = vmatprep.subr.bf16.mxu0 0
        %1130 = vmatpush2.bf16.msra.mxu0 0
        %1131 = vmatprep.subr.bf16.mxu0 0
        %1132 = vmatpush2.bf16.msra.mxu0 0
        %1133 = vmatprep.mubr.bf16.mxu0 0
        %1134 = vmatmul.mubr.bf16.gmra.mxu0 %v1080
        %v1135 = vpop.f32.mrf.mxu0
        %v1136 = vadd.f32 %v1100, %v1135
        %v1137 = vpop.f32.mrf.mxu0
        %v1138 = vpop.f32.mrf.mxu0
        %v1139 = vadd.f32 %v1100, %v1138
        %v1140 = vpop.f32.mrf.mxu0
        %1141 = vmatprep.mubr.bf16.mxu0 0
        %1142 = vmatmul.mubr.bf16.gmra.mxu0 %v1081
        %v1143 = vpop.f32.mrf.mxu0
        %v1144 = vadd.f32 %v1100, %v1143
        %v1145 = vpop.f32.mrf.mxu0
        %v1146 = vpop.f32.mrf.mxu0
        %v1147 = vadd.f32 %v1100, %v1146
        %v1148 = vpop.f32.mrf.mxu0
        %1149 = vmatprep.mubr.bf16.mxu0 0
        %1150 = vmatmul.mubr.bf16.gmra.mxu0 %v1082
        %v1151 = vpop.f32.mrf.mxu0
        %v1152 = vadd.f32 %v1100, %v1151
        %v1153 = vpop.f32.mrf.mxu0
        %v1154 = vpop.f32.mrf.mxu0
        %v1155 = vadd.f32 %v1100, %v1154
        %v1156 = vpop.f32.mrf.mxu0
        %1157 = vmatprep.mubr.bf16.mxu0 0
        %1158 = vmatmul.mubr.bf16.gmra.mxu0 %v1083
        %v1159 = vpop.f32.mrf.mxu0
        %v1160 = vadd.f32 %v1100, %v1159
        %v1161 = vpop.f32.mrf.mxu0
        %v1162 = vpop.f32.mrf.mxu0
        %v1163 = vadd.f32 %v1100, %v1162
        %v1164 = vpop.f32.mrf.mxu0
        %1165 = vmatprep.mubr.bf16.mxu0 0
        %1166 = vmatmul.mubr.bf16.gmra.mxu0 %v1084
        %v1167 = vpop.f32.mrf.mxu0
        %v1168 = vadd.f32 %v1100, %v1167
        %v1169 = vpop.f32.mrf.mxu0
        %v1170 = vpop.f32.mrf.mxu0
        %v1171 = vadd.f32 %v1100, %v1170
        %v1172 = vpop.f32.mrf.mxu0
        %1173 = vmatprep.mubr.bf16.mxu0 0
        %1174 = vmatmul.mubr.bf16.gmra.mxu0 %v1085
        %v1175 = vpop.f32.mrf.mxu0
        %v1176 = vadd.f32 %v1100, %v1175
        %v1177 = vpop.f32.mrf.mxu0
        %v1178 = vpop.f32.mrf.mxu0
        %v1179 = vadd.f32 %v1100, %v1178
        %v1180 = vpop.f32.mrf.mxu0
        %1181 = vmatprep.mubr.bf16.mxu0 0
        %1182 = vmatmul.mubr.bf16.gmra.mxu0 %v1086
        %v1183 = vpop.f32.mrf.mxu0
        %v1184 = vadd.f32 %v1100, %v1183
        %v1185 = vpop.f32.mrf.mxu0
        %v1186 = vpop.f32.mrf.mxu0
        %v1187 = vadd.f32 %v1100, %v1186
        %v1188 = vpop.f32.mrf.mxu0
        %1189 = vmatprep.mubr.bf16.mxu0 0
        %1190 = vmatmul.mubr.bf16.gmra.mxu0 %v1087
        %v1191 = vpop.f32.mrf.mxu0
        %v1192 = vadd.f32 %v1100, %v1191
        %v1193 = vpop.f32.mrf.mxu0
        %v1194 = vpop.f32.mrf.mxu0
        %v1195 = vadd.f32 %v1100, %v1194
        %v1196 = vpop.f32.mrf.mxu0
        %1197 = vdwg.mxu0
        %v1198 = vmax.f32 %v1136, 0.0
        %v1199 = vmax.f32 %v1139, 0.0
        %v1200 = vmax.f32 %v1144, 0.0
        %v1201 = vmax.f32 %v1147, 0.0
        %v1202 = vmax.f32 %v1152, 0.0
        %v1203 = vmax.f32 %v1155, 0.0
        %v1204 = vmax.f32 %v1160, 0.0
        %v1205 = vmax.f32 %v1163, 0.0
        %v1206 = vmax.f32 %v1168, 0.0
        %v1207 = vmax.f32 %v1171, 0.0
        %v1208 = vmax.f32 %v1176, 0.0
        %v1209 = vmax.f32 %v1179, 0.0
        %v1210 = vmax.f32 %v1184, 0.0
        %v1211 = vmax.f32 %v1187, 0.0
        %v1212 = vmax.f32 %v1192, 0.0
        %v1213 = vmax.f32 %v1195, 0.0
        %v1214 = vpack.c.bf16 %v1199, %v1198
        %v1215 = vpack.c.bf16 %v1201, %v1200
        %v1216 = vpack.c.bf16 %v1203, %v1202
        %v1217 = vpack.c.bf16 %v1205, %v1204
        %v1218 = vpack.c.bf16 %v1207, %v1206
        %v1219 = vpack.c.bf16 %v1209, %v1208
        %v1220 = vpack.c.bf16 %v1211, %v1210
        %v1221 = vpack.c.bf16 %v1213, %v1212
        %s1222 = scalar_lea.vmem [#allocation2], 16
        %v1223 = vld [vmem:[%s1222] sm:$0xf]
        %v1224 = vld [vmem:[%s1222 + $0x4] sm:$0xf]
        %v1225 = vld [vmem:[%s1222 + $0x8] sm:$0xf]
        %v1226 = vld [vmem:[%s1222 + $0xc] sm:$0xf]
        %v1231 = vunpack.c.l.b16 %v1223
        %v1232 = vunpack.c.l.b16 %v1224
        %v1233 = vunpack.c.l.b16 %v1225
        %v1234 = vunpack.c.l.b16 %v1226
        %v1235 = vpack.c.b16 %v1232, %v1231
        %v1236 = vpack.c.b16 %v1234, %v1233
        %v1240 = vsel %vm480, %v1214, 0
        %v1243 = vsel %vm480, %v1215, 0
        %v1246 = vsel %vm480, %v1216, 0
        %v1249 = vsel %vm480, %v1217, 0
        %v1252 = vsel %vm480, %v1218, 0
        %v1255 = vsel %vm480, %v1219, 0
        %v1258 = vsel %vm480, %v1220, 0
        %v1261 = vsel %vm480, %v1221, 0
        %1263 = vmatprep.subr.bf16.mxu0 0
        %1264 = vmatpush1.bf16.msra.mxu0 0
        %1265 = vmatprep.subr.bf16.mxu0 0
        %1266 = vmatpush1.bf16.msra.mxu0 0
        %1267 = vmatprep.subr.bf16.mxu0 0
        %1268 = vmatpush1.bf16.msra.mxu0 0
        %1269 = vmatprep.subr.bf16.mxu0 0
        %1270 = vmatpush1.bf16.msra.mxu0 0
        %1271 = vmatprep.subr.bf16.mxu0 0
        %1272 = vmatpush1.bf16.msra.mxu0 0
        %1273 = vmatprep.subr.bf16.mxu0 0
        %1274 = vmatpush1.bf16.msra.mxu0 0
        %1275 = vmatprep.subr.bf16.mxu0 0
        %1276 = vmatpush1.bf16.msra.mxu0 %v1236
        %1277 = vmatprep.subr.bf16.mxu0 0
        %1278 = vmatpush1.bf16.msra.mxu0 %v1235
        %1279 = vmatprep.subr.bf16.mxu0 0
        %1280 = vmatpush2.bf16.msra.mxu0 0
        %1281 = vmatprep.subr.bf16.mxu0 0
        %1282 = vmatpush2.bf16.msra.mxu0 0
        %1283 = vmatprep.subr.bf16.mxu0 0
        %1284 = vmatpush2.bf16.msra.mxu0 0
        %1285 = vmatprep.subr.bf16.mxu0 0
        %1286 = vmatpush2.bf16.msra.mxu0 0
        %1287 = vmatprep.subr.bf16.mxu0 0
        %1288 = vmatpush2.bf16.msra.mxu0 0
        %1289 = vmatprep.subr.bf16.mxu0 0
        %1290 = vmatpush2.bf16.msra.mxu0 0
        %1291 = vmatprep.subr.bf16.mxu0 0
        %1292 = vmatpush2.bf16.msra.mxu0 0
        %1293 = vmatprep.subr.bf16.mxu0 0
        %1294 = vmatpush2.bf16.msra.mxu0 0
        %1295 = vmatprep.mubr.bf16.mxu0 0
        %1296 = vmatmul.mubr.bf16.gmra.mxu0 %v1240
        %v1297 = vpop.f32.mrf.mxu0
        %v1298 = vadd.f32 0.0, %v1297
        %v1299 = vpop.f32.mrf.mxu0
        %v1300 = vpop.f32.mrf.mxu0
        %v1301 = vadd.f32 0.0, %v1300
        %v1302 = vpop.f32.mrf.mxu0
        %1303 = vmatprep.mubr.bf16.mxu0 0
        %1304 = vmatmul.mubr.bf16.gmra.mxu0 %v1243
        %v1305 = vpop.f32.mrf.mxu0
        %v1306 = vadd.f32 0.0, %v1305
        %v1307 = vpop.f32.mrf.mxu0
        %v1308 = vpop.f32.mrf.mxu0
        %v1309 = vadd.f32 0.0, %v1308
        %v1310 = vpop.f32.mrf.mxu0
        %1311 = vmatprep.mubr.bf16.mxu0 0
        %1312 = vmatmul.mubr.bf16.gmra.mxu0 %v1246
        %v1313 = vpop.f32.mrf.mxu0
        %v1314 = vadd.f32 0.0, %v1313
        %v1315 = vpop.f32.mrf.mxu0
        %v1316 = vpop.f32.mrf.mxu0
        %v1317 = vadd.f32 0.0, %v1316
        %v1318 = vpop.f32.mrf.mxu0
        %1319 = vmatprep.mubr.bf16.mxu0 0
        %1320 = vmatmul.mubr.bf16.gmra.mxu0 %v1249
        %v1321 = vpop.f32.mrf.mxu0
        %v1322 = vadd.f32 0.0, %v1321
        %v1323 = vpop.f32.mrf.mxu0
        %v1324 = vpop.f32.mrf.mxu0
        %v1325 = vadd.f32 0.0, %v1324
        %v1326 = vpop.f32.mrf.mxu0
        %1327 = vmatprep.mubr.bf16.mxu0 0
        %1328 = vmatmul.mubr.bf16.gmra.mxu0 %v1252
        %v1329 = vpop.f32.mrf.mxu0
        %v1330 = vadd.f32 0.0, %v1329
        %v1331 = vpop.f32.mrf.mxu0
        %v1332 = vpop.f32.mrf.mxu0
        %v1333 = vadd.f32 0.0, %v1332
        %v1334 = vpop.f32.mrf.mxu0
        %1335 = vmatprep.mubr.bf16.mxu0 0
        %1336 = vmatmul.mubr.bf16.gmra.mxu0 %v1255
        %v1337 = vpop.f32.mrf.mxu0
        %v1338 = vadd.f32 0.0, %v1337
        %v1339 = vpop.f32.mrf.mxu0
        %v1340 = vpop.f32.mrf.mxu0
        %v1341 = vadd.f32 0.0, %v1340
        %v1342 = vpop.f32.mrf.mxu0
        %1343 = vmatprep.mubr.bf16.mxu0 0
        %1344 = vmatmul.mubr.bf16.gmra.mxu0 %v1258
        %v1345 = vpop.f32.mrf.mxu0
        %v1346 = vadd.f32 0.0, %v1345
        %v1347 = vpop.f32.mrf.mxu0
        %v1348 = vpop.f32.mrf.mxu0
        %v1349 = vadd.f32 0.0, %v1348
        %v1350 = vpop.f32.mrf.mxu0
        %1351 = vmatprep.mubr.bf16.mxu0 0
        %1352 = vmatmul.mubr.bf16.gmra.mxu0 %v1261
        %v1353 = vpop.f32.mrf.mxu0
        %v1354 = vadd.f32 0.0, %v1353
        %v1355 = vpop.f32.mrf.mxu0
        %v1356 = vpop.f32.mrf.mxu0
        %v1357 = vadd.f32 0.0, %v1356
        %v1358 = vpop.f32.mrf.mxu0
        %1359 = vdwg.mxu0
        %v1360 = vld [vmem:[#allocation6 + $0x1] sm:$0x1]
        %v1362 = vsel %vm480, %v1360, 0
        %v1365 = vsel %vm480, %v1298, 0
        %v1368 = vsel %vm480, %v1301, 0
        %v1371 = vsel %vm480, %v1306, 0
        %v1374 = vsel %vm480, %v1309, 0
        %v1377 = vsel %vm480, %v1314, 0
        %v1380 = vsel %vm480, %v1317, 0
        %v1383 = vsel %vm480, %v1322, 0
        %v1386 = vsel %vm480, %v1325, 0
        %v1389 = vsel %vm480, %v1330, 0
        %v1392 = vsel %vm480, %v1333, 0
        %v1395 = vsel %vm480, %v1338, 0
        %v1398 = vsel %vm480, %v1341, 0
        %v1401 = vsel %vm480, %v1346, 0
        %v1404 = vsel %vm480, %v1349, 0
        %v1407 = vsel %vm480, %v1354, 0
        %v1410 = vsel %vm480, %v1357, 0
        %1412 = vmatprep.subr.mxu0 0.0
        %1413 = vmatpush1.xpose.msra.mxu0 %v1410
        %1414 = vmatprep.subr.mxu0 0.0
        %1415 = vmatpush1.xpose.msra.mxu0 %v1407
        %1416 = vmatprep.subr.mxu0 0.0
        %1417 = vmatpush1.xpose.msra.mxu0 %v1404
        %1418 = vmatprep.subr.mxu0 0.0
        %1419 = vmatpush1.xpose.msra.mxu0 %v1401
        %1420 = vmatprep.subr.mxu0 0.0
        %1421 = vmatpush1.xpose.msra.mxu0 %v1398
        %1422 = vmatprep.subr.mxu0 0.0
        %1423 = vmatpush1.xpose.msra.mxu0 %v1395
        %1424 = vmatprep.subr.mxu0 0.0
        %1425 = vmatpush1.xpose.msra.mxu0 %v1392
        %1426 = vmatprep.subr.mxu0 0.0
        %1427 = vmatpush1.xpose.msra.mxu0 %v1389
        %1428 = vmatprep.subr.mxu0 0.0
        %1429 = vmatpush1.xpose.msra.mxu0 %v1386
        %1430 = vmatprep.subr.mxu0 0.0
        %1431 = vmatpush1.xpose.msra.mxu0 %v1383
        %1432 = vmatprep.subr.mxu0 0.0
        %1433 = vmatpush1.xpose.msra.mxu0 %v1380
        %1434 = vmatprep.subr.mxu0 0.0
        %1435 = vmatpush1.xpose.msra.mxu0 %v1377
        %1436 = vmatprep.subr.mxu0 0.0
        %1437 = vmatpush1.xpose.msra.mxu0 %v1374
        %1438 = vmatprep.subr.mxu0 0.0
        %1439 = vmatpush1.xpose.msra.mxu0 %v1371
        %1440 = vmatprep.subr.mxu0 0.0
        %1441 = vmatpush1.xpose.msra.mxu0 %v1368
        %1442 = vmatprep.subr.mxu0 0.0
        %1443 = vmatpush1.xpose.msra.mxu0 %v1365
        %1444 = vmatprep.subr.mxu0 0.0
        %1445 = vmatpush2.xpose.msra.mxu0 0.0
        %1446 = vmatprep.subr.mxu0 0.0
        %1447 = vmatpush2.xpose.msra.mxu0 0.0
        %1448 = vmatprep.subr.mxu0 0.0
        %1449 = vmatpush2.xpose.msra.mxu0 0.0
        %1450 = vmatprep.subr.mxu0 0.0
        %1451 = vmatpush2.xpose.msra.mxu0 0.0
        %1452 = vmatprep.subr.mxu0 0.0
        %1453 = vmatpush2.xpose.msra.mxu0 0.0
        %1454 = vmatprep.subr.mxu0 0.0
        %1455 = vmatpush2.xpose.msra.mxu0 0.0
        %1456 = vmatprep.subr.mxu0 0.0
        %1457 = vmatpush2.xpose.msra.mxu0 0.0
        %1458 = vmatprep.subr.mxu0 0.0
        %1459 = vmatpush2.xpose.msra.mxu0 0.0
        %1460 = vmatprep.subr.mxu0 0.0
        %1461 = vmatpush2.xpose.msra.mxu0 0.0
        %1462 = vmatprep.subr.mxu0 0.0
        %1463 = vmatpush2.xpose.msra.mxu0 0.0
        %1464 = vmatprep.subr.mxu0 0.0
        %1465 = vmatpush2.xpose.msra.mxu0 0.0
        %1466 = vmatprep.subr.mxu0 0.0
        %1467 = vmatpush2.xpose.msra.mxu0 0.0
        %1468 = vmatprep.subr.mxu0 0.0
        %1469 = vmatpush2.xpose.msra.mxu0 0.0
        %1470 = vmatprep.subr.mxu0 0.0
        %1471 = vmatpush2.xpose.msra.mxu0 0.0
        %1472 = vmatprep.subr.mxu0 0.0
        %1473 = vmatpush2.xpose.msra.mxu0 0.0
        %1474 = vmatprep.subr.mxu0 0.0
        %1475 = vmatpush2.xpose.msra.mxu0 0.0
        %1476 = vmatprep.mubr.f32.mxu0 0.0
        %1477 = vmatmul.mubr.f32.gmra.mxu0 %v1362
        %v1478 = vpop.f32.mrf.mxu0
        %v1479 = vadd.f32 0.0, %v1478
        %v1480 = vpop.f32.mrf.mxu0
        %1481 = vdwg.mxu0
        %1482 = vset.pattern.permute.xlu0 32
        %1483 = vperm.xlu0 %1482, %v1298
        %v1484 = vpop.permute.xlu0 %1483
        %1486 = vset.pattern.permute.xlu0 32
        %1487 = vperm.xlu0 %1486, %v1301
        %v1488 = vpop.permute.xlu0 %1487
        %1490 = vset.pattern.permute.xlu0 32
        %1491 = vperm.xlu0 %1490, %v1306
        %v1492 = vpop.permute.xlu0 %1491
        %1494 = vset.pattern.permute.xlu0 32
        %1495 = vperm.xlu0 %1494, %v1309
        %v1496 = vpop.permute.xlu0 %1495
        %1498 = vset.pattern.permute.xlu0 32
        %1499 = vperm.xlu0 %1498, %v1314
        %v1500 = vpop.permute.xlu0 %1499
        %1502 = vset.pattern.permute.xlu0 32
        %1503 = vperm.xlu0 %1502, %v1317
        %v1504 = vpop.permute.xlu0 %1503
        %1506 = vset.pattern.permute.xlu0 32
        %1507 = vperm.xlu0 %1506, %v1322
        %v1508 = vpop.permute.xlu0 %1507
        %1510 = vset.pattern.permute.xlu0 32
        %1511 = vperm.xlu0 %1510, %v1325
        %v1512 = vpop.permute.xlu0 %1511
        %1514 = vset.pattern.permute.xlu0 32
        %1515 = vperm.xlu0 %1514, %v1330
        %v1516 = vpop.permute.xlu0 %1515
        %1518 = vset.pattern.permute.xlu0 32
        %1519 = vperm.xlu0 %1518, %v1333
        %v1520 = vpop.permute.xlu0 %1519
        %1522 = vset.pattern.permute.xlu0 32
        %1523 = vperm.xlu0 %1522, %v1338
        %v1524 = vpop.permute.xlu0 %1523
        %1526 = vset.pattern.permute.xlu0 32
        %1527 = vperm.xlu0 %1526, %v1341
        %v1528 = vpop.permute.xlu0 %1527
        %1530 = vset.pattern.permute.xlu0 32
        %1531 = vperm.xlu0 %1530, %v1346
        %v1532 = vpop.permute.xlu0 %1531
        %1534 = vset.pattern.permute.xlu0 32
        %1535 = vperm.xlu0 %1534, %v1349
        %v1536 = vpop.permute.xlu0 %1535
        %1538 = vset.pattern.permute.xlu0 32
        %1539 = vperm.xlu0 %1538, %v1354
        %v1540 = vpop.permute.xlu0 %1539
        %1542 = vset.pattern.permute.xlu0 32
        %1543 = vperm.xlu0 %1542, %v1357
        %v1544 = vpop.permute.xlu0 %1543
        %v1546 = vlaneseq
        %v1547 = vshrl.u32 %v1546, 7
        %v1548 = vsub.s32 0, %v1547
        %v1549 = vrot.slane %v1479, %v1548
        %v1550 = vadd.f32 %v1484, %v1549
        %v1551 = vadd.f32 %v1488, %v1549
        %v1552 = vadd.f32 %v1492, %v1549
        %v1553 = vadd.f32 %v1496, %v1549
        %v1554 = vadd.f32 %v1500, %v1549
        %v1555 = vadd.f32 %v1504, %v1549
        %v1556 = vadd.f32 %v1508, %v1549
        %v1557 = vadd.f32 %v1512, %v1549
        %v1558 = vadd.f32 %v1516, %v1549
        %v1559 = vadd.f32 %v1520, %v1549
        %v1560 = vadd.f32 %v1524, %v1549
        %v1561 = vadd.f32 %v1528, %v1549
        %v1562 = vadd.f32 %v1532, %v1549
        %v1563 = vadd.f32 %v1536, %v1549
        %v1564 = vadd.f32 %v1540, %v1549
        %v1565 = vadd.f32 %v1544, %v1549
        %s1566 = scalar_lea.vmem [#allocation4], 128
        %v1567 = vld [vmem:[%s1566] sm:$0xff]
        %v1568 = vld [vmem:[%s1566 + $0x8] sm:$0xff]
        %v1569 = vld [vmem:[%s1566 + $0x10] sm:$0xff]
        %v1570 = vld [vmem:[%s1566 + $0x18] sm:$0xff]
        %v1571 = vld [vmem:[%s1566 + $0x20] sm:$0xff]
        %v1572 = vld [vmem:[%s1566 + $0x28] sm:$0xff]
        %v1573 = vld [vmem:[%s1566 + $0x30] sm:$0xff]
        %v1574 = vld [vmem:[%s1566 + $0x38] sm:$0xff]
        %v1575 = vld [vmem:[%s1566 + $0x40] sm:$0xff]
        %v1576 = vld [vmem:[%s1566 + $0x48] sm:$0xff]
        %v1577 = vld [vmem:[%s1566 + $0x50] sm:$0xff]
        %v1578 = vld [vmem:[%s1566 + $0x58] sm:$0xff]
        %v1579 = vld [vmem:[%s1566 + $0x60] sm:$0xff]
        %v1580 = vld [vmem:[%s1566 + $0x68] sm:$0xff]
        %v1581 = vld [vmem:[%s1566 + $0x70] sm:$0xff]
        %v1582 = vld [vmem:[%s1566 + $0x78] sm:$0xff]
        %v1583 = vadd.f32 %v1550, %v1567
        %v1584 = vadd.f32 %v1551, %v1568
        %v1585 = vadd.f32 %v1552, %v1569
        %v1586 = vadd.f32 %v1553, %v1570
        %v1587 = vadd.f32 %v1554, %v1571
        %v1588 = vadd.f32 %v1555, %v1572
        %v1589 = vadd.f32 %v1556, %v1573
        %v1590 = vadd.f32 %v1557, %v1574
        %v1591 = vadd.f32 %v1558, %v1575
        %v1592 = vadd.f32 %v1559, %v1576
        %v1593 = vadd.f32 %v1560, %v1577
        %v1594 = vadd.f32 %v1561, %v1578
        %v1595 = vadd.f32 %v1562, %v1579
        %v1596 = vadd.f32 %v1563, %v1580
        %v1597 = vadd.f32 %v1564, %v1581
        %v1598 = vadd.f32 %v1565, %v1582
        %vm1599 = vcmp.gt.f32.partialorder %v1583, 0.0
        %vm1600 = vcmp.gt.f32.partialorder %v1584, 0.0
        %vm1601 = vcmp.gt.f32.partialorder %v1585, 0.0
        %vm1602 = vcmp.gt.f32.partialorder %v1586, 0.0
        %vm1603 = vcmp.gt.f32.partialorder %v1587, 0.0
        %vm1604 = vcmp.gt.f32.partialorder %v1588, 0.0
        %vm1605 = vcmp.gt.f32.partialorder %v1589, 0.0
        %vm1606 = vcmp.gt.f32.partialorder %v1590, 0.0
        %vm1607 = vcmp.gt.f32.partialorder %v1591, 0.0
        %vm1608 = vcmp.gt.f32.partialorder %v1592, 0.0
        %vm1609 = vcmp.gt.f32.partialorder %v1593, 0.0
        %vm1610 = vcmp.gt.f32.partialorder %v1594, 0.0
        %vm1611 = vcmp.gt.f32.partialorder %v1595, 0.0
        %vm1612 = vcmp.gt.f32.partialorder %v1596, 0.0
        %vm1613 = vcmp.gt.f32.partialorder %v1597, 0.0
        %vm1614 = vcmp.gt.f32.partialorder %v1598, 0.0
        %v1615 = vmul.f32 %v1583, 0.2
        %v1616 = vmul.f32 %v1584, 0.2
        %v1617 = vmul.f32 %v1585, 0.2
        %v1618 = vmul.f32 %v1586, 0.2
        %v1619 = vmul.f32 %v1587, 0.2
        %v1620 = vmul.f32 %v1588, 0.2
        %v1621 = vmul.f32 %v1589, 0.2
        %v1622 = vmul.f32 %v1590, 0.2
        %v1623 = vmul.f32 %v1591, 0.2
        %v1624 = vmul.f32 %v1592, 0.2
        %v1625 = vmul.f32 %v1593, 0.2
        %v1626 = vmul.f32 %v1594, 0.2
        %v1627 = vmul.f32 %v1595, 0.2
        %v1628 = vmul.f32 %v1596, 0.2
        %v1629 = vmul.f32 %v1597, 0.2
        %v1630 = vmul.f32 %v1598, 0.2
        %v1631 = vsel %vm1599, %v1583, %v1615
        %v1632 = vsel %vm1600, %v1584, %v1616
        %v1633 = vsel %vm1601, %v1585, %v1617
        %v1634 = vsel %vm1602, %v1586, %v1618
        %v1635 = vsel %vm1603, %v1587, %v1619
        %v1636 = vsel %vm1604, %v1588, %v1620
        %v1637 = vsel %vm1605, %v1589, %v1621
        %v1638 = vsel %vm1606, %v1590, %v1622
        %v1639 = vsel %vm1607, %v1591, %v1623
        %v1640 = vsel %vm1608, %v1592, %v1624
        %v1641 = vsel %vm1609, %v1593, %v1625
        %v1642 = vsel %vm1610, %v1594, %v1626
        %v1643 = vsel %vm1611, %v1595, %v1627
        %v1644 = vsel %vm1612, %v1596, %v1628
        %v1645 = vsel %vm1613, %v1597, %v1629
        %v1646 = vsel %vm1614, %v1598, %v1630
        %1647 = vmax.xlane.f32.xlu0 %v1631
        %v1648 = vpop.xlane.xlu0 %1647
        %1649 = vmax.xlane.f32.xlu0 %v1632
        %v1650 = vpop.xlane.xlu0 %1649
        %1651 = vmax.xlane.f32.xlu0 %v1633
        %v1652 = vpop.xlane.xlu0 %1651
        %1653 = vmax.xlane.f32.xlu0 %v1634
        %v1654 = vpop.xlane.xlu0 %1653
        %1655 = vmax.xlane.f32.xlu0 %v1635
        %v1656 = vpop.xlane.xlu0 %1655
        %1657 = vmax.xlane.f32.xlu0 %v1636
        %v1658 = vpop.xlane.xlu0 %1657
        %1659 = vmax.xlane.f32.xlu0 %v1637
        %v1660 = vpop.xlane.xlu0 %1659
        %1661 = vmax.xlane.f32.xlu0 %v1638
        %v1662 = vpop.xlane.xlu0 %1661
        %1663 = vmax.xlane.f32.xlu0 %v1639
        %v1664 = vpop.xlane.xlu0 %1663
        %1665 = vmax.xlane.f32.xlu0 %v1640
        %v1666 = vpop.xlane.xlu0 %1665
        %1667 = vmax.xlane.f32.xlu0 %v1641
        %v1668 = vpop.xlane.xlu0 %1667
        %1669 = vmax.xlane.f32.xlu0 %v1642
        %v1670 = vpop.xlane.xlu0 %1669
        %1671 = vmax.xlane.f32.xlu0 %v1643
        %v1672 = vpop.xlane.xlu0 %1671
        %1673 = vmax.xlane.f32.xlu0 %v1644
        %v1674 = vpop.xlane.xlu0 %1673
        %1675 = vmax.xlane.f32.xlu0 %v1645
        %v1676 = vpop.xlane.xlu0 %1675
        %1677 = vmax.xlane.f32.xlu0 %v1646
        %v1678 = vpop.xlane.xlu0 %1677
        %v1679 = vsub.f32 %v1631, %v1648
        %v1680 = vsub.f32 %v1632, %v1650
        %v1681 = vsub.f32 %v1633, %v1652
        %v1682 = vsub.f32 %v1634, %v1654
        %v1683 = vsub.f32 %v1635, %v1656
        %v1684 = vsub.f32 %v1636, %v1658
        %v1685 = vsub.f32 %v1637, %v1660
        %v1686 = vsub.f32 %v1638, %v1662
        %v1687 = vsub.f32 %v1639, %v1664
        %v1688 = vsub.f32 %v1640, %v1666
        %v1689 = vsub.f32 %v1641, %v1668
        %v1690 = vsub.f32 %v1642, %v1670
        %v1691 = vsub.f32 %v1643, %v1672
        %v1692 = vsub.f32 %v1644, %v1674
        %v1693 = vsub.f32 %v1645, %v1676
        %v1694 = vsub.f32 %v1646, %v1678
        %v1695 = vmul.f32 %v1679, 1.442695
        %v1696 = vpow.pop %v1695
        %v1697 = vmul.f32 %v1680, 1.442695
        %v1698 = vpow.pop %v1697
        %v1699 = vmul.f32 %v1681, 1.442695
        %v1700 = vpow.pop %v1699
        %v1701 = vmul.f32 %v1682, 1.442695
        %v1702 = vpow.pop %v1701
        %v1703 = vmul.f32 %v1683, 1.442695
        %v1704 = vpow.pop %v1703
        %v1705 = vmul.f32 %v1684, 1.442695
        %v1706 = vpow.pop %v1705
        %v1707 = vmul.f32 %v1685, 1.442695
        %v1708 = vpow.pop %v1707
        %v1709 = vmul.f32 %v1686, 1.442695
        %v1710 = vpow.pop %v1709
        %v1711 = vmul.f32 %v1687, 1.442695
        %v1712 = vpow.pop %v1711
        %v1713 = vmul.f32 %v1688, 1.442695
        %v1714 = vpow.pop %v1713
        %v1715 = vmul.f32 %v1689, 1.442695
        %v1716 = vpow.pop %v1715
        %v1717 = vmul.f32 %v1690, 1.442695
        %v1718 = vpow.pop %v1717
        %v1719 = vmul.f32 %v1691, 1.442695
        %v1720 = vpow.pop %v1719
        %v1721 = vmul.f32 %v1692, 1.442695
        %v1722 = vpow.pop %v1721
        %v1723 = vmul.f32 %v1693, 1.442695
        %v1724 = vpow.pop %v1723
        %v1725 = vmul.f32 %v1694, 1.442695
        %v1726 = vpow.pop %v1725
        %v1727 = vmul.f32 %v1696, %v407
        %v1728 = vmul.f32 %v1698, %v408
        %v1729 = vmul.f32 %v1700, %v409
        %v1730 = vmul.f32 %v1702, %v410
        %v1731 = vmul.f32 %v1704, %v411
        %v1732 = vmul.f32 %v1706, %v412
        %v1733 = vmul.f32 %v1708, %v413
        %v1734 = vmul.f32 %v1710, %v414
        %v1735 = vmul.f32 %v1712, %v415
        %v1736 = vmul.f32 %v1714, %v416
        %v1737 = vmul.f32 %v1716, %v417
        %v1738 = vmul.f32 %v1718, %v418
        %v1739 = vmul.f32 %v1720, %v419
        %v1740 = vmul.f32 %v1722, %v420
        %v1741 = vmul.f32 %v1724, %v421
        %v1742 = vmul.f32 %v1726, %v422
        %1743 = vadd.xlane.f32.xlu0 %v1727
        %v1744 = vpop.xlane.xlu0 %1743
        %1745 = vadd.xlane.f32.xlu0 %v1728
        %v1746 = vpop.xlane.xlu0 %1745
        %1747 = vadd.xlane.f32.xlu0 %v1729
        %v1748 = vpop.xlane.xlu0 %1747
        %1749 = vadd.xlane.f32.xlu0 %v1730
        %v1750 = vpop.xlane.xlu0 %1749
        %1751 = vadd.xlane.f32.xlu0 %v1731
        %v1752 = vpop.xlane.xlu0 %1751
        %1753 = vadd.xlane.f32.xlu0 %v1732
        %v1754 = vpop.xlane.xlu0 %1753
        %1755 = vadd.xlane.f32.xlu0 %v1733
        %v1756 = vpop.xlane.xlu0 %1755
        %1757 = vadd.xlane.f32.xlu0 %v1734
        %v1758 = vpop.xlane.xlu0 %1757
        %1759 = vadd.xlane.f32.xlu0 %v1735
        %v1760 = vpop.xlane.xlu0 %1759
        %1761 = vadd.xlane.f32.xlu0 %v1736
        %v1762 = vpop.xlane.xlu0 %1761
        %1763 = vadd.xlane.f32.xlu0 %v1737
        %v1764 = vpop.xlane.xlu0 %1763
        %1765 = vadd.xlane.f32.xlu0 %v1738
        %v1766 = vpop.xlane.xlu0 %1765
        %1767 = vadd.xlane.f32.xlu0 %v1739
        %v1768 = vpop.xlane.xlu0 %1767
        %1769 = vadd.xlane.f32.xlu0 %v1740
        %v1770 = vpop.xlane.xlu0 %1769
        %1771 = vadd.xlane.f32.xlu0 %v1741
        %v1772 = vpop.xlane.xlu0 %1771
        %1773 = vadd.xlane.f32.xlu0 %v1742
        %v1774 = vpop.xlane.xlu0 %1773
        %vm1775 = vcmp.gt.f32.partialorder %v1744, 0.0
        %vm1776 = vcmp.gt.f32.partialorder %v1746, 0.0
        %vm1777 = vcmp.gt.f32.partialorder %v1748, 0.0
        %vm1778 = vcmp.gt.f32.partialorder %v1750, 0.0
        %vm1779 = vcmp.gt.f32.partialorder %v1752, 0.0
        %vm1780 = vcmp.gt.f32.partialorder %v1754, 0.0
        %vm1781 = vcmp.gt.f32.partialorder %v1756, 0.0
        %vm1782 = vcmp.gt.f32.partialorder %v1758, 0.0
        %vm1783 = vcmp.gt.f32.partialorder %v1760, 0.0
        %vm1784 = vcmp.gt.f32.partialorder %v1762, 0.0
        %vm1785 = vcmp.gt.f32.partialorder %v1764, 0.0
        %vm1786 = vcmp.gt.f32.partialorder %v1766, 0.0
        %vm1787 = vcmp.gt.f32.partialorder %v1768, 0.0
        %vm1788 = vcmp.gt.f32.partialorder %v1770, 0.0
        %vm1789 = vcmp.gt.f32.partialorder %v1772, 0.0
        %vm1790 = vcmp.gt.f32.partialorder %v1774, 0.0
        %v1791 = vsel %vm1775, %v1744, 1.0
        %v1792 = vsel %vm1776, %v1746, 1.0
        %v1793 = vsel %vm1777, %v1748, 1.0
        %v1794 = vsel %vm1778, %v1750, 1.0
        %v1795 = vsel %vm1779, %v1752, 1.0
        %v1796 = vsel %vm1780, %v1754, 1.0
        %v1797 = vsel %vm1781, %v1756, 1.0
        %v1798 = vsel %vm1782, %v1758, 1.0
        %v1799 = vsel %vm1783, %v1760, 1.0
        %v1800 = vsel %vm1784, %v1762, 1.0
        %v1801 = vsel %vm1785, %v1764, 1.0
        %v1802 = vsel %vm1786, %v1766, 1.0
        %v1803 = vsel %vm1787, %v1768, 1.0
        %v1804 = vsel %vm1788, %v1770, 1.0
        %v1805 = vsel %vm1789, %v1772, 1.0
        %v1806 = vsel %vm1790, %v1774, 1.0
        %v1807 = vrcp.pop %v1791
        %v1808 = vmul.f32 %v1727, %v1807
        %v1809 = vrcp.pop %v1792
        %v1810 = vmul.f32 %v1728, %v1809
        %v1811 = vrcp.pop %v1793
        %v1812 = vmul.f32 %v1729, %v1811
        %v1813 = vrcp.pop %v1794
        %v1814 = vmul.f32 %v1730, %v1813
        %v1815 = vrcp.pop %v1795
        %v1816 = vmul.f32 %v1731, %v1815
        %v1817 = vrcp.pop %v1796
        %v1818 = vmul.f32 %v1732, %v1817
        %v1819 = vrcp.pop %v1797
        %v1820 = vmul.f32 %v1733, %v1819
        %v1821 = vrcp.pop %v1798
        %v1822 = vmul.f32 %v1734, %v1821
        %v1823 = vrcp.pop %v1799
        %v1824 = vmul.f32 %v1735, %v1823
        %v1825 = vrcp.pop %v1800
        %v1826 = vmul.f32 %v1736, %v1825
        %v1827 = vrcp.pop %v1801
        %v1828 = vmul.f32 %v1737, %v1827
        %v1829 = vrcp.pop %v1802
        %v1830 = vmul.f32 %v1738, %v1829
        %v1831 = vrcp.pop %v1803
        %v1832 = vmul.f32 %v1739, %v1831
        %v1833 = vrcp.pop %v1804
        %v1834 = vmul.f32 %v1740, %v1833
        %v1835 = vrcp.pop %v1805
        %v1836 = vmul.f32 %v1741, %v1835
        %v1837 = vrcp.pop %v1806
        %v1838 = vmul.f32 %v1742, %v1837
        %v1839 = vpack.c.bf16 %v1810, %v1808
        %v1840 = vpack.c.bf16 %v1814, %v1812
        %v1841 = vpack.c.bf16 %v1818, %v1816
        %v1842 = vpack.c.bf16 %v1822, %v1820
        %v1843 = vpack.c.bf16 %v1826, %v1824
        %v1844 = vpack.c.bf16 %v1830, %v1828
        %v1845 = vpack.c.bf16 %v1834, %v1832
        %v1846 = vpack.c.bf16 %v1838, %v1836
        %v1847 = vpack.c.bf16 %v1301, %v1298
        %v1848 = vpack.c.bf16 %v1309, %v1306
        %v1849 = vpack.c.bf16 %v1317, %v1314
        %v1850 = vpack.c.bf16 %v1325, %v1322
        %v1851 = vpack.c.bf16 %v1333, %v1330
        %v1852 = vpack.c.bf16 %v1341, %v1338
        %v1853 = vpack.c.bf16 %v1349, %v1346
        %v1854 = vpack.c.bf16 %v1357, %v1354
        %v1855 = vld [vmem:[#allocation6 + $0x7] sm:$0x1]
        %v1856 = vlaneseq
        %v1857 = vshrl.u32 %v1856, 7
        %v1858 = vsub.s32 0, %v1857
        %v1859 = vrot.slane %v1855, %v1858
        %1860 = vmatprep.subr.bf16.mxu0 0
        %1861 = vmatpush1.bf16.msra.mxu0 %v1854
        %1862 = vmatprep.subr.bf16.mxu0 0
        %1863 = vmatpush1.bf16.msra.mxu0 %v1853
        %1864 = vmatprep.subr.bf16.mxu0 0
        %1865 = vmatpush1.bf16.msra.mxu0 %v1852
        %1866 = vmatprep.subr.bf16.mxu0 0
        %1867 = vmatpush1.bf16.msra.mxu0 %v1851
        %1868 = vmatprep.subr.bf16.mxu0 0
        %1869 = vmatpush1.bf16.msra.mxu0 %v1850
        %1870 = vmatprep.subr.bf16.mxu0 0
        %1871 = vmatpush1.bf16.msra.mxu0 %v1849
        %1872 = vmatprep.subr.bf16.mxu0 0
        %1873 = vmatpush1.bf16.msra.mxu0 %v1848
        %1874 = vmatprep.subr.bf16.mxu0 0
        %1875 = vmatpush1.bf16.msra.mxu0 %v1847
        %1876 = vmatprep.subr.bf16.mxu0 0
        %1877 = vmatpush2.bf16.msra.mxu0 0
        %1878 = vmatprep.subr.bf16.mxu0 0
        %1879 = vmatpush2.bf16.msra.mxu0 0
        %1880 = vmatprep.subr.bf16.mxu0 0
        %1881 = vmatpush2.bf16.msra.mxu0 0
        %1882 = vmatprep.subr.bf16.mxu0 0
        %1883 = vmatpush2.bf16.msra.mxu0 0
        %1884 = vmatprep.subr.bf16.mxu0 0
        %1885 = vmatpush2.bf16.msra.mxu0 0
        %1886 = vmatprep.subr.bf16.mxu0 0
        %1887 = vmatpush2.bf16.msra.mxu0 0
        %1888 = vmatprep.subr.bf16.mxu0 0
        %1889 = vmatpush2.bf16.msra.mxu0 0
        %1890 = vmatprep.subr.bf16.mxu0 0
        %1891 = vmatpush2.bf16.msra.mxu0 0
        %1892 = vmatprep.mubr.bf16.mxu0 0
        %1893 = vmatmul.mubr.bf16.gmra.mxu0 %v1839
        %v1894 = vpop.f32.mrf.mxu0
        %v1895 = vadd.f32 %v1859, %v1894
        %v1896 = vpop.f32.mrf.mxu0
        %v1897 = vpop.f32.mrf.mxu0
        %v1898 = vadd.f32 %v1859, %v1897
        %v1899 = vpop.f32.mrf.mxu0
        %1900 = vmatprep.mubr.bf16.mxu0 0
        %1901 = vmatmul.mubr.bf16.gmra.mxu0 %v1840
        %v1902 = vpop.f32.mrf.mxu0
        %v1903 = vadd.f32 %v1859, %v1902
        %v1904 = vpop.f32.mrf.mxu0
        %v1905 = vpop.f32.mrf.mxu0
        %v1906 = vadd.f32 %v1859, %v1905
        %v1907 = vpop.f32.mrf.mxu0
        %1908 = vmatprep.mubr.bf16.mxu0 0
        %1909 = vmatmul.mubr.bf16.gmra.mxu0 %v1841
        %v1910 = vpop.f32.mrf.mxu0
        %v1911 = vadd.f32 %v1859, %v1910
        %v1912 = vpop.f32.mrf.mxu0
        %v1913 = vpop.f32.mrf.mxu0
        %v1914 = vadd.f32 %v1859, %v1913
        %v1915 = vpop.f32.mrf.mxu0
        %1916 = vmatprep.mubr.bf16.mxu0 0
        %1917 = vmatmul.mubr.bf16.gmra.mxu0 %v1842
        %v1918 = vpop.f32.mrf.mxu0
        %v1919 = vadd.f32 %v1859, %v1918
        %v1920 = vpop.f32.mrf.mxu0
        %v1921 = vpop.f32.mrf.mxu0
        %v1922 = vadd.f32 %v1859, %v1921
        %v1923 = vpop.f32.mrf.mxu0
        %1924 = vmatprep.mubr.bf16.mxu0 0
        %1925 = vmatmul.mubr.bf16.gmra.mxu0 %v1843
        %v1926 = vpop.f32.mrf.mxu0
        %v1927 = vadd.f32 %v1859, %v1926
        %v1928 = vpop.f32.mrf.mxu0
        %v1929 = vpop.f32.mrf.mxu0
        %v1930 = vadd.f32 %v1859, %v1929
        %v1931 = vpop.f32.mrf.mxu0
        %1932 = vmatprep.mubr.bf16.mxu0 0
        %1933 = vmatmul.mubr.bf16.gmra.mxu0 %v1844
        %v1934 = vpop.f32.mrf.mxu0
        %v1935 = vadd.f32 %v1859, %v1934
        %v1936 = vpop.f32.mrf.mxu0
        %v1937 = vpop.f32.mrf.mxu0
        %v1938 = vadd.f32 %v1859, %v1937
        %v1939 = vpop.f32.mrf.mxu0
        %1940 = vmatprep.mubr.bf16.mxu0 0
        %1941 = vmatmul.mubr.bf16.gmra.mxu0 %v1845
        %v1942 = vpop.f32.mrf.mxu0
        %v1943 = vadd.f32 %v1859, %v1942
        %v1944 = vpop.f32.mrf.mxu0
        %v1945 = vpop.f32.mrf.mxu0
        %v1946 = vadd.f32 %v1859, %v1945
        %v1947 = vpop.f32.mrf.mxu0
        %1948 = vmatprep.mubr.bf16.mxu0 0
        %1949 = vmatmul.mubr.bf16.gmra.mxu0 %v1846
        %v1950 = vpop.f32.mrf.mxu0
        %v1951 = vadd.f32 %v1859, %v1950
        %v1952 = vpop.f32.mrf.mxu0
        %v1953 = vpop.f32.mrf.mxu0
        %v1954 = vadd.f32 %v1859, %v1953
        %v1955 = vpop.f32.mrf.mxu0
        %1956 = vdwg.mxu0
        %v1957 = vmax.f32 %v1895, 0.0
        %v1958 = vmax.f32 %v1898, 0.0
        %v1959 = vmax.f32 %v1903, 0.0
        %v1960 = vmax.f32 %v1906, 0.0
        %v1961 = vmax.f32 %v1911, 0.0
        %v1962 = vmax.f32 %v1914, 0.0
        %v1963 = vmax.f32 %v1919, 0.0
        %v1964 = vmax.f32 %v1922, 0.0
        %v1965 = vmax.f32 %v1927, 0.0
        %v1966 = vmax.f32 %v1930, 0.0
        %v1967 = vmax.f32 %v1935, 0.0
        %v1968 = vmax.f32 %v1938, 0.0
        %v1969 = vmax.f32 %v1943, 0.0
        %v1970 = vmax.f32 %v1946, 0.0
        %v1971 = vmax.f32 %v1951, 0.0
        %v1972 = vmax.f32 %v1954, 0.0
        %v1973 = vpack.c.bf16 %v1958, %v1957
        %v1974 = vpack.c.bf16 %v1960, %v1959
        %v1975 = vpack.c.bf16 %v1962, %v1961
        %v1976 = vpack.c.bf16 %v1964, %v1963
        %v1977 = vpack.c.bf16 %v1966, %v1965
        %v1978 = vpack.c.bf16 %v1968, %v1967
        %v1979 = vpack.c.bf16 %v1970, %v1969
        %v1980 = vpack.c.bf16 %v1972, %v1971
        %s1981 = scalar_lea.vmem [#allocation2], 32
        %v1982 = vld [vmem:[%s1981] sm:$0xf]
        %v1983 = vld [vmem:[%s1981 + $0x4] sm:$0xf]
        %v1984 = vld [vmem:[%s1981 + $0x8] sm:$0xf]
        %v1985 = vld [vmem:[%s1981 + $0xc] sm:$0xf]
        %v1990 = vunpack.c.l.b16 %v1982
        %v1991 = vunpack.c.l.b16 %v1983
        %v1992 = vunpack.c.l.b16 %v1984
        %v1993 = vunpack.c.l.b16 %v1985
        %v1994 = vpack.c.b16 %v1991, %v1990
        %v1995 = vpack.c.b16 %v1993, %v1992
        %v1999 = vsel %vm480, %v1973, 0
        %v2002 = vsel %vm480, %v1974, 0
        %v2005 = vsel %vm480, %v1975, 0
        %v2008 = vsel %vm480, %v1976, 0
        %v2011 = vsel %vm480, %v1977, 0
        %v2014 = vsel %vm480, %v1978, 0
        %v2017 = vsel %vm480, %v1979, 0
        %v2020 = vsel %vm480, %v1980, 0
        %2022 = vmatprep.subr.bf16.mxu0 0
        %2023 = vmatpush1.bf16.msra.mxu0 0
        %2024 = vmatprep.subr.bf16.mxu0 0
        %2025 = vmatpush1.bf16.msra.mxu0 0
        %2026 = vmatprep.subr.bf16.mxu0 0
        %2027 = vmatpush1.bf16.msra.mxu0 0
        %2028 = vmatprep.subr.bf16.mxu0 0
        %2029 = vmatpush1.bf16.msra.mxu0 0
        %2030 = vmatprep.subr.bf16.mxu0 0
        %2031 = vmatpush1.bf16.msra.mxu0 0
        %2032 = vmatprep.subr.bf16.mxu0 0
        %2033 = vmatpush1.bf16.msra.mxu0 0
        %2034 = vmatprep.subr.bf16.mxu0 0
        %2035 = vmatpush1.bf16.msra.mxu0 %v1995
        %2036 = vmatprep.subr.bf16.mxu0 0
        %2037 = vmatpush1.bf16.msra.mxu0 %v1994
        %2038 = vmatprep.subr.bf16.mxu0 0
        %2039 = vmatpush2.bf16.msra.mxu0 0
        %2040 = vmatprep.subr.bf16.mxu0 0
        %2041 = vmatpush2.bf16.msra.mxu0 0
        %2042 = vmatprep.subr.bf16.mxu0 0
        %2043 = vmatpush2.bf16.msra.mxu0 0
        %2044 = vmatprep.subr.bf16.mxu0 0
        %2045 = vmatpush2.bf16.msra.mxu0 0
        %2046 = vmatprep.subr.bf16.mxu0 0
        %2047 = vmatpush2.bf16.msra.mxu0 0
        %2048 = vmatprep.subr.bf16.mxu0 0
        %2049 = vmatpush2.bf16.msra.mxu0 0
        %2050 = vmatprep.subr.bf16.mxu0 0
        %2051 = vmatpush2.bf16.msra.mxu0 0
        %2052 = vmatprep.subr.bf16.mxu0 0
        %2053 = vmatpush2.bf16.msra.mxu0 0
        %2054 = vmatprep.mubr.bf16.mxu0 0
        %2055 = vmatmul.mubr.bf16.gmra.mxu0 %v1999
        %v2056 = vpop.f32.mrf.mxu0
        %v2057 = vadd.f32 0.0, %v2056
        %v2058 = vpop.f32.mrf.mxu0
        %v2059 = vpop.f32.mrf.mxu0
        %v2060 = vadd.f32 0.0, %v2059
        %v2061 = vpop.f32.mrf.mxu0
        %2062 = vmatprep.mubr.bf16.mxu0 0
        %2063 = vmatmul.mubr.bf16.gmra.mxu0 %v2002
        %v2064 = vpop.f32.mrf.mxu0
        %v2065 = vadd.f32 0.0, %v2064
        %v2066 = vpop.f32.mrf.mxu0
        %v2067 = vpop.f32.mrf.mxu0
        %v2068 = vadd.f32 0.0, %v2067
        %v2069 = vpop.f32.mrf.mxu0
        %2070 = vmatprep.mubr.bf16.mxu0 0
        %2071 = vmatmul.mubr.bf16.gmra.mxu0 %v2005
        %v2072 = vpop.f32.mrf.mxu0
        %v2073 = vadd.f32 0.0, %v2072
        %v2074 = vpop.f32.mrf.mxu0
        %v2075 = vpop.f32.mrf.mxu0
        %v2076 = vadd.f32 0.0, %v2075
        %v2077 = vpop.f32.mrf.mxu0
        %2078 = vmatprep.mubr.bf16.mxu0 0
        %2079 = vmatmul.mubr.bf16.gmra.mxu0 %v2008
        %v2080 = vpop.f32.mrf.mxu0
        %v2081 = vadd.f32 0.0, %v2080
        %v2082 = vpop.f32.mrf.mxu0
        %v2083 = vpop.f32.mrf.mxu0
        %v2084 = vadd.f32 0.0, %v2083
        %v2085 = vpop.f32.mrf.mxu0
        %2086 = vmatprep.mubr.bf16.mxu0 0
        %2087 = vmatmul.mubr.bf16.gmra.mxu0 %v2011
        %v2088 = vpop.f32.mrf.mxu0
        %v2089 = vadd.f32 0.0, %v2088
        %v2090 = vpop.f32.mrf.mxu0
        %v2091 = vpop.f32.mrf.mxu0
        %v2092 = vadd.f32 0.0, %v2091
        %v2093 = vpop.f32.mrf.mxu0
        %2094 = vmatprep.mubr.bf16.mxu0 0
        %2095 = vmatmul.mubr.bf16.gmra.mxu0 %v2014
        %v2096 = vpop.f32.mrf.mxu0
        %v2097 = vadd.f32 0.0, %v2096
        %v2098 = vpop.f32.mrf.mxu0
        %v2099 = vpop.f32.mrf.mxu0
        %v2100 = vadd.f32 0.0, %v2099
        %v2101 = vpop.f32.mrf.mxu0
        %2102 = vmatprep.mubr.bf16.mxu0 0
        %2103 = vmatmul.mubr.bf16.gmra.mxu0 %v2017
        %v2104 = vpop.f32.mrf.mxu0
        %v2105 = vadd.f32 0.0, %v2104
        %v2106 = vpop.f32.mrf.mxu0
        %v2107 = vpop.f32.mrf.mxu0
        %v2108 = vadd.f32 0.0, %v2107
        %v2109 = vpop.f32.mrf.mxu0
        %2110 = vmatprep.mubr.bf16.mxu0 0
        %2111 = vmatmul.mubr.bf16.gmra.mxu0 %v2020
        %v2112 = vpop.f32.mrf.mxu0
        %v2113 = vadd.f32 0.0, %v2112
        %v2114 = vpop.f32.mrf.mxu0
        %v2115 = vpop.f32.mrf.mxu0
        %v2116 = vadd.f32 0.0, %v2115
        %v2117 = vpop.f32.mrf.mxu0
        %2118 = vdwg.mxu0
        %v2119 = vld [vmem:[#allocation6 + $0x2] sm:$0x1]
        %v2121 = vsel %vm480, %v2119, 0
        %v2124 = vsel %vm480, %v2057, 0
        %v2127 = vsel %vm480, %v2060, 0
        %v2130 = vsel %vm480, %v2065, 0
        %v2133 = vsel %vm480, %v2068, 0
        %v2136 = vsel %vm480, %v2073, 0
        %v2139 = vsel %vm480, %v2076, 0
        %v2142 = vsel %vm480, %v2081, 0
        %v2145 = vsel %vm480, %v2084, 0
        %v2148 = vsel %vm480, %v2089, 0
        %v2151 = vsel %vm480, %v2092, 0
        %v2154 = vsel %vm480, %v2097, 0
        %v2157 = vsel %vm480, %v2100, 0
        %v2160 = vsel %vm480, %v2105, 0
        %v2163 = vsel %vm480, %v2108, 0
        %v2166 = vsel %vm480, %v2113, 0
        %v2169 = vsel %vm480, %v2116, 0
        %2171 = vmatprep.subr.mxu0 0.0
        %2172 = vmatpush1.xpose.msra.mxu0 %v2169
        %2173 = vmatprep.subr.mxu0 0.0
        %2174 = vmatpush1.xpose.msra.mxu0 %v2166
        %2175 = vmatprep.subr.mxu0 0.0
        %2176 = vmatpush1.xpose.msra.mxu0 %v2163
        %2177 = vmatprep.subr.mxu0 0.0
        %2178 = vmatpush1.xpose.msra.mxu0 %v2160
        %2179 = vmatprep.subr.mxu0 0.0
        %2180 = vmatpush1.xpose.msra.mxu0 %v2157
        %2181 = vmatprep.subr.mxu0 0.0
        %2182 = vmatpush1.xpose.msra.mxu0 %v2154
        %2183 = vmatprep.subr.mxu0 0.0
        %2184 = vmatpush1.xpose.msra.mxu0 %v2151
        %2185 = vmatprep.subr.mxu0 0.0
        %2186 = vmatpush1.xpose.msra.mxu0 %v2148
        %2187 = vmatprep.subr.mxu0 0.0
        %2188 = vmatpush1.xpose.msra.mxu0 %v2145
        %2189 = vmatprep.subr.mxu0 0.0
        %2190 = vmatpush1.xpose.msra.mxu0 %v2142
        %2191 = vmatprep.subr.mxu0 0.0
        %2192 = vmatpush1.xpose.msra.mxu0 %v2139
        %2193 = vmatprep.subr.mxu0 0.0
        %2194 = vmatpush1.xpose.msra.mxu0 %v2136
        %2195 = vmatprep.subr.mxu0 0.0
        %2196 = vmatpush1.xpose.msra.mxu0 %v2133
        %2197 = vmatprep.subr.mxu0 0.0
        %2198 = vmatpush1.xpose.msra.mxu0 %v2130
        %2199 = vmatprep.subr.mxu0 0.0
        %2200 = vmatpush1.xpose.msra.mxu0 %v2127
        %2201 = vmatprep.subr.mxu0 0.0
        %2202 = vmatpush1.xpose.msra.mxu0 %v2124
        %2203 = vmatprep.subr.mxu0 0.0
        %2204 = vmatpush2.xpose.msra.mxu0 0.0
        %2205 = vmatprep.subr.mxu0 0.0
        %2206 = vmatpush2.xpose.msra.mxu0 0.0
        %2207 = vmatprep.subr.mxu0 0.0
        %2208 = vmatpush2.xpose.msra.mxu0 0.0
        %2209 = vmatprep.subr.mxu0 0.0
        %2210 = vmatpush2.xpose.msra.mxu0 0.0
        %2211 = vmatprep.subr.mxu0 0.0
        %2212 = vmatpush2.xpose.msra.mxu0 0.0
        %2213 = vmatprep.subr.mxu0 0.0
        %2214 = vmatpush2.xpose.msra.mxu0 0.0
        %2215 = vmatprep.subr.mxu0 0.0
        %2216 = vmatpush2.xpose.msra.mxu0 0.0
        %2217 = vmatprep.subr.mxu0 0.0
        %2218 = vmatpush2.xpose.msra.mxu0 0.0
        %2219 = vmatprep.subr.mxu0 0.0
        %2220 = vmatpush2.xpose.msra.mxu0 0.0
        %2221 = vmatprep.subr.mxu0 0.0
        %2222 = vmatpush2.xpose.msra.mxu0 0.0
        %2223 = vmatprep.subr.mxu0 0.0
        %2224 = vmatpush2.xpose.msra.mxu0 0.0
        %2225 = vmatprep.subr.mxu0 0.0
        %2226 = vmatpush2.xpose.msra.mxu0 0.0
        %2227 = vmatprep.subr.mxu0 0.0
        %2228 = vmatpush2.xpose.msra.mxu0 0.0
        %2229 = vmatprep.subr.mxu0 0.0
        %2230 = vmatpush2.xpose.msra.mxu0 0.0
        %2231 = vmatprep.subr.mxu0 0.0
        %2232 = vmatpush2.xpose.msra.mxu0 0.0
        %2233 = vmatprep.subr.mxu0 0.0
        %2234 = vmatpush2.xpose.msra.mxu0 0.0
        %2235 = vmatprep.mubr.f32.mxu0 0.0
        %2236 = vmatmul.mubr.f32.gmra.mxu0 %v2121
        %v2237 = vpop.f32.mrf.mxu0
        %v2238 = vadd.f32 0.0, %v2237
        %v2239 = vpop.f32.mrf.mxu0
        %2240 = vdwg.mxu0
        %2241 = vset.pattern.permute.xlu0 32
        %2242 = vperm.xlu0 %2241, %v2057
        %v2243 = vpop.permute.xlu0 %2242
        %2245 = vset.pattern.permute.xlu0 32
        %2246 = vperm.xlu0 %2245, %v2060
        %v2247 = vpop.permute.xlu0 %2246
        %2249 = vset.pattern.permute.xlu0 32
        %2250 = vperm.xlu0 %2249, %v2065
        %v2251 = vpop.permute.xlu0 %2250
        %2253 = vset.pattern.permute.xlu0 32
        %2254 = vperm.xlu0 %2253, %v2068
        %v2255 = vpop.permute.xlu0 %2254
        %2257 = vset.pattern.permute.xlu0 32
        %2258 = vperm.xlu0 %2257, %v2073
        %v2259 = vpop.permute.xlu0 %2258
        %2261 = vset.pattern.permute.xlu0 32
        %2262 = vperm.xlu0 %2261, %v2076
        %v2263 = vpop.permute.xlu0 %2262
        %2265 = vset.pattern.permute.xlu0 32
        %2266 = vperm.xlu0 %2265, %v2081
        %v2267 = vpop.permute.xlu0 %2266
        %2269 = vset.pattern.permute.xlu0 32
        %2270 = vperm.xlu0 %2269, %v2084
        %v2271 = vpop.permute.xlu0 %2270
        %2273 = vset.pattern.permute.xlu0 32
        %2274 = vperm.xlu0 %2273, %v2089
        %v2275 = vpop.permute.xlu0 %2274
        %2277 = vset.pattern.permute.xlu0 32
        %2278 = vperm.xlu0 %2277, %v2092
        %v2279 = vpop.permute.xlu0 %2278
        %2281 = vset.pattern.permute.xlu0 32
        %2282 = vperm.xlu0 %2281, %v2097
        %v2283 = vpop.permute.xlu0 %2282
        %2285 = vset.pattern.permute.xlu0 32
        %2286 = vperm.xlu0 %2285, %v2100
        %v2287 = vpop.permute.xlu0 %2286
        %2289 = vset.pattern.permute.xlu0 32
        %2290 = vperm.xlu0 %2289, %v2105
        %v2291 = vpop.permute.xlu0 %2290
        %2293 = vset.pattern.permute.xlu0 32
        %2294 = vperm.xlu0 %2293, %v2108
        %v2295 = vpop.permute.xlu0 %2294
        %2297 = vset.pattern.permute.xlu0 32
        %2298 = vperm.xlu0 %2297, %v2113
        %v2299 = vpop.permute.xlu0 %2298
        %2301 = vset.pattern.permute.xlu0 32
        %2302 = vperm.xlu0 %2301, %v2116
        %v2303 = vpop.permute.xlu0 %2302
        %v2305 = vlaneseq
        %v2306 = vshrl.u32 %v2305, 7
        %v2307 = vsub.s32 0, %v2306
        %v2308 = vrot.slane %v2238, %v2307
        %v2309 = vadd.f32 %v2243, %v2308
        %v2310 = vadd.f32 %v2247, %v2308
        %v2311 = vadd.f32 %v2251, %v2308
        %v2312 = vadd.f32 %v2255, %v2308
        %v2313 = vadd.f32 %v2259, %v2308
        %v2314 = vadd.f32 %v2263, %v2308
        %v2315 = vadd.f32 %v2267, %v2308
        %v2316 = vadd.f32 %v2271, %v2308
        %v2317 = vadd.f32 %v2275, %v2308
        %v2318 = vadd.f32 %v2279, %v2308
        %v2319 = vadd.f32 %v2283, %v2308
        %v2320 = vadd.f32 %v2287, %v2308
        %v2321 = vadd.f32 %v2291, %v2308
        %v2322 = vadd.f32 %v2295, %v2308
        %v2323 = vadd.f32 %v2299, %v2308
        %v2324 = vadd.f32 %v2303, %v2308
        %s2325 = scalar_lea.vmem [#allocation4], 256
        %v2326 = vld [vmem:[%s2325] sm:$0xff]
        %v2327 = vld [vmem:[%s2325 + $0x8] sm:$0xff]
        %v2328 = vld [vmem:[%s2325 + $0x10] sm:$0xff]
        %v2329 = vld [vmem:[%s2325 + $0x18] sm:$0xff]
        %v2330 = vld [vmem:[%s2325 + $0x20] sm:$0xff]
        %v2331 = vld [vmem:[%s2325 + $0x28] sm:$0xff]
        %v2332 = vld [vmem:[%s2325 + $0x30] sm:$0xff]
        %v2333 = vld [vmem:[%s2325 + $0x38] sm:$0xff]
        %v2334 = vld [vmem:[%s2325 + $0x40] sm:$0xff]
        %v2335 = vld [vmem:[%s2325 + $0x48] sm:$0xff]
        %v2336 = vld [vmem:[%s2325 + $0x50] sm:$0xff]
        %v2337 = vld [vmem:[%s2325 + $0x58] sm:$0xff]
        %v2338 = vld [vmem:[%s2325 + $0x60] sm:$0xff]
        %v2339 = vld [vmem:[%s2325 + $0x68] sm:$0xff]
        %v2340 = vld [vmem:[%s2325 + $0x70] sm:$0xff]
        %v2341 = vld [vmem:[%s2325 + $0x78] sm:$0xff]
        %v2342 = vadd.f32 %v2309, %v2326
        %v2343 = vadd.f32 %v2310, %v2327
        %v2344 = vadd.f32 %v2311, %v2328
        %v2345 = vadd.f32 %v2312, %v2329
        %v2346 = vadd.f32 %v2313, %v2330
        %v2347 = vadd.f32 %v2314, %v2331
        %v2348 = vadd.f32 %v2315, %v2332
        %v2349 = vadd.f32 %v2316, %v2333
        %v2350 = vadd.f32 %v2317, %v2334
        %v2351 = vadd.f32 %v2318, %v2335
        %v2352 = vadd.f32 %v2319, %v2336
        %v2353 = vadd.f32 %v2320, %v2337
        %v2354 = vadd.f32 %v2321, %v2338
        %v2355 = vadd.f32 %v2322, %v2339
        %v2356 = vadd.f32 %v2323, %v2340
        %v2357 = vadd.f32 %v2324, %v2341
        %vm2358 = vcmp.gt.f32.partialorder %v2342, 0.0
        %vm2359 = vcmp.gt.f32.partialorder %v2343, 0.0
        %vm2360 = vcmp.gt.f32.partialorder %v2344, 0.0
        %vm2361 = vcmp.gt.f32.partialorder %v2345, 0.0
        %vm2362 = vcmp.gt.f32.partialorder %v2346, 0.0
        %vm2363 = vcmp.gt.f32.partialorder %v2347, 0.0
        %vm2364 = vcmp.gt.f32.partialorder %v2348, 0.0
        %vm2365 = vcmp.gt.f32.partialorder %v2349, 0.0
        %vm2366 = vcmp.gt.f32.partialorder %v2350, 0.0
        %vm2367 = vcmp.gt.f32.partialorder %v2351, 0.0
        %vm2368 = vcmp.gt.f32.partialorder %v2352, 0.0
        %vm2369 = vcmp.gt.f32.partialorder %v2353, 0.0
        %vm2370 = vcmp.gt.f32.partialorder %v2354, 0.0
        %vm2371 = vcmp.gt.f32.partialorder %v2355, 0.0
        %vm2372 = vcmp.gt.f32.partialorder %v2356, 0.0
        %vm2373 = vcmp.gt.f32.partialorder %v2357, 0.0
        %v2374 = vmul.f32 %v2342, 0.2
        %v2375 = vmul.f32 %v2343, 0.2
        %v2376 = vmul.f32 %v2344, 0.2
        %v2377 = vmul.f32 %v2345, 0.2
        %v2378 = vmul.f32 %v2346, 0.2
        %v2379 = vmul.f32 %v2347, 0.2
        %v2380 = vmul.f32 %v2348, 0.2
        %v2381 = vmul.f32 %v2349, 0.2
        %v2382 = vmul.f32 %v2350, 0.2
        %v2383 = vmul.f32 %v2351, 0.2
        %v2384 = vmul.f32 %v2352, 0.2
        %v2385 = vmul.f32 %v2353, 0.2
        %v2386 = vmul.f32 %v2354, 0.2
        %v2387 = vmul.f32 %v2355, 0.2
        %v2388 = vmul.f32 %v2356, 0.2
        %v2389 = vmul.f32 %v2357, 0.2
        %v2390 = vsel %vm2358, %v2342, %v2374
        %v2391 = vsel %vm2359, %v2343, %v2375
        %v2392 = vsel %vm2360, %v2344, %v2376
        %v2393 = vsel %vm2361, %v2345, %v2377
        %v2394 = vsel %vm2362, %v2346, %v2378
        %v2395 = vsel %vm2363, %v2347, %v2379
        %v2396 = vsel %vm2364, %v2348, %v2380
        %v2397 = vsel %vm2365, %v2349, %v2381
        %v2398 = vsel %vm2366, %v2350, %v2382
        %v2399 = vsel %vm2367, %v2351, %v2383
        %v2400 = vsel %vm2368, %v2352, %v2384
        %v2401 = vsel %vm2369, %v2353, %v2385
        %v2402 = vsel %vm2370, %v2354, %v2386
        %v2403 = vsel %vm2371, %v2355, %v2387
        %v2404 = vsel %vm2372, %v2356, %v2388
        %v2405 = vsel %vm2373, %v2357, %v2389
        %2406 = vmax.xlane.f32.xlu0 %v2390
        %v2407 = vpop.xlane.xlu0 %2406
        %2408 = vmax.xlane.f32.xlu0 %v2391
        %v2409 = vpop.xlane.xlu0 %2408
        %2410 = vmax.xlane.f32.xlu0 %v2392
        %v2411 = vpop.xlane.xlu0 %2410
        %2412 = vmax.xlane.f32.xlu0 %v2393
        %v2413 = vpop.xlane.xlu0 %2412
        %2414 = vmax.xlane.f32.xlu0 %v2394
        %v2415 = vpop.xlane.xlu0 %2414
        %2416 = vmax.xlane.f32.xlu0 %v2395
        %v2417 = vpop.xlane.xlu0 %2416
        %2418 = vmax.xlane.f32.xlu0 %v2396
        %v2419 = vpop.xlane.xlu0 %2418
        %2420 = vmax.xlane.f32.xlu0 %v2397
        %v2421 = vpop.xlane.xlu0 %2420
        %2422 = vmax.xlane.f32.xlu0 %v2398
        %v2423 = vpop.xlane.xlu0 %2422
        %2424 = vmax.xlane.f32.xlu0 %v2399
        %v2425 = vpop.xlane.xlu0 %2424
        %2426 = vmax.xlane.f32.xlu0 %v2400
        %v2427 = vpop.xlane.xlu0 %2426
        %2428 = vmax.xlane.f32.xlu0 %v2401
        %v2429 = vpop.xlane.xlu0 %2428
        %2430 = vmax.xlane.f32.xlu0 %v2402
        %v2431 = vpop.xlane.xlu0 %2430
        %2432 = vmax.xlane.f32.xlu0 %v2403
        %v2433 = vpop.xlane.xlu0 %2432
        %2434 = vmax.xlane.f32.xlu0 %v2404
        %v2435 = vpop.xlane.xlu0 %2434
        %2436 = vmax.xlane.f32.xlu0 %v2405
        %v2437 = vpop.xlane.xlu0 %2436
        %v2438 = vsub.f32 %v2390, %v2407
        %v2439 = vsub.f32 %v2391, %v2409
        %v2440 = vsub.f32 %v2392, %v2411
        %v2441 = vsub.f32 %v2393, %v2413
        %v2442 = vsub.f32 %v2394, %v2415
        %v2443 = vsub.f32 %v2395, %v2417
        %v2444 = vsub.f32 %v2396, %v2419
        %v2445 = vsub.f32 %v2397, %v2421
        %v2446 = vsub.f32 %v2398, %v2423
        %v2447 = vsub.f32 %v2399, %v2425
        %v2448 = vsub.f32 %v2400, %v2427
        %v2449 = vsub.f32 %v2401, %v2429
        %v2450 = vsub.f32 %v2402, %v2431
        %v2451 = vsub.f32 %v2403, %v2433
        %v2452 = vsub.f32 %v2404, %v2435
        %v2453 = vsub.f32 %v2405, %v2437
        %v2454 = vmul.f32 %v2438, 1.442695
        %v2455 = vpow.pop %v2454
        %v2456 = vmul.f32 %v2439, 1.442695
        %v2457 = vpow.pop %v2456
        %v2458 = vmul.f32 %v2440, 1.442695
        %v2459 = vpow.pop %v2458
        %v2460 = vmul.f32 %v2441, 1.442695
        %v2461 = vpow.pop %v2460
        %v2462 = vmul.f32 %v2442, 1.442695
        %v2463 = vpow.pop %v2462
        %v2464 = vmul.f32 %v2443, 1.442695
        %v2465 = vpow.pop %v2464
        %v2466 = vmul.f32 %v2444, 1.442695
        %v2467 = vpow.pop %v2466
        %v2468 = vmul.f32 %v2445, 1.442695
        %v2469 = vpow.pop %v2468
        %v2470 = vmul.f32 %v2446, 1.442695
        %v2471 = vpow.pop %v2470
        %v2472 = vmul.f32 %v2447, 1.442695
        %v2473 = vpow.pop %v2472
        %v2474 = vmul.f32 %v2448, 1.442695
        %v2475 = vpow.pop %v2474
        %v2476 = vmul.f32 %v2449, 1.442695
        %v2477 = vpow.pop %v2476
        %v2478 = vmul.f32 %v2450, 1.442695
        %v2479 = vpow.pop %v2478
        %v2480 = vmul.f32 %v2451, 1.442695
        %v2481 = vpow.pop %v2480
        %v2482 = vmul.f32 %v2452, 1.442695
        %v2483 = vpow.pop %v2482
        %v2484 = vmul.f32 %v2453, 1.442695
        %v2485 = vpow.pop %v2484
        %v2486 = vmul.f32 %v2455, %v407
        %v2487 = vmul.f32 %v2457, %v408
        %v2488 = vmul.f32 %v2459, %v409
        %v2489 = vmul.f32 %v2461, %v410
        %v2490 = vmul.f32 %v2463, %v411
        %v2491 = vmul.f32 %v2465, %v412
        %v2492 = vmul.f32 %v2467, %v413
        %v2493 = vmul.f32 %v2469, %v414
        %v2494 = vmul.f32 %v2471, %v415
        %v2495 = vmul.f32 %v2473, %v416
        %v2496 = vmul.f32 %v2475, %v417
        %v2497 = vmul.f32 %v2477, %v418
        %v2498 = vmul.f32 %v2479, %v419
        %v2499 = vmul.f32 %v2481, %v420
        %v2500 = vmul.f32 %v2483, %v421
        %v2501 = vmul.f32 %v2485, %v422
        %2502 = vadd.xlane.f32.xlu0 %v2486
        %v2503 = vpop.xlane.xlu0 %2502
        %2504 = vadd.xlane.f32.xlu0 %v2487
        %v2505 = vpop.xlane.xlu0 %2504
        %2506 = vadd.xlane.f32.xlu0 %v2488
        %v2507 = vpop.xlane.xlu0 %2506
        %2508 = vadd.xlane.f32.xlu0 %v2489
        %v2509 = vpop.xlane.xlu0 %2508
        %2510 = vadd.xlane.f32.xlu0 %v2490
        %v2511 = vpop.xlane.xlu0 %2510
        %2512 = vadd.xlane.f32.xlu0 %v2491
        %v2513 = vpop.xlane.xlu0 %2512
        %2514 = vadd.xlane.f32.xlu0 %v2492
        %v2515 = vpop.xlane.xlu0 %2514
        %2516 = vadd.xlane.f32.xlu0 %v2493
        %v2517 = vpop.xlane.xlu0 %2516
        %2518 = vadd.xlane.f32.xlu0 %v2494
        %v2519 = vpop.xlane.xlu0 %2518
        %2520 = vadd.xlane.f32.xlu0 %v2495
        %v2521 = vpop.xlane.xlu0 %2520
        %2522 = vadd.xlane.f32.xlu0 %v2496
        %v2523 = vpop.xlane.xlu0 %2522
        %2524 = vadd.xlane.f32.xlu0 %v2497
        %v2525 = vpop.xlane.xlu0 %2524
        %2526 = vadd.xlane.f32.xlu0 %v2498
        %v2527 = vpop.xlane.xlu0 %2526
        %2528 = vadd.xlane.f32.xlu0 %v2499
        %v2529 = vpop.xlane.xlu0 %2528
        %2530 = vadd.xlane.f32.xlu0 %v2500
        %v2531 = vpop.xlane.xlu0 %2530
        %2532 = vadd.xlane.f32.xlu0 %v2501
        %v2533 = vpop.xlane.xlu0 %2532
        %vm2534 = vcmp.gt.f32.partialorder %v2503, 0.0
        %vm2535 = vcmp.gt.f32.partialorder %v2505, 0.0
        %vm2536 = vcmp.gt.f32.partialorder %v2507, 0.0
        %vm2537 = vcmp.gt.f32.partialorder %v2509, 0.0
        %vm2538 = vcmp.gt.f32.partialorder %v2511, 0.0
        %vm2539 = vcmp.gt.f32.partialorder %v2513, 0.0
        %vm2540 = vcmp.gt.f32.partialorder %v2515, 0.0
        %vm2541 = vcmp.gt.f32.partialorder %v2517, 0.0
        %vm2542 = vcmp.gt.f32.partialorder %v2519, 0.0
        %vm2543 = vcmp.gt.f32.partialorder %v2521, 0.0
        %vm2544 = vcmp.gt.f32.partialorder %v2523, 0.0
        %vm2545 = vcmp.gt.f32.partialorder %v2525, 0.0
        %vm2546 = vcmp.gt.f32.partialorder %v2527, 0.0
        %vm2547 = vcmp.gt.f32.partialorder %v2529, 0.0
        %vm2548 = vcmp.gt.f32.partialorder %v2531, 0.0
        %vm2549 = vcmp.gt.f32.partialorder %v2533, 0.0
        %v2550 = vsel %vm2534, %v2503, 1.0
        %v2551 = vsel %vm2535, %v2505, 1.0
        %v2552 = vsel %vm2536, %v2507, 1.0
        %v2553 = vsel %vm2537, %v2509, 1.0
        %v2554 = vsel %vm2538, %v2511, 1.0
        %v2555 = vsel %vm2539, %v2513, 1.0
        %v2556 = vsel %vm2540, %v2515, 1.0
        %v2557 = vsel %vm2541, %v2517, 1.0
        %v2558 = vsel %vm2542, %v2519, 1.0
        %v2559 = vsel %vm2543, %v2521, 1.0
        %v2560 = vsel %vm2544, %v2523, 1.0
        %v2561 = vsel %vm2545, %v2525, 1.0
        %v2562 = vsel %vm2546, %v2527, 1.0
        %v2563 = vsel %vm2547, %v2529, 1.0
        %v2564 = vsel %vm2548, %v2531, 1.0
        %v2565 = vsel %vm2549, %v2533, 1.0
        %v2566 = vrcp.pop %v2550
        %v2567 = vmul.f32 %v2486, %v2566
        %v2568 = vrcp.pop %v2551
        %v2569 = vmul.f32 %v2487, %v2568
        %v2570 = vrcp.pop %v2552
        %v2571 = vmul.f32 %v2488, %v2570
        %v2572 = vrcp.pop %v2553
        %v2573 = vmul.f32 %v2489, %v2572
        %v2574 = vrcp.pop %v2554
        %v2575 = vmul.f32 %v2490, %v2574
        %v2576 = vrcp.pop %v2555
        %v2577 = vmul.f32 %v2491, %v2576
        %v2578 = vrcp.pop %v2556
        %v2579 = vmul.f32 %v2492, %v2578
        %v2580 = vrcp.pop %v2557
        %v2581 = vmul.f32 %v2493, %v2580
        %v2582 = vrcp.pop %v2558
        %v2583 = vmul.f32 %v2494, %v2582
        %v2584 = vrcp.pop %v2559
        %v2585 = vmul.f32 %v2495, %v2584
        %v2586 = vrcp.pop %v2560
        %v2587 = vmul.f32 %v2496, %v2586
        %v2588 = vrcp.pop %v2561
        %v2589 = vmul.f32 %v2497, %v2588
        %v2590 = vrcp.pop %v2562
        %v2591 = vmul.f32 %v2498, %v2590
        %v2592 = vrcp.pop %v2563
        %v2593 = vmul.f32 %v2499, %v2592
        %v2594 = vrcp.pop %v2564
        %v2595 = vmul.f32 %v2500, %v2594
        %v2596 = vrcp.pop %v2565
        %v2597 = vmul.f32 %v2501, %v2596
        %v2598 = vpack.c.bf16 %v2569, %v2567
        %v2599 = vpack.c.bf16 %v2573, %v2571
        %v2600 = vpack.c.bf16 %v2577, %v2575
        %v2601 = vpack.c.bf16 %v2581, %v2579
        %v2602 = vpack.c.bf16 %v2585, %v2583
        %v2603 = vpack.c.bf16 %v2589, %v2587
        %v2604 = vpack.c.bf16 %v2593, %v2591
        %v2605 = vpack.c.bf16 %v2597, %v2595
        %v2606 = vpack.c.bf16 %v2060, %v2057
        %v2607 = vpack.c.bf16 %v2068, %v2065
        %v2608 = vpack.c.bf16 %v2076, %v2073
        %v2609 = vpack.c.bf16 %v2084, %v2081
        %v2610 = vpack.c.bf16 %v2092, %v2089
        %v2611 = vpack.c.bf16 %v2100, %v2097
        %v2612 = vpack.c.bf16 %v2108, %v2105
        %v2613 = vpack.c.bf16 %v2116, %v2113
        %v2614 = vld [vmem:[#allocation6 + $0x8] sm:$0x1]
        %v2615 = vlaneseq
        %v2616 = vshrl.u32 %v2615, 7
        %v2617 = vsub.s32 0, %v2616
        %v2618 = vrot.slane %v2614, %v2617
        %2619 = vmatprep.subr.bf16.mxu0 0
        %2620 = vmatpush1.bf16.msra.mxu0 %v2613
        %2621 = vmatprep.subr.bf16.mxu0 0
        %2622 = vmatpush1.bf16.msra.mxu0 %v2612
        %2623 = vmatprep.subr.bf16.mxu0 0
        %2624 = vmatpush1.bf16.msra.mxu0 %v2611
        %2625 = vmatprep.subr.bf16.mxu0 0
        %2626 = vmatpush1.bf16.msra.mxu0 %v2610
        %2627 = vmatprep.subr.bf16.mxu0 0
        %2628 = vmatpush1.bf16.msra.mxu0 %v2609
        %2629 = vmatprep.subr.bf16.mxu0 0
        %2630 = vmatpush1.bf16.msra.mxu0 %v2608
        %2631 = vmatprep.subr.bf16.mxu0 0
        %2632 = vmatpush1.bf16.msra.mxu0 %v2607
        %2633 = vmatprep.subr.bf16.mxu0 0
        %2634 = vmatpush1.bf16.msra.mxu0 %v2606
        %2635 = vmatprep.subr.bf16.mxu0 0
        %2636 = vmatpush2.bf16.msra.mxu0 0
        %2637 = vmatprep.subr.bf16.mxu0 0
        %2638 = vmatpush2.bf16.msra.mxu0 0
        %2639 = vmatprep.subr.bf16.mxu0 0
        %2640 = vmatpush2.bf16.msra.mxu0 0
        %2641 = vmatprep.subr.bf16.mxu0 0
        %2642 = vmatpush2.bf16.msra.mxu0 0
        %2643 = vmatprep.subr.bf16.mxu0 0
        %2644 = vmatpush2.bf16.msra.mxu0 0
        %2645 = vmatprep.subr.bf16.mxu0 0
        %2646 = vmatpush2.bf16.msra.mxu0 0
        %2647 = vmatprep.subr.bf16.mxu0 0
        %2648 = vmatpush2.bf16.msra.mxu0 0
        %2649 = vmatprep.subr.bf16.mxu0 0
        %2650 = vmatpush2.bf16.msra.mxu0 0
        %2651 = vmatprep.mubr.bf16.mxu0 0
        %2652 = vmatmul.mubr.bf16.gmra.mxu0 %v2598
        %v2653 = vpop.f32.mrf.mxu0
        %v2654 = vadd.f32 %v2618, %v2653
        %v2655 = vpop.f32.mrf.mxu0
        %v2656 = vpop.f32.mrf.mxu0
        %v2657 = vadd.f32 %v2618, %v2656
        %v2658 = vpop.f32.mrf.mxu0
        %2659 = vmatprep.mubr.bf16.mxu0 0
        %2660 = vmatmul.mubr.bf16.gmra.mxu0 %v2599
        %v2661 = vpop.f32.mrf.mxu0
        %v2662 = vadd.f32 %v2618, %v2661
        %v2663 = vpop.f32.mrf.mxu0
        %v2664 = vpop.f32.mrf.mxu0
        %v2665 = vadd.f32 %v2618, %v2664
        %v2666 = vpop.f32.mrf.mxu0
        %2667 = vmatprep.mubr.bf16.mxu0 0
        %2668 = vmatmul.mubr.bf16.gmra.mxu0 %v2600
        %v2669 = vpop.f32.mrf.mxu0
        %v2670 = vadd.f32 %v2618, %v2669
        %v2671 = vpop.f32.mrf.mxu0
        %v2672 = vpop.f32.mrf.mxu0
        %v2673 = vadd.f32 %v2618, %v2672
        %v2674 = vpop.f32.mrf.mxu0
        %2675 = vmatprep.mubr.bf16.mxu0 0
        %2676 = vmatmul.mubr.bf16.gmra.mxu0 %v2601
        %v2677 = vpop.f32.mrf.mxu0
        %v2678 = vadd.f32 %v2618, %v2677
        %v2679 = vpop.f32.mrf.mxu0
        %v2680 = vpop.f32.mrf.mxu0
        %v2681 = vadd.f32 %v2618, %v2680
        %v2682 = vpop.f32.mrf.mxu0
        %2683 = vmatprep.mubr.bf16.mxu0 0
        %2684 = vmatmul.mubr.bf16.gmra.mxu0 %v2602
        %v2685 = vpop.f32.mrf.mxu0
        %v2686 = vadd.f32 %v2618, %v2685
        %v2687 = vpop.f32.mrf.mxu0
        %v2688 = vpop.f32.mrf.mxu0
        %v2689 = vadd.f32 %v2618, %v2688
        %v2690 = vpop.f32.mrf.mxu0
        %2691 = vmatprep.mubr.bf16.mxu0 0
        %2692 = vmatmul.mubr.bf16.gmra.mxu0 %v2603
        %v2693 = vpop.f32.mrf.mxu0
        %v2694 = vadd.f32 %v2618, %v2693
        %v2695 = vpop.f32.mrf.mxu0
        %v2696 = vpop.f32.mrf.mxu0
        %v2697 = vadd.f32 %v2618, %v2696
        %v2698 = vpop.f32.mrf.mxu0
        %2699 = vmatprep.mubr.bf16.mxu0 0
        %2700 = vmatmul.mubr.bf16.gmra.mxu0 %v2604
        %v2701 = vpop.f32.mrf.mxu0
        %v2702 = vadd.f32 %v2618, %v2701
        %v2703 = vpop.f32.mrf.mxu0
        %v2704 = vpop.f32.mrf.mxu0
        %v2705 = vadd.f32 %v2618, %v2704
        %v2706 = vpop.f32.mrf.mxu0
        %2707 = vmatprep.mubr.bf16.mxu0 0
        %2708 = vmatmul.mubr.bf16.gmra.mxu0 %v2605
        %v2709 = vpop.f32.mrf.mxu0
        %v2710 = vadd.f32 %v2618, %v2709
        %v2711 = vpop.f32.mrf.mxu0
        %v2712 = vpop.f32.mrf.mxu0
        %v2713 = vadd.f32 %v2618, %v2712
        %v2714 = vpop.f32.mrf.mxu0
        %2715 = vdwg.mxu0
        %v2716 = vmax.f32 %v2654, 0.0
        %v2717 = vmax.f32 %v2657, 0.0
        %v2718 = vmax.f32 %v2662, 0.0
        %v2719 = vmax.f32 %v2665, 0.0
        %v2720 = vmax.f32 %v2670, 0.0
        %v2721 = vmax.f32 %v2673, 0.0
        %v2722 = vmax.f32 %v2678, 0.0
        %v2723 = vmax.f32 %v2681, 0.0
        %v2724 = vmax.f32 %v2686, 0.0
        %v2725 = vmax.f32 %v2689, 0.0
        %v2726 = vmax.f32 %v2694, 0.0
        %v2727 = vmax.f32 %v2697, 0.0
        %v2728 = vmax.f32 %v2702, 0.0
        %v2729 = vmax.f32 %v2705, 0.0
        %v2730 = vmax.f32 %v2710, 0.0
        %v2731 = vmax.f32 %v2713, 0.0
        %v2732 = vpack.c.bf16 %v2717, %v2716
        %v2733 = vpack.c.bf16 %v2719, %v2718
        %v2734 = vpack.c.bf16 %v2721, %v2720
        %v2735 = vpack.c.bf16 %v2723, %v2722
        %v2736 = vpack.c.bf16 %v2725, %v2724
        %v2737 = vpack.c.bf16 %v2727, %v2726
        %v2738 = vpack.c.bf16 %v2729, %v2728
        %v2739 = vpack.c.bf16 %v2731, %v2730
        %s2740 = scalar_lea.vmem [#allocation2], 48
        %v2741 = vld [vmem:[%s2740] sm:$0xf]
        %v2742 = vld [vmem:[%s2740 + $0x4] sm:$0xf]
        %v2743 = vld [vmem:[%s2740 + $0x8] sm:$0xf]
        %v2744 = vld [vmem:[%s2740 + $0xc] sm:$0xf]
        %v2749 = vunpack.c.l.b16 %v2741
        %v2750 = vunpack.c.l.b16 %v2742
        %v2751 = vunpack.c.l.b16 %v2743
        %v2752 = vunpack.c.l.b16 %v2744
        %v2753 = vpack.c.b16 %v2750, %v2749
        %v2754 = vpack.c.b16 %v2752, %v2751
        %v2758 = vsel %vm480, %v2732, 0
        %v2761 = vsel %vm480, %v2733, 0
        %v2764 = vsel %vm480, %v2734, 0
        %v2767 = vsel %vm480, %v2735, 0
        %v2770 = vsel %vm480, %v2736, 0
        %v2773 = vsel %vm480, %v2737, 0
        %v2776 = vsel %vm480, %v2738, 0
        %v2779 = vsel %vm480, %v2739, 0
        %2781 = vmatprep.subr.bf16.mxu0 0
        %2782 = vmatpush1.bf16.msra.mxu0 0
        %2783 = vmatprep.subr.bf16.mxu0 0
        %2784 = vmatpush1.bf16.msra.mxu0 0
        %2785 = vmatprep.subr.bf16.mxu0 0
        %2786 = vmatpush1.bf16.msra.mxu0 0
        %2787 = vmatprep.subr.bf16.mxu0 0
        %2788 = vmatpush1.bf16.msra.mxu0 0
        %2789 = vmatprep.subr.bf16.mxu0 0
        %2790 = vmatpush1.bf16.msra.mxu0 0
        %2791 = vmatprep.subr.bf16.mxu0 0
        %2792 = vmatpush1.bf16.msra.mxu0 0
        %2793 = vmatprep.subr.bf16.mxu0 0
        %2794 = vmatpush1.bf16.msra.mxu0 %v2754
        %2795 = vmatprep.subr.bf16.mxu0 0
        %2796 = vmatpush1.bf16.msra.mxu0 %v2753
        %2797 = vmatprep.subr.bf16.mxu0 0
        %2798 = vmatpush2.bf16.msra.mxu0 0
        %2799 = vmatprep.subr.bf16.mxu0 0
        %2800 = vmatpush2.bf16.msra.mxu0 0
        %2801 = vmatprep.subr.bf16.mxu0 0
        %2802 = vmatpush2.bf16.msra.mxu0 0
        %2803 = vmatprep.subr.bf16.mxu0 0
        %2804 = vmatpush2.bf16.msra.mxu0 0
        %2805 = vmatprep.subr.bf16.mxu0 0
        %2806 = vmatpush2.bf16.msra.mxu0 0
        %2807 = vmatprep.subr.bf16.mxu0 0
        %2808 = vmatpush2.bf16.msra.mxu0 0
        %2809 = vmatprep.subr.bf16.mxu0 0
        %2810 = vmatpush2.bf16.msra.mxu0 0
        %2811 = vmatprep.subr.bf16.mxu0 0
        %2812 = vmatpush2.bf16.msra.mxu0 0
        %2813 = vmatprep.mubr.bf16.mxu0 0
        %2814 = vmatmul.mubr.bf16.gmra.mxu0 %v2758
        %v2815 = vpop.f32.mrf.mxu0
        %v2816 = vadd.f32 0.0, %v2815
        %v2817 = vpop.f32.mrf.mxu0
        %v2818 = vpop.f32.mrf.mxu0
        %v2819 = vadd.f32 0.0, %v2818
        %v2820 = vpop.f32.mrf.mxu0
        %2821 = vmatprep.mubr.bf16.mxu0 0
        %2822 = vmatmul.mubr.bf16.gmra.mxu0 %v2761
        %v2823 = vpop.f32.mrf.mxu0
        %v2824 = vadd.f32 0.0, %v2823
        %v2825 = vpop.f32.mrf.mxu0
        %v2826 = vpop.f32.mrf.mxu0
        %v2827 = vadd.f32 0.0, %v2826
        %v2828 = vpop.f32.mrf.mxu0
        %2829 = vmatprep.mubr.bf16.mxu0 0
        %2830 = vmatmul.mubr.bf16.gmra.mxu0 %v2764
        %v2831 = vpop.f32.mrf.mxu0
        %v2832 = vadd.f32 0.0, %v2831
        %v2833 = vpop.f32.mrf.mxu0
        %v2834 = vpop.f32.mrf.mxu0
        %v2835 = vadd.f32 0.0, %v2834
        %v2836 = vpop.f32.mrf.mxu0
        %2837 = vmatprep.mubr.bf16.mxu0 0
        %2838 = vmatmul.mubr.bf16.gmra.mxu0 %v2767
        %v2839 = vpop.f32.mrf.mxu0
        %v2840 = vadd.f32 0.0, %v2839
        %v2841 = vpop.f32.mrf.mxu0
        %v2842 = vpop.f32.mrf.mxu0
        %v2843 = vadd.f32 0.0, %v2842
        %v2844 = vpop.f32.mrf.mxu0
        %2845 = vmatprep.mubr.bf16.mxu0 0
        %2846 = vmatmul.mubr.bf16.gmra.mxu0 %v2770
        %v2847 = vpop.f32.mrf.mxu0
        %v2848 = vadd.f32 0.0, %v2847
        %v2849 = vpop.f32.mrf.mxu0
        %v2850 = vpop.f32.mrf.mxu0
        %v2851 = vadd.f32 0.0, %v2850
        %v2852 = vpop.f32.mrf.mxu0
        %2853 = vmatprep.mubr.bf16.mxu0 0
        %2854 = vmatmul.mubr.bf16.gmra.mxu0 %v2773
        %v2855 = vpop.f32.mrf.mxu0
        %v2856 = vadd.f32 0.0, %v2855
        %v2857 = vpop.f32.mrf.mxu0
        %v2858 = vpop.f32.mrf.mxu0
        %v2859 = vadd.f32 0.0, %v2858
        %v2860 = vpop.f32.mrf.mxu0
        %2861 = vmatprep.mubr.bf16.mxu0 0
        %2862 = vmatmul.mubr.bf16.gmra.mxu0 %v2776
        %v2863 = vpop.f32.mrf.mxu0
        %v2864 = vadd.f32 0.0, %v2863
        %v2865 = vpop.f32.mrf.mxu0
        %v2866 = vpop.f32.mrf.mxu0
        %v2867 = vadd.f32 0.0, %v2866
        %v2868 = vpop.f32.mrf.mxu0
        %2869 = vmatprep.mubr.bf16.mxu0 0
        %2870 = vmatmul.mubr.bf16.gmra.mxu0 %v2779
        %v2871 = vpop.f32.mrf.mxu0
        %v2872 = vadd.f32 0.0, %v2871
        %v2873 = vpop.f32.mrf.mxu0
        %v2874 = vpop.f32.mrf.mxu0
        %v2875 = vadd.f32 0.0, %v2874
        %v2876 = vpop.f32.mrf.mxu0
        %2877 = vdwg.mxu0
        %v2878 = vld [vmem:[#allocation6 + $0x3] sm:$0x1]
        %v2880 = vsel %vm480, %v2878, 0
        %v2883 = vsel %vm480, %v2816, 0
        %v2886 = vsel %vm480, %v2819, 0
        %v2889 = vsel %vm480, %v2824, 0
        %v2892 = vsel %vm480, %v2827, 0
        %v2895 = vsel %vm480, %v2832, 0
        %v2898 = vsel %vm480, %v2835, 0
        %v2901 = vsel %vm480, %v2840, 0
        %v2904 = vsel %vm480, %v2843, 0
        %v2907 = vsel %vm480, %v2848, 0
        %v2910 = vsel %vm480, %v2851, 0
        %v2913 = vsel %vm480, %v2856, 0
        %v2916 = vsel %vm480, %v2859, 0
        %v2919 = vsel %vm480, %v2864, 0
        %v2922 = vsel %vm480, %v2867, 0
        %v2925 = vsel %vm480, %v2872, 0
        %v2928 = vsel %vm480, %v2875, 0
        %2930 = vmatprep.subr.mxu0 0.0
        %2931 = vmatpush1.xpose.msra.mxu0 %v2928
        %2932 = vmatprep.subr.mxu0 0.0
        %2933 = vmatpush1.xpose.msra.mxu0 %v2925
        %2934 = vmatprep.subr.mxu0 0.0
        %2935 = vmatpush1.xpose.msra.mxu0 %v2922
        %2936 = vmatprep.subr.mxu0 0.0
        %2937 = vmatpush1.xpose.msra.mxu0 %v2919
        %2938 = vmatprep.subr.mxu0 0.0
        %2939 = vmatpush1.xpose.msra.mxu0 %v2916
        %2940 = vmatprep.subr.mxu0 0.0
        %2941 = vmatpush1.xpose.msra.mxu0 %v2913
        %2942 = vmatprep.subr.mxu0 0.0
        %2943 = vmatpush1.xpose.msra.mxu0 %v2910
        %2944 = vmatprep.subr.mxu0 0.0
        %2945 = vmatpush1.xpose.msra.mxu0 %v2907
        %2946 = vmatprep.subr.mxu0 0.0
        %2947 = vmatpush1.xpose.msra.mxu0 %v2904
        %2948 = vmatprep.subr.mxu0 0.0
        %2949 = vmatpush1.xpose.msra.mxu0 %v2901
        %2950 = vmatprep.subr.mxu0 0.0
        %2951 = vmatpush1.xpose.msra.mxu0 %v2898
        %2952 = vmatprep.subr.mxu0 0.0
        %2953 = vmatpush1.xpose.msra.mxu0 %v2895
        %2954 = vmatprep.subr.mxu0 0.0
        %2955 = vmatpush1.xpose.msra.mxu0 %v2892
        %2956 = vmatprep.subr.mxu0 0.0
        %2957 = vmatpush1.xpose.msra.mxu0 %v2889
        %2958 = vmatprep.subr.mxu0 0.0
        %2959 = vmatpush1.xpose.msra.mxu0 %v2886
        %2960 = vmatprep.subr.mxu0 0.0
        %2961 = vmatpush1.xpose.msra.mxu0 %v2883
        %2962 = vmatprep.subr.mxu0 0.0
        %2963 = vmatpush2.xpose.msra.mxu0 0.0
        %2964 = vmatprep.subr.mxu0 0.0
        %2965 = vmatpush2.xpose.msra.mxu0 0.0
        %2966 = vmatprep.subr.mxu0 0.0
        %2967 = vmatpush2.xpose.msra.mxu0 0.0
        %2968 = vmatprep.subr.mxu0 0.0
        %2969 = vmatpush2.xpose.msra.mxu0 0.0
        %2970 = vmatprep.subr.mxu0 0.0
        %2971 = vmatpush2.xpose.msra.mxu0 0.0
        %2972 = vmatprep.subr.mxu0 0.0
        %2973 = vmatpush2.xpose.msra.mxu0 0.0
        %2974 = vmatprep.subr.mxu0 0.0
        %2975 = vmatpush2.xpose.msra.mxu0 0.0
        %2976 = vmatprep.subr.mxu0 0.0
        %2977 = vmatpush2.xpose.msra.mxu0 0.0
        %2978 = vmatprep.subr.mxu0 0.0
        %2979 = vmatpush2.xpose.msra.mxu0 0.0
        %2980 = vmatprep.subr.mxu0 0.0
        %2981 = vmatpush2.xpose.msra.mxu0 0.0
        %2982 = vmatprep.subr.mxu0 0.0
        %2983 = vmatpush2.xpose.msra.mxu0 0.0
        %2984 = vmatprep.subr.mxu0 0.0
        %2985 = vmatpush2.xpose.msra.mxu0 0.0
        %2986 = vmatprep.subr.mxu0 0.0
        %2987 = vmatpush2.xpose.msra.mxu0 0.0
        %2988 = vmatprep.subr.mxu0 0.0
        %2989 = vmatpush2.xpose.msra.mxu0 0.0
        %2990 = vmatprep.subr.mxu0 0.0
        %2991 = vmatpush2.xpose.msra.mxu0 0.0
        %2992 = vmatprep.subr.mxu0 0.0
        %2993 = vmatpush2.xpose.msra.mxu0 0.0
        %2994 = vmatprep.mubr.f32.mxu0 0.0
        %2995 = vmatmul.mubr.f32.gmra.mxu0 %v2880
        %v2996 = vpop.f32.mrf.mxu0
        %v2997 = vadd.f32 0.0, %v2996
        %v2998 = vpop.f32.mrf.mxu0
        %2999 = vdwg.mxu0
        %3000 = vset.pattern.permute.xlu0 32
        %3001 = vperm.xlu0 %3000, %v2816
        %v3002 = vpop.permute.xlu0 %3001
        %3004 = vset.pattern.permute.xlu0 32
        %3005 = vperm.xlu0 %3004, %v2819
        %v3006 = vpop.permute.xlu0 %3005
        %3008 = vset.pattern.permute.xlu0 32
        %3009 = vperm.xlu0 %3008, %v2824
        %v3010 = vpop.permute.xlu0 %3009
        %3012 = vset.pattern.permute.xlu0 32
        %3013 = vperm.xlu0 %3012, %v2827
        %v3014 = vpop.permute.xlu0 %3013
        %3016 = vset.pattern.permute.xlu0 32
        %3017 = vperm.xlu0 %3016, %v2832
        %v3018 = vpop.permute.xlu0 %3017
        %3020 = vset.pattern.permute.xlu0 32
        %3021 = vperm.xlu0 %3020, %v2835
        %v3022 = vpop.permute.xlu0 %3021
        %3024 = vset.pattern.permute.xlu0 32
        %3025 = vperm.xlu0 %3024, %v2840
        %v3026 = vpop.permute.xlu0 %3025
        %3028 = vset.pattern.permute.xlu0 32
        %3029 = vperm.xlu0 %3028, %v2843
        %v3030 = vpop.permute.xlu0 %3029
        %3032 = vset.pattern.permute.xlu0 32
        %3033 = vperm.xlu0 %3032, %v2848
        %v3034 = vpop.permute.xlu0 %3033
        %3036 = vset.pattern.permute.xlu0 32
        %3037 = vperm.xlu0 %3036, %v2851
        %v3038 = vpop.permute.xlu0 %3037
        %3040 = vset.pattern.permute.xlu0 32
        %3041 = vperm.xlu0 %3040, %v2856
        %v3042 = vpop.permute.xlu0 %3041
        %3044 = vset.pattern.permute.xlu0 32
        %3045 = vperm.xlu0 %3044, %v2859
        %v3046 = vpop.permute.xlu0 %3045
        %3048 = vset.pattern.permute.xlu0 32
        %3049 = vperm.xlu0 %3048, %v2864
        %v3050 = vpop.permute.xlu0 %3049
        %3052 = vset.pattern.permute.xlu0 32
        %3053 = vperm.xlu0 %3052, %v2867
        %v3054 = vpop.permute.xlu0 %3053
        %3056 = vset.pattern.permute.xlu0 32
        %3057 = vperm.xlu0 %3056, %v2872
        %v3058 = vpop.permute.xlu0 %3057
        %3060 = vset.pattern.permute.xlu0 32
        %3061 = vperm.xlu0 %3060, %v2875
        %v3062 = vpop.permute.xlu0 %3061
        %v3064 = vlaneseq
        %v3065 = vshrl.u32 %v3064, 7
        %v3066 = vsub.s32 0, %v3065
        %v3067 = vrot.slane %v2997, %v3066
        %v3068 = vadd.f32 %v3002, %v3067
        %v3069 = vadd.f32 %v3006, %v3067
        %v3070 = vadd.f32 %v3010, %v3067
        %v3071 = vadd.f32 %v3014, %v3067
        %v3072 = vadd.f32 %v3018, %v3067
        %v3073 = vadd.f32 %v3022, %v3067
        %v3074 = vadd.f32 %v3026, %v3067
        %v3075 = vadd.f32 %v3030, %v3067
        %v3076 = vadd.f32 %v3034, %v3067
        %v3077 = vadd.f32 %v3038, %v3067
        %v3078 = vadd.f32 %v3042, %v3067
        %v3079 = vadd.f32 %v3046, %v3067
        %v3080 = vadd.f32 %v3050, %v3067
        %v3081 = vadd.f32 %v3054, %v3067
        %v3082 = vadd.f32 %v3058, %v3067
        %v3083 = vadd.f32 %v3062, %v3067
        %s3084 = scalar_lea.vmem [#allocation4], 384
        %v3085 = vld [vmem:[%s3084] sm:$0xff]
        %v3086 = vld [vmem:[%s3084 + $0x8] sm:$0xff]
        %v3087 = vld [vmem:[%s3084 + $0x10] sm:$0xff]
        %v3088 = vld [vmem:[%s3084 + $0x18] sm:$0xff]
        %v3089 = vld [vmem:[%s3084 + $0x20] sm:$0xff]
        %v3090 = vld [vmem:[%s3084 + $0x28] sm:$0xff]
        %v3091 = vld [vmem:[%s3084 + $0x30] sm:$0xff]
        %v3092 = vld [vmem:[%s3084 + $0x38] sm:$0xff]
        %v3093 = vld [vmem:[%s3084 + $0x40] sm:$0xff]
        %v3094 = vld [vmem:[%s3084 + $0x48] sm:$0xff]
        %v3095 = vld [vmem:[%s3084 + $0x50] sm:$0xff]
        %v3096 = vld [vmem:[%s3084 + $0x58] sm:$0xff]
        %v3097 = vld [vmem:[%s3084 + $0x60] sm:$0xff]
        %v3098 = vld [vmem:[%s3084 + $0x68] sm:$0xff]
        %v3099 = vld [vmem:[%s3084 + $0x70] sm:$0xff]
        %v3100 = vld [vmem:[%s3084 + $0x78] sm:$0xff]
        %v3101 = vadd.f32 %v3068, %v3085
        %v3102 = vadd.f32 %v3069, %v3086
        %v3103 = vadd.f32 %v3070, %v3087
        %v3104 = vadd.f32 %v3071, %v3088
        %v3105 = vadd.f32 %v3072, %v3089
        %v3106 = vadd.f32 %v3073, %v3090
        %v3107 = vadd.f32 %v3074, %v3091
        %v3108 = vadd.f32 %v3075, %v3092
        %v3109 = vadd.f32 %v3076, %v3093
        %v3110 = vadd.f32 %v3077, %v3094
        %v3111 = vadd.f32 %v3078, %v3095
        %v3112 = vadd.f32 %v3079, %v3096
        %v3113 = vadd.f32 %v3080, %v3097
        %v3114 = vadd.f32 %v3081, %v3098
        %v3115 = vadd.f32 %v3082, %v3099
        %v3116 = vadd.f32 %v3083, %v3100
        %vm3117 = vcmp.gt.f32.partialorder %v3101, 0.0
        %vm3118 = vcmp.gt.f32.partialorder %v3102, 0.0
        %vm3119 = vcmp.gt.f32.partialorder %v3103, 0.0
        %vm3120 = vcmp.gt.f32.partialorder %v3104, 0.0
        %vm3121 = vcmp.gt.f32.partialorder %v3105, 0.0
        %vm3122 = vcmp.gt.f32.partialorder %v3106, 0.0
        %vm3123 = vcmp.gt.f32.partialorder %v3107, 0.0
        %vm3124 = vcmp.gt.f32.partialorder %v3108, 0.0
        %vm3125 = vcmp.gt.f32.partialorder %v3109, 0.0
        %vm3126 = vcmp.gt.f32.partialorder %v3110, 0.0
        %vm3127 = vcmp.gt.f32.partialorder %v3111, 0.0
        %vm3128 = vcmp.gt.f32.partialorder %v3112, 0.0
        %vm3129 = vcmp.gt.f32.partialorder %v3113, 0.0
        %vm3130 = vcmp.gt.f32.partialorder %v3114, 0.0
        %vm3131 = vcmp.gt.f32.partialorder %v3115, 0.0
        %vm3132 = vcmp.gt.f32.partialorder %v3116, 0.0
        %v3133 = vmul.f32 %v3101, 0.2
        %v3134 = vmul.f32 %v3102, 0.2
        %v3135 = vmul.f32 %v3103, 0.2
        %v3136 = vmul.f32 %v3104, 0.2
        %v3137 = vmul.f32 %v3105, 0.2
        %v3138 = vmul.f32 %v3106, 0.2
        %v3139 = vmul.f32 %v3107, 0.2
        %v3140 = vmul.f32 %v3108, 0.2
        %v3141 = vmul.f32 %v3109, 0.2
        %v3142 = vmul.f32 %v3110, 0.2
        %v3143 = vmul.f32 %v3111, 0.2
        %v3144 = vmul.f32 %v3112, 0.2
        %v3145 = vmul.f32 %v3113, 0.2
        %v3146 = vmul.f32 %v3114, 0.2
        %v3147 = vmul.f32 %v3115, 0.2
        %v3148 = vmul.f32 %v3116, 0.2
        %v3149 = vsel %vm3117, %v3101, %v3133
        %v3150 = vsel %vm3118, %v3102, %v3134
        %v3151 = vsel %vm3119, %v3103, %v3135
        %v3152 = vsel %vm3120, %v3104, %v3136
        %v3153 = vsel %vm3121, %v3105, %v3137
        %v3154 = vsel %vm3122, %v3106, %v3138
        %v3155 = vsel %vm3123, %v3107, %v3139
        %v3156 = vsel %vm3124, %v3108, %v3140
        %v3157 = vsel %vm3125, %v3109, %v3141
        %v3158 = vsel %vm3126, %v3110, %v3142
        %v3159 = vsel %vm3127, %v3111, %v3143
        %v3160 = vsel %vm3128, %v3112, %v3144
        %v3161 = vsel %vm3129, %v3113, %v3145
        %v3162 = vsel %vm3130, %v3114, %v3146
        %v3163 = vsel %vm3131, %v3115, %v3147
        %v3164 = vsel %vm3132, %v3116, %v3148
        %3165 = vmax.xlane.f32.xlu0 %v3149
        %v3166 = vpop.xlane.xlu0 %3165
        %3167 = vmax.xlane.f32.xlu0 %v3150
        %v3168 = vpop.xlane.xlu0 %3167
        %3169 = vmax.xlane.f32.xlu0 %v3151
        %v3170 = vpop.xlane.xlu0 %3169
        %3171 = vmax.xlane.f32.xlu0 %v3152
        %v3172 = vpop.xlane.xlu0 %3171
        %3173 = vmax.xlane.f32.xlu0 %v3153
        %v3174 = vpop.xlane.xlu0 %3173
        %3175 = vmax.xlane.f32.xlu0 %v3154
        %v3176 = vpop.xlane.xlu0 %3175
        %3177 = vmax.xlane.f32.xlu0 %v3155
        %v3178 = vpop.xlane.xlu0 %3177
        %3179 = vmax.xlane.f32.xlu0 %v3156
        %v3180 = vpop.xlane.xlu0 %3179
        %3181 = vmax.xlane.f32.xlu0 %v3157
        %v3182 = vpop.xlane.xlu0 %3181
        %3183 = vmax.xlane.f32.xlu0 %v3158
        %v3184 = vpop.xlane.xlu0 %3183
        %3185 = vmax.xlane.f32.xlu0 %v3159
        %v3186 = vpop.xlane.xlu0 %3185
        %3187 = vmax.xlane.f32.xlu0 %v3160
        %v3188 = vpop.xlane.xlu0 %3187
        %3189 = vmax.xlane.f32.xlu0 %v3161
        %v3190 = vpop.xlane.xlu0 %3189
        %3191 = vmax.xlane.f32.xlu0 %v3162
        %v3192 = vpop.xlane.xlu0 %3191
        %3193 = vmax.xlane.f32.xlu0 %v3163
        %v3194 = vpop.xlane.xlu0 %3193
        %3195 = vmax.xlane.f32.xlu0 %v3164
        %v3196 = vpop.xlane.xlu0 %3195
        %v3197 = vsub.f32 %v3149, %v3166
        %v3198 = vsub.f32 %v3150, %v3168
        %v3199 = vsub.f32 %v3151, %v3170
        %v3200 = vsub.f32 %v3152, %v3172
        %v3201 = vsub.f32 %v3153, %v3174
        %v3202 = vsub.f32 %v3154, %v3176
        %v3203 = vsub.f32 %v3155, %v3178
        %v3204 = vsub.f32 %v3156, %v3180
        %v3205 = vsub.f32 %v3157, %v3182
        %v3206 = vsub.f32 %v3158, %v3184
        %v3207 = vsub.f32 %v3159, %v3186
        %v3208 = vsub.f32 %v3160, %v3188
        %v3209 = vsub.f32 %v3161, %v3190
        %v3210 = vsub.f32 %v3162, %v3192
        %v3211 = vsub.f32 %v3163, %v3194
        %v3212 = vsub.f32 %v3164, %v3196
        %v3213 = vmul.f32 %v3197, 1.442695
        %v3214 = vpow.pop %v3213
        %v3215 = vmul.f32 %v3198, 1.442695
        %v3216 = vpow.pop %v3215
        %v3217 = vmul.f32 %v3199, 1.442695
        %v3218 = vpow.pop %v3217
        %v3219 = vmul.f32 %v3200, 1.442695
        %v3220 = vpow.pop %v3219
        %v3221 = vmul.f32 %v3201, 1.442695
        %v3222 = vpow.pop %v3221
        %v3223 = vmul.f32 %v3202, 1.442695
        %v3224 = vpow.pop %v3223
        %v3225 = vmul.f32 %v3203, 1.442695
        %v3226 = vpow.pop %v3225
        %v3227 = vmul.f32 %v3204, 1.442695
        %v3228 = vpow.pop %v3227
        %v3229 = vmul.f32 %v3205, 1.442695
        %v3230 = vpow.pop %v3229
        %v3231 = vmul.f32 %v3206, 1.442695
        %v3232 = vpow.pop %v3231
        %v3233 = vmul.f32 %v3207, 1.442695
        %v3234 = vpow.pop %v3233
        %v3235 = vmul.f32 %v3208, 1.442695
        %v3236 = vpow.pop %v3235
        %v3237 = vmul.f32 %v3209, 1.442695
        %v3238 = vpow.pop %v3237
        %v3239 = vmul.f32 %v3210, 1.442695
        %v3240 = vpow.pop %v3239
        %v3241 = vmul.f32 %v3211, 1.442695
        %v3242 = vpow.pop %v3241
        %v3243 = vmul.f32 %v3212, 1.442695
        %v3244 = vpow.pop %v3243
        %v3245 = vmul.f32 %v3214, %v424
        %v3246 = vmul.f32 %v3216, %v425
        %v3247 = vmul.f32 %v3218, %v426
        %v3248 = vmul.f32 %v3220, %v427
        %v3249 = vmul.f32 %v3222, %v428
        %v3250 = vmul.f32 %v3224, %v429
        %v3251 = vmul.f32 %v3226, %v430
        %v3252 = vmul.f32 %v3228, %v431
        %v3253 = vmul.f32 %v3230, %v432
        %v3254 = vmul.f32 %v3232, %v433
        %v3255 = vmul.f32 %v3234, %v434
        %v3256 = vmul.f32 %v3236, %v435
        %v3257 = vmul.f32 %v3238, %v436
        %v3258 = vmul.f32 %v3240, %v437
        %v3259 = vmul.f32 %v3242, %v438
        %v3260 = vmul.f32 %v3244, %v439
        %3261 = vadd.xlane.f32.xlu0 %v3245
        %v3262 = vpop.xlane.xlu0 %3261
        %3263 = vadd.xlane.f32.xlu0 %v3246
        %v3264 = vpop.xlane.xlu0 %3263
        %3265 = vadd.xlane.f32.xlu0 %v3247
        %v3266 = vpop.xlane.xlu0 %3265
        %3267 = vadd.xlane.f32.xlu0 %v3248
        %v3268 = vpop.xlane.xlu0 %3267
        %3269 = vadd.xlane.f32.xlu0 %v3249
        %v3270 = vpop.xlane.xlu0 %3269
        %3271 = vadd.xlane.f32.xlu0 %v3250
        %v3272 = vpop.xlane.xlu0 %3271
        %3273 = vadd.xlane.f32.xlu0 %v3251
        %v3274 = vpop.xlane.xlu0 %3273
        %3275 = vadd.xlane.f32.xlu0 %v3252
        %v3276 = vpop.xlane.xlu0 %3275
        %3277 = vadd.xlane.f32.xlu0 %v3253
        %v3278 = vpop.xlane.xlu0 %3277
        %3279 = vadd.xlane.f32.xlu0 %v3254
        %v3280 = vpop.xlane.xlu0 %3279
        %3281 = vadd.xlane.f32.xlu0 %v3255
        %v3282 = vpop.xlane.xlu0 %3281
        %3283 = vadd.xlane.f32.xlu0 %v3256
        %v3284 = vpop.xlane.xlu0 %3283
        %3285 = vadd.xlane.f32.xlu0 %v3257
        %v3286 = vpop.xlane.xlu0 %3285
        %3287 = vadd.xlane.f32.xlu0 %v3258
        %v3288 = vpop.xlane.xlu0 %3287
        %3289 = vadd.xlane.f32.xlu0 %v3259
        %v3290 = vpop.xlane.xlu0 %3289
        %3291 = vadd.xlane.f32.xlu0 %v3260
        %v3292 = vpop.xlane.xlu0 %3291
        %vm3293 = vcmp.gt.f32.partialorder %v3262, 0.0
        %vm3294 = vcmp.gt.f32.partialorder %v3264, 0.0
        %vm3295 = vcmp.gt.f32.partialorder %v3266, 0.0
        %vm3296 = vcmp.gt.f32.partialorder %v3268, 0.0
        %vm3297 = vcmp.gt.f32.partialorder %v3270, 0.0
        %vm3298 = vcmp.gt.f32.partialorder %v3272, 0.0
        %vm3299 = vcmp.gt.f32.partialorder %v3274, 0.0
        %vm3300 = vcmp.gt.f32.partialorder %v3276, 0.0
        %vm3301 = vcmp.gt.f32.partialorder %v3278, 0.0
        %vm3302 = vcmp.gt.f32.partialorder %v3280, 0.0
        %vm3303 = vcmp.gt.f32.partialorder %v3282, 0.0
        %vm3304 = vcmp.gt.f32.partialorder %v3284, 0.0
        %vm3305 = vcmp.gt.f32.partialorder %v3286, 0.0
        %vm3306 = vcmp.gt.f32.partialorder %v3288, 0.0
        %vm3307 = vcmp.gt.f32.partialorder %v3290, 0.0
        %vm3308 = vcmp.gt.f32.partialorder %v3292, 0.0
        %v3309 = vsel %vm3293, %v3262, 1.0
        %v3310 = vsel %vm3294, %v3264, 1.0
        %v3311 = vsel %vm3295, %v3266, 1.0
        %v3312 = vsel %vm3296, %v3268, 1.0
        %v3313 = vsel %vm3297, %v3270, 1.0
        %v3314 = vsel %vm3298, %v3272, 1.0
        %v3315 = vsel %vm3299, %v3274, 1.0
        %v3316 = vsel %vm3300, %v3276, 1.0
        %v3317 = vsel %vm3301, %v3278, 1.0
        %v3318 = vsel %vm3302, %v3280, 1.0
        %v3319 = vsel %vm3303, %v3282, 1.0
        %v3320 = vsel %vm3304, %v3284, 1.0
        %v3321 = vsel %vm3305, %v3286, 1.0
        %v3322 = vsel %vm3306, %v3288, 1.0
        %v3323 = vsel %vm3307, %v3290, 1.0
        %v3324 = vsel %vm3308, %v3292, 1.0
        %v3325 = vrcp.pop %v3309
        %v3326 = vmul.f32 %v3245, %v3325
        %v3327 = vrcp.pop %v3310
        %v3328 = vmul.f32 %v3246, %v3327
        %v3329 = vrcp.pop %v3311
        %v3330 = vmul.f32 %v3247, %v3329
        %v3331 = vrcp.pop %v3312
        %v3332 = vmul.f32 %v3248, %v3331
        %v3333 = vrcp.pop %v3313
        %v3334 = vmul.f32 %v3249, %v3333
        %v3335 = vrcp.pop %v3314
        %v3336 = vmul.f32 %v3250, %v3335
        %v3337 = vrcp.pop %v3315
        %v3338 = vmul.f32 %v3251, %v3337
        %v3339 = vrcp.pop %v3316
        %v3340 = vmul.f32 %v3252, %v3339
        %v3341 = vrcp.pop %v3317
        %v3342 = vmul.f32 %v3253, %v3341
        %v3343 = vrcp.pop %v3318
        %v3344 = vmul.f32 %v3254, %v3343
        %v3345 = vrcp.pop %v3319
        %v3346 = vmul.f32 %v3255, %v3345
        %v3347 = vrcp.pop %v3320
        %v3348 = vmul.f32 %v3256, %v3347
        %v3349 = vrcp.pop %v3321
        %v3350 = vmul.f32 %v3257, %v3349
        %v3351 = vrcp.pop %v3322
        %v3352 = vmul.f32 %v3258, %v3351
        %v3353 = vrcp.pop %v3323
        %v3354 = vmul.f32 %v3259, %v3353
        %v3355 = vrcp.pop %v3324
        %v3356 = vmul.f32 %v3260, %v3355
        %v3357 = vpack.c.bf16 %v3328, %v3326
        %v3358 = vpack.c.bf16 %v3332, %v3330
        %v3359 = vpack.c.bf16 %v3336, %v3334
        %v3360 = vpack.c.bf16 %v3340, %v3338
        %v3361 = vpack.c.bf16 %v3344, %v3342
        %v3362 = vpack.c.bf16 %v3348, %v3346
        %v3363 = vpack.c.bf16 %v3352, %v3350
        %v3364 = vpack.c.bf16 %v3356, %v3354
        %v3365 = vpack.c.bf16 %v2819, %v2816
        %v3366 = vpack.c.bf16 %v2827, %v2824
        %v3367 = vpack.c.bf16 %v2835, %v2832
        %v3368 = vpack.c.bf16 %v2843, %v2840
        %v3369 = vpack.c.bf16 %v2851, %v2848
        %v3370 = vpack.c.bf16 %v2859, %v2856
        %v3371 = vpack.c.bf16 %v2867, %v2864
        %v3372 = vpack.c.bf16 %v2875, %v2872
        %v3373 = vld [vmem:[#allocation6 + $0x9] sm:$0x1]
        %v3374 = vlaneseq
        %v3375 = vshrl.u32 %v3374, 7
        %v3376 = vsub.s32 0, %v3375
        %v3377 = vrot.slane %v3373, %v3376
        %3378 = vmatprep.subr.bf16.mxu0 0
        %3379 = vmatpush1.bf16.msra.mxu0 %v3372
        %3380 = vmatprep.subr.bf16.mxu0 0
        %3381 = vmatpush1.bf16.msra.mxu0 %v3371
        %3382 = vmatprep.subr.bf16.mxu0 0
        %3383 = vmatpush1.bf16.msra.mxu0 %v3370
        %3384 = vmatprep.subr.bf16.mxu0 0
        %3385 = vmatpush1.bf16.msra.mxu0 %v3369
        %3386 = vmatprep.subr.bf16.mxu0 0
        %3387 = vmatpush1.bf16.msra.mxu0 %v3368
        %3388 = vmatprep.subr.bf16.mxu0 0
        %3389 = vmatpush1.bf16.msra.mxu0 %v3367
        %3390 = vmatprep.subr.bf16.mxu0 0
        %3391 = vmatpush1.bf16.msra.mxu0 %v3366
        %3392 = vmatprep.subr.bf16.mxu0 0
        %3393 = vmatpush1.bf16.msra.mxu0 %v3365
        %3394 = vmatprep.subr.bf16.mxu0 0
        %3395 = vmatpush2.bf16.msra.mxu0 0
        %3396 = vmatprep.subr.bf16.mxu0 0
        %3397 = vmatpush2.bf16.msra.mxu0 0
        %3398 = vmatprep.subr.bf16.mxu0 0
        %3399 = vmatpush2.bf16.msra.mxu0 0
        %3400 = vmatprep.subr.bf16.mxu0 0
        %3401 = vmatpush2.bf16.msra.mxu0 0
        %3402 = vmatprep.subr.bf16.mxu0 0
        %3403 = vmatpush2.bf16.msra.mxu0 0
        %3404 = vmatprep.subr.bf16.mxu0 0
        %3405 = vmatpush2.bf16.msra.mxu0 0
        %3406 = vmatprep.subr.bf16.mxu0 0
        %3407 = vmatpush2.bf16.msra.mxu0 0
        %3408 = vmatprep.subr.bf16.mxu0 0
        %3409 = vmatpush2.bf16.msra.mxu0 0
        %3410 = vmatprep.mubr.bf16.mxu0 0
        %3411 = vmatmul.mubr.bf16.gmra.mxu0 %v3357
        %v3412 = vpop.f32.mrf.mxu0
        %v3413 = vadd.f32 %v3377, %v3412
        %v3414 = vpop.f32.mrf.mxu0
        %v3415 = vpop.f32.mrf.mxu0
        %v3416 = vadd.f32 %v3377, %v3415
        %v3417 = vpop.f32.mrf.mxu0
        %3418 = vmatprep.mubr.bf16.mxu0 0
        %3419 = vmatmul.mubr.bf16.gmra.mxu0 %v3358
        %v3420 = vpop.f32.mrf.mxu0
        %v3421 = vadd.f32 %v3377, %v3420
        %v3422 = vpop.f32.mrf.mxu0
        %v3423 = vpop.f32.mrf.mxu0
        %v3424 = vadd.f32 %v3377, %v3423
        %v3425 = vpop.f32.mrf.mxu0
        %3426 = vmatprep.mubr.bf16.mxu0 0
        %3427 = vmatmul.mubr.bf16.gmra.mxu0 %v3359
        %v3428 = vpop.f32.mrf.mxu0
        %v3429 = vadd.f32 %v3377, %v3428
        %v3430 = vpop.f32.mrf.mxu0
        %v3431 = vpop.f32.mrf.mxu0
        %v3432 = vadd.f32 %v3377, %v3431
        %v3433 = vpop.f32.mrf.mxu0
        %3434 = vmatprep.mubr.bf16.mxu0 0
        %3435 = vmatmul.mubr.bf16.gmra.mxu0 %v3360
        %v3436 = vpop.f32.mrf.mxu0
        %v3437 = vadd.f32 %v3377, %v3436
        %v3438 = vpop.f32.mrf.mxu0
        %v3439 = vpop.f32.mrf.mxu0
        %v3440 = vadd.f32 %v3377, %v3439
        %v3441 = vpop.f32.mrf.mxu0
        %3442 = vmatprep.mubr.bf16.mxu0 0
        %3443 = vmatmul.mubr.bf16.gmra.mxu0 %v3361
        %v3444 = vpop.f32.mrf.mxu0
        %v3445 = vadd.f32 %v3377, %v3444
        %v3446 = vpop.f32.mrf.mxu0
        %v3447 = vpop.f32.mrf.mxu0
        %v3448 = vadd.f32 %v3377, %v3447
        %v3449 = vpop.f32.mrf.mxu0
        %3450 = vmatprep.mubr.bf16.mxu0 0
        %3451 = vmatmul.mubr.bf16.gmra.mxu0 %v3362
        %v3452 = vpop.f32.mrf.mxu0
        %v3453 = vadd.f32 %v3377, %v3452
        %v3454 = vpop.f32.mrf.mxu0
        %v3455 = vpop.f32.mrf.mxu0
        %v3456 = vadd.f32 %v3377, %v3455
        %v3457 = vpop.f32.mrf.mxu0
        %3458 = vmatprep.mubr.bf16.mxu0 0
        %3459 = vmatmul.mubr.bf16.gmra.mxu0 %v3363
        %v3460 = vpop.f32.mrf.mxu0
        %v3461 = vadd.f32 %v3377, %v3460
        %v3462 = vpop.f32.mrf.mxu0
        %v3463 = vpop.f32.mrf.mxu0
        %v3464 = vadd.f32 %v3377, %v3463
        %v3465 = vpop.f32.mrf.mxu0
        %3466 = vmatprep.mubr.bf16.mxu0 0
        %3467 = vmatmul.mubr.bf16.gmra.mxu0 %v3364
        %v3468 = vpop.f32.mrf.mxu0
        %v3469 = vadd.f32 %v3377, %v3468
        %v3470 = vpop.f32.mrf.mxu0
        %v3471 = vpop.f32.mrf.mxu0
        %v3472 = vadd.f32 %v3377, %v3471
        %v3473 = vpop.f32.mrf.mxu0
        %3474 = vdwg.mxu0
        %v3475 = vmax.f32 %v3413, 0.0
        %v3476 = vmax.f32 %v3416, 0.0
        %v3477 = vmax.f32 %v3421, 0.0
        %v3478 = vmax.f32 %v3424, 0.0
        %v3479 = vmax.f32 %v3429, 0.0
        %v3480 = vmax.f32 %v3432, 0.0
        %v3481 = vmax.f32 %v3437, 0.0
        %v3482 = vmax.f32 %v3440, 0.0
        %v3483 = vmax.f32 %v3445, 0.0
        %v3484 = vmax.f32 %v3448, 0.0
        %v3485 = vmax.f32 %v3453, 0.0
        %v3486 = vmax.f32 %v3456, 0.0
        %v3487 = vmax.f32 %v3461, 0.0
        %v3488 = vmax.f32 %v3464, 0.0
        %v3489 = vmax.f32 %v3469, 0.0
        %v3490 = vmax.f32 %v3472, 0.0
        %v3491 = vadd.f32 %v3475, %v2716
        %v3492 = vadd.f32 %v3476, %v2717
        %v3493 = vadd.f32 %v3477, %v2718
        %v3494 = vadd.f32 %v3478, %v2719
        %v3495 = vadd.f32 %v3479, %v2720
        %v3496 = vadd.f32 %v3480, %v2721
        %v3497 = vadd.f32 %v3481, %v2722
        %v3498 = vadd.f32 %v3482, %v2723
        %v3499 = vadd.f32 %v3483, %v2724
        %v3500 = vadd.f32 %v3484, %v2725
        %v3501 = vadd.f32 %v3485, %v2726
        %v3502 = vadd.f32 %v3486, %v2727
        %v3503 = vadd.f32 %v3487, %v2728
        %v3504 = vadd.f32 %v3488, %v2729
        %v3505 = vadd.f32 %v3489, %v2730
        %v3506 = vadd.f32 %v3490, %v2731
        %v3507 = vpack.c.bf16 %v3492, %v3491
        %v3508 = vpack.c.bf16 %v3494, %v3493
        %v3509 = vpack.c.bf16 %v3496, %v3495
        %v3510 = vpack.c.bf16 %v3498, %v3497
        %v3511 = vpack.c.bf16 %v3500, %v3499
        %v3512 = vpack.c.bf16 %v3502, %v3501
        %v3513 = vpack.c.bf16 %v3504, %v3503
        %v3514 = vpack.c.bf16 %v3506, %v3505
        %v3515 = vld [vmem:[%s5] sm:$0xf]
        %v3516 = vld [vmem:[%s5 + $0x4] sm:$0xf]
        %v3517 = vld [vmem:[%s5 + $0x8] sm:$0xf]
        %v3518 = vld [vmem:[%s5 + $0xc] sm:$0xf]
        %v3519 = vld [vmem:[#allocation6 + $0xc] sm:$0x1]
        %v3520 = vlaneseq
        %v3521 = vshrl.u32 %v3520, 7
        %v3522 = vsub.s32 0, %v3521
        %v3523 = vrot.slane %v3519, %v3522
        %v3528 = vunpack.c.l.b16 %v3515
        %v3529 = vunpack.c.l.b16 %v3516
        %v3530 = vunpack.c.l.b16 %v3517
        %v3531 = vunpack.c.l.b16 %v3518
        %v3532 = vpack.c.b16 %v3529, %v3528
        %v3533 = vpack.c.b16 %v3531, %v3530
        %v3537 = vsel %vm480, %v3507, 0
        %v3540 = vsel %vm480, %v3508, 0
        %v3543 = vsel %vm480, %v3509, 0
        %v3546 = vsel %vm480, %v3510, 0
        %v3549 = vsel %vm480, %v3511, 0
        %v3552 = vsel %vm480, %v3512, 0
        %v3555 = vsel %vm480, %v3513, 0
        %v3558 = vsel %vm480, %v3514, 0
        %3560 = vmatprep.subr.bf16.mxu0 0
        %3561 = vmatpush1.bf16.msra.mxu0 0
        %3562 = vmatprep.subr.bf16.mxu0 0
        %3563 = vmatpush1.bf16.msra.mxu0 0
        %3564 = vmatprep.subr.bf16.mxu0 0
        %3565 = vmatpush1.bf16.msra.mxu0 0
        %3566 = vmatprep.subr.bf16.mxu0 0
        %3567 = vmatpush1.bf16.msra.mxu0 0
        %3568 = vmatprep.subr.bf16.mxu0 0
        %3569 = vmatpush1.bf16.msra.mxu0 0
        %3570 = vmatprep.subr.bf16.mxu0 0
        %3571 = vmatpush1.bf16.msra.mxu0 0
        %3572 = vmatprep.subr.bf16.mxu0 0
        %3573 = vmatpush1.bf16.msra.mxu0 %v3533
        %3574 = vmatprep.subr.bf16.mxu0 0
        %3575 = vmatpush1.bf16.msra.mxu0 %v3532
        %3576 = vmatprep.subr.bf16.mxu0 0
        %3577 = vmatpush2.bf16.msra.mxu0 0
        %3578 = vmatprep.subr.bf16.mxu0 0
        %3579 = vmatpush2.bf16.msra.mxu0 0
        %3580 = vmatprep.subr.bf16.mxu0 0
        %3581 = vmatpush2.bf16.msra.mxu0 0
        %3582 = vmatprep.subr.bf16.mxu0 0
        %3583 = vmatpush2.bf16.msra.mxu0 0
        %3584 = vmatprep.subr.bf16.mxu0 0
        %3585 = vmatpush2.bf16.msra.mxu0 0
        %3586 = vmatprep.subr.bf16.mxu0 0
        %3587 = vmatpush2.bf16.msra.mxu0 0
        %3588 = vmatprep.subr.bf16.mxu0 0
        %3589 = vmatpush2.bf16.msra.mxu0 0
        %3590 = vmatprep.subr.bf16.mxu0 0
        %3591 = vmatpush2.bf16.msra.mxu0 0
        %3592 = vmatprep.mubr.bf16.mxu0 0
        %3593 = vmatmul.mubr.bf16.gmra.mxu0 %v3537
        %v3594 = vpop.f32.mrf.mxu0
        %v3595 = vadd.f32 %v3523, %v3594
        %v3596 = vpop.f32.mrf.mxu0
        %v3597 = vpop.f32.mrf.mxu0
        %v3598 = vadd.f32 %v3523, %v3597
        %v3599 = vpop.f32.mrf.mxu0
        %3600 = vmatprep.mubr.bf16.mxu0 0
        %3601 = vmatmul.mubr.bf16.gmra.mxu0 %v3540
        %v3602 = vpop.f32.mrf.mxu0
        %v3603 = vadd.f32 %v3523, %v3602
        %v3604 = vpop.f32.mrf.mxu0
        %v3605 = vpop.f32.mrf.mxu0
        %v3606 = vadd.f32 %v3523, %v3605
        %v3607 = vpop.f32.mrf.mxu0
        %3608 = vmatprep.mubr.bf16.mxu0 0
        %3609 = vmatmul.mubr.bf16.gmra.mxu0 %v3543
        %v3610 = vpop.f32.mrf.mxu0
        %v3611 = vadd.f32 %v3523, %v3610
        %v3612 = vpop.f32.mrf.mxu0
        %v3613 = vpop.f32.mrf.mxu0
        %v3614 = vadd.f32 %v3523, %v3613
        %v3615 = vpop.f32.mrf.mxu0
        %3616 = vmatprep.mubr.bf16.mxu0 0
        %3617 = vmatmul.mubr.bf16.gmra.mxu0 %v3546
        %v3618 = vpop.f32.mrf.mxu0
        %v3619 = vadd.f32 %v3523, %v3618
        %v3620 = vpop.f32.mrf.mxu0
        %v3621 = vpop.f32.mrf.mxu0
        %v3622 = vadd.f32 %v3523, %v3621
        %v3623 = vpop.f32.mrf.mxu0
        %3624 = vmatprep.mubr.bf16.mxu0 0
        %3625 = vmatmul.mubr.bf16.gmra.mxu0 %v3549
        %v3626 = vpop.f32.mrf.mxu0
        %v3627 = vadd.f32 %v3523, %v3626
        %v3628 = vpop.f32.mrf.mxu0
        %v3629 = vpop.f32.mrf.mxu0
        %v3630 = vadd.f32 %v3523, %v3629
        %v3631 = vpop.f32.mrf.mxu0
        %3632 = vmatprep.mubr.bf16.mxu0 0
        %3633 = vmatmul.mubr.bf16.gmra.mxu0 %v3552
        %v3634 = vpop.f32.mrf.mxu0
        %v3635 = vadd.f32 %v3523, %v3634
        %v3636 = vpop.f32.mrf.mxu0
        %v3637 = vpop.f32.mrf.mxu0
        %v3638 = vadd.f32 %v3523, %v3637
        %v3639 = vpop.f32.mrf.mxu0
        %3640 = vmatprep.mubr.bf16.mxu0 0
        %3641 = vmatmul.mubr.bf16.gmra.mxu0 %v3555
        %v3642 = vpop.f32.mrf.mxu0
        %v3643 = vadd.f32 %v3523, %v3642
        %v3644 = vpop.f32.mrf.mxu0
        %v3645 = vpop.f32.mrf.mxu0
        %v3646 = vadd.f32 %v3523, %v3645
        %v3647 = vpop.f32.mrf.mxu0
        %3648 = vmatprep.mubr.bf16.mxu0 0
        %3649 = vmatmul.mubr.bf16.gmra.mxu0 %v3558
        %v3650 = vpop.f32.mrf.mxu0
        %v3651 = vadd.f32 %v3523, %v3650
        %v3652 = vpop.f32.mrf.mxu0
        %v3653 = vpop.f32.mrf.mxu0
        %v3654 = vadd.f32 %v3523, %v3653
        %v3655 = vpop.f32.mrf.mxu0
        %3656 = vdwg.mxu0
        %v3657 = vmax.f32 %v3595, 0.0
        %v3658 = vmax.f32 %v3598, 0.0
        %v3659 = vmax.f32 %v3603, 0.0
        %v3660 = vmax.f32 %v3606, 0.0
        %v3661 = vmax.f32 %v3611, 0.0
        %v3662 = vmax.f32 %v3614, 0.0
        %v3663 = vmax.f32 %v3619, 0.0
        %v3664 = vmax.f32 %v3622, 0.0
        %v3665 = vmax.f32 %v3627, 0.0
        %v3666 = vmax.f32 %v3630, 0.0
        %v3667 = vmax.f32 %v3635, 0.0
        %v3668 = vmax.f32 %v3638, 0.0
        %v3669 = vmax.f32 %v3643, 0.0
        %v3670 = vmax.f32 %v3646, 0.0
        %v3671 = vmax.f32 %v3651, 0.0
        %v3672 = vmax.f32 %v3654, 0.0
        %v3673 = vpack.c.bf16 %v3658, %v3657
        %v3674 = vpack.c.bf16 %v3660, %v3659
        %v3675 = vpack.c.bf16 %v3662, %v3661
        %v3676 = vpack.c.bf16 %v3664, %v3663
        %v3677 = vpack.c.bf16 %v3666, %v3665
        %v3678 = vpack.c.bf16 %v3668, %v3667
        %v3679 = vpack.c.bf16 %v3670, %v3669
        %v3680 = vpack.c.bf16 %v3672, %v3671
        %v3682 = vsel %vm480, %v3673, 0
        %v3685 = vsel %vm480, %v3674, 0
        %v3688 = vsel %vm480, %v3675, 0
        %v3691 = vsel %vm480, %v3676, 0
        %v3694 = vsel %vm480, %v3677, 0
        %v3697 = vsel %vm480, %v3678, 0
        %v3700 = vsel %vm480, %v3679, 0
        %v3703 = vsel %vm480, %v3680, 0
        %3705 = vmatprep.subr.bf16.mxu0 0
        %3706 = vmatpush1.bf16.msra.mxu0 0
        %3707 = vmatprep.subr.bf16.mxu0 0
        %3708 = vmatpush1.bf16.msra.mxu0 0
        %3709 = vmatprep.subr.bf16.mxu0 0
        %3710 = vmatpush1.bf16.msra.mxu0 0
        %3711 = vmatprep.subr.bf16.mxu0 0
        %3712 = vmatpush1.bf16.msra.mxu0 0
        %3713 = vmatprep.subr.bf16.mxu0 0
        %3714 = vmatpush1.bf16.msra.mxu0 0
        %3715 = vmatprep.subr.bf16.mxu0 0
        %3716 = vmatpush1.bf16.msra.mxu0 0
        %3717 = vmatprep.subr.bf16.mxu0 0
        %3718 = vmatpush1.bf16.msra.mxu0 %v2754
        %3719 = vmatprep.subr.bf16.mxu0 0
        %3720 = vmatpush1.bf16.msra.mxu0 %v2753
        %3721 = vmatprep.subr.bf16.mxu0 0
        %3722 = vmatpush2.bf16.msra.mxu0 0
        %3723 = vmatprep.subr.bf16.mxu0 0
        %3724 = vmatpush2.bf16.msra.mxu0 0
        %3725 = vmatprep.subr.bf16.mxu0 0
        %3726 = vmatpush2.bf16.msra.mxu0 0
        %3727 = vmatprep.subr.bf16.mxu0 0
        %3728 = vmatpush2.bf16.msra.mxu0 0
        %3729 = vmatprep.subr.bf16.mxu0 0
        %3730 = vmatpush2.bf16.msra.mxu0 0
        %3731 = vmatprep.subr.bf16.mxu0 0
        %3732 = vmatpush2.bf16.msra.mxu0 0
        %3733 = vmatprep.subr.bf16.mxu0 0
        %3734 = vmatpush2.bf16.msra.mxu0 0
        %3735 = vmatprep.subr.bf16.mxu0 0
        %3736 = vmatpush2.bf16.msra.mxu0 0
        %3737 = vmatprep.mubr.bf16.mxu0 0
        %3738 = vmatmul.mubr.bf16.gmra.mxu0 %v3682
        %v3739 = vpop.f32.mrf.mxu0
        %v3740 = vadd.f32 0.0, %v3739
        %v3741 = vpop.f32.mrf.mxu0
        %v3742 = vpop.f32.mrf.mxu0
        %v3743 = vadd.f32 0.0, %v3742
        %v3744 = vpop.f32.mrf.mxu0
        %3745 = vmatprep.mubr.bf16.mxu0 0
        %3746 = vmatmul.mubr.bf16.gmra.mxu0 %v3685
        %v3747 = vpop.f32.mrf.mxu0
        %v3748 = vadd.f32 0.0, %v3747
        %v3749 = vpop.f32.mrf.mxu0
        %v3750 = vpop.f32.mrf.mxu0
        %v3751 = vadd.f32 0.0, %v3750
        %v3752 = vpop.f32.mrf.mxu0
        %3753 = vmatprep.mubr.bf16.mxu0 0
        %3754 = vmatmul.mubr.bf16.gmra.mxu0 %v3688
        %v3755 = vpop.f32.mrf.mxu0
        %v3756 = vadd.f32 0.0, %v3755
        %v3757 = vpop.f32.mrf.mxu0
        %v3758 = vpop.f32.mrf.mxu0
        %v3759 = vadd.f32 0.0, %v3758
        %v3760 = vpop.f32.mrf.mxu0
        %3761 = vmatprep.mubr.bf16.mxu0 0
        %3762 = vmatmul.mubr.bf16.gmra.mxu0 %v3691
        %v3763 = vpop.f32.mrf.mxu0
        %v3764 = vadd.f32 0.0, %v3763
        %v3765 = vpop.f32.mrf.mxu0
        %v3766 = vpop.f32.mrf.mxu0
        %v3767 = vadd.f32 0.0, %v3766
        %v3768 = vpop.f32.mrf.mxu0
        %3769 = vmatprep.mubr.bf16.mxu0 0
        %3770 = vmatmul.mubr.bf16.gmra.mxu0 %v3694
        %v3771 = vpop.f32.mrf.mxu0
        %v3772 = vadd.f32 0.0, %v3771
        %v3773 = vpop.f32.mrf.mxu0
        %v3774 = vpop.f32.mrf.mxu0
        %v3775 = vadd.f32 0.0, %v3774
        %v3776 = vpop.f32.mrf.mxu0
        %3777 = vmatprep.mubr.bf16.mxu0 0
        %3778 = vmatmul.mubr.bf16.gmra.mxu0 %v3697
        %v3779 = vpop.f32.mrf.mxu0
        %v3780 = vadd.f32 0.0, %v3779
        %v3781 = vpop.f32.mrf.mxu0
        %v3782 = vpop.f32.mrf.mxu0
        %v3783 = vadd.f32 0.0, %v3782
        %v3784 = vpop.f32.mrf.mxu0
        %3785 = vmatprep.mubr.bf16.mxu0 0
        %3786 = vmatmul.mubr.bf16.gmra.mxu0 %v3700
        %v3787 = vpop.f32.mrf.mxu0
        %v3788 = vadd.f32 0.0, %v3787
        %v3789 = vpop.f32.mrf.mxu0
        %v3790 = vpop.f32.mrf.mxu0
        %v3791 = vadd.f32 0.0, %v3790
        %v3792 = vpop.f32.mrf.mxu0
        %3793 = vmatprep.mubr.bf16.mxu0 0
        %3794 = vmatmul.mubr.bf16.gmra.mxu0 %v3703
        %v3795 = vpop.f32.mrf.mxu0
        %v3796 = vadd.f32 0.0, %v3795
        %v3797 = vpop.f32.mrf.mxu0
        %v3798 = vpop.f32.mrf.mxu0
        %v3799 = vadd.f32 0.0, %v3798
        %v3800 = vpop.f32.mrf.mxu0
        %3801 = vdwg.mxu0
        %v3803 = vsel %vm480, %v3740, 0
        %v3806 = vsel %vm480, %v3743, 0
        %v3809 = vsel %vm480, %v3748, 0
        %v3812 = vsel %vm480, %v3751, 0
        %v3815 = vsel %vm480, %v3756, 0
        %v3818 = vsel %vm480, %v3759, 0
        %v3821 = vsel %vm480, %v3764, 0
        %v3824 = vsel %vm480, %v3767, 0
        %v3827 = vsel %vm480, %v3772, 0
        %v3830 = vsel %vm480, %v3775, 0
        %v3833 = vsel %vm480, %v3780, 0
        %v3836 = vsel %vm480, %v3783, 0
        %v3839 = vsel %vm480, %v3788, 0
        %v3842 = vsel %vm480, %v3791, 0
        %v3845 = vsel %vm480, %v3796, 0
        %v3848 = vsel %vm480, %v3799, 0
        %3850 = vmatprep.subr.mxu0 0.0
        %3851 = vmatpush1.xpose.msra.mxu0 %v3848
        %3852 = vmatprep.subr.mxu0 0.0
        %3853 = vmatpush1.xpose.msra.mxu0 %v3845
        %3854 = vmatprep.subr.mxu0 0.0
        %3855 = vmatpush1.xpose.msra.mxu0 %v3842
        %3856 = vmatprep.subr.mxu0 0.0
        %3857 = vmatpush1.xpose.msra.mxu0 %v3839
        %3858 = vmatprep.subr.mxu0 0.0
        %3859 = vmatpush1.xpose.msra.mxu0 %v3836
        %3860 = vmatprep.subr.mxu0 0.0
        %3861 = vmatpush1.xpose.msra.mxu0 %v3833
        %3862 = vmatprep.subr.mxu0 0.0
        %3863 = vmatpush1.xpose.msra.mxu0 %v3830
        %3864 = vmatprep.subr.mxu0 0.0
        %3865 = vmatpush1.xpose.msra.mxu0 %v3827
        %3866 = vmatprep.subr.mxu0 0.0
        %3867 = vmatpush1.xpose.msra.mxu0 %v3824
        %3868 = vmatprep.subr.mxu0 0.0
        %3869 = vmatpush1.xpose.msra.mxu0 %v3821
        %3870 = vmatprep.subr.mxu0 0.0
        %3871 = vmatpush1.xpose.msra.mxu0 %v3818
        %3872 = vmatprep.subr.mxu0 0.0
        %3873 = vmatpush1.xpose.msra.mxu0 %v3815
        %3874 = vmatprep.subr.mxu0 0.0
        %3875 = vmatpush1.xpose.msra.mxu0 %v3812
        %3876 = vmatprep.subr.mxu0 0.0
        %3877 = vmatpush1.xpose.msra.mxu0 %v3809
        %3878 = vmatprep.subr.mxu0 0.0
        %3879 = vmatpush1.xpose.msra.mxu0 %v3806
        %3880 = vmatprep.subr.mxu0 0.0
        %3881 = vmatpush1.xpose.msra.mxu0 %v3803
        %3882 = vmatprep.subr.mxu0 0.0
        %3883 = vmatpush2.xpose.msra.mxu0 0.0
        %3884 = vmatprep.subr.mxu0 0.0
        %3885 = vmatpush2.xpose.msra.mxu0 0.0
        %3886 = vmatprep.subr.mxu0 0.0
        %3887 = vmatpush2.xpose.msra.mxu0 0.0
        %3888 = vmatprep.subr.mxu0 0.0
        %3889 = vmatpush2.xpose.msra.mxu0 0.0
        %3890 = vmatprep.subr.mxu0 0.0
        %3891 = vmatpush2.xpose.msra.mxu0 0.0
        %3892 = vmatprep.subr.mxu0 0.0
        %3893 = vmatpush2.xpose.msra.mxu0 0.0
        %3894 = vmatprep.subr.mxu0 0.0
        %3895 = vmatpush2.xpose.msra.mxu0 0.0
        %3896 = vmatprep.subr.mxu0 0.0
        %3897 = vmatpush2.xpose.msra.mxu0 0.0
        %3898 = vmatprep.subr.mxu0 0.0
        %3899 = vmatpush2.xpose.msra.mxu0 0.0
        %3900 = vmatprep.subr.mxu0 0.0
        %3901 = vmatpush2.xpose.msra.mxu0 0.0
        %3902 = vmatprep.subr.mxu0 0.0
        %3903 = vmatpush2.xpose.msra.mxu0 0.0
        %3904 = vmatprep.subr.mxu0 0.0
        %3905 = vmatpush2.xpose.msra.mxu0 0.0
        %3906 = vmatprep.subr.mxu0 0.0
        %3907 = vmatpush2.xpose.msra.mxu0 0.0
        %3908 = vmatprep.subr.mxu0 0.0
        %3909 = vmatpush2.xpose.msra.mxu0 0.0
        %3910 = vmatprep.subr.mxu0 0.0
        %3911 = vmatpush2.xpose.msra.mxu0 0.0
        %3912 = vmatprep.subr.mxu0 0.0
        %3913 = vmatpush2.xpose.msra.mxu0 0.0
        %3914 = vmatprep.mubr.f32.mxu0 0.0
        %3915 = vmatmul.mubr.f32.gmra.mxu0 %v2880
        %v3916 = vpop.f32.mrf.mxu0
        %v3917 = vadd.f32 0.0, %v3916
        %v3918 = vpop.f32.mrf.mxu0
        %3919 = vdwg.mxu0
        %3920 = vset.pattern.permute.xlu0 32
        %3921 = vperm.xlu0 %3920, %v3740
        %v3922 = vpop.permute.xlu0 %3921
        %3924 = vset.pattern.permute.xlu0 32
        %3925 = vperm.xlu0 %3924, %v3743
        %v3926 = vpop.permute.xlu0 %3925
        %3928 = vset.pattern.permute.xlu0 32
        %3929 = vperm.xlu0 %3928, %v3748
        %v3930 = vpop.permute.xlu0 %3929
        %3932 = vset.pattern.permute.xlu0 32
        %3933 = vperm.xlu0 %3932, %v3751
        %v3934 = vpop.permute.xlu0 %3933
        %3936 = vset.pattern.permute.xlu0 32
        %3937 = vperm.xlu0 %3936, %v3756
        %v3938 = vpop.permute.xlu0 %3937
        %3940 = vset.pattern.permute.xlu0 32
        %3941 = vperm.xlu0 %3940, %v3759
        %v3942 = vpop.permute.xlu0 %3941
        %3944 = vset.pattern.permute.xlu0 32
        %3945 = vperm.xlu0 %3944, %v3764
        %v3946 = vpop.permute.xlu0 %3945
        %3948 = vset.pattern.permute.xlu0 32
        %3949 = vperm.xlu0 %3948, %v3767
        %v3950 = vpop.permute.xlu0 %3949
        %3952 = vset.pattern.permute.xlu0 32
        %3953 = vperm.xlu0 %3952, %v3772
        %v3954 = vpop.permute.xlu0 %3953
        %3956 = vset.pattern.permute.xlu0 32
        %3957 = vperm.xlu0 %3956, %v3775
        %v3958 = vpop.permute.xlu0 %3957
        %3960 = vset.pattern.permute.xlu0 32
        %3961 = vperm.xlu0 %3960, %v3780
        %v3962 = vpop.permute.xlu0 %3961
        %3964 = vset.pattern.permute.xlu0 32
        %3965 = vperm.xlu0 %3964, %v3783
        %v3966 = vpop.permute.xlu0 %3965
        %3968 = vset.pattern.permute.xlu0 32
        %3969 = vperm.xlu0 %3968, %v3788
        %v3970 = vpop.permute.xlu0 %3969
        %3972 = vset.pattern.permute.xlu0 32
        %3973 = vperm.xlu0 %3972, %v3791
        %v3974 = vpop.permute.xlu0 %3973
        %3976 = vset.pattern.permute.xlu0 32
        %3977 = vperm.xlu0 %3976, %v3796
        %v3978 = vpop.permute.xlu0 %3977
        %3980 = vset.pattern.permute.xlu0 32
        %3981 = vperm.xlu0 %3980, %v3799
        %v3982 = vpop.permute.xlu0 %3981
        %v3984 = vlaneseq
        %v3985 = vshrl.u32 %v3984, 7
        %v3986 = vsub.s32 0, %v3985
        %v3987 = vrot.slane %v3917, %v3986
        %v3988 = vadd.f32 %v3922, %v3987
        %v3989 = vadd.f32 %v3926, %v3987
        %v3990 = vadd.f32 %v3930, %v3987
        %v3991 = vadd.f32 %v3934, %v3987
        %v3992 = vadd.f32 %v3938, %v3987
        %v3993 = vadd.f32 %v3942, %v3987
        %v3994 = vadd.f32 %v3946, %v3987
        %v3995 = vadd.f32 %v3950, %v3987
        %v3996 = vadd.f32 %v3954, %v3987
        %v3997 = vadd.f32 %v3958, %v3987
        %v3998 = vadd.f32 %v3962, %v3987
        %v3999 = vadd.f32 %v3966, %v3987
        %v4000 = vadd.f32 %v3970, %v3987
        %v4001 = vadd.f32 %v3974, %v3987
        %v4002 = vadd.f32 %v3978, %v3987
        %v4003 = vadd.f32 %v3982, %v3987
        %v4004 = vadd.f32 %v3988, %v3085
        %v4005 = vadd.f32 %v3989, %v3086
        %v4006 = vadd.f32 %v3990, %v3087
        %v4007 = vadd.f32 %v3991, %v3088
        %v4008 = vadd.f32 %v3992, %v3089
        %v4009 = vadd.f32 %v3993, %v3090
        %v4010 = vadd.f32 %v3994, %v3091
        %v4011 = vadd.f32 %v3995, %v3092
        %v4012 = vadd.f32 %v3996, %v3093
        %v4013 = vadd.f32 %v3997, %v3094
        %v4014 = vadd.f32 %v3998, %v3095
        %v4015 = vadd.f32 %v3999, %v3096
        %v4016 = vadd.f32 %v4000, %v3097
        %v4017 = vadd.f32 %v4001, %v3098
        %v4018 = vadd.f32 %v4002, %v3099
        %v4019 = vadd.f32 %v4003, %v3100
        %vm4020 = vcmp.gt.f32.partialorder %v4004, 0.0
        %vm4021 = vcmp.gt.f32.partialorder %v4005, 0.0
        %vm4022 = vcmp.gt.f32.partialorder %v4006, 0.0
        %vm4023 = vcmp.gt.f32.partialorder %v4007, 0.0
        %vm4024 = vcmp.gt.f32.partialorder %v4008, 0.0
        %vm4025 = vcmp.gt.f32.partialorder %v4009, 0.0
        %vm4026 = vcmp.gt.f32.partialorder %v4010, 0.0
        %vm4027 = vcmp.gt.f32.partialorder %v4011, 0.0
        %vm4028 = vcmp.gt.f32.partialorder %v4012, 0.0
        %vm4029 = vcmp.gt.f32.partialorder %v4013, 0.0
        %vm4030 = vcmp.gt.f32.partialorder %v4014, 0.0
        %vm4031 = vcmp.gt.f32.partialorder %v4015, 0.0
        %vm4032 = vcmp.gt.f32.partialorder %v4016, 0.0
        %vm4033 = vcmp.gt.f32.partialorder %v4017, 0.0
        %vm4034 = vcmp.gt.f32.partialorder %v4018, 0.0
        %vm4035 = vcmp.gt.f32.partialorder %v4019, 0.0
        %v4036 = vmul.f32 %v4004, 0.2
        %v4037 = vmul.f32 %v4005, 0.2
        %v4038 = vmul.f32 %v4006, 0.2
        %v4039 = vmul.f32 %v4007, 0.2
        %v4040 = vmul.f32 %v4008, 0.2
        %v4041 = vmul.f32 %v4009, 0.2
        %v4042 = vmul.f32 %v4010, 0.2
        %v4043 = vmul.f32 %v4011, 0.2
        %v4044 = vmul.f32 %v4012, 0.2
        %v4045 = vmul.f32 %v4013, 0.2
        %v4046 = vmul.f32 %v4014, 0.2
        %v4047 = vmul.f32 %v4015, 0.2
        %v4048 = vmul.f32 %v4016, 0.2
        %v4049 = vmul.f32 %v4017, 0.2
        %v4050 = vmul.f32 %v4018, 0.2
        %v4051 = vmul.f32 %v4019, 0.2
        %v4052 = vsel %vm4020, %v4004, %v4036
        %v4053 = vsel %vm4021, %v4005, %v4037
        %v4054 = vsel %vm4022, %v4006, %v4038
        %v4055 = vsel %vm4023, %v4007, %v4039
        %v4056 = vsel %vm4024, %v4008, %v4040
        %v4057 = vsel %vm4025, %v4009, %v4041
        %v4058 = vsel %vm4026, %v4010, %v4042
        %v4059 = vsel %vm4027, %v4011, %v4043
        %v4060 = vsel %vm4028, %v4012, %v4044
        %v4061 = vsel %vm4029, %v4013, %v4045
        %v4062 = vsel %vm4030, %v4014, %v4046
        %v4063 = vsel %vm4031, %v4015, %v4047
        %v4064 = vsel %vm4032, %v4016, %v4048
        %v4065 = vsel %vm4033, %v4017, %v4049
        %v4066 = vsel %vm4034, %v4018, %v4050
        %v4067 = vsel %vm4035, %v4019, %v4051
        %4068 = vmax.xlane.f32.xlu0 %v4052
        %v4069 = vpop.xlane.xlu0 %4068
        %4070 = vmax.xlane.f32.xlu0 %v4053
        %v4071 = vpop.xlane.xlu0 %4070
        %4072 = vmax.xlane.f32.xlu0 %v4054
        %v4073 = vpop.xlane.xlu0 %4072
        %4074 = vmax.xlane.f32.xlu0 %v4055
        %v4075 = vpop.xlane.xlu0 %4074
        %4076 = vmax.xlane.f32.xlu0 %v4056
        %v4077 = vpop.xlane.xlu0 %4076
        %4078 = vmax.xlane.f32.xlu0 %v4057
        %v4079 = vpop.xlane.xlu0 %4078
        %4080 = vmax.xlane.f32.xlu0 %v4058
        %v4081 = vpop.xlane.xlu0 %4080
        %4082 = vmax.xlane.f32.xlu0 %v4059
        %v4083 = vpop.xlane.xlu0 %4082
        %4084 = vmax.xlane.f32.xlu0 %v4060
        %v4085 = vpop.xlane.xlu0 %4084
        %4086 = vmax.xlane.f32.xlu0 %v4061
        %v4087 = vpop.xlane.xlu0 %4086
        %4088 = vmax.xlane.f32.xlu0 %v4062
        %v4089 = vpop.xlane.xlu0 %4088
        %4090 = vmax.xlane.f32.xlu0 %v4063
        %v4091 = vpop.xlane.xlu0 %4090
        %4092 = vmax.xlane.f32.xlu0 %v4064
        %v4093 = vpop.xlane.xlu0 %4092
        %4094 = vmax.xlane.f32.xlu0 %v4065
        %v4095 = vpop.xlane.xlu0 %4094
        %4096 = vmax.xlane.f32.xlu0 %v4066
        %v4097 = vpop.xlane.xlu0 %4096
        %4098 = vmax.xlane.f32.xlu0 %v4067
        %v4099 = vpop.xlane.xlu0 %4098
        %v4100 = vsub.f32 %v4052, %v4069
        %v4101 = vsub.f32 %v4053, %v4071
        %v4102 = vsub.f32 %v4054, %v4073
        %v4103 = vsub.f32 %v4055, %v4075
        %v4104 = vsub.f32 %v4056, %v4077
        %v4105 = vsub.f32 %v4057, %v4079
        %v4106 = vsub.f32 %v4058, %v4081
        %v4107 = vsub.f32 %v4059, %v4083
        %v4108 = vsub.f32 %v4060, %v4085
        %v4109 = vsub.f32 %v4061, %v4087
        %v4110 = vsub.f32 %v4062, %v4089
        %v4111 = vsub.f32 %v4063, %v4091
        %v4112 = vsub.f32 %v4064, %v4093
        %v4113 = vsub.f32 %v4065, %v4095
        %v4114 = vsub.f32 %v4066, %v4097
        %v4115 = vsub.f32 %v4067, %v4099
        %v4116 = vmul.f32 %v4100, 1.442695
        %v4117 = vpow.pop %v4116
        %v4118 = vmul.f32 %v4101, 1.442695
        %v4119 = vpow.pop %v4118
        %v4120 = vmul.f32 %v4102, 1.442695
        %v4121 = vpow.pop %v4120
        %v4122 = vmul.f32 %v4103, 1.442695
        %v4123 = vpow.pop %v4122
        %v4124 = vmul.f32 %v4104, 1.442695
        %v4125 = vpow.pop %v4124
        %v4126 = vmul.f32 %v4105, 1.442695
        %v4127 = vpow.pop %v4126
        %v4128 = vmul.f32 %v4106, 1.442695
        %v4129 = vpow.pop %v4128
        %v4130 = vmul.f32 %v4107, 1.442695
        %v4131 = vpow.pop %v4130
        %v4132 = vmul.f32 %v4108, 1.442695
        %v4133 = vpow.pop %v4132
        %v4134 = vmul.f32 %v4109, 1.442695
        %v4135 = vpow.pop %v4134
        %v4136 = vmul.f32 %v4110, 1.442695
        %v4137 = vpow.pop %v4136
        %v4138 = vmul.f32 %v4111, 1.442695
        %v4139 = vpow.pop %v4138
        %v4140 = vmul.f32 %v4112, 1.442695
        %v4141 = vpow.pop %v4140
        %v4142 = vmul.f32 %v4113, 1.442695
        %v4143 = vpow.pop %v4142
        %v4144 = vmul.f32 %v4114, 1.442695
        %v4145 = vpow.pop %v4144
        %v4146 = vmul.f32 %v4115, 1.442695
        %v4147 = vpow.pop %v4146
        %v4148 = vmul.f32 %v4117, %v424
        %v4149 = vmul.f32 %v4119, %v425
        %v4150 = vmul.f32 %v4121, %v426
        %v4151 = vmul.f32 %v4123, %v427
        %v4152 = vmul.f32 %v4125, %v428
        %v4153 = vmul.f32 %v4127, %v429
        %v4154 = vmul.f32 %v4129, %v430
        %v4155 = vmul.f32 %v4131, %v431
        %v4156 = vmul.f32 %v4133, %v432
        %v4157 = vmul.f32 %v4135, %v433
        %v4158 = vmul.f32 %v4137, %v434
        %v4159 = vmul.f32 %v4139, %v435
        %v4160 = vmul.f32 %v4141, %v436
        %v4161 = vmul.f32 %v4143, %v437
        %v4162 = vmul.f32 %v4145, %v438
        %v4163 = vmul.f32 %v4147, %v439
        %4164 = vadd.xlane.f32.xlu0 %v4148
        %v4165 = vpop.xlane.xlu0 %4164
        %4166 = vadd.xlane.f32.xlu0 %v4149
        %v4167 = vpop.xlane.xlu0 %4166
        %4168 = vadd.xlane.f32.xlu0 %v4150
        %v4169 = vpop.xlane.xlu0 %4168
        %4170 = vadd.xlane.f32.xlu0 %v4151
        %v4171 = vpop.xlane.xlu0 %4170
        %4172 = vadd.xlane.f32.xlu0 %v4152
        %v4173 = vpop.xlane.xlu0 %4172
        %4174 = vadd.xlane.f32.xlu0 %v4153
        %v4175 = vpop.xlane.xlu0 %4174
        %4176 = vadd.xlane.f32.xlu0 %v4154
        %v4177 = vpop.xlane.xlu0 %4176
        %4178 = vadd.xlane.f32.xlu0 %v4155
        %v4179 = vpop.xlane.xlu0 %4178
        %4180 = vadd.xlane.f32.xlu0 %v4156
        %v4181 = vpop.xlane.xlu0 %4180
        %4182 = vadd.xlane.f32.xlu0 %v4157
        %v4183 = vpop.xlane.xlu0 %4182
        %4184 = vadd.xlane.f32.xlu0 %v4158
        %v4185 = vpop.xlane.xlu0 %4184
        %4186 = vadd.xlane.f32.xlu0 %v4159
        %v4187 = vpop.xlane.xlu0 %4186
        %4188 = vadd.xlane.f32.xlu0 %v4160
        %v4189 = vpop.xlane.xlu0 %4188
        %4190 = vadd.xlane.f32.xlu0 %v4161
        %v4191 = vpop.xlane.xlu0 %4190
        %4192 = vadd.xlane.f32.xlu0 %v4162
        %v4193 = vpop.xlane.xlu0 %4192
        %4194 = vadd.xlane.f32.xlu0 %v4163
        %v4195 = vpop.xlane.xlu0 %4194
        %vm4196 = vcmp.gt.f32.partialorder %v4165, 0.0
        %vm4197 = vcmp.gt.f32.partialorder %v4167, 0.0
        %vm4198 = vcmp.gt.f32.partialorder %v4169, 0.0
        %vm4199 = vcmp.gt.f32.partialorder %v4171, 0.0
        %vm4200 = vcmp.gt.f32.partialorder %v4173, 0.0
        %vm4201 = vcmp.gt.f32.partialorder %v4175, 0.0
        %vm4202 = vcmp.gt.f32.partialorder %v4177, 0.0
        %vm4203 = vcmp.gt.f32.partialorder %v4179, 0.0
        %vm4204 = vcmp.gt.f32.partialorder %v4181, 0.0
        %vm4205 = vcmp.gt.f32.partialorder %v4183, 0.0
        %vm4206 = vcmp.gt.f32.partialorder %v4185, 0.0
        %vm4207 = vcmp.gt.f32.partialorder %v4187, 0.0
        %vm4208 = vcmp.gt.f32.partialorder %v4189, 0.0
        %vm4209 = vcmp.gt.f32.partialorder %v4191, 0.0
        %vm4210 = vcmp.gt.f32.partialorder %v4193, 0.0
        %vm4211 = vcmp.gt.f32.partialorder %v4195, 0.0
        %v4212 = vsel %vm4196, %v4165, 1.0
        %v4213 = vsel %vm4197, %v4167, 1.0
        %v4214 = vsel %vm4198, %v4169, 1.0
        %v4215 = vsel %vm4199, %v4171, 1.0
        %v4216 = vsel %vm4200, %v4173, 1.0
        %v4217 = vsel %vm4201, %v4175, 1.0
        %v4218 = vsel %vm4202, %v4177, 1.0
        %v4219 = vsel %vm4203, %v4179, 1.0
        %v4220 = vsel %vm4204, %v4181, 1.0
        %v4221 = vsel %vm4205, %v4183, 1.0
        %v4222 = vsel %vm4206, %v4185, 1.0
        %v4223 = vsel %vm4207, %v4187, 1.0
        %v4224 = vsel %vm4208, %v4189, 1.0
        %v4225 = vsel %vm4209, %v4191, 1.0
        %v4226 = vsel %vm4210, %v4193, 1.0
        %v4227 = vsel %vm4211, %v4195, 1.0
        %v4228 = vrcp.pop %v4212
        %v4229 = vmul.f32 %v4148, %v4228
        %v4230 = vrcp.pop %v4213
        %v4231 = vmul.f32 %v4149, %v4230
        %v4232 = vrcp.pop %v4214
        %v4233 = vmul.f32 %v4150, %v4232
        %v4234 = vrcp.pop %v4215
        %v4235 = vmul.f32 %v4151, %v4234
        %v4236 = vrcp.pop %v4216
        %v4237 = vmul.f32 %v4152, %v4236
        %v4238 = vrcp.pop %v4217
        %v4239 = vmul.f32 %v4153, %v4238
        %v4240 = vrcp.pop %v4218
        %v4241 = vmul.f32 %v4154, %v4240
        %v4242 = vrcp.pop %v4219
        %v4243 = vmul.f32 %v4155, %v4242
        %v4244 = vrcp.pop %v4220
        %v4245 = vmul.f32 %v4156, %v4244
        %v4246 = vrcp.pop %v4221
        %v4247 = vmul.f32 %v4157, %v4246
        %v4248 = vrcp.pop %v4222
        %v4249 = vmul.f32 %v4158, %v4248
        %v4250 = vrcp.pop %v4223
        %v4251 = vmul.f32 %v4159, %v4250
        %v4252 = vrcp.pop %v4224
        %v4253 = vmul.f32 %v4160, %v4252
        %v4254 = vrcp.pop %v4225
        %v4255 = vmul.f32 %v4161, %v4254
        %v4256 = vrcp.pop %v4226
        %v4257 = vmul.f32 %v4162, %v4256
        %v4258 = vrcp.pop %v4227
        %v4259 = vmul.f32 %v4163, %v4258
        %v4260 = vpack.c.bf16 %v4231, %v4229
        %v4261 = vpack.c.bf16 %v4235, %v4233
        %v4262 = vpack.c.bf16 %v4239, %v4237
        %v4263 = vpack.c.bf16 %v4243, %v4241
        %v4264 = vpack.c.bf16 %v4247, %v4245
        %v4265 = vpack.c.bf16 %v4251, %v4249
        %v4266 = vpack.c.bf16 %v4255, %v4253
        %v4267 = vpack.c.bf16 %v4259, %v4257
        %v4268 = vpack.c.bf16 %v3743, %v3740
        %v4269 = vpack.c.bf16 %v3751, %v3748
        %v4270 = vpack.c.bf16 %v3759, %v3756
        %v4271 = vpack.c.bf16 %v3767, %v3764
        %v4272 = vpack.c.bf16 %v3775, %v3772
        %v4273 = vpack.c.bf16 %v3783, %v3780
        %v4274 = vpack.c.bf16 %v3791, %v3788
        %v4275 = vpack.c.bf16 %v3799, %v3796
        %4276 = vmatprep.subr.bf16.mxu0 0
        %4277 = vmatpush1.bf16.msra.mxu0 %v4275
        %4278 = vmatprep.subr.bf16.mxu0 0
        %4279 = vmatpush1.bf16.msra.mxu0 %v4274
        %4280 = vmatprep.subr.bf16.mxu0 0
        %4281 = vmatpush1.bf16.msra.mxu0 %v4273
        %4282 = vmatprep.subr.bf16.mxu0 0
        %4283 = vmatpush1.bf16.msra.mxu0 %v4272
        %4284 = vmatprep.subr.bf16.mxu0 0
        %4285 = vmatpush1.bf16.msra.mxu0 %v4271
        %4286 = vmatprep.subr.bf16.mxu0 0
        %4287 = vmatpush1.bf16.msra.mxu0 %v4270
        %4288 = vmatprep.subr.bf16.mxu0 0
        %4289 = vmatpush1.bf16.msra.mxu0 %v4269
        %4290 = vmatprep.subr.bf16.mxu0 0
        %4291 = vmatpush1.bf16.msra.mxu0 %v4268
        %4292 = vmatprep.subr.bf16.mxu0 0
        %4293 = vmatpush2.bf16.msra.mxu0 0
        %4294 = vmatprep.subr.bf16.mxu0 0
        %4295 = vmatpush2.bf16.msra.mxu0 0
        %4296 = vmatprep.subr.bf16.mxu0 0
        %4297 = vmatpush2.bf16.msra.mxu0 0
        %4298 = vmatprep.subr.bf16.mxu0 0
        %4299 = vmatpush2.bf16.msra.mxu0 0
        %4300 = vmatprep.subr.bf16.mxu0 0
        %4301 = vmatpush2.bf16.msra.mxu0 0
        %4302 = vmatprep.subr.bf16.mxu0 0
        %4303 = vmatpush2.bf16.msra.mxu0 0
        %4304 = vmatprep.subr.bf16.mxu0 0
        %4305 = vmatpush2.bf16.msra.mxu0 0
        %4306 = vmatprep.subr.bf16.mxu0 0
        %4307 = vmatpush2.bf16.msra.mxu0 0
        %4308 = vmatprep.mubr.bf16.mxu0 0
        %4309 = vmatmul.mubr.bf16.gmra.mxu0 %v4260
        %v4310 = vpop.f32.mrf.mxu0
        %v4311 = vadd.f32 %v3377, %v4310
        %v4312 = vpop.f32.mrf.mxu0
        %v4313 = vpop.f32.mrf.mxu0
        %v4314 = vadd.f32 %v3377, %v4313
        %v4315 = vpop.f32.mrf.mxu0
        %4316 = vmatprep.mubr.bf16.mxu0 0
        %4317 = vmatmul.mubr.bf16.gmra.mxu0 %v4261
        %v4318 = vpop.f32.mrf.mxu0
        %v4319 = vadd.f32 %v3377, %v4318
        %v4320 = vpop.f32.mrf.mxu0
        %v4321 = vpop.f32.mrf.mxu0
        %v4322 = vadd.f32 %v3377, %v4321
        %v4323 = vpop.f32.mrf.mxu0
        %4324 = vmatprep.mubr.bf16.mxu0 0
        %4325 = vmatmul.mubr.bf16.gmra.mxu0 %v4262
        %v4326 = vpop.f32.mrf.mxu0
        %v4327 = vadd.f32 %v3377, %v4326
        %v4328 = vpop.f32.mrf.mxu0
        %v4329 = vpop.f32.mrf.mxu0
        %v4330 = vadd.f32 %v3377, %v4329
        %v4331 = vpop.f32.mrf.mxu0
        %4332 = vmatprep.mubr.bf16.mxu0 0
        %4333 = vmatmul.mubr.bf16.gmra.mxu0 %v4263
        %v4334 = vpop.f32.mrf.mxu0
        %v4335 = vadd.f32 %v3377, %v4334
        %v4336 = vpop.f32.mrf.mxu0
        %v4337 = vpop.f32.mrf.mxu0
        %v4338 = vadd.f32 %v3377, %v4337
        %v4339 = vpop.f32.mrf.mxu0
        %4340 = vmatprep.mubr.bf16.mxu0 0
        %4341 = vmatmul.mubr.bf16.gmra.mxu0 %v4264
        %v4342 = vpop.f32.mrf.mxu0
        %v4343 = vadd.f32 %v3377, %v4342
        %v4344 = vpop.f32.mrf.mxu0
        %v4345 = vpop.f32.mrf.mxu0
        %v4346 = vadd.f32 %v3377, %v4345
        %v4347 = vpop.f32.mrf.mxu0
        %4348 = vmatprep.mubr.bf16.mxu0 0
        %4349 = vmatmul.mubr.bf16.gmra.mxu0 %v4265
        %v4350 = vpop.f32.mrf.mxu0
        %v4351 = vadd.f32 %v3377, %v4350
        %v4352 = vpop.f32.mrf.mxu0
        %v4353 = vpop.f32.mrf.mxu0
        %v4354 = vadd.f32 %v3377, %v4353
        %v4355 = vpop.f32.mrf.mxu0
        %4356 = vmatprep.mubr.bf16.mxu0 0
        %4357 = vmatmul.mubr.bf16.gmra.mxu0 %v4266
        %v4358 = vpop.f32.mrf.mxu0
        %v4359 = vadd.f32 %v3377, %v4358
        %v4360 = vpop.f32.mrf.mxu0
        %v4361 = vpop.f32.mrf.mxu0
        %v4362 = vadd.f32 %v3377, %v4361
        %v4363 = vpop.f32.mrf.mxu0
        %4364 = vmatprep.mubr.bf16.mxu0 0
        %4365 = vmatmul.mubr.bf16.gmra.mxu0 %v4267
        %v4366 = vpop.f32.mrf.mxu0
        %v4367 = vadd.f32 %v3377, %v4366
        %v4368 = vpop.f32.mrf.mxu0
        %v4369 = vpop.f32.mrf.mxu0
        %v4370 = vadd.f32 %v3377, %v4369
        %v4371 = vpop.f32.mrf.mxu0
        %4372 = vdwg.mxu0
        %v4373 = vmax.f32 %v4311, 0.0
        %v4374 = vmax.f32 %v4314, 0.0
        %v4375 = vmax.f32 %v4319, 0.0
        %v4376 = vmax.f32 %v4322, 0.0
        %v4377 = vmax.f32 %v4327, 0.0
        %v4378 = vmax.f32 %v4330, 0.0
        %v4379 = vmax.f32 %v4335, 0.0
        %v4380 = vmax.f32 %v4338, 0.0
        %v4381 = vmax.f32 %v4343, 0.0
        %v4382 = vmax.f32 %v4346, 0.0
        %v4383 = vmax.f32 %v4351, 0.0
        %v4384 = vmax.f32 %v4354, 0.0
        %v4385 = vmax.f32 %v4359, 0.0
        %v4386 = vmax.f32 %v4362, 0.0
        %v4387 = vmax.f32 %v4367, 0.0
        %v4388 = vmax.f32 %v4370, 0.0
        %v4389 = vadd.f32 %v4373, %v2716
        %v4390 = vadd.f32 %v4374, %v2717
        %v4391 = vadd.f32 %v4375, %v2718
        %v4392 = vadd.f32 %v4376, %v2719
        %v4393 = vadd.f32 %v4377, %v2720
        %v4394 = vadd.f32 %v4378, %v2721
        %v4395 = vadd.f32 %v4379, %v2722
        %v4396 = vadd.f32 %v4380, %v2723
        %v4397 = vadd.f32 %v4381, %v2724
        %v4398 = vadd.f32 %v4382, %v2725
        %v4399 = vadd.f32 %v4383, %v2726
        %v4400 = vadd.f32 %v4384, %v2727
        %v4401 = vadd.f32 %v4385, %v2728
        %v4402 = vadd.f32 %v4386, %v2729
        %v4403 = vadd.f32 %v4387, %v2730
        %v4404 = vadd.f32 %v4388, %v2731
        %v4405 = vpack.c.bf16 %v4390, %v4389
        %v4406 = vpack.c.bf16 %v4392, %v4391
        %v4407 = vpack.c.bf16 %v4394, %v4393
        %v4408 = vpack.c.bf16 %v4396, %v4395
        %v4409 = vpack.c.bf16 %v4398, %v4397
        %v4410 = vpack.c.bf16 %v4400, %v4399
        %v4411 = vpack.c.bf16 %v4402, %v4401
        %v4412 = vpack.c.bf16 %v4404, %v4403
        %s4413 = scalar_lea.vmem %s5, 16
        %v4414 = vld [vmem:[%s4413] sm:$0xf]
        %v4415 = vld [vmem:[%s4413 + $0x4] sm:$0xf]
        %v4416 = vld [vmem:[%s4413 + $0x8] sm:$0xf]
        %v4417 = vld [vmem:[%s4413 + $0xc] sm:$0xf]
        %v4418 = vld [vmem:[#allocation6 + $0xd] sm:$0x1]
        %v4419 = vlaneseq
        %v4420 = vshrl.u32 %v4419, 7
        %v4421 = vsub.s32 0, %v4420
        %v4422 = vrot.slane %v4418, %v4421
        %v4427 = vunpack.c.l.b16 %v4414
        %v4428 = vunpack.c.l.b16 %v4415
        %v4429 = vunpack.c.l.b16 %v4416
        %v4430 = vunpack.c.l.b16 %v4417
        %v4431 = vpack.c.b16 %v4428, %v4427
        %v4432 = vpack.c.b16 %v4430, %v4429
        %v4436 = vsel %vm480, %v4405, 0
        %v4439 = vsel %vm480, %v4406, 0
        %v4442 = vsel %vm480, %v4407, 0
        %v4445 = vsel %vm480, %v4408, 0
        %v4448 = vsel %vm480, %v4409, 0
        %v4451 = vsel %vm480, %v4410, 0
        %v4454 = vsel %vm480, %v4411, 0
        %v4457 = vsel %vm480, %v4412, 0
        %4459 = vmatprep.subr.bf16.mxu0 0
        %4460 = vmatpush1.bf16.msra.mxu0 0
        %4461 = vmatprep.subr.bf16.mxu0 0
        %4462 = vmatpush1.bf16.msra.mxu0 0
        %4463 = vmatprep.subr.bf16.mxu0 0
        %4464 = vmatpush1.bf16.msra.mxu0 0
        %4465 = vmatprep.subr.bf16.mxu0 0
        %4466 = vmatpush1.bf16.msra.mxu0 0
        %4467 = vmatprep.subr.bf16.mxu0 0
        %4468 = vmatpush1.bf16.msra.mxu0 0
        %4469 = vmatprep.subr.bf16.mxu0 0
        %4470 = vmatpush1.bf16.msra.mxu0 0
        %4471 = vmatprep.subr.bf16.mxu0 0
        %4472 = vmatpush1.bf16.msra.mxu0 %v4432
        %4473 = vmatprep.subr.bf16.mxu0 0
        %4474 = vmatpush1.bf16.msra.mxu0 %v4431
        %4475 = vmatprep.subr.bf16.mxu0 0
        %4476 = vmatpush2.bf16.msra.mxu0 0
        %4477 = vmatprep.subr.bf16.mxu0 0
        %4478 = vmatpush2.bf16.msra.mxu0 0
        %4479 = vmatprep.subr.bf16.mxu0 0
        %4480 = vmatpush2.bf16.msra.mxu0 0
        %4481 = vmatprep.subr.bf16.mxu0 0
        %4482 = vmatpush2.bf16.msra.mxu0 0
        %4483 = vmatprep.subr.bf16.mxu0 0
        %4484 = vmatpush2.bf16.msra.mxu0 0
        %4485 = vmatprep.subr.bf16.mxu0 0
        %4486 = vmatpush2.bf16.msra.mxu0 0
        %4487 = vmatprep.subr.bf16.mxu0 0
        %4488 = vmatpush2.bf16.msra.mxu0 0
        %4489 = vmatprep.subr.bf16.mxu0 0
        %4490 = vmatpush2.bf16.msra.mxu0 0
        %4491 = vmatprep.mubr.bf16.mxu0 0
        %4492 = vmatmul.mubr.bf16.gmra.mxu0 %v4436
        %v4493 = vpop.f32.mrf.mxu0
        %v4494 = vadd.f32 %v4422, %v4493
        %v4495 = vpop.f32.mrf.mxu0
        %v4496 = vpop.f32.mrf.mxu0
        %v4497 = vadd.f32 %v4422, %v4496
        %v4498 = vpop.f32.mrf.mxu0
        %4499 = vmatprep.mubr.bf16.mxu0 0
        %4500 = vmatmul.mubr.bf16.gmra.mxu0 %v4439
        %v4501 = vpop.f32.mrf.mxu0
        %v4502 = vadd.f32 %v4422, %v4501
        %v4503 = vpop.f32.mrf.mxu0
        %v4504 = vpop.f32.mrf.mxu0
        %v4505 = vadd.f32 %v4422, %v4504
        %v4506 = vpop.f32.mrf.mxu0
        %4507 = vmatprep.mubr.bf16.mxu0 0
        %4508 = vmatmul.mubr.bf16.gmra.mxu0 %v4442
        %v4509 = vpop.f32.mrf.mxu0
        %v4510 = vadd.f32 %v4422, %v4509
        %v4511 = vpop.f32.mrf.mxu0
        %v4512 = vpop.f32.mrf.mxu0
        %v4513 = vadd.f32 %v4422, %v4512
        %v4514 = vpop.f32.mrf.mxu0
        %4515 = vmatprep.mubr.bf16.mxu0 0
        %4516 = vmatmul.mubr.bf16.gmra.mxu0 %v4445
        %v4517 = vpop.f32.mrf.mxu0
        %v4518 = vadd.f32 %v4422, %v4517
        %v4519 = vpop.f32.mrf.mxu0
        %v4520 = vpop.f32.mrf.mxu0
        %v4521 = vadd.f32 %v4422, %v4520
        %v4522 = vpop.f32.mrf.mxu0
        %4523 = vmatprep.mubr.bf16.mxu0 0
        %4524 = vmatmul.mubr.bf16.gmra.mxu0 %v4448
        %v4525 = vpop.f32.mrf.mxu0
        %v4526 = vadd.f32 %v4422, %v4525
        %v4527 = vpop.f32.mrf.mxu0
        %v4528 = vpop.f32.mrf.mxu0
        %v4529 = vadd.f32 %v4422, %v4528
        %v4530 = vpop.f32.mrf.mxu0
        %4531 = vmatprep.mubr.bf16.mxu0 0
        %4532 = vmatmul.mubr.bf16.gmra.mxu0 %v4451
        %v4533 = vpop.f32.mrf.mxu0
        %v4534 = vadd.f32 %v4422, %v4533
        %v4535 = vpop.f32.mrf.mxu0
        %v4536 = vpop.f32.mrf.mxu0
        %v4537 = vadd.f32 %v4422, %v4536
        %v4538 = vpop.f32.mrf.mxu0
        %4539 = vmatprep.mubr.bf16.mxu0 0
        %4540 = vmatmul.mubr.bf16.gmra.mxu0 %v4454
        %v4541 = vpop.f32.mrf.mxu0
        %v4542 = vadd.f32 %v4422, %v4541
        %v4543 = vpop.f32.mrf.mxu0
        %v4544 = vpop.f32.mrf.mxu0
        %v4545 = vadd.f32 %v4422, %v4544
        %v4546 = vpop.f32.mrf.mxu0
        %4547 = vmatprep.mubr.bf16.mxu0 0
        %4548 = vmatmul.mubr.bf16.gmra.mxu0 %v4457
        %v4549 = vpop.f32.mrf.mxu0
        %v4550 = vadd.f32 %v4422, %v4549
        %v4551 = vpop.f32.mrf.mxu0
        %v4552 = vpop.f32.mrf.mxu0
        %v4553 = vadd.f32 %v4422, %v4552
        %v4554 = vpop.f32.mrf.mxu0
        %4555 = vdwg.mxu0
        %v4556 = vmax.f32 %v4494, 0.0
        %v4557 = vmax.f32 %v4497, 0.0
        %v4558 = vmax.f32 %v4502, 0.0
        %v4559 = vmax.f32 %v4505, 0.0
        %v4560 = vmax.f32 %v4510, 0.0
        %v4561 = vmax.f32 %v4513, 0.0
        %v4562 = vmax.f32 %v4518, 0.0
        %v4563 = vmax.f32 %v4521, 0.0
        %v4564 = vmax.f32 %v4526, 0.0
        %v4565 = vmax.f32 %v4529, 0.0
        %v4566 = vmax.f32 %v4534, 0.0
        %v4567 = vmax.f32 %v4537, 0.0
        %v4568 = vmax.f32 %v4542, 0.0
        %v4569 = vmax.f32 %v4545, 0.0
        %v4570 = vmax.f32 %v4550, 0.0
        %v4571 = vmax.f32 %v4553, 0.0
        %v4572 = vpack.c.bf16 %v4557, %v4556
        %v4573 = vpack.c.bf16 %v4559, %v4558
        %v4574 = vpack.c.bf16 %v4561, %v4560
        %v4575 = vpack.c.bf16 %v4563, %v4562
        %v4576 = vpack.c.bf16 %v4565, %v4564
        %v4577 = vpack.c.bf16 %v4567, %v4566
        %v4578 = vpack.c.bf16 %v4569, %v4568
        %v4579 = vpack.c.bf16 %v4571, %v4570
        %s4580 = scalar_lea.vmem [#allocation2], 64
        %v4581 = vld [vmem:[%s4580] sm:$0xf]
        %v4582 = vld [vmem:[%s4580 + $0x4] sm:$0xf]
        %v4583 = vld [vmem:[%s4580 + $0x8] sm:$0xf]
        %v4584 = vld [vmem:[%s4580 + $0xc] sm:$0xf]
        %v4589 = vunpack.c.l.b16 %v4581
        %v4590 = vunpack.c.l.b16 %v4582
        %v4591 = vunpack.c.l.b16 %v4583
        %v4592 = vunpack.c.l.b16 %v4584
        %v4593 = vpack.c.b16 %v4590, %v4589
        %v4594 = vpack.c.b16 %v4592, %v4591
        %v4598 = vsel %vm480, %v4572, 0
        %v4601 = vsel %vm480, %v4573, 0
        %v4604 = vsel %vm480, %v4574, 0
        %v4607 = vsel %vm480, %v4575, 0
        %v4610 = vsel %vm480, %v4576, 0
        %v4613 = vsel %vm480, %v4577, 0
        %v4616 = vsel %vm480, %v4578, 0
        %v4619 = vsel %vm480, %v4579, 0
        %4621 = vmatprep.subr.bf16.mxu0 0
        %4622 = vmatpush1.bf16.msra.mxu0 0
        %4623 = vmatprep.subr.bf16.mxu0 0
        %4624 = vmatpush1.bf16.msra.mxu0 0
        %4625 = vmatprep.subr.bf16.mxu0 0
        %4626 = vmatpush1.bf16.msra.mxu0 0
        %4627 = vmatprep.subr.bf16.mxu0 0
        %4628 = vmatpush1.bf16.msra.mxu0 0
        %4629 = vmatprep.subr.bf16.mxu0 0
        %4630 = vmatpush1.bf16.msra.mxu0 0
        %4631 = vmatprep.subr.bf16.mxu0 0
        %4632 = vmatpush1.bf16.msra.mxu0 0
        %4633 = vmatprep.subr.bf16.mxu0 0
        %4634 = vmatpush1.bf16.msra.mxu0 %v4594
        %4635 = vmatprep.subr.bf16.mxu0 0
        %4636 = vmatpush1.bf16.msra.mxu0 %v4593
        %4637 = vmatprep.subr.bf16.mxu0 0
        %4638 = vmatpush2.bf16.msra.mxu0 0
        %4639 = vmatprep.subr.bf16.mxu0 0
        %4640 = vmatpush2.bf16.msra.mxu0 0
        %4641 = vmatprep.subr.bf16.mxu0 0
        %4642 = vmatpush2.bf16.msra.mxu0 0
        %4643 = vmatprep.subr.bf16.mxu0 0
        %4644 = vmatpush2.bf16.msra.mxu0 0
        %4645 = vmatprep.subr.bf16.mxu0 0
        %4646 = vmatpush2.bf16.msra.mxu0 0
        %4647 = vmatprep.subr.bf16.mxu0 0
        %4648 = vmatpush2.bf16.msra.mxu0 0
        %4649 = vmatprep.subr.bf16.mxu0 0
        %4650 = vmatpush2.bf16.msra.mxu0 0
        %4651 = vmatprep.subr.bf16.mxu0 0
        %4652 = vmatpush2.bf16.msra.mxu0 0
        %4653 = vmatprep.mubr.bf16.mxu0 0
        %4654 = vmatmul.mubr.bf16.gmra.mxu0 %v4598
        %v4655 = vpop.f32.mrf.mxu0
        %v4656 = vadd.f32 0.0, %v4655
        %v4657 = vpop.f32.mrf.mxu0
        %v4658 = vpop.f32.mrf.mxu0
        %v4659 = vadd.f32 0.0, %v4658
        %v4660 = vpop.f32.mrf.mxu0
        %4661 = vmatprep.mubr.bf16.mxu0 0
        %4662 = vmatmul.mubr.bf16.gmra.mxu0 %v4601
        %v4663 = vpop.f32.mrf.mxu0
        %v4664 = vadd.f32 0.0, %v4663
        %v4665 = vpop.f32.mrf.mxu0
        %v4666 = vpop.f32.mrf.mxu0
        %v4667 = vadd.f32 0.0, %v4666
        %v4668 = vpop.f32.mrf.mxu0
        %4669 = vmatprep.mubr.bf16.mxu0 0
        %4670 = vmatmul.mubr.bf16.gmra.mxu0 %v4604
        %v4671 = vpop.f32.mrf.mxu0
        %v4672 = vadd.f32 0.0, %v4671
        %v4673 = vpop.f32.mrf.mxu0
        %v4674 = vpop.f32.mrf.mxu0
        %v4675 = vadd.f32 0.0, %v4674
        %v4676 = vpop.f32.mrf.mxu0
        %4677 = vmatprep.mubr.bf16.mxu0 0
        %4678 = vmatmul.mubr.bf16.gmra.mxu0 %v4607
        %v4679 = vpop.f32.mrf.mxu0
        %v4680 = vadd.f32 0.0, %v4679
        %v4681 = vpop.f32.mrf.mxu0
        %v4682 = vpop.f32.mrf.mxu0
        %v4683 = vadd.f32 0.0, %v4682
        %v4684 = vpop.f32.mrf.mxu0
        %4685 = vmatprep.mubr.bf16.mxu0 0
        %4686 = vmatmul.mubr.bf16.gmra.mxu0 %v4610
        %v4687 = vpop.f32.mrf.mxu0
        %v4688 = vadd.f32 0.0, %v4687
        %v4689 = vpop.f32.mrf.mxu0
        %v4690 = vpop.f32.mrf.mxu0
        %v4691 = vadd.f32 0.0, %v4690
        %v4692 = vpop.f32.mrf.mxu0
        %4693 = vmatprep.mubr.bf16.mxu0 0
        %4694 = vmatmul.mubr.bf16.gmra.mxu0 %v4613
        %v4695 = vpop.f32.mrf.mxu0
        %v4696 = vadd.f32 0.0, %v4695
        %v4697 = vpop.f32.mrf.mxu0
        %v4698 = vpop.f32.mrf.mxu0
        %v4699 = vadd.f32 0.0, %v4698
        %v4700 = vpop.f32.mrf.mxu0
        %4701 = vmatprep.mubr.bf16.mxu0 0
        %4702 = vmatmul.mubr.bf16.gmra.mxu0 %v4616
        %v4703 = vpop.f32.mrf.mxu0
        %v4704 = vadd.f32 0.0, %v4703
        %v4705 = vpop.f32.mrf.mxu0
        %v4706 = vpop.f32.mrf.mxu0
        %v4707 = vadd.f32 0.0, %v4706
        %v4708 = vpop.f32.mrf.mxu0
        %4709 = vmatprep.mubr.bf16.mxu0 0
        %4710 = vmatmul.mubr.bf16.gmra.mxu0 %v4619
        %v4711 = vpop.f32.mrf.mxu0
        %v4712 = vadd.f32 0.0, %v4711
        %v4713 = vpop.f32.mrf.mxu0
        %v4714 = vpop.f32.mrf.mxu0
        %v4715 = vadd.f32 0.0, %v4714
        %v4716 = vpop.f32.mrf.mxu0
        %4717 = vdwg.mxu0
        %v4718 = vld [vmem:[#allocation6 + $0x4] sm:$0x1]
        %v4720 = vsel %vm480, %v4718, 0
        %v4723 = vsel %vm480, %v4656, 0
        %v4726 = vsel %vm480, %v4659, 0
        %v4729 = vsel %vm480, %v4664, 0
        %v4732 = vsel %vm480, %v4667, 0
        %v4735 = vsel %vm480, %v4672, 0
        %v4738 = vsel %vm480, %v4675, 0
        %v4741 = vsel %vm480, %v4680, 0
        %v4744 = vsel %vm480, %v4683, 0
        %v4747 = vsel %vm480, %v4688, 0
        %v4750 = vsel %vm480, %v4691, 0
        %v4753 = vsel %vm480, %v4696, 0
        %v4756 = vsel %vm480, %v4699, 0
        %v4759 = vsel %vm480, %v4704, 0
        %v4762 = vsel %vm480, %v4707, 0
        %v4765 = vsel %vm480, %v4712, 0
        %v4768 = vsel %vm480, %v4715, 0
        %4770 = vmatprep.subr.mxu0 0.0
        %4771 = vmatpush1.xpose.msra.mxu0 %v4768
        %4772 = vmatprep.subr.mxu0 0.0
        %4773 = vmatpush1.xpose.msra.mxu0 %v4765
        %4774 = vmatprep.subr.mxu0 0.0
        %4775 = vmatpush1.xpose.msra.mxu0 %v4762
        %4776 = vmatprep.subr.mxu0 0.0
        %4777 = vmatpush1.xpose.msra.mxu0 %v4759
        %4778 = vmatprep.subr.mxu0 0.0
        %4779 = vmatpush1.xpose.msra.mxu0 %v4756
        %4780 = vmatprep.subr.mxu0 0.0
        %4781 = vmatpush1.xpose.msra.mxu0 %v4753
        %4782 = vmatprep.subr.mxu0 0.0
        %4783 = vmatpush1.xpose.msra.mxu0 %v4750
        %4784 = vmatprep.subr.mxu0 0.0
        %4785 = vmatpush1.xpose.msra.mxu0 %v4747
        %4786 = vmatprep.subr.mxu0 0.0
        %4787 = vmatpush1.xpose.msra.mxu0 %v4744
        %4788 = vmatprep.subr.mxu0 0.0
        %4789 = vmatpush1.xpose.msra.mxu0 %v4741
        %4790 = vmatprep.subr.mxu0 0.0
        %4791 = vmatpush1.xpose.msra.mxu0 %v4738
        %4792 = vmatprep.subr.mxu0 0.0
        %4793 = vmatpush1.xpose.msra.mxu0 %v4735
        %4794 = vmatprep.subr.mxu0 0.0
        %4795 = vmatpush1.xpose.msra.mxu0 %v4732
        %4796 = vmatprep.subr.mxu0 0.0
        %4797 = vmatpush1.xpose.msra.mxu0 %v4729
        %4798 = vmatprep.subr.mxu0 0.0
        %4799 = vmatpush1.xpose.msra.mxu0 %v4726
        %4800 = vmatprep.subr.mxu0 0.0
        %4801 = vmatpush1.xpose.msra.mxu0 %v4723
        %4802 = vmatprep.subr.mxu0 0.0
        %4803 = vmatpush2.xpose.msra.mxu0 0.0
        %4804 = vmatprep.subr.mxu0 0.0
        %4805 = vmatpush2.xpose.msra.mxu0 0.0
        %4806 = vmatprep.subr.mxu0 0.0
        %4807 = vmatpush2.xpose.msra.mxu0 0.0
        %4808 = vmatprep.subr.mxu0 0.0
        %4809 = vmatpush2.xpose.msra.mxu0 0.0
        %4810 = vmatprep.subr.mxu0 0.0
        %4811 = vmatpush2.xpose.msra.mxu0 0.0
        %4812 = vmatprep.subr.mxu0 0.0
        %4813 = vmatpush2.xpose.msra.mxu0 0.0
        %4814 = vmatprep.subr.mxu0 0.0
        %4815 = vmatpush2.xpose.msra.mxu0 0.0
        %4816 = vmatprep.subr.mxu0 0.0
        %4817 = vmatpush2.xpose.msra.mxu0 0.0
        %4818 = vmatprep.subr.mxu0 0.0
        %4819 = vmatpush2.xpose.msra.mxu0 0.0
        %4820 = vmatprep.subr.mxu0 0.0
        %4821 = vmatpush2.xpose.msra.mxu0 0.0
        %4822 = vmatprep.subr.mxu0 0.0
        %4823 = vmatpush2.xpose.msra.mxu0 0.0
        %4824 = vmatprep.subr.mxu0 0.0
        %4825 = vmatpush2.xpose.msra.mxu0 0.0
        %4826 = vmatprep.subr.mxu0 0.0
        %4827 = vmatpush2.xpose.msra.mxu0 0.0
        %4828 = vmatprep.subr.mxu0 0.0
        %4829 = vmatpush2.xpose.msra.mxu0 0.0
        %4830 = vmatprep.subr.mxu0 0.0
        %4831 = vmatpush2.xpose.msra.mxu0 0.0
        %4832 = vmatprep.subr.mxu0 0.0
        %4833 = vmatpush2.xpose.msra.mxu0 0.0
        %4834 = vmatprep.mubr.f32.mxu0 0.0
        %4835 = vmatmul.mubr.f32.gmra.mxu0 %v4720
        %v4836 = vpop.f32.mrf.mxu0
        %v4837 = vadd.f32 0.0, %v4836
        %v4838 = vpop.f32.mrf.mxu0
        %4839 = vdwg.mxu0
        %4840 = vset.pattern.permute.xlu0 32
        %4841 = vperm.xlu0 %4840, %v4656
        %v4842 = vpop.permute.xlu0 %4841
        %4844 = vset.pattern.permute.xlu0 32
        %4845 = vperm.xlu0 %4844, %v4659
        %v4846 = vpop.permute.xlu0 %4845
        %4848 = vset.pattern.permute.xlu0 32
        %4849 = vperm.xlu0 %4848, %v4664
        %v4850 = vpop.permute.xlu0 %4849
        %4852 = vset.pattern.permute.xlu0 32
        %4853 = vperm.xlu0 %4852, %v4667
        %v4854 = vpop.permute.xlu0 %4853
        %4856 = vset.pattern.permute.xlu0 32
        %4857 = vperm.xlu0 %4856, %v4672
        %v4858 = vpop.permute.xlu0 %4857
        %4860 = vset.pattern.permute.xlu0 32
        %4861 = vperm.xlu0 %4860, %v4675
        %v4862 = vpop.permute.xlu0 %4861
        %4864 = vset.pattern.permute.xlu0 32
        %4865 = vperm.xlu0 %4864, %v4680
        %v4866 = vpop.permute.xlu0 %4865
        %4868 = vset.pattern.permute.xlu0 32
        %4869 = vperm.xlu0 %4868, %v4683
        %v4870 = vpop.permute.xlu0 %4869
        %4872 = vset.pattern.permute.xlu0 32
        %4873 = vperm.xlu0 %4872, %v4688
        %v4874 = vpop.permute.xlu0 %4873
        %4876 = vset.pattern.permute.xlu0 32
        %4877 = vperm.xlu0 %4876, %v4691
        %v4878 = vpop.permute.xlu0 %4877
        %4880 = vset.pattern.permute.xlu0 32
        %4881 = vperm.xlu0 %4880, %v4696
        %v4882 = vpop.permute.xlu0 %4881
        %4884 = vset.pattern.permute.xlu0 32
        %4885 = vperm.xlu0 %4884, %v4699
        %v4886 = vpop.permute.xlu0 %4885
        %4888 = vset.pattern.permute.xlu0 32
        %4889 = vperm.xlu0 %4888, %v4704
        %v4890 = vpop.permute.xlu0 %4889
        %4892 = vset.pattern.permute.xlu0 32
        %4893 = vperm.xlu0 %4892, %v4707
        %v4894 = vpop.permute.xlu0 %4893
        %4896 = vset.pattern.permute.xlu0 32
        %4897 = vperm.xlu0 %4896, %v4712
        %v4898 = vpop.permute.xlu0 %4897
        %4900 = vset.pattern.permute.xlu0 32
        %4901 = vperm.xlu0 %4900, %v4715
        %v4902 = vpop.permute.xlu0 %4901
        %v4904 = vlaneseq
        %v4905 = vshrl.u32 %v4904, 7
        %v4906 = vsub.s32 0, %v4905
        %v4907 = vrot.slane %v4837, %v4906
        %v4908 = vadd.f32 %v4842, %v4907
        %v4909 = vadd.f32 %v4846, %v4907
        %v4910 = vadd.f32 %v4850, %v4907
        %v4911 = vadd.f32 %v4854, %v4907
        %v4912 = vadd.f32 %v4858, %v4907
        %v4913 = vadd.f32 %v4862, %v4907
        %v4914 = vadd.f32 %v4866, %v4907
        %v4915 = vadd.f32 %v4870, %v4907
        %v4916 = vadd.f32 %v4874, %v4907
        %v4917 = vadd.f32 %v4878, %v4907
        %v4918 = vadd.f32 %v4882, %v4907
        %v4919 = vadd.f32 %v4886, %v4907
        %v4920 = vadd.f32 %v4890, %v4907
        %v4921 = vadd.f32 %v4894, %v4907
        %v4922 = vadd.f32 %v4898, %v4907
        %v4923 = vadd.f32 %v4902, %v4907
        %s4924 = scalar_lea.vmem [#allocation4], 512
        %v4925 = vld [vmem:[%s4924] sm:$0xff]
        %v4926 = vld [vmem:[%s4924 + $0x8] sm:$0xff]
        %v4927 = vld [vmem:[%s4924 + $0x10] sm:$0xff]
        %v4928 = vld [vmem:[%s4924 + $0x18] sm:$0xff]
        %v4929 = vld [vmem:[%s4924 + $0x20] sm:$0xff]
        %v4930 = vld [vmem:[%s4924 + $0x28] sm:$0xff]
        %v4931 = vld [vmem:[%s4924 + $0x30] sm:$0xff]
        %v4932 = vld [vmem:[%s4924 + $0x38] sm:$0xff]
        %v4933 = vld [vmem:[%s4924 + $0x40] sm:$0xff]
        %v4934 = vld [vmem:[%s4924 + $0x48] sm:$0xff]
        %v4935 = vld [vmem:[%s4924 + $0x50] sm:$0xff]
        %v4936 = vld [vmem:[%s4924 + $0x58] sm:$0xff]
        %v4937 = vld [vmem:[%s4924 + $0x60] sm:$0xff]
        %v4938 = vld [vmem:[%s4924 + $0x68] sm:$0xff]
        %v4939 = vld [vmem:[%s4924 + $0x70] sm:$0xff]
        %v4940 = vld [vmem:[%s4924 + $0x78] sm:$0xff]
        %v4941 = vadd.f32 %v4908, %v4925
        %v4942 = vadd.f32 %v4909, %v4926
        %v4943 = vadd.f32 %v4910, %v4927
        %v4944 = vadd.f32 %v4911, %v4928
        %v4945 = vadd.f32 %v4912, %v4929
        %v4946 = vadd.f32 %v4913, %v4930
        %v4947 = vadd.f32 %v4914, %v4931
        %v4948 = vadd.f32 %v4915, %v4932
        %v4949 = vadd.f32 %v4916, %v4933
        %v4950 = vadd.f32 %v4917, %v4934
        %v4951 = vadd.f32 %v4918, %v4935
        %v4952 = vadd.f32 %v4919, %v4936
        %v4953 = vadd.f32 %v4920, %v4937
        %v4954 = vadd.f32 %v4921, %v4938
        %v4955 = vadd.f32 %v4922, %v4939
        %v4956 = vadd.f32 %v4923, %v4940
        %vm4957 = vcmp.gt.f32.partialorder %v4941, 0.0
        %vm4958 = vcmp.gt.f32.partialorder %v4942, 0.0
        %vm4959 = vcmp.gt.f32.partialorder %v4943, 0.0
        %vm4960 = vcmp.gt.f32.partialorder %v4944, 0.0
        %vm4961 = vcmp.gt.f32.partialorder %v4945, 0.0
        %vm4962 = vcmp.gt.f32.partialorder %v4946, 0.0
        %vm4963 = vcmp.gt.f32.partialorder %v4947, 0.0
        %vm4964 = vcmp.gt.f32.partialorder %v4948, 0.0
        %vm4965 = vcmp.gt.f32.partialorder %v4949, 0.0
        %vm4966 = vcmp.gt.f32.partialorder %v4950, 0.0
        %vm4967 = vcmp.gt.f32.partialorder %v4951, 0.0
        %vm4968 = vcmp.gt.f32.partialorder %v4952, 0.0
        %vm4969 = vcmp.gt.f32.partialorder %v4953, 0.0
        %vm4970 = vcmp.gt.f32.partialorder %v4954, 0.0
        %vm4971 = vcmp.gt.f32.partialorder %v4955, 0.0
        %vm4972 = vcmp.gt.f32.partialorder %v4956, 0.0
        %v4973 = vmul.f32 %v4941, 0.2
        %v4974 = vmul.f32 %v4942, 0.2
        %v4975 = vmul.f32 %v4943, 0.2
        %v4976 = vmul.f32 %v4944, 0.2
        %v4977 = vmul.f32 %v4945, 0.2
        %v4978 = vmul.f32 %v4946, 0.2
        %v4979 = vmul.f32 %v4947, 0.2
        %v4980 = vmul.f32 %v4948, 0.2
        %v4981 = vmul.f32 %v4949, 0.2
        %v4982 = vmul.f32 %v4950, 0.2
        %v4983 = vmul.f32 %v4951, 0.2
        %v4984 = vmul.f32 %v4952, 0.2
        %v4985 = vmul.f32 %v4953, 0.2
        %v4986 = vmul.f32 %v4954, 0.2
        %v4987 = vmul.f32 %v4955, 0.2
        %v4988 = vmul.f32 %v4956, 0.2
        %v4989 = vsel %vm4957, %v4941, %v4973
        %v4990 = vsel %vm4958, %v4942, %v4974
        %v4991 = vsel %vm4959, %v4943, %v4975
        %v4992 = vsel %vm4960, %v4944, %v4976
        %v4993 = vsel %vm4961, %v4945, %v4977
        %v4994 = vsel %vm4962, %v4946, %v4978
        %v4995 = vsel %vm4963, %v4947, %v4979
        %v4996 = vsel %vm4964, %v4948, %v4980
        %v4997 = vsel %vm4965, %v4949, %v4981
        %v4998 = vsel %vm4966, %v4950, %v4982
        %v4999 = vsel %vm4967, %v4951, %v4983
        %v5000 = vsel %vm4968, %v4952, %v4984
        %v5001 = vsel %vm4969, %v4953, %v4985
        %v5002 = vsel %vm4970, %v4954, %v4986
        %v5003 = vsel %vm4971, %v4955, %v4987
        %v5004 = vsel %vm4972, %v4956, %v4988
        %5005 = vmax.xlane.f32.xlu0 %v4989
        %v5006 = vpop.xlane.xlu0 %5005
        %5007 = vmax.xlane.f32.xlu0 %v4990
        %v5008 = vpop.xlane.xlu0 %5007
        %5009 = vmax.xlane.f32.xlu0 %v4991
        %v5010 = vpop.xlane.xlu0 %5009
        %5011 = vmax.xlane.f32.xlu0 %v4992
        %v5012 = vpop.xlane.xlu0 %5011
        %5013 = vmax.xlane.f32.xlu0 %v4993
        %v5014 = vpop.xlane.xlu0 %5013
        %5015 = vmax.xlane.f32.xlu0 %v4994
        %v5016 = vpop.xlane.xlu0 %5015
        %5017 = vmax.xlane.f32.xlu0 %v4995
        %v5018 = vpop.xlane.xlu0 %5017
        %5019 = vmax.xlane.f32.xlu0 %v4996
        %v5020 = vpop.xlane.xlu0 %5019
        %5021 = vmax.xlane.f32.xlu0 %v4997
        %v5022 = vpop.xlane.xlu0 %5021
        %5023 = vmax.xlane.f32.xlu0 %v4998
        %v5024 = vpop.xlane.xlu0 %5023
        %5025 = vmax.xlane.f32.xlu0 %v4999
        %v5026 = vpop.xlane.xlu0 %5025
        %5027 = vmax.xlane.f32.xlu0 %v5000
        %v5028 = vpop.xlane.xlu0 %5027
        %5029 = vmax.xlane.f32.xlu0 %v5001
        %v5030 = vpop.xlane.xlu0 %5029
        %5031 = vmax.xlane.f32.xlu0 %v5002
        %v5032 = vpop.xlane.xlu0 %5031
        %5033 = vmax.xlane.f32.xlu0 %v5003
        %v5034 = vpop.xlane.xlu0 %5033
        %5035 = vmax.xlane.f32.xlu0 %v5004
        %v5036 = vpop.xlane.xlu0 %5035
        %v5037 = vsub.f32 %v4989, %v5006
        %v5038 = vsub.f32 %v4990, %v5008
        %v5039 = vsub.f32 %v4991, %v5010
        %v5040 = vsub.f32 %v4992, %v5012
        %v5041 = vsub.f32 %v4993, %v5014
        %v5042 = vsub.f32 %v4994, %v5016
        %v5043 = vsub.f32 %v4995, %v5018
        %v5044 = vsub.f32 %v4996, %v5020
        %v5045 = vsub.f32 %v4997, %v5022
        %v5046 = vsub.f32 %v4998, %v5024
        %v5047 = vsub.f32 %v4999, %v5026
        %v5048 = vsub.f32 %v5000, %v5028
        %v5049 = vsub.f32 %v5001, %v5030
        %v5050 = vsub.f32 %v5002, %v5032
        %v5051 = vsub.f32 %v5003, %v5034
        %v5052 = vsub.f32 %v5004, %v5036
        %v5053 = vmul.f32 %v5037, 1.442695
        %v5054 = vpow.pop %v5053
        %v5055 = vmul.f32 %v5038, 1.442695
        %v5056 = vpow.pop %v5055
        %v5057 = vmul.f32 %v5039, 1.442695
        %v5058 = vpow.pop %v5057
        %v5059 = vmul.f32 %v5040, 1.442695
        %v5060 = vpow.pop %v5059
        %v5061 = vmul.f32 %v5041, 1.442695
        %v5062 = vpow.pop %v5061
        %v5063 = vmul.f32 %v5042, 1.442695
        %v5064 = vpow.pop %v5063
        %v5065 = vmul.f32 %v5043, 1.442695
        %v5066 = vpow.pop %v5065
        %v5067 = vmul.f32 %v5044, 1.442695
        %v5068 = vpow.pop %v5067
        %v5069 = vmul.f32 %v5045, 1.442695
        %v5070 = vpow.pop %v5069
        %v5071 = vmul.f32 %v5046, 1.442695
        %v5072 = vpow.pop %v5071
        %v5073 = vmul.f32 %v5047, 1.442695
        %v5074 = vpow.pop %v5073
        %v5075 = vmul.f32 %v5048, 1.442695
        %v5076 = vpow.pop %v5075
        %v5077 = vmul.f32 %v5049, 1.442695
        %v5078 = vpow.pop %v5077
        %v5079 = vmul.f32 %v5050, 1.442695
        %v5080 = vpow.pop %v5079
        %v5081 = vmul.f32 %v5051, 1.442695
        %v5082 = vpow.pop %v5081
        %v5083 = vmul.f32 %v5052, 1.442695
        %v5084 = vpow.pop %v5083
        %v5085 = vmul.f32 %v5054, %v424
        %v5086 = vmul.f32 %v5056, %v425
        %v5087 = vmul.f32 %v5058, %v426
        %v5088 = vmul.f32 %v5060, %v427
        %v5089 = vmul.f32 %v5062, %v428
        %v5090 = vmul.f32 %v5064, %v429
        %v5091 = vmul.f32 %v5066, %v430
        %v5092 = vmul.f32 %v5068, %v431
        %v5093 = vmul.f32 %v5070, %v432
        %v5094 = vmul.f32 %v5072, %v433
        %v5095 = vmul.f32 %v5074, %v434
        %v5096 = vmul.f32 %v5076, %v435
        %v5097 = vmul.f32 %v5078, %v436
        %v5098 = vmul.f32 %v5080, %v437
        %v5099 = vmul.f32 %v5082, %v438
        %v5100 = vmul.f32 %v5084, %v439
        %5101 = vadd.xlane.f32.xlu0 %v5085
        %v5102 = vpop.xlane.xlu0 %5101
        %5103 = vadd.xlane.f32.xlu0 %v5086
        %v5104 = vpop.xlane.xlu0 %5103
        %5105 = vadd.xlane.f32.xlu0 %v5087
        %v5106 = vpop.xlane.xlu0 %5105
        %5107 = vadd.xlane.f32.xlu0 %v5088
        %v5108 = vpop.xlane.xlu0 %5107
        %5109 = vadd.xlane.f32.xlu0 %v5089
        %v5110 = vpop.xlane.xlu0 %5109
        %5111 = vadd.xlane.f32.xlu0 %v5090
        %v5112 = vpop.xlane.xlu0 %5111
        %5113 = vadd.xlane.f32.xlu0 %v5091
        %v5114 = vpop.xlane.xlu0 %5113
        %5115 = vadd.xlane.f32.xlu0 %v5092
        %v5116 = vpop.xlane.xlu0 %5115
        %5117 = vadd.xlane.f32.xlu0 %v5093
        %v5118 = vpop.xlane.xlu0 %5117
        %5119 = vadd.xlane.f32.xlu0 %v5094
        %v5120 = vpop.xlane.xlu0 %5119
        %5121 = vadd.xlane.f32.xlu0 %v5095
        %v5122 = vpop.xlane.xlu0 %5121
        %5123 = vadd.xlane.f32.xlu0 %v5096
        %v5124 = vpop.xlane.xlu0 %5123
        %5125 = vadd.xlane.f32.xlu0 %v5097
        %v5126 = vpop.xlane.xlu0 %5125
        %5127 = vadd.xlane.f32.xlu0 %v5098
        %v5128 = vpop.xlane.xlu0 %5127
        %5129 = vadd.xlane.f32.xlu0 %v5099
        %v5130 = vpop.xlane.xlu0 %5129
        %5131 = vadd.xlane.f32.xlu0 %v5100
        %v5132 = vpop.xlane.xlu0 %5131
        %vm5133 = vcmp.gt.f32.partialorder %v5102, 0.0
        %vm5134 = vcmp.gt.f32.partialorder %v5104, 0.0
        %vm5135 = vcmp.gt.f32.partialorder %v5106, 0.0
        %vm5136 = vcmp.gt.f32.partialorder %v5108, 0.0
        %vm5137 = vcmp.gt.f32.partialorder %v5110, 0.0
        %vm5138 = vcmp.gt.f32.partialorder %v5112, 0.0
        %vm5139 = vcmp.gt.f32.partialorder %v5114, 0.0
        %vm5140 = vcmp.gt.f32.partialorder %v5116, 0.0
        %vm5141 = vcmp.gt.f32.partialorder %v5118, 0.0
        %vm5142 = vcmp.gt.f32.partialorder %v5120, 0.0
        %vm5143 = vcmp.gt.f32.partialorder %v5122, 0.0
        %vm5144 = vcmp.gt.f32.partialorder %v5124, 0.0
        %vm5145 = vcmp.gt.f32.partialorder %v5126, 0.0
        %vm5146 = vcmp.gt.f32.partialorder %v5128, 0.0
        %vm5147 = vcmp.gt.f32.partialorder %v5130, 0.0
        %vm5148 = vcmp.gt.f32.partialorder %v5132, 0.0
        %v5149 = vsel %vm5133, %v5102, 1.0
        %v5150 = vsel %vm5134, %v5104, 1.0
        %v5151 = vsel %vm5135, %v5106, 1.0
        %v5152 = vsel %vm5136, %v5108, 1.0
        %v5153 = vsel %vm5137, %v5110, 1.0
        %v5154 = vsel %vm5138, %v5112, 1.0
        %v5155 = vsel %vm5139, %v5114, 1.0
        %v5156 = vsel %vm5140, %v5116, 1.0
        %v5157 = vsel %vm5141, %v5118, 1.0
        %v5158 = vsel %vm5142, %v5120, 1.0
        %v5159 = vsel %vm5143, %v5122, 1.0
        %v5160 = vsel %vm5144, %v5124, 1.0
        %v5161 = vsel %vm5145, %v5126, 1.0
        %v5162 = vsel %vm5146, %v5128, 1.0
        %v5163 = vsel %vm5147, %v5130, 1.0
        %v5164 = vsel %vm5148, %v5132, 1.0
        %v5165 = vrcp.pop %v5149
        %v5166 = vmul.f32 %v5085, %v5165
        %v5167 = vrcp.pop %v5150
        %v5168 = vmul.f32 %v5086, %v5167
        %v5169 = vrcp.pop %v5151
        %v5170 = vmul.f32 %v5087, %v5169
        %v5171 = vrcp.pop %v5152
        %v5172 = vmul.f32 %v5088, %v5171
        %v5173 = vrcp.pop %v5153
        %v5174 = vmul.f32 %v5089, %v5173
        %v5175 = vrcp.pop %v5154
        %v5176 = vmul.f32 %v5090, %v5175
        %v5177 = vrcp.pop %v5155
        %v5178 = vmul.f32 %v5091, %v5177
        %v5179 = vrcp.pop %v5156
        %v5180 = vmul.f32 %v5092, %v5179
        %v5181 = vrcp.pop %v5157
        %v5182 = vmul.f32 %v5093, %v5181
        %v5183 = vrcp.pop %v5158
        %v5184 = vmul.f32 %v5094, %v5183
        %v5185 = vrcp.pop %v5159
        %v5186 = vmul.f32 %v5095, %v5185
        %v5187 = vrcp.pop %v5160
        %v5188 = vmul.f32 %v5096, %v5187
        %v5189 = vrcp.pop %v5161
        %v5190 = vmul.f32 %v5097, %v5189
        %v5191 = vrcp.pop %v5162
        %v5192 = vmul.f32 %v5098, %v5191
        %v5193 = vrcp.pop %v5163
        %v5194 = vmul.f32 %v5099, %v5193
        %v5195 = vrcp.pop %v5164
        %v5196 = vmul.f32 %v5100, %v5195
        %v5197 = vpack.c.bf16 %v5168, %v5166
        %v5198 = vpack.c.bf16 %v5172, %v5170
        %v5199 = vpack.c.bf16 %v5176, %v5174
        %v5200 = vpack.c.bf16 %v5180, %v5178
        %v5201 = vpack.c.bf16 %v5184, %v5182
        %v5202 = vpack.c.bf16 %v5188, %v5186
        %v5203 = vpack.c.bf16 %v5192, %v5190
        %v5204 = vpack.c.bf16 %v5196, %v5194
        %v5205 = vpack.c.bf16 %v4659, %v4656
        %v5206 = vpack.c.bf16 %v4667, %v4664
        %v5207 = vpack.c.bf16 %v4675, %v4672
        %v5208 = vpack.c.bf16 %v4683, %v4680
        %v5209 = vpack.c.bf16 %v4691, %v4688
        %v5210 = vpack.c.bf16 %v4699, %v4696
        %v5211 = vpack.c.bf16 %v4707, %v4704
        %v5212 = vpack.c.bf16 %v4715, %v4712
        %v5213 = vld [vmem:[#allocation6 + $0xa] sm:$0x1]
        %v5214 = vlaneseq
        %v5215 = vshrl.u32 %v5214, 7
        %v5216 = vsub.s32 0, %v5215
        %v5217 = vrot.slane %v5213, %v5216
        %5218 = vmatprep.subr.bf16.mxu0 0
        %5219 = vmatpush1.bf16.msra.mxu0 %v5212
        %5220 = vmatprep.subr.bf16.mxu0 0
        %5221 = vmatpush1.bf16.msra.mxu0 %v5211
        %5222 = vmatprep.subr.bf16.mxu0 0
        %5223 = vmatpush1.bf16.msra.mxu0 %v5210
        %5224 = vmatprep.subr.bf16.mxu0 0
        %5225 = vmatpush1.bf16.msra.mxu0 %v5209
        %5226 = vmatprep.subr.bf16.mxu0 0
        %5227 = vmatpush1.bf16.msra.mxu0 %v5208
        %5228 = vmatprep.subr.bf16.mxu0 0
        %5229 = vmatpush1.bf16.msra.mxu0 %v5207
        %5230 = vmatprep.subr.bf16.mxu0 0
        %5231 = vmatpush1.bf16.msra.mxu0 %v5206
        %5232 = vmatprep.subr.bf16.mxu0 0
        %5233 = vmatpush1.bf16.msra.mxu0 %v5205
        %5234 = vmatprep.subr.bf16.mxu0 0
        %5235 = vmatpush2.bf16.msra.mxu0 0
        %5236 = vmatprep.subr.bf16.mxu0 0
        %5237 = vmatpush2.bf16.msra.mxu0 0
        %5238 = vmatprep.subr.bf16.mxu0 0
        %5239 = vmatpush2.bf16.msra.mxu0 0
        %5240 = vmatprep.subr.bf16.mxu0 0
        %5241 = vmatpush2.bf16.msra.mxu0 0
        %5242 = vmatprep.subr.bf16.mxu0 0
        %5243 = vmatpush2.bf16.msra.mxu0 0
        %5244 = vmatprep.subr.bf16.mxu0 0
        %5245 = vmatpush2.bf16.msra.mxu0 0
        %5246 = vmatprep.subr.bf16.mxu0 0
        %5247 = vmatpush2.bf16.msra.mxu0 0
        %5248 = vmatprep.subr.bf16.mxu0 0
        %5249 = vmatpush2.bf16.msra.mxu0 0
        %5250 = vmatprep.mubr.bf16.mxu0 0
        %5251 = vmatmul.mubr.bf16.gmra.mxu0 %v5197
        %v5252 = vpop.f32.mrf.mxu0
        %v5253 = vadd.f32 %v5217, %v5252
        %v5254 = vpop.f32.mrf.mxu0
        %v5255 = vpop.f32.mrf.mxu0
        %v5256 = vadd.f32 %v5217, %v5255
        %v5257 = vpop.f32.mrf.mxu0
        %5258 = vmatprep.mubr.bf16.mxu0 0
        %5259 = vmatmul.mubr.bf16.gmra.mxu0 %v5198
        %v5260 = vpop.f32.mrf.mxu0
        %v5261 = vadd.f32 %v5217, %v5260
        %v5262 = vpop.f32.mrf.mxu0
        %v5263 = vpop.f32.mrf.mxu0
        %v5264 = vadd.f32 %v5217, %v5263
        %v5265 = vpop.f32.mrf.mxu0
        %5266 = vmatprep.mubr.bf16.mxu0 0
        %5267 = vmatmul.mubr.bf16.gmra.mxu0 %v5199
        %v5268 = vpop.f32.mrf.mxu0
        %v5269 = vadd.f32 %v5217, %v5268
        %v5270 = vpop.f32.mrf.mxu0
        %v5271 = vpop.f32.mrf.mxu0
        %v5272 = vadd.f32 %v5217, %v5271
        %v5273 = vpop.f32.mrf.mxu0
        %5274 = vmatprep.mubr.bf16.mxu0 0
        %5275 = vmatmul.mubr.bf16.gmra.mxu0 %v5200
        %v5276 = vpop.f32.mrf.mxu0
        %v5277 = vadd.f32 %v5217, %v5276
        %v5278 = vpop.f32.mrf.mxu0
        %v5279 = vpop.f32.mrf.mxu0
        %v5280 = vadd.f32 %v5217, %v5279
        %v5281 = vpop.f32.mrf.mxu0
        %5282 = vmatprep.mubr.bf16.mxu0 0
        %5283 = vmatmul.mubr.bf16.gmra.mxu0 %v5201
        %v5284 = vpop.f32.mrf.mxu0
        %v5285 = vadd.f32 %v5217, %v5284
        %v5286 = vpop.f32.mrf.mxu0
        %v5287 = vpop.f32.mrf.mxu0
        %v5288 = vadd.f32 %v5217, %v5287
        %v5289 = vpop.f32.mrf.mxu0
        %5290 = vmatprep.mubr.bf16.mxu0 0
        %5291 = vmatmul.mubr.bf16.gmra.mxu0 %v5202
        %v5292 = vpop.f32.mrf.mxu0
        %v5293 = vadd.f32 %v5217, %v5292
        %v5294 = vpop.f32.mrf.mxu0
        %v5295 = vpop.f32.mrf.mxu0
        %v5296 = vadd.f32 %v5217, %v5295
        %v5297 = vpop.f32.mrf.mxu0
        %5298 = vmatprep.mubr.bf16.mxu0 0
        %5299 = vmatmul.mubr.bf16.gmra.mxu0 %v5203
        %v5300 = vpop.f32.mrf.mxu0
        %v5301 = vadd.f32 %v5217, %v5300
        %v5302 = vpop.f32.mrf.mxu0
        %v5303 = vpop.f32.mrf.mxu0
        %v5304 = vadd.f32 %v5217, %v5303
        %v5305 = vpop.f32.mrf.mxu0
        %5306 = vmatprep.mubr.bf16.mxu0 0
        %5307 = vmatmul.mubr.bf16.gmra.mxu0 %v5204
        %v5308 = vpop.f32.mrf.mxu0
        %v5309 = vadd.f32 %v5217, %v5308
        %v5310 = vpop.f32.mrf.mxu0
        %v5311 = vpop.f32.mrf.mxu0
        %v5312 = vadd.f32 %v5217, %v5311
        %v5313 = vpop.f32.mrf.mxu0
        %5314 = vdwg.mxu0
        %v5315 = vmax.f32 %v5253, 0.0
        %v5316 = vmax.f32 %v5256, 0.0
        %v5317 = vmax.f32 %v5261, 0.0
        %v5318 = vmax.f32 %v5264, 0.0
        %v5319 = vmax.f32 %v5269, 0.0
        %v5320 = vmax.f32 %v5272, 0.0
        %v5321 = vmax.f32 %v5277, 0.0
        %v5322 = vmax.f32 %v5280, 0.0
        %v5323 = vmax.f32 %v5285, 0.0
        %v5324 = vmax.f32 %v5288, 0.0
        %v5325 = vmax.f32 %v5293, 0.0
        %v5326 = vmax.f32 %v5296, 0.0
        %v5327 = vmax.f32 %v5301, 0.0
        %v5328 = vmax.f32 %v5304, 0.0
        %v5329 = vmax.f32 %v5309, 0.0
        %v5330 = vmax.f32 %v5312, 0.0
        %v5331 = vadd.f32 %v5315, %v2716
        %v5332 = vadd.f32 %v5316, %v2717
        %v5333 = vadd.f32 %v5317, %v2718
        %v5334 = vadd.f32 %v5318, %v2719
        %v5335 = vadd.f32 %v5319, %v2720
        %v5336 = vadd.f32 %v5320, %v2721
        %v5337 = vadd.f32 %v5321, %v2722
        %v5338 = vadd.f32 %v5322, %v2723
        %v5339 = vadd.f32 %v5323, %v2724
        %v5340 = vadd.f32 %v5324, %v2725
        %v5341 = vadd.f32 %v5325, %v2726
        %v5342 = vadd.f32 %v5326, %v2727
        %v5343 = vadd.f32 %v5327, %v2728
        %v5344 = vadd.f32 %v5328, %v2729
        %v5345 = vadd.f32 %v5329, %v2730
        %v5346 = vadd.f32 %v5330, %v2731
        %v5347 = vpack.c.bf16 %v5332, %v5331
        %v5348 = vpack.c.bf16 %v5334, %v5333
        %v5349 = vpack.c.bf16 %v5336, %v5335
        %v5350 = vpack.c.bf16 %v5338, %v5337
        %v5351 = vpack.c.bf16 %v5340, %v5339
        %v5352 = vpack.c.bf16 %v5342, %v5341
        %v5353 = vpack.c.bf16 %v5344, %v5343
        %v5354 = vpack.c.bf16 %v5346, %v5345
        %v5355 = vld [vmem:[#allocation7] sm:$0xf]
        %v5356 = vld [vmem:[#allocation7 + $0x4] sm:$0xf]
        %v5357 = vld [vmem:[#allocation7 + $0x8] sm:$0xf]
        %v5358 = vld [vmem:[#allocation7 + $0xc] sm:$0xf]
        %v5359 = vld [vmem:[%s7] sm:$0x1]
        %v5360 = vlaneseq
        %v5361 = vshrl.u32 %v5360, 7
        %v5362 = vsub.s32 0, %v5361
        %v5363 = vrot.slane %v5359, %v5362
        %v5368 = vunpack.c.l.b16 %v5355
        %v5369 = vunpack.c.l.b16 %v5356
        %v5370 = vunpack.c.l.b16 %v5357
        %v5371 = vunpack.c.l.b16 %v5358
        %v5372 = vpack.c.b16 %v5369, %v5368
        %v5373 = vpack.c.b16 %v5371, %v5370
        %v5377 = vsel %vm480, %v5347, 0
        %v5380 = vsel %vm480, %v5348, 0
        %v5383 = vsel %vm480, %v5349, 0
        %v5386 = vsel %vm480, %v5350, 0
        %v5389 = vsel %vm480, %v5351, 0
        %v5392 = vsel %vm480, %v5352, 0
        %v5395 = vsel %vm480, %v5353, 0
        %v5398 = vsel %vm480, %v5354, 0
        %5400 = vmatprep.subr.bf16.mxu0 0
        %5401 = vmatpush1.bf16.msra.mxu0 0
        %5402 = vmatprep.subr.bf16.mxu0 0
        %5403 = vmatpush1.bf16.msra.mxu0 0
        %5404 = vmatprep.subr.bf16.mxu0 0
        %5405 = vmatpush1.bf16.msra.mxu0 0
        %5406 = vmatprep.subr.bf16.mxu0 0
        %5407 = vmatpush1.bf16.msra.mxu0 0
        %5408 = vmatprep.subr.bf16.mxu0 0
        %5409 = vmatpush1.bf16.msra.mxu0 0
        %5410 = vmatprep.subr.bf16.mxu0 0
        %5411 = vmatpush1.bf16.msra.mxu0 0
        %5412 = vmatprep.subr.bf16.mxu0 0
        %5413 = vmatpush1.bf16.msra.mxu0 %v5373
        %5414 = vmatprep.subr.bf16.mxu0 0
        %5415 = vmatpush1.bf16.msra.mxu0 %v5372
        %5416 = vmatprep.subr.bf16.mxu0 0
        %5417 = vmatpush2.bf16.msra.mxu0 0
        %5418 = vmatprep.subr.bf16.mxu0 0
        %5419 = vmatpush2.bf16.msra.mxu0 0
        %5420 = vmatprep.subr.bf16.mxu0 0
        %5421 = vmatpush2.bf16.msra.mxu0 0
        %5422 = vmatprep.subr.bf16.mxu0 0
        %5423 = vmatpush2.bf16.msra.mxu0 0
        %5424 = vmatprep.subr.bf16.mxu0 0
        %5425 = vmatpush2.bf16.msra.mxu0 0
        %5426 = vmatprep.subr.bf16.mxu0 0
        %5427 = vmatpush2.bf16.msra.mxu0 0
        %5428 = vmatprep.subr.bf16.mxu0 0
        %5429 = vmatpush2.bf16.msra.mxu0 0
        %5430 = vmatprep.subr.bf16.mxu0 0
        %5431 = vmatpush2.bf16.msra.mxu0 0
        %5432 = vmatprep.mubr.bf16.mxu0 0
        %5433 = vmatmul.mubr.bf16.gmra.mxu0 %v5377
        %v5434 = vpop.f32.mrf.mxu0
        %v5435 = vadd.f32 %v5363, %v5434
        %v5436 = vpop.f32.mrf.mxu0
        %v5437 = vpop.f32.mrf.mxu0
        %v5438 = vadd.f32 %v5363, %v5437
        %v5439 = vpop.f32.mrf.mxu0
        %5440 = vmatprep.mubr.bf16.mxu0 0
        %5441 = vmatmul.mubr.bf16.gmra.mxu0 %v5380
        %v5442 = vpop.f32.mrf.mxu0
        %v5443 = vadd.f32 %v5363, %v5442
        %v5444 = vpop.f32.mrf.mxu0
        %v5445 = vpop.f32.mrf.mxu0
        %v5446 = vadd.f32 %v5363, %v5445
        %v5447 = vpop.f32.mrf.mxu0
        %5448 = vmatprep.mubr.bf16.mxu0 0
        %5449 = vmatmul.mubr.bf16.gmra.mxu0 %v5383
        %v5450 = vpop.f32.mrf.mxu0
        %v5451 = vadd.f32 %v5363, %v5450
        %v5452 = vpop.f32.mrf.mxu0
        %v5453 = vpop.f32.mrf.mxu0
        %v5454 = vadd.f32 %v5363, %v5453
        %v5455 = vpop.f32.mrf.mxu0
        %5456 = vmatprep.mubr.bf16.mxu0 0
        %5457 = vmatmul.mubr.bf16.gmra.mxu0 %v5386
        %v5458 = vpop.f32.mrf.mxu0
        %v5459 = vadd.f32 %v5363, %v5458
        %v5460 = vpop.f32.mrf.mxu0
        %v5461 = vpop.f32.mrf.mxu0
        %v5462 = vadd.f32 %v5363, %v5461
        %v5463 = vpop.f32.mrf.mxu0
        %5464 = vmatprep.mubr.bf16.mxu0 0
        %5465 = vmatmul.mubr.bf16.gmra.mxu0 %v5389
        %v5466 = vpop.f32.mrf.mxu0
        %v5467 = vadd.f32 %v5363, %v5466
        %v5468 = vpop.f32.mrf.mxu0
        %v5469 = vpop.f32.mrf.mxu0
        %v5470 = vadd.f32 %v5363, %v5469
        %v5471 = vpop.f32.mrf.mxu0
        %5472 = vmatprep.mubr.bf16.mxu0 0
        %5473 = vmatmul.mubr.bf16.gmra.mxu0 %v5392
        %v5474 = vpop.f32.mrf.mxu0
        %v5475 = vadd.f32 %v5363, %v5474
        %v5476 = vpop.f32.mrf.mxu0
        %v5477 = vpop.f32.mrf.mxu0
        %v5478 = vadd.f32 %v5363, %v5477
        %v5479 = vpop.f32.mrf.mxu0
        %5480 = vmatprep.mubr.bf16.mxu0 0
        %5481 = vmatmul.mubr.bf16.gmra.mxu0 %v5395
        %v5482 = vpop.f32.mrf.mxu0
        %v5483 = vadd.f32 %v5363, %v5482
        %v5484 = vpop.f32.mrf.mxu0
        %v5485 = vpop.f32.mrf.mxu0
        %v5486 = vadd.f32 %v5363, %v5485
        %v5487 = vpop.f32.mrf.mxu0
        %5488 = vmatprep.mubr.bf16.mxu0 0
        %5489 = vmatmul.mubr.bf16.gmra.mxu0 %v5398
        %v5490 = vpop.f32.mrf.mxu0
        %v5491 = vadd.f32 %v5363, %v5490
        %v5492 = vpop.f32.mrf.mxu0
        %v5493 = vpop.f32.mrf.mxu0
        %v5494 = vadd.f32 %v5363, %v5493
        %v5495 = vpop.f32.mrf.mxu0
        %5496 = vdwg.mxu0
        %v5497 = vld [vmem:[#allocation9] sm:$0xf]
        %v5498 = vld [vmem:[#allocation9 + $0x4] sm:$0xf]
        %v5499 = vld [vmem:[#allocation9 + $0x8] sm:$0xf]
        %v5500 = vld [vmem:[#allocation9 + $0xc] sm:$0xf]
        %v5501 = vld [vmem:[#allocation9 + $0x10] sm:$0xf]
        %v5502 = vld [vmem:[#allocation9 + $0x14] sm:$0xf]
        %v5503 = vld [vmem:[#allocation9 + $0x18] sm:$0xf]
        %v5504 = vld [vmem:[#allocation9 + $0x1c] sm:$0xf]
        %v5505 = vld [vmem:[#allocation9 + $0x20] sm:$0xf]
        %v5506 = vld [vmem:[#allocation9 + $0x24] sm:$0xf]
        %v5507 = vld [vmem:[#allocation9 + $0x28] sm:$0xf]
        %v5508 = vld [vmem:[#allocation9 + $0x2c] sm:$0xf]
        %v5509 = vld [vmem:[#allocation9 + $0x30] sm:$0xf]
        %v5510 = vld [vmem:[#allocation9 + $0x34] sm:$0xf]
        %v5511 = vld [vmem:[#allocation9 + $0x38] sm:$0xf]
        %v5512 = vld [vmem:[#allocation9 + $0x3c] sm:$0xf]
        %v5529 = vunpack.c.l.b16 %v5497
        %v5530 = vunpack.c.l.b16 %v5498
        %v5531 = vunpack.c.l.b16 %v5499
        %v5532 = vunpack.c.l.b16 %v5500
        %v5533 = vunpack.c.l.b16 %v5501
        %v5534 = vunpack.c.l.b16 %v5502
        %v5535 = vunpack.c.l.b16 %v5503
        %v5536 = vunpack.c.l.b16 %v5504
        %v5537 = vunpack.c.l.b16 %v5505
        %v5538 = vunpack.c.l.b16 %v5506
        %v5539 = vunpack.c.l.b16 %v5507
        %v5540 = vunpack.c.l.b16 %v5508
        %v5541 = vunpack.c.l.b16 %v5509
        %v5542 = vunpack.c.l.b16 %v5510
        %v5543 = vunpack.c.l.b16 %v5511
        %v5544 = vunpack.c.l.b16 %v5512
        %v5545 = vpack.c.b16 %v5530, %v5529
        %v5546 = vpack.c.b16 %v5532, %v5531
        %v5547 = vpack.c.b16 %v5534, %v5533
        %v5548 = vpack.c.b16 %v5536, %v5535
        %v5549 = vpack.c.b16 %v5538, %v5537
        %v5550 = vpack.c.b16 %v5540, %v5539
        %v5551 = vpack.c.b16 %v5542, %v5541
        %v5552 = vpack.c.b16 %v5544, %v5543
        %5561 = vmatprep.subr.bf16.mxu0 0
        %5562 = vmatpush1.bf16.msra.mxu0 %v5354
        %5563 = vmatprep.subr.bf16.mxu0 0
        %5564 = vmatpush1.bf16.msra.mxu0 %v5353
        %5565 = vmatprep.subr.bf16.mxu0 0
        %5566 = vmatpush1.bf16.msra.mxu0 %v5352
        %5567 = vmatprep.subr.bf16.mxu0 0
        %5568 = vmatpush1.bf16.msra.mxu0 %v5351
        %5569 = vmatprep.subr.bf16.mxu0 0
        %5570 = vmatpush1.bf16.msra.mxu0 %v5350
        %5571 = vmatprep.subr.bf16.mxu0 0
        %5572 = vmatpush1.bf16.msra.mxu0 %v5349
        %5573 = vmatprep.subr.bf16.mxu0 0
        %5574 = vmatpush1.bf16.msra.mxu0 %v5348
        %5575 = vmatprep.subr.bf16.mxu0 0
        %5576 = vmatpush1.bf16.msra.mxu0 %v5347
        %5577 = vmatprep.subr.bf16.mxu0 0
        %5578 = vmatpush2.bf16.msra.mxu0 0
        %5579 = vmatprep.subr.bf16.mxu0 0
        %5580 = vmatpush2.bf16.msra.mxu0 0
        %5581 = vmatprep.subr.bf16.mxu0 0
        %5582 = vmatpush2.bf16.msra.mxu0 0
        %5583 = vmatprep.subr.bf16.mxu0 0
        %5584 = vmatpush2.bf16.msra.mxu0 0
        %5585 = vmatprep.subr.bf16.mxu0 0
        %5586 = vmatpush2.bf16.msra.mxu0 0
        %5587 = vmatprep.subr.bf16.mxu0 0
        %5588 = vmatpush2.bf16.msra.mxu0 0
        %5589 = vmatprep.subr.bf16.mxu0 0
        %5590 = vmatpush2.bf16.msra.mxu0 0
        %5591 = vmatprep.subr.bf16.mxu0 0
        %5592 = vmatpush2.bf16.msra.mxu0 0
        %5593 = vmatprep.mubr.bf16.mxu0 0
        %5594 = vmatmul.mubr.bf16.gmra.mxu0 %v5545
        %v5595 = vpop.f32.mrf.mxu0
        %v5596 = vadd.f32 0.0, %v5595
        %v5597 = vpop.f32.mrf.mxu0
        %v5598 = vpop.f32.mrf.mxu0
        %v5599 = vadd.f32 0.0, %v5598
        %v5600 = vpop.f32.mrf.mxu0
        %5601 = vmatprep.mubr.bf16.mxu0 0
        %5602 = vmatmul.mubr.bf16.gmra.mxu0 %v5546
        %v5603 = vpop.f32.mrf.mxu0
        %v5604 = vadd.f32 0.0, %v5603
        %v5605 = vpop.f32.mrf.mxu0
        %v5606 = vpop.f32.mrf.mxu0
        %v5607 = vadd.f32 0.0, %v5606
        %v5608 = vpop.f32.mrf.mxu0
        %5609 = vmatprep.mubr.bf16.mxu0 0
        %5610 = vmatmul.mubr.bf16.gmra.mxu0 %v5547
        %v5611 = vpop.f32.mrf.mxu0
        %v5612 = vadd.f32 0.0, %v5611
        %v5613 = vpop.f32.mrf.mxu0
        %v5614 = vpop.f32.mrf.mxu0
        %v5615 = vadd.f32 0.0, %v5614
        %v5616 = vpop.f32.mrf.mxu0
        %5617 = vmatprep.mubr.bf16.mxu0 0
        %5618 = vmatmul.mubr.bf16.gmra.mxu0 %v5548
        %v5619 = vpop.f32.mrf.mxu0
        %v5620 = vadd.f32 0.0, %v5619
        %v5621 = vpop.f32.mrf.mxu0
        %v5622 = vpop.f32.mrf.mxu0
        %v5623 = vadd.f32 0.0, %v5622
        %v5624 = vpop.f32.mrf.mxu0
        %5625 = vmatprep.mubr.bf16.mxu0 0
        %5626 = vmatmul.mubr.bf16.gmra.mxu0 %v5549
        %v5627 = vpop.f32.mrf.mxu0
        %v5628 = vadd.f32 0.0, %v5627
        %v5629 = vpop.f32.mrf.mxu0
        %v5630 = vpop.f32.mrf.mxu0
        %v5631 = vadd.f32 0.0, %v5630
        %v5632 = vpop.f32.mrf.mxu0
        %5633 = vmatprep.mubr.bf16.mxu0 0
        %5634 = vmatmul.mubr.bf16.gmra.mxu0 %v5550
        %v5635 = vpop.f32.mrf.mxu0
        %v5636 = vadd.f32 0.0, %v5635
        %v5637 = vpop.f32.mrf.mxu0
        %v5638 = vpop.f32.mrf.mxu0
        %v5639 = vadd.f32 0.0, %v5638
        %v5640 = vpop.f32.mrf.mxu0
        %5641 = vmatprep.mubr.bf16.mxu0 0
        %5642 = vmatmul.mubr.bf16.gmra.mxu0 %v5551
        %v5643 = vpop.f32.mrf.mxu0
        %v5644 = vadd.f32 0.0, %v5643
        %v5645 = vpop.f32.mrf.mxu0
        %v5646 = vpop.f32.mrf.mxu0
        %v5647 = vadd.f32 0.0, %v5646
        %v5648 = vpop.f32.mrf.mxu0
        %5649 = vmatprep.mubr.bf16.mxu0 0
        %5650 = vmatmul.mubr.bf16.gmra.mxu0 %v5552
        %v5651 = vpop.f32.mrf.mxu0
        %v5652 = vadd.f32 0.0, %v5651
        %v5653 = vpop.f32.mrf.mxu0
        %v5654 = vpop.f32.mrf.mxu0
        %v5655 = vadd.f32 0.0, %v5654
        %v5656 = vpop.f32.mrf.mxu0
        %5657 = vdwg.mxu0
        %v5658 = vpack.c.bf16 %v5438, %v5435
        %v5659 = vpack.c.bf16 %v5446, %v5443
        %v5660 = vpack.c.bf16 %v5454, %v5451
        %v5661 = vpack.c.bf16 %v5462, %v5459
        %v5662 = vpack.c.bf16 %v5470, %v5467
        %v5663 = vpack.c.bf16 %v5478, %v5475
        %v5664 = vpack.c.bf16 %v5486, %v5483
        %v5665 = vpack.c.bf16 %v5494, %v5491
        %5666 = vmatprep.subr.bf16.mxu0 0
        %5667 = vmatpush1.bf16.msra.mxu0 %v5665
        %5668 = vmatprep.subr.bf16.mxu0 0
        %5669 = vmatpush1.bf16.msra.mxu0 %v5664
        %5670 = vmatprep.subr.bf16.mxu0 0
        %5671 = vmatpush1.bf16.msra.mxu0 %v5663
        %5672 = vmatprep.subr.bf16.mxu0 0
        %5673 = vmatpush1.bf16.msra.mxu0 %v5662
        %5674 = vmatprep.subr.bf16.mxu0 0
        %5675 = vmatpush1.bf16.msra.mxu0 %v5661
        %5676 = vmatprep.subr.bf16.mxu0 0
        %5677 = vmatpush1.bf16.msra.mxu0 %v5660
        %5678 = vmatprep.subr.bf16.mxu0 0
        %5679 = vmatpush1.bf16.msra.mxu0 %v5659
        %5680 = vmatprep.subr.bf16.mxu0 0
        %5681 = vmatpush1.bf16.msra.mxu0 %v5658
        %5682 = vmatprep.subr.bf16.mxu0 0
        %5683 = vmatpush2.bf16.msra.mxu0 0
        %5684 = vmatprep.subr.bf16.mxu0 0
        %5685 = vmatpush2.bf16.msra.mxu0 0
        %5686 = vmatprep.subr.bf16.mxu0 0
        %5687 = vmatpush2.bf16.msra.mxu0 0
        %5688 = vmatprep.subr.bf16.mxu0 0
        %5689 = vmatpush2.bf16.msra.mxu0 0
        %5690 = vmatprep.subr.bf16.mxu0 0
        %5691 = vmatpush2.bf16.msra.mxu0 0
        %5692 = vmatprep.subr.bf16.mxu0 0
        %5693 = vmatpush2.bf16.msra.mxu0 0
        %5694 = vmatprep.subr.bf16.mxu0 0
        %5695 = vmatpush2.bf16.msra.mxu0 0
        %5696 = vmatprep.subr.bf16.mxu0 0
        %5697 = vmatpush2.bf16.msra.mxu0 0
        %5698 = vmatprep.mubr.bf16.mxu0 0
        %5699 = vmatmul.mubr.bf16.gmra.mxu0 %v5545
        %v5700 = vpop.f32.mrf.mxu0
        %v5701 = vadd.f32 0.0, %v5700
        %v5702 = vpop.f32.mrf.mxu0
        %v5703 = vpop.f32.mrf.mxu0
        %v5704 = vadd.f32 0.0, %v5703
        %v5705 = vpop.f32.mrf.mxu0
        %5706 = vmatprep.mubr.bf16.mxu0 0
        %5707 = vmatmul.mubr.bf16.gmra.mxu0 %v5546
        %v5708 = vpop.f32.mrf.mxu0
        %v5709 = vadd.f32 0.0, %v5708
        %v5710 = vpop.f32.mrf.mxu0
        %v5711 = vpop.f32.mrf.mxu0
        %v5712 = vadd.f32 0.0, %v5711
        %v5713 = vpop.f32.mrf.mxu0
        %5714 = vmatprep.mubr.bf16.mxu0 0
        %5715 = vmatmul.mubr.bf16.gmra.mxu0 %v5547
        %v5716 = vpop.f32.mrf.mxu0
        %v5717 = vadd.f32 0.0, %v5716
        %v5718 = vpop.f32.mrf.mxu0
        %v5719 = vpop.f32.mrf.mxu0
        %v5720 = vadd.f32 0.0, %v5719
        %v5721 = vpop.f32.mrf.mxu0
        %5722 = vmatprep.mubr.bf16.mxu0 0
        %5723 = vmatmul.mubr.bf16.gmra.mxu0 %v5548
        %v5724 = vpop.f32.mrf.mxu0
        %v5725 = vadd.f32 0.0, %v5724
        %v5726 = vpop.f32.mrf.mxu0
        %v5727 = vpop.f32.mrf.mxu0
        %v5728 = vadd.f32 0.0, %v5727
        %v5729 = vpop.f32.mrf.mxu0
        %5730 = vmatprep.mubr.bf16.mxu0 0
        %5731 = vmatmul.mubr.bf16.gmra.mxu0 %v5549
        %v5732 = vpop.f32.mrf.mxu0
        %v5733 = vadd.f32 0.0, %v5732
        %v5734 = vpop.f32.mrf.mxu0
        %v5735 = vpop.f32.mrf.mxu0
        %v5736 = vadd.f32 0.0, %v5735
        %v5737 = vpop.f32.mrf.mxu0
        %5738 = vmatprep.mubr.bf16.mxu0 0
        %5739 = vmatmul.mubr.bf16.gmra.mxu0 %v5550
        %v5740 = vpop.f32.mrf.mxu0
        %v5741 = vadd.f32 0.0, %v5740
        %v5742 = vpop.f32.mrf.mxu0
        %v5743 = vpop.f32.mrf.mxu0
        %v5744 = vadd.f32 0.0, %v5743
        %v5745 = vpop.f32.mrf.mxu0
        %5746 = vmatprep.mubr.bf16.mxu0 0
        %5747 = vmatmul.mubr.bf16.gmra.mxu0 %v5551
        %v5748 = vpop.f32.mrf.mxu0
        %v5749 = vadd.f32 0.0, %v5748
        %v5750 = vpop.f32.mrf.mxu0
        %v5751 = vpop.f32.mrf.mxu0
        %v5752 = vadd.f32 0.0, %v5751
        %v5753 = vpop.f32.mrf.mxu0
        %5754 = vmatprep.mubr.bf16.mxu0 0
        %5755 = vmatmul.mubr.bf16.gmra.mxu0 %v5552
        %v5756 = vpop.f32.mrf.mxu0
        %v5757 = vadd.f32 0.0, %v5756
        %v5758 = vpop.f32.mrf.mxu0
        %v5759 = vpop.f32.mrf.mxu0
        %v5760 = vadd.f32 0.0, %v5759
        %v5761 = vpop.f32.mrf.mxu0
        %5762 = vdwg.mxu0
        %v5763 = vpack.c.bf16 %v5599, %v5596
        %v5764 = vpack.c.bf16 %v5607, %v5604
        %v5765 = vpack.c.bf16 %v5615, %v5612
        %v5766 = vpack.c.bf16 %v5623, %v5620
        %v5767 = vpack.c.bf16 %v5631, %v5628
        %v5768 = vpack.c.bf16 %v5639, %v5636
        %v5769 = vpack.c.bf16 %v5647, %v5644
        %v5770 = vpack.c.bf16 %v5655, %v5652
        %s5771 = scalar_lea.vmem %s5, 32
        %v5772 = vld [vmem:[%s5771] sm:$0xf]
        %v5773 = vld [vmem:[%s5771 + $0x4] sm:$0xf]
        %v5774 = vld [vmem:[%s5771 + $0x8] sm:$0xf]
        %v5775 = vld [vmem:[%s5771 + $0xc] sm:$0xf]
        %v5776 = vld [vmem:[#allocation6 + $0xe] sm:$0x1]
        %v5777 = vlaneseq
        %v5778 = vshrl.u32 %v5777, 7
        %v5779 = vsub.s32 0, %v5778
        %v5780 = vrot.slane %v5776, %v5779
        %v5785 = vunpack.c.l.b16 %v5772
        %v5786 = vunpack.c.l.b16 %v5773
        %v5787 = vunpack.c.l.b16 %v5774
        %v5788 = vunpack.c.l.b16 %v5775
        %v5789 = vpack.c.b16 %v5786, %v5785
        %v5790 = vpack.c.b16 %v5788, %v5787
        %v5794 = vsel %vm480, %v5763, 0
        %v5797 = vsel %vm480, %v5764, 0
        %v5800 = vsel %vm480, %v5765, 0
        %v5803 = vsel %vm480, %v5766, 0
        %v5806 = vsel %vm480, %v5767, 0
        %v5809 = vsel %vm480, %v5768, 0
        %v5812 = vsel %vm480, %v5769, 0
        %v5815 = vsel %vm480, %v5770, 0
        %5817 = vmatprep.subr.bf16.mxu0 0
        %5818 = vmatpush1.bf16.msra.mxu0 0
        %5819 = vmatprep.subr.bf16.mxu0 0
        %5820 = vmatpush1.bf16.msra.mxu0 0
        %5821 = vmatprep.subr.bf16.mxu0 0
        %5822 = vmatpush1.bf16.msra.mxu0 0
        %5823 = vmatprep.subr.bf16.mxu0 0
        %5824 = vmatpush1.bf16.msra.mxu0 0
        %5825 = vmatprep.subr.bf16.mxu0 0
        %5826 = vmatpush1.bf16.msra.mxu0 0
        %5827 = vmatprep.subr.bf16.mxu0 0
        %5828 = vmatpush1.bf16.msra.mxu0 0
        %5829 = vmatprep.subr.bf16.mxu0 0
        %5830 = vmatpush1.bf16.msra.mxu0 %v5790
        %5831 = vmatprep.subr.bf16.mxu0 0
        %5832 = vmatpush1.bf16.msra.mxu0 %v5789
        %5833 = vmatprep.subr.bf16.mxu0 0
        %5834 = vmatpush2.bf16.msra.mxu0 0
        %5835 = vmatprep.subr.bf16.mxu0 0
        %5836 = vmatpush2.bf16.msra.mxu0 0
        %5837 = vmatprep.subr.bf16.mxu0 0
        %5838 = vmatpush2.bf16.msra.mxu0 0
        %5839 = vmatprep.subr.bf16.mxu0 0
        %5840 = vmatpush2.bf16.msra.mxu0 0
        %5841 = vmatprep.subr.bf16.mxu0 0
        %5842 = vmatpush2.bf16.msra.mxu0 0
        %5843 = vmatprep.subr.bf16.mxu0 0
        %5844 = vmatpush2.bf16.msra.mxu0 0
        %5845 = vmatprep.subr.bf16.mxu0 0
        %5846 = vmatpush2.bf16.msra.mxu0 0
        %5847 = vmatprep.subr.bf16.mxu0 0
        %5848 = vmatpush2.bf16.msra.mxu0 0
        %5849 = vmatprep.mubr.bf16.mxu0 0
        %5850 = vmatmul.mubr.bf16.gmra.mxu0 %v5794
        %v5851 = vpop.f32.mrf.mxu0
        %v5852 = vadd.f32 %v5780, %v5851
        %v5853 = vpop.f32.mrf.mxu0
        %v5854 = vpop.f32.mrf.mxu0
        %v5855 = vadd.f32 %v5780, %v5854
        %v5856 = vpop.f32.mrf.mxu0
        %5857 = vmatprep.mubr.bf16.mxu0 0
        %5858 = vmatmul.mubr.bf16.gmra.mxu0 %v5797
        %v5859 = vpop.f32.mrf.mxu0
        %v5860 = vadd.f32 %v5780, %v5859
        %v5861 = vpop.f32.mrf.mxu0
        %v5862 = vpop.f32.mrf.mxu0
        %v5863 = vadd.f32 %v5780, %v5862
        %v5864 = vpop.f32.mrf.mxu0
        %5865 = vmatprep.mubr.bf16.mxu0 0
        %5866 = vmatmul.mubr.bf16.gmra.mxu0 %v5800
        %v5867 = vpop.f32.mrf.mxu0
        %v5868 = vadd.f32 %v5780, %v5867
        %v5869 = vpop.f32.mrf.mxu0
        %v5870 = vpop.f32.mrf.mxu0
        %v5871 = vadd.f32 %v5780, %v5870
        %v5872 = vpop.f32.mrf.mxu0
        %5873 = vmatprep.mubr.bf16.mxu0 0
        %5874 = vmatmul.mubr.bf16.gmra.mxu0 %v5803
        %v5875 = vpop.f32.mrf.mxu0
        %v5876 = vadd.f32 %v5780, %v5875
        %v5877 = vpop.f32.mrf.mxu0
        %v5878 = vpop.f32.mrf.mxu0
        %v5879 = vadd.f32 %v5780, %v5878
        %v5880 = vpop.f32.mrf.mxu0
        %5881 = vmatprep.mubr.bf16.mxu0 0
        %5882 = vmatmul.mubr.bf16.gmra.mxu0 %v5806
        %v5883 = vpop.f32.mrf.mxu0
        %v5884 = vadd.f32 %v5780, %v5883
        %v5885 = vpop.f32.mrf.mxu0
        %v5886 = vpop.f32.mrf.mxu0
        %v5887 = vadd.f32 %v5780, %v5886
        %v5888 = vpop.f32.mrf.mxu0
        %5889 = vmatprep.mubr.bf16.mxu0 0
        %5890 = vmatmul.mubr.bf16.gmra.mxu0 %v5809
        %v5891 = vpop.f32.mrf.mxu0
        %v5892 = vadd.f32 %v5780, %v5891
        %v5893 = vpop.f32.mrf.mxu0
        %v5894 = vpop.f32.mrf.mxu0
        %v5895 = vadd.f32 %v5780, %v5894
        %v5896 = vpop.f32.mrf.mxu0
        %5897 = vmatprep.mubr.bf16.mxu0 0
        %5898 = vmatmul.mubr.bf16.gmra.mxu0 %v5812
        %v5899 = vpop.f32.mrf.mxu0
        %v5900 = vadd.f32 %v5780, %v5899
        %v5901 = vpop.f32.mrf.mxu0
        %v5902 = vpop.f32.mrf.mxu0
        %v5903 = vadd.f32 %v5780, %v5902
        %v5904 = vpop.f32.mrf.mxu0
        %5905 = vmatprep.mubr.bf16.mxu0 0
        %5906 = vmatmul.mubr.bf16.gmra.mxu0 %v5815
        %v5907 = vpop.f32.mrf.mxu0
        %v5908 = vadd.f32 %v5780, %v5907
        %v5909 = vpop.f32.mrf.mxu0
        %v5910 = vpop.f32.mrf.mxu0
        %v5911 = vadd.f32 %v5780, %v5910
        %v5912 = vpop.f32.mrf.mxu0
        %5913 = vdwg.mxu0
        %v5914 = vmax.f32 %v5852, 0.0
        %v5915 = vmax.f32 %v5855, 0.0
        %v5916 = vmax.f32 %v5860, 0.0
        %v5917 = vmax.f32 %v5863, 0.0
        %v5918 = vmax.f32 %v5868, 0.0
        %v5919 = vmax.f32 %v5871, 0.0
        %v5920 = vmax.f32 %v5876, 0.0
        %v5921 = vmax.f32 %v5879, 0.0
        %v5922 = vmax.f32 %v5884, 0.0
        %v5923 = vmax.f32 %v5887, 0.0
        %v5924 = vmax.f32 %v5892, 0.0
        %v5925 = vmax.f32 %v5895, 0.0
        %v5926 = vmax.f32 %v5900, 0.0
        %v5927 = vmax.f32 %v5903, 0.0
        %v5928 = vmax.f32 %v5908, 0.0
        %v5929 = vmax.f32 %v5911, 0.0
        %v5930 = vpack.c.bf16 %v5915, %v5914
        %v5931 = vpack.c.bf16 %v5917, %v5916
        %v5932 = vpack.c.bf16 %v5919, %v5918
        %v5933 = vpack.c.bf16 %v5921, %v5920
        %v5934 = vpack.c.bf16 %v5923, %v5922
        %v5935 = vpack.c.bf16 %v5925, %v5924
        %v5936 = vpack.c.bf16 %v5927, %v5926
        %v5937 = vpack.c.bf16 %v5929, %v5928
        %s5938 = scalar_lea.vmem %s5, 48
        %v5939 = vld [vmem:[%s5938] sm:$0xf]
        %v5940 = vld [vmem:[%s5938 + $0x4] sm:$0xf]
        %v5941 = vld [vmem:[%s5938 + $0x8] sm:$0xf]
        %v5942 = vld [vmem:[%s5938 + $0xc] sm:$0xf]
        %v5943 = vld [vmem:[#allocation6 + $0xf] sm:$0x1]
        %v5944 = vlaneseq
        %v5945 = vshrl.u32 %v5944, 7
        %v5946 = vsub.s32 0, %v5945
        %v5947 = vrot.slane %v5943, %v5946
        %v5952 = vunpack.c.l.b16 %v5939
        %v5953 = vunpack.c.l.b16 %v5940
        %v5954 = vunpack.c.l.b16 %v5941
        %v5955 = vunpack.c.l.b16 %v5942
        %v5956 = vpack.c.b16 %v5953, %v5952
        %v5957 = vpack.c.b16 %v5955, %v5954
        %v5961 = vsel %vm480, %v5930, 0
        %v5964 = vsel %vm480, %v5931, 0
        %v5967 = vsel %vm480, %v5932, 0
        %v5970 = vsel %vm480, %v5933, 0
        %v5973 = vsel %vm480, %v5934, 0
        %v5976 = vsel %vm480, %v5935, 0
        %v5979 = vsel %vm480, %v5936, 0
        %v5982 = vsel %vm480, %v5937, 0
        %5984 = vmatprep.subr.bf16.mxu0 0
        %5985 = vmatpush1.bf16.msra.mxu0 0
        %5986 = vmatprep.subr.bf16.mxu0 0
        %5987 = vmatpush1.bf16.msra.mxu0 0
        %5988 = vmatprep.subr.bf16.mxu0 0
        %5989 = vmatpush1.bf16.msra.mxu0 0
        %5990 = vmatprep.subr.bf16.mxu0 0
        %5991 = vmatpush1.bf16.msra.mxu0 0
        %5992 = vmatprep.subr.bf16.mxu0 0
        %5993 = vmatpush1.bf16.msra.mxu0 0
        %5994 = vmatprep.subr.bf16.mxu0 0
        %5995 = vmatpush1.bf16.msra.mxu0 0
        %5996 = vmatprep.subr.bf16.mxu0 0
        %5997 = vmatpush1.bf16.msra.mxu0 %v5957
        %5998 = vmatprep.subr.bf16.mxu0 0
        %5999 = vmatpush1.bf16.msra.mxu0 %v5956
        %6000 = vmatprep.subr.bf16.mxu0 0
        %6001 = vmatpush2.bf16.msra.mxu0 0
        %6002 = vmatprep.subr.bf16.mxu0 0
        %6003 = vmatpush2.bf16.msra.mxu0 0
        %6004 = vmatprep.subr.bf16.mxu0 0
        %6005 = vmatpush2.bf16.msra.mxu0 0
        %6006 = vmatprep.subr.bf16.mxu0 0
        %6007 = vmatpush2.bf16.msra.mxu0 0
        %6008 = vmatprep.subr.bf16.mxu0 0
        %6009 = vmatpush2.bf16.msra.mxu0 0
        %6010 = vmatprep.subr.bf16.mxu0 0
        %6011 = vmatpush2.bf16.msra.mxu0 0
        %6012 = vmatprep.subr.bf16.mxu0 0
        %6013 = vmatpush2.bf16.msra.mxu0 0
        %6014 = vmatprep.subr.bf16.mxu0 0
        %6015 = vmatpush2.bf16.msra.mxu0 0
        %6016 = vmatprep.mubr.bf16.mxu0 0
        %6017 = vmatmul.mubr.bf16.gmra.mxu0 %v5961
        %v6018 = vpop.f32.mrf.mxu0
        %v6019 = vadd.f32 %v5947, %v6018
        %v6020 = vpop.f32.mrf.mxu0
        %v6021 = vpop.f32.mrf.mxu0
        %v6022 = vadd.f32 %v5947, %v6021
        %v6023 = vpop.f32.mrf.mxu0
        %6024 = vmatprep.mubr.bf16.mxu0 0
        %6025 = vmatmul.mubr.bf16.gmra.mxu0 %v5964
        %v6026 = vpop.f32.mrf.mxu0
        %v6027 = vadd.f32 %v5947, %v6026
        %v6028 = vpop.f32.mrf.mxu0
        %v6029 = vpop.f32.mrf.mxu0
        %v6030 = vadd.f32 %v5947, %v6029
        %v6031 = vpop.f32.mrf.mxu0
        %6032 = vmatprep.mubr.bf16.mxu0 0
        %6033 = vmatmul.mubr.bf16.gmra.mxu0 %v5967
        %v6034 = vpop.f32.mrf.mxu0
        %v6035 = vadd.f32 %v5947, %v6034
        %v6036 = vpop.f32.mrf.mxu0
        %v6037 = vpop.f32.mrf.mxu0
        %v6038 = vadd.f32 %v5947, %v6037
        %v6039 = vpop.f32.mrf.mxu0
        %6040 = vmatprep.mubr.bf16.mxu0 0
        %6041 = vmatmul.mubr.bf16.gmra.mxu0 %v5970
        %v6042 = vpop.f32.mrf.mxu0
        %v6043 = vadd.f32 %v5947, %v6042
        %v6044 = vpop.f32.mrf.mxu0
        %v6045 = vpop.f32.mrf.mxu0
        %v6046 = vadd.f32 %v5947, %v6045
        %v6047 = vpop.f32.mrf.mxu0
        %6048 = vmatprep.mubr.bf16.mxu0 0
        %6049 = vmatmul.mubr.bf16.gmra.mxu0 %v5973
        %v6050 = vpop.f32.mrf.mxu0
        %v6051 = vadd.f32 %v5947, %v6050
        %v6052 = vpop.f32.mrf.mxu0
        %v6053 = vpop.f32.mrf.mxu0
        %v6054 = vadd.f32 %v5947, %v6053
        %v6055 = vpop.f32.mrf.mxu0
        %6056 = vmatprep.mubr.bf16.mxu0 0
        %6057 = vmatmul.mubr.bf16.gmra.mxu0 %v5976
        %v6058 = vpop.f32.mrf.mxu0
        %v6059 = vadd.f32 %v5947, %v6058
        %v6060 = vpop.f32.mrf.mxu0
        %v6061 = vpop.f32.mrf.mxu0
        %v6062 = vadd.f32 %v5947, %v6061
        %v6063 = vpop.f32.mrf.mxu0
        %6064 = vmatprep.mubr.bf16.mxu0 0
        %6065 = vmatmul.mubr.bf16.gmra.mxu0 %v5979
        %v6066 = vpop.f32.mrf.mxu0
        %v6067 = vadd.f32 %v5947, %v6066
        %v6068 = vpop.f32.mrf.mxu0
        %v6069 = vpop.f32.mrf.mxu0
        %v6070 = vadd.f32 %v5947, %v6069
        %v6071 = vpop.f32.mrf.mxu0
        %6072 = vmatprep.mubr.bf16.mxu0 0
        %6073 = vmatmul.mubr.bf16.gmra.mxu0 %v5982
        %v6074 = vpop.f32.mrf.mxu0
        %v6075 = vadd.f32 %v5947, %v6074
        %v6076 = vpop.f32.mrf.mxu0
        %v6077 = vpop.f32.mrf.mxu0
        %v6078 = vadd.f32 %v5947, %v6077
        %v6079 = vpop.f32.mrf.mxu0
        %6080 = vdwg.mxu0
        %v6081 = vmax.f32 %v6019, 0.0
        %v6082 = vmax.f32 %v6022, 0.0
        %v6083 = vmax.f32 %v6027, 0.0
        %v6084 = vmax.f32 %v6030, 0.0
        %v6085 = vmax.f32 %v6035, 0.0
        %v6086 = vmax.f32 %v6038, 0.0
        %v6087 = vmax.f32 %v6043, 0.0
        %v6088 = vmax.f32 %v6046, 0.0
        %v6089 = vmax.f32 %v6051, 0.0
        %v6090 = vmax.f32 %v6054, 0.0
        %v6091 = vmax.f32 %v6059, 0.0
        %v6092 = vmax.f32 %v6062, 0.0
        %v6093 = vmax.f32 %v6067, 0.0
        %v6094 = vmax.f32 %v6070, 0.0
        %v6095 = vmax.f32 %v6075, 0.0
        %v6096 = vmax.f32 %v6078, 0.0
        %v6097 = vpack.c.bf16 %v6082, %v6081
        %v6098 = vpack.c.bf16 %v6084, %v6083
        %v6099 = vpack.c.bf16 %v6086, %v6085
        %v6100 = vpack.c.bf16 %v6088, %v6087
        %v6101 = vpack.c.bf16 %v6090, %v6089
        %v6102 = vpack.c.bf16 %v6092, %v6091
        %v6103 = vpack.c.bf16 %v6094, %v6093
        %v6104 = vpack.c.bf16 %v6096, %v6095
        %s6105 = scalar_lea.vmem [#allocation7], 16
        %v6106 = vld [vmem:[%s6105] sm:$0xf]
        %v6107 = vld [vmem:[%s6105 + $0x4] sm:$0xf]
        %v6108 = vld [vmem:[%s6105 + $0x8] sm:$0xf]
        %v6109 = vld [vmem:[%s6105 + $0xc] sm:$0xf]
        %v6110 = vld [vmem:[%s7 + $0x1] sm:$0x1]
        %v6111 = vlaneseq
        %v6112 = vshrl.u32 %v6111, 7
        %v6113 = vsub.s32 0, %v6112
        %v6114 = vrot.slane %v6110, %v6113
        %v6119 = vunpack.c.l.b16 %v6106
        %v6120 = vunpack.c.l.b16 %v6107
        %v6121 = vunpack.c.l.b16 %v6108
        %v6122 = vunpack.c.l.b16 %v6109
        %v6123 = vpack.c.b16 %v6120, %v6119
        %v6124 = vpack.c.b16 %v6122, %v6121
        %v6128 = vsel %vm480, %v6097, 0
        %v6131 = vsel %vm480, %v6098, 0
        %v6134 = vsel %vm480, %v6099, 0
        %v6137 = vsel %vm480, %v6100, 0
        %v6140 = vsel %vm480, %v6101, 0
        %v6143 = vsel %vm480, %v6102, 0
        %v6146 = vsel %vm480, %v6103, 0
        %v6149 = vsel %vm480, %v6104, 0
        %6151 = vmatprep.subr.bf16.mxu0 0
        %6152 = vmatpush1.bf16.msra.mxu0 0
        %6153 = vmatprep.subr.bf16.mxu0 0
        %6154 = vmatpush1.bf16.msra.mxu0 0
        %6155 = vmatprep.subr.bf16.mxu0 0
        %6156 = vmatpush1.bf16.msra.mxu0 0
        %6157 = vmatprep.subr.bf16.mxu0 0
        %6158 = vmatpush1.bf16.msra.mxu0 0
        %6159 = vmatprep.subr.bf16.mxu0 0
        %6160 = vmatpush1.bf16.msra.mxu0 0
        %6161 = vmatprep.subr.bf16.mxu0 0
        %6162 = vmatpush1.bf16.msra.mxu0 0
        %6163 = vmatprep.subr.bf16.mxu0 0
        %6164 = vmatpush1.bf16.msra.mxu0 %v6124
        %6165 = vmatprep.subr.bf16.mxu0 0
        %6166 = vmatpush1.bf16.msra.mxu0 %v6123
        %6167 = vmatprep.subr.bf16.mxu0 0
        %6168 = vmatpush2.bf16.msra.mxu0 0
        %6169 = vmatprep.subr.bf16.mxu0 0
        %6170 = vmatpush2.bf16.msra.mxu0 0
        %6171 = vmatprep.subr.bf16.mxu0 0
        %6172 = vmatpush2.bf16.msra.mxu0 0
        %6173 = vmatprep.subr.bf16.mxu0 0
        %6174 = vmatpush2.bf16.msra.mxu0 0
        %6175 = vmatprep.subr.bf16.mxu0 0
        %6176 = vmatpush2.bf16.msra.mxu0 0
        %6177 = vmatprep.subr.bf16.mxu0 0
        %6178 = vmatpush2.bf16.msra.mxu0 0
        %6179 = vmatprep.subr.bf16.mxu0 0
        %6180 = vmatpush2.bf16.msra.mxu0 0
        %6181 = vmatprep.subr.bf16.mxu0 0
        %6182 = vmatpush2.bf16.msra.mxu0 0
        %6183 = vmatprep.mubr.bf16.mxu0 0
        %6184 = vmatmul.mubr.bf16.gmra.mxu0 %v6128
        %v6185 = vpop.f32.mrf.mxu0
        %v6186 = vadd.f32 %v6114, %v6185
        %v6187 = vpop.f32.mrf.mxu0
        %v6188 = vpop.f32.mrf.mxu0
        %v6189 = vadd.f32 %v6114, %v6188
        %v6190 = vpop.f32.mrf.mxu0
        %6191 = vmatprep.mubr.bf16.mxu0 0
        %6192 = vmatmul.mubr.bf16.gmra.mxu0 %v6131
        %v6193 = vpop.f32.mrf.mxu0
        %v6194 = vadd.f32 %v6114, %v6193
        %v6195 = vpop.f32.mrf.mxu0
        %v6196 = vpop.f32.mrf.mxu0
        %v6197 = vadd.f32 %v6114, %v6196
        %v6198 = vpop.f32.mrf.mxu0
        %6199 = vmatprep.mubr.bf16.mxu0 0
        %6200 = vmatmul.mubr.bf16.gmra.mxu0 %v6134
        %v6201 = vpop.f32.mrf.mxu0
        %v6202 = vadd.f32 %v6114, %v6201
        %v6203 = vpop.f32.mrf.mxu0
        %v6204 = vpop.f32.mrf.mxu0
        %v6205 = vadd.f32 %v6114, %v6204
        %v6206 = vpop.f32.mrf.mxu0
        %6207 = vmatprep.mubr.bf16.mxu0 0
        %6208 = vmatmul.mubr.bf16.gmra.mxu0 %v6137
        %v6209 = vpop.f32.mrf.mxu0
        %v6210 = vadd.f32 %v6114, %v6209
        %v6211 = vpop.f32.mrf.mxu0
        %v6212 = vpop.f32.mrf.mxu0
        %v6213 = vadd.f32 %v6114, %v6212
        %v6214 = vpop.f32.mrf.mxu0
        %6215 = vmatprep.mubr.bf16.mxu0 0
        %6216 = vmatmul.mubr.bf16.gmra.mxu0 %v6140
        %v6217 = vpop.f32.mrf.mxu0
        %v6218 = vadd.f32 %v6114, %v6217
        %v6219 = vpop.f32.mrf.mxu0
        %v6220 = vpop.f32.mrf.mxu0
        %v6221 = vadd.f32 %v6114, %v6220
        %v6222 = vpop.f32.mrf.mxu0
        %6223 = vmatprep.mubr.bf16.mxu0 0
        %6224 = vmatmul.mubr.bf16.gmra.mxu0 %v6143
        %v6225 = vpop.f32.mrf.mxu0
        %v6226 = vadd.f32 %v6114, %v6225
        %v6227 = vpop.f32.mrf.mxu0
        %v6228 = vpop.f32.mrf.mxu0
        %v6229 = vadd.f32 %v6114, %v6228
        %v6230 = vpop.f32.mrf.mxu0
        %6231 = vmatprep.mubr.bf16.mxu0 0
        %6232 = vmatmul.mubr.bf16.gmra.mxu0 %v6146
        %v6233 = vpop.f32.mrf.mxu0
        %v6234 = vadd.f32 %v6114, %v6233
        %v6235 = vpop.f32.mrf.mxu0
        %v6236 = vpop.f32.mrf.mxu0
        %v6237 = vadd.f32 %v6114, %v6236
        %v6238 = vpop.f32.mrf.mxu0
        %6239 = vmatprep.mubr.bf16.mxu0 0
        %6240 = vmatmul.mubr.bf16.gmra.mxu0 %v6149
        %v6241 = vpop.f32.mrf.mxu0
        %v6242 = vadd.f32 %v6114, %v6241
        %v6243 = vpop.f32.mrf.mxu0
        %v6244 = vpop.f32.mrf.mxu0
        %v6245 = vadd.f32 %v6114, %v6244
        %v6246 = vpop.f32.mrf.mxu0
        %6247 = vdwg.mxu0
        %v6248 = vlaneseq
        %v6249 = vshrl.u32 %v6248, 7
        %v6250 = vsub.s32 0, %v6249
        %v6251 = vrot.slane %v6186, %v6250
        %v6252 = vlaneseq
        %v6253 = vshrl.u32 %v6252, 7
        %v6254 = vsub.s32 0, %v6253
        %v6255 = vrot.slane %v6189, %v6254
        %v6256 = vlaneseq
        %v6257 = vshrl.u32 %v6256, 7
        %v6258 = vsub.s32 0, %v6257
        %v6259 = vrot.slane %v6194, %v6258
        %v6260 = vlaneseq
        %v6261 = vshrl.u32 %v6260, 7
        %v6262 = vsub.s32 0, %v6261
        %v6263 = vrot.slane %v6197, %v6262
        %v6264 = vlaneseq
        %v6265 = vshrl.u32 %v6264, 7
        %v6266 = vsub.s32 0, %v6265
        %v6267 = vrot.slane %v6202, %v6266
        %v6268 = vlaneseq
        %v6269 = vshrl.u32 %v6268, 7
        %v6270 = vsub.s32 0, %v6269
        %v6271 = vrot.slane %v6205, %v6270
        %v6272 = vlaneseq
        %v6273 = vshrl.u32 %v6272, 7
        %v6274 = vsub.s32 0, %v6273
        %v6275 = vrot.slane %v6210, %v6274
        %v6276 = vlaneseq
        %v6277 = vshrl.u32 %v6276, 7
        %v6278 = vsub.s32 0, %v6277
        %v6279 = vrot.slane %v6213, %v6278
        %v6280 = vlaneseq
        %v6281 = vshrl.u32 %v6280, 7
        %v6282 = vsub.s32 0, %v6281
        %v6283 = vrot.slane %v6218, %v6282
        %v6284 = vlaneseq
        %v6285 = vshrl.u32 %v6284, 7
        %v6286 = vsub.s32 0, %v6285
        %v6287 = vrot.slane %v6221, %v6286
        %v6288 = vlaneseq
        %v6289 = vshrl.u32 %v6288, 7
        %v6290 = vsub.s32 0, %v6289
        %v6291 = vrot.slane %v6226, %v6290
        %v6292 = vlaneseq
        %v6293 = vshrl.u32 %v6292, 7
        %v6294 = vsub.s32 0, %v6293
        %v6295 = vrot.slane %v6229, %v6294
        %v6296 = vlaneseq
        %v6297 = vshrl.u32 %v6296, 7
        %v6298 = vsub.s32 0, %v6297
        %v6299 = vrot.slane %v6234, %v6298
        %v6300 = vlaneseq
        %v6301 = vshrl.u32 %v6300, 7
        %v6302 = vsub.s32 0, %v6301
        %v6303 = vrot.slane %v6237, %v6302
        %v6304 = vlaneseq
        %v6305 = vshrl.u32 %v6304, 7
        %v6306 = vsub.s32 0, %v6305
        %v6307 = vrot.slane %v6242, %v6306
        %v6308 = vlaneseq
        %v6309 = vshrl.u32 %v6308, 7
        %v6310 = vsub.s32 0, %v6309
        %v6311 = vrot.slane %v6245, %v6310
        %v6312 = vlaneseq
        %v6313 = vshrl.u32 %v6312, 7
        %v6314 = vsub.s32 0, %v6313
        %v6315 = vrot.slane %v5701, %v6314
        %v6316 = vlaneseq
        %v6317 = vshrl.u32 %v6316, 7
        %v6318 = vsub.s32 0, %v6317
        %v6319 = vrot.slane %v5704, %v6318
        %v6320 = vlaneseq
        %v6321 = vshrl.u32 %v6320, 7
        %v6322 = vsub.s32 0, %v6321
        %v6323 = vrot.slane %v5709, %v6322
        %v6324 = vlaneseq
        %v6325 = vshrl.u32 %v6324, 7
        %v6326 = vsub.s32 0, %v6325
        %v6327 = vrot.slane %v5712, %v6326
        %v6328 = vlaneseq
        %v6329 = vshrl.u32 %v6328, 7
        %v6330 = vsub.s32 0, %v6329
        %v6331 = vrot.slane %v5717, %v6330
        %v6332 = vlaneseq
        %v6333 = vshrl.u32 %v6332, 7
        %v6334 = vsub.s32 0, %v6333
        %v6335 = vrot.slane %v5720, %v6334
        %v6336 = vlaneseq
        %v6337 = vshrl.u32 %v6336, 7
        %v6338 = vsub.s32 0, %v6337
        %v6339 = vrot.slane %v5725, %v6338
        %v6340 = vlaneseq
        %v6341 = vshrl.u32 %v6340, 7
        %v6342 = vsub.s32 0, %v6341
        %v6343 = vrot.slane %v5728, %v6342
        %v6344 = vlaneseq
        %v6345 = vshrl.u32 %v6344, 7
        %v6346 = vsub.s32 0, %v6345
        %v6347 = vrot.slane %v5733, %v6346
        %v6348 = vlaneseq
        %v6349 = vshrl.u32 %v6348, 7
        %v6350 = vsub.s32 0, %v6349
        %v6351 = vrot.slane %v5736, %v6350
        %v6352 = vlaneseq
        %v6353 = vshrl.u32 %v6352, 7
        %v6354 = vsub.s32 0, %v6353
        %v6355 = vrot.slane %v5741, %v6354
        %v6356 = vlaneseq
        %v6357 = vshrl.u32 %v6356, 7
        %v6358 = vsub.s32 0, %v6357
        %v6359 = vrot.slane %v5744, %v6358
        %v6360 = vlaneseq
        %v6361 = vshrl.u32 %v6360, 7
        %v6362 = vsub.s32 0, %v6361
        %v6363 = vrot.slane %v5749, %v6362
        %v6364 = vlaneseq
        %v6365 = vshrl.u32 %v6364, 7
        %v6366 = vsub.s32 0, %v6365
        %v6367 = vrot.slane %v5752, %v6366
        %v6368 = vlaneseq
        %v6369 = vshrl.u32 %v6368, 7
        %v6370 = vsub.s32 0, %v6369
        %v6371 = vrot.slane %v5757, %v6370
        %v6372 = vlaneseq
        %v6373 = vshrl.u32 %v6372, 7
        %v6374 = vsub.s32 0, %v6373
        %v6375 = vrot.slane %v5760, %v6374
        %v6376 = vsub.f32 %v6186, %v6251
        %v6377 = vsub.f32 %v6189, %v6255
        %v6378 = vsub.f32 %v6194, %v6259
        %v6379 = vsub.f32 %v6197, %v6263
        %v6380 = vsub.f32 %v6202, %v6267
        %v6381 = vsub.f32 %v6205, %v6271
        %v6382 = vsub.f32 %v6210, %v6275
        %v6383 = vsub.f32 %v6213, %v6279
        %v6384 = vsub.f32 %v6218, %v6283
        %v6385 = vsub.f32 %v6221, %v6287
        %v6386 = vsub.f32 %v6226, %v6291
        %v6387 = vsub.f32 %v6229, %v6295
        %v6388 = vsub.f32 %v6234, %v6299
        %v6389 = vsub.f32 %v6237, %v6303
        %v6390 = vsub.f32 %v6242, %v6307
        %v6391 = vsub.f32 %v6245, %v6311
        %v6392 = vsub.f32 %v5701, %v6315
        %v6393 = vsub.f32 %v5704, %v6319
        %v6394 = vsub.f32 %v5709, %v6323
        %v6395 = vsub.f32 %v5712, %v6327
        %v6396 = vsub.f32 %v5717, %v6331
        %v6397 = vsub.f32 %v5720, %v6335
        %v6398 = vsub.f32 %v5725, %v6339
        %v6399 = vsub.f32 %v5728, %v6343
        %v6400 = vsub.f32 %v5733, %v6347
        %v6401 = vsub.f32 %v5736, %v6351
        %v6402 = vsub.f32 %v5741, %v6355
        %v6403 = vsub.f32 %v5744, %v6359
        %v6404 = vsub.f32 %v5749, %v6363
        %v6405 = vsub.f32 %v5752, %v6367
        %v6406 = vsub.f32 %v5757, %v6371
        %v6407 = vsub.f32 %v5760, %v6375
        %6408 = vst [vmem:[%s405] sm:$0xff] %v6376
        %6409 = vst [vmem:[%s405 + $0x8] sm:$0xff] %v6377
        %6410 = vst [vmem:[%s405 + $0x10] sm:$0xff] %v6378
        %6411 = vst [vmem:[%s405 + $0x18] sm:$0xff] %v6379
        %6412 = vst [vmem:[%s405 + $0x20] sm:$0xff] %v6380
        %6413 = vst [vmem:[%s405 + $0x28] sm:$0xff] %v6381
        %6414 = vst [vmem:[%s405 + $0x30] sm:$0xff] %v6382
        %6415 = vst [vmem:[%s405 + $0x38] sm:$0xff] %v6383
        %6416 = vst [vmem:[%s405 + $0x40] sm:$0xff] %v6384
        %6417 = vst [vmem:[%s405 + $0x48] sm:$0xff] %v6385
        %6418 = vst [vmem:[%s405 + $0x50] sm:$0xff] %v6386
        %6419 = vst [vmem:[%s405 + $0x58] sm:$0xff] %v6387
        %6420 = vst [vmem:[%s405 + $0x60] sm:$0xff] %v6388
        %6421 = vst [vmem:[%s405 + $0x68] sm:$0xff] %v6389
        %6422 = vst [vmem:[%s405 + $0x70] sm:$0xff] %v6390
        %6423 = vst [vmem:[%s405 + $0x78] sm:$0xff] %v6391
        %6424 = vst [vmem:[%s405 + $0x80] sm:$0xff] %v6392
        %6425 = vst [vmem:[%s405 + $0x88] sm:$0xff] %v6393
        %6426 = vst [vmem:[%s405 + $0x90] sm:$0xff] %v6394
        %6427 = vst [vmem:[%s405 + $0x98] sm:$0xff] %v6395
        %6428 = vst [vmem:[%s405 + $0xa0] sm:$0xff] %v6396
        %6429 = vst [vmem:[%s405 + $0xa8] sm:$0xff] %v6397
        %6430 = vst [vmem:[%s405 + $0xb0] sm:$0xff] %v6398
        %6431 = vst [vmem:[%s405 + $0xb8] sm:$0xff] %v6399
        %6432 = vst [vmem:[%s405 + $0xc0] sm:$0xff] %v6400
        %6433 = vst [vmem:[%s405 + $0xc8] sm:$0xff] %v6401
        %6434 = vst [vmem:[%s405 + $0xd0] sm:$0xff] %v6402
        %6435 = vst [vmem:[%s405 + $0xd8] sm:$0xff] %v6403
        %6436 = vst [vmem:[%s405 + $0xe0] sm:$0xff] %v6404
        %6437 = vst [vmem:[%s405 + $0xe8] sm:$0xff] %v6405
        %6438 = vst [vmem:[%s405 + $0xf0] sm:$0xff] %v6406
        %6439 = vst [vmem:[%s405 + $0xf8] sm:$0xff] %v6407
        %p6440 = scmp.lt.s32.totalorder %s23, 1
        %s6441 = scalar_select %p6440, %s23, 1
        %s6442 = smul.addr %s6441, 32
        %s6443 = smul.addr %s6442, 8
        %s6444 = scalar_lea.vmem %s9, %s6443
        // Predicated region
        $region77: #{fwd.1} parent=55 // pred_check
          %p6445 = pneg %p235
        $region78: #{fwd.1} parent=55 // pred_check_branch
          %6447 = sbr.rel (%p6445) target = $region80
        $region79: #{fwd.1} parent=55 // pred_region
          _
        $region80: #{fwd.1} parent=55 // pred_fallthru
          _
      $region56: #{fwd.1} parent=5 // pred_fallthru
        _
      %p6448 = scmp.le.s32.totalorder 2, %s18
      // Predicated region
      $region81: #{fwd.1} parent=5 // pred_check
        %p6449 = pneg %p6448
      $region82: #{fwd.1} parent=5 // pred_check_branch
        %6451 = sbr.rel (%p6449) target = $region84
      $region83: #{fwd.1} parent=5 // pred_region
        %s6452 = ssub.s32 %s18, 2
        // Predicated region
        $region85: #{fwd.1} parent=83 // pred_check
          %p6453 = pneg %p241
        $region86: #{fwd.1} parent=83 // pred_check_branch
          %6455 = sbr.rel (%p6453) target = $region88
        $region87: #{fwd.1} parent=83 // pred_region
          %p6456 = scmp.lt.s32.totalorder %s24, 1
          %s6457 = scalar_select %p6456, %s24, 1
          %s6458 = smul.addr %s6457, 32
          %s6459 = smul.addr %s6458, 8
          %s6460 = scalar_lea.vmem %s9, %s6459
        $region88: #{fwd.1} parent=83 // pred_fallthru
          _
      $region84: #{fwd.1} parent=5 // pred_fallthru
        _
    $region6: #{fwd.1} parent=1 // loop_footer
      %s22 = sadd.s32 1, %s18
    $region7: #{fwd.1} parent=1 // loop_footer_branch
      %17 = sbr.rel target = $region3
    $region8: #{fwd.1} parent=1 // loop_exit
      _
    %6461 = vsyncpa [#allocation3], 1
    %s6462 = scalar_lea.sflag [#allocation3], 1
    %6463 = vsyncpa %s6462, 1
    %6464 = vsyncpa [#allocation5], 1
    %6465 = vsyncpa [#allocation8], 1

</llo_original>
